<compile_context>
chip_gen: v7x
topology: tpu7x:2x2x1
jax: 0.10.0
libtpu: 0.0.40
codegen_flags: <defaults>
</compile_context>

<pallas_src>
import jax
import jax.numpy as jnp
from jax import lax
from jax.experimental import pallas as pl
from jax.experimental.pallas import tpu as pltpu

LANE = 128


def _resblock_kernel(xpad_ref, w1_ref, b1_ref, w2_ref, b2_ref, out_ref, mid_ref):
    # xpad_ref: (NB, H+2, W+2, Cp) bf16  spatially padded, channel-padded input
    # w1_ref/w2_ref: (9, Cp, Cp) bf16    3x3 taps (BN scale pre-folded), tap-major
    # b1_ref/b2_ref: (1, Cp) f32         folded BN bias (zero on padded channels)
    # out_ref: (NB, H, W, Cp) f32
    # mid_ref: VMEM scratch (NB, H+2, W+2, Cp) bf16 holding padded relu1 output
    NB, H, W, Cp = out_ref.shape
    M = NB * H * W

    xpad = xpad_ref[...]                                  # (NB, H+2, W+2, Cp) bf16

    taps = [(dy, dx) for dy in range(3) for dx in range(3)]

    def conv3x3(padded, w_ref):
        # Unrolled accumulation of nine (M, Cp) @ (Cp, Cp) MXU dots; no im2col
        # temporary (keeps the VMEM live-set ~9x smaller than the concat form).
        acc = jnp.zeros((M, Cp), jnp.float32)
        for t, (dy, dx) in enumerate(taps):
            patch = padded[:, dy:dy + H, dx:dx + W, :].reshape(M, Cp)
            acc = acc + jnp.dot(patch, w_ref[t],
                                preferred_element_type=jnp.float32)
        return acc

    # ---- conv1 (BN1 scale folded into w1) + bias + ReLU, f32 epilogue ----
    y1 = jnp.maximum(conv3x3(xpad, w1_ref) + b1_ref[...], 0.0)      # (M, Cp)

    # ---- conv2 halo: sublane-aligned writes ----
    # Pad y1 with one zero column per side IN-REGISTER, then store full-width
    # rows (unmasked, aligned vst).  Only the top/bottom halo rows need an
    # explicit zero store.  Re-done every step because with the "parallel"
    # batch axis another TensorCore may never execute program_id 0.
    y1b = y1.astype(jnp.bfloat16).reshape(NB, H, W, Cp)
    zcol = jnp.zeros((NB, H, 1, Cp), jnp.bfloat16)
    zrow = jnp.zeros((NB, 1, W + 2, Cp), jnp.bfloat16)
    mid_ref[:, 0:1, :, :] = zrow
    mid_ref[:, H + 1:H + 2, :, :] = zrow
    mid_ref[:, 1:H + 1, :, :] = jnp.concatenate([zcol, y1b, zcol], axis=2)

    # ---- conv2 (BN2 scale folded into w2) + bias + residual + ReLU ----
    acc2 = conv3x3(mid_ref[...], w2_ref)
    identity = xpad[:, 1:H + 1, 1:W + 1, :].reshape(M, Cp).astype(jnp.float32)
    out = jnp.maximum(acc2 + b2_ref[...] + identity, 0.0)
    out_ref[...] = out.reshape(NB, H, W, Cp).astype(out_ref.dtype)


def _default_vmem_limit_bytes():
    # Generation-aware budget: ~3/4 of physical VMEM (v5e/v6e 128 MiB -> 96 MiB,
    # v7x 64 MiB -> 48 MiB), capped to always leave double-buffer headroom.
    cap = 64 << 20
    try:
        info = pltpu.get_tpu_info()
        cap = getattr(info, "vmem_capacity_bytes", None) or cap
    except Exception:
        pass
    return int(min(cap * 3 // 4, 100 << 20))


def _pick_batch_block(N, H, W, Cp):
    # Largest divisor of N that (a) keeps the bf16 input block around <=4 MiB
    # and (b) leaves at least 2 grid steps (DMA/compute overlap + v7x megacore).
    per_image = (H + 2) * (W + 2) * Cp * 2                 # bf16 bytes
    target = max(1, (4 << 20) // max(per_image, 1))
    if N >= 2:
        target = min(target, N // 2)
    nb = 1
    for d in range(1, N + 1):
        if N % d == 0 and d <= target:
            nb = d
    return nb


def resblock_pallas(x_nhwc, w1_hwio, bn1, w2_hwio, bn2, eps=1e-5,
                    batch_block=None):
    """x_nhwc: (N,H,W,C) f32.  w*_hwio: (3,3,C,C).  bn*: (gamma,beta,mean,var)."""
    N, H, W, C = x_nhwc.shape
    Cp = ((C + LANE - 1) // LANE) * LANE          # lane-dense channel count
    NB = _pick_batch_block(N, H, W, Cp) if batch_block is None else batch_block
    assert N % NB == 0, "batch_block must divide N"

    # Fold BN (eval mode) into per-channel scale / bias, zero-padded to Cp.
    def fold(bn):
        g, b, m, v = bn
        s = (g / jnp.sqrt(v + eps)).astype(jnp.float32)
        bias = (b - m * s).astype(jnp.float32)
        s = jnp.pad(s, (0, Cp - C))               # zero scale on padded channels
        bias = jnp.pad(bias, (0, Cp - C)).reshape(1, Cp)
        return s, bias

    s1, b1 = fold(bn1)
    s2, b2 = fold(bn2)

    # Single fused wrapper pad: channel pad to Cp (lane-dense) + 1px spatial
    # halo + bf16 cast -> one lane-dense HBM copy the kernel reads.
    xpad = jnp.pad(x_nhwc.astype(jnp.float32),
                   ((0, 0), (1, 1), (1, 1), (0, Cp - C))).astype(jnp.bfloat16)

    # Pad weights, fold the BN scale into the output channels (padded output
    # channels keep exactly-zero scale), reshape tap-major, cast to bf16.
    def prep_w(w_hwio, scale):
        w = jnp.pad(w_hwio.astype(jnp.float32),
                    ((0, 0), (0, 0), (0, Cp - C), (0, Cp - C)))   # (3,3,Cp,Cp)
        w = w * scale.reshape(1, 1, 1, Cp)
        return w.reshape(9, Cp, Cp).astype(jnp.bfloat16)

    w1 = prep_w(w1_hwio, s1)
    w2 = prep_w(w2_hwio, s2)

    out_padded = pl.pallas_call(
        _resblock_kernel,
        out_shape=jax.ShapeDtypeStruct((N, H, W, Cp), jnp.float32),
        grid_spec=pltpu.PrefetchScalarGridSpec(
            num_scalar_prefetch=0,
            grid=(N // NB,),
            in_specs=[
                pl.BlockSpec((NB, H + 2, W + 2, Cp), lambda n: (n, 0, 0, 0)),
                # Grid-invariant operands: constant index_map -> the compiler
                # keeps the resident block instead of re-issuing DMA per step.
                pl.BlockSpec((9, Cp, Cp), lambda n: (0, 0, 0)),
                pl.BlockSpec((1, Cp), lambda n: (0, 0)),
                pl.BlockSpec((9, Cp, Cp), lambda n: (0, 0, 0)),
                pl.BlockSpec((1, Cp), lambda n: (0, 0)),
            ],
            out_specs=pl.BlockSpec((NB, H, W, Cp), lambda n: (n, 0, 0, 0)),
            scratch_shapes=[pltpu.VMEM((NB, H + 2, W + 2, Cp), jnp.bfloat16)],
        ),
        compiler_params=pltpu.CompilerParams(
            dimension_semantics=("parallel",),     # v7x: shard batch on 2 TCs
            vmem_limit_bytes=_default_vmem_limit_bytes()),
    )(xpad, w1, b1, w2, b2)

    return out_padded[..., :C]


def resblock_ref(x_nhwc, w1_hwio, bn1, w2_hwio, bn2, eps=1e-5):
    """Pure-JAX f32 reference mirroring the PyTorch forward (eval-mode BN)."""
    dn = ('NHWC', 'HWIO', 'NHWC')

    def bn_apply(y, bn):
        g, b, m, v = bn
        return (y - m) / jnp.sqrt(v + eps) * g + b

    out = lax.conv_general_dilated(x_nhwc, w1_hwio, (1, 1), 'SAME',
                                   dimension_numbers=dn)
    out = jax.nn.relu(bn_apply(out, bn1))
    out = lax.conv_general_dilated(out, w2_hwio, (1, 1), 'SAME',
                                   dimension_numbers=dn)
    out = bn_apply(out, bn2)
    out = jax.nn.relu(out + x_nhwc)
    return out


if __name__ == "__main__":
    # Small shapes: batch=2, inplanes=planes=8, spatial=16x16, stride=1,
    # downsample=None (identity path is the raw input).
    N, C, H, W = 2, 8, 16, 16
    key = jax.random.PRNGKey(0)
    ks = jax.random.split(key, 9)

    x_nchw = jax.random.normal(ks[0], (N, C, H, W), jnp.float32)
    x_nhwc = jnp.transpose(x_nchw, (0, 2, 3, 1))

    # Deterministic synthetic parameters (shapes match nn.Conv2d / BatchNorm2d).
    w1_hwio = 0.1 * jax.random.normal(ks[1], (3, 3, C, C), jnp.float32)
    w2_hwio = 0.1 * jax.random.normal(ks[2], (3, 3, C, C), jnp.float32)
    bn1 = (1.0 + 0.1 * jax.random.normal(ks[3], (C,), jnp.float32),   # gamma
           0.1 * jax.random.normal(ks[4], (C,), jnp.float32),         # beta
           0.1 * jax.random.normal(ks[5], (C,), jnp.float32),         # running_mean
           1.0 + 0.1 * jnp.abs(jax.random.normal(ks[6], (C,), jnp.float32)))  # var
    bn2 = (1.0 + 0.1 * jax.random.normal(ks[7], (C,), jnp.float32),
           0.1 * jax.random.normal(ks[8], (C,), jnp.float32),
           jnp.zeros((C,), jnp.float32),
           jnp.ones((C,), jnp.float32))

    out = resblock_pallas(x_nhwc, w1_hwio, bn1, w2_hwio, bn2)
    out = jax.block_until_ready(out)

    ref = resblock_ref(x_nhwc, w1_hwio, bn1, w2_hwio, bn2)
    assert out.shape == (N, H, W, C)
    # bf16 MXU operands -> looser tolerance than the old all-f32 version.
    assert jnp.allclose(out, ref, atol=5e-2, rtol=5e-2), "mismatch vs JAX reference"

    # back to PyTorch's NCHW convention if needed downstream
    _ = jnp.transpose(out, (0, 3, 1, 2))

    print("KERNEL_OK")
</pallas_src>

<mosaic_0001>
module attributes {stable_mosaic.version = 11 : i64} {
  func.func @_resblock_kernel(%arg0: i32, %arg1: memref<1x18x18x128xbf16, #tpu.memory_space<vmem>>, %arg2: memref<9x128x128xbf16, #tpu.memory_space<vmem>>, %arg3: memref<1x128xf32, #tpu.memory_space<vmem>>, %arg4: memref<9x128x128xbf16, #tpu.memory_space<vmem>>, %arg5: memref<1x128xf32, #tpu.memory_space<vmem>>, %arg6: memref<1x16x16x128xf32, #tpu.memory_space<vmem>>, %arg7: memref<1x18x18x128xbf16, #tpu.memory_space<vmem>>) attributes {dimension_semantics = [#tpu.dimension_semantics<parallel>], iteration_bounds = array<i64: 2>, scalar_prefetch = 0 : i64, scratch_operands = 1 : i64, tpu.core_type = #tpu.core_type<tc>, window_params = [{transform_indices = @transform_0, window_bounds = array<i64: 1, 18, 18, 128>}, {pipeline_mode = #tpu.pipeline_mode<synchronous>, transform_indices = @transform_1, window_bounds = array<i64: 9, 128, 128>}, {pipeline_mode = #tpu.pipeline_mode<synchronous>, transform_indices = @transform_2, window_bounds = array<i64: 1, 128>}, {pipeline_mode = #tpu.pipeline_mode<synchronous>, transform_indices = @transform_3, window_bounds = array<i64: 9, 128, 128>}, {pipeline_mode = #tpu.pipeline_mode<synchronous>, transform_indices = @transform_4, window_bounds = array<i64: 1, 128>}, {transform_indices = @transform_5, window_bounds = array<i64: 1, 16, 16, 128>}]} {
    %c0 = arith.constant 0 : index
    %c0_0 = arith.constant 0 : index
    %c0_1 = arith.constant 0 : index
    %c0_2 = arith.constant 0 : index
    %0 = vector.load %arg1[%c0, %c0_0, %c0_1, %c0_2] : memref<1x18x18x128xbf16, #tpu.memory_space<vmem>>, vector<1x18x18x128xbf16>
    %cst = arith.constant 0.000000e+00 : f32
    %1 = vector.broadcast %cst : f32 to vector<256x128xf32>
    %2 = vector.extract_strided_slice %0 {offsets = [0, 0, 0, 0], sizes = [1, 16, 16, 128], strides = [1, 1, 1, 1]} : vector<1x18x18x128xbf16> to vector<1x16x16x128xbf16>
    %3 = vector.shape_cast %2 : vector<1x16x16x128xbf16> to vector<256x128xbf16>
    %c0_3 = arith.constant 0 : index
    %c0_4 = arith.constant 0 : index
    %c0_5 = arith.constant 0 : index
    %4 = vector.load %arg2[%c0_3, %c0_4, %c0_5] : memref<9x128x128xbf16, #tpu.memory_space<vmem>>, vector<1x128x128xbf16>
    %5 = vector.shape_cast %4 : vector<1x128x128xbf16> to vector<128x128xbf16>
    %cst_6 = arith.constant dense<0.000000e+00> : vector<256x128xf32>
    %6 = tpu.matmul %3, %5, %cst_6 {dimension_numbers = #tpu.dot_dimension_numbers<[1], [0], [0], [1], [0, 0, 1, 1], [], []>} : vector<256x128xbf16>, vector<128x128xbf16>, vector<256x128xf32> -> vector<256x128xf32>
    %7 = arith.addf %1, %6 : vector<256x128xf32>
    %8 = vector.extract_strided_slice %0 {offsets = [0, 0, 1, 0], sizes = [1, 16, 16, 128], strides = [1, 1, 1, 1]} : vector<1x18x18x128xbf16> to vector<1x16x16x128xbf16>
    %9 = vector.shape_cast %8 : vector<1x16x16x128xbf16> to vector<256x128xbf16>
    %c1 = arith.constant 1 : index
    %c0_7 = arith.constant 0 : index
    %c0_8 = arith.constant 0 : index
    %10 = vector.load %arg2[%c1, %c0_7, %c0_8] : memref<9x128x128xbf16, #tpu.memory_space<vmem>>, vector<1x128x128xbf16>
    %11 = vector.shape_cast %10 : vector<1x128x128xbf16> to vector<128x128xbf16>
    %cst_9 = arith.constant dense<0.000000e+00> : vector<256x128xf32>
    %12 = tpu.matmul %9, %11, %cst_9 {dimension_numbers = #tpu.dot_dimension_numbers<[1], [0], [0], [1], [0, 0, 1, 1], [], []>} : vector<256x128xbf16>, vector<128x128xbf16>, vector<256x128xf32> -> vector<256x128xf32>
    %13 = arith.addf %7, %12 : vector<256x128xf32>
    %14 = vector.extract_strided_slice %0 {offsets = [0, 0, 2, 0], sizes = [1, 16, 16, 128], strides = [1, 1, 1, 1]} : vector<1x18x18x128xbf16> to vector<1x16x16x128xbf16>
    %15 = vector.shape_cast %14 : vector<1x16x16x128xbf16> to vector<256x128xbf16>
    %c2 = arith.constant 2 : index
    %c0_10 = arith.constant 0 : index
    %c0_11 = arith.constant 0 : index
    %16 = vector.load %arg2[%c2, %c0_10, %c0_11] : memref<9x128x128xbf16, #tpu.memory_space<vmem>>, vector<1x128x128xbf16>
    %17 = vector.shape_cast %16 : vector<1x128x128xbf16> to vector<128x128xbf16>
    %cst_12 = arith.constant dense<0.000000e+00> : vector<256x128xf32>
    %18 = tpu.matmul %15, %17, %cst_12 {dimension_numbers = #tpu.dot_dimension_numbers<[1], [0], [0], [1], [0, 0, 1, 1], [], []>} : vector<256x128xbf16>, vector<128x128xbf16>, vector<256x128xf32> -> vector<256x128xf32>
    %19 = arith.addf %13, %18 : vector<256x128xf32>
    %20 = vector.extract_strided_slice %0 {offsets = [0, 1, 0, 0], sizes = [1, 16, 16, 128], strides = [1, 1, 1, 1]} : vector<1x18x18x128xbf16> to vector<1x16x16x128xbf16>
    %21 = vector.shape_cast %20 : vector<1x16x16x128xbf16> to vector<256x128xbf16>
    %c3 = arith.constant 3 : index
    %c0_13 = arith.constant 0 : index
    %c0_14 = arith.constant 0 : index
    %22 = vector.load %arg2[%c3, %c0_13, %c0_14] : memref<9x128x128xbf16, #tpu.memory_space<vmem>>, vector<1x128x128xbf16>
    %23 = vector.shape_cast %22 : vector<1x128x128xbf16> to vector<128x128xbf16>
    %cst_15 = arith.constant dense<0.000000e+00> : vector<256x128xf32>
    %24 = tpu.matmul %21, %23, %cst_15 {dimension_numbers = #tpu.dot_dimension_numbers<[1], [0], [0], [1], [0, 0, 1, 1], [], []>} : vector<256x128xbf16>, vector<128x128xbf16>, vector<256x128xf32> -> vector<256x128xf32>
    %25 = arith.addf %19, %24 : vector<256x128xf32>
    %26 = vector.extract_strided_slice %0 {offsets = [0, 1, 1, 0], sizes = [1, 16, 16, 128], strides = [1, 1, 1, 1]} : vector<1x18x18x128xbf16> to vector<1x16x16x128xbf16>
    %27 = vector.shape_cast %26 : vector<1x16x16x128xbf16> to vector<256x128xbf16>
    %c4 = arith.constant 4 : index
    %c0_16 = arith.constant 0 : index
    %c0_17 = arith.constant 0 : index
    %28 = vector.load %arg2[%c4, %c0_16, %c0_17] : memref<9x128x128xbf16, #tpu.memory_space<vmem>>, vector<1x128x128xbf16>
    %29 = vector.shape_cast %28 : vector<1x128x128xbf16> to vector<128x128xbf16>
    %cst_18 = arith.constant dense<0.000000e+00> : vector<256x128xf32>
    %30 = tpu.matmul %27, %29, %cst_18 {dimension_numbers = #tpu.dot_dimension_numbers<[1], [0], [0], [1], [0, 0, 1, 1], [], []>} : vector<256x128xbf16>, vector<128x128xbf16>, vector<256x128xf32> -> vector<256x128xf32>
    %31 = arith.addf %25, %30 : vector<256x128xf32>
    %32 = vector.extract_strided_slice %0 {offsets = [0, 1, 2, 0], sizes = [1, 16, 16, 128], strides = [1, 1, 1, 1]} : vector<1x18x18x128xbf16> to vector<1x16x16x128xbf16>
    %33 = vector.shape_cast %32 : vector<1x16x16x128xbf16> to vector<256x128xbf16>
    %c5 = arith.constant 5 : index
    %c0_19 = arith.constant 0 : index
    %c0_20 = arith.constant 0 : index
    %34 = vector.load %arg2[%c5, %c0_19, %c0_20] : memref<9x128x128xbf16, #tpu.memory_space<vmem>>, vector<1x128x128xbf16>
    %35 = vector.shape_cast %34 : vector<1x128x128xbf16> to vector<128x128xbf16>
    %cst_21 = arith.constant dense<0.000000e+00> : vector<256x128xf32>
    %36 = tpu.matmul %33, %35, %cst_21 {dimension_numbers = #tpu.dot_dimension_numbers<[1], [0], [0], [1], [0, 0, 1, 1], [], []>} : vector<256x128xbf16>, vector<128x128xbf16>, vector<256x128xf32> -> vector<256x128xf32>
    %37 = arith.addf %31, %36 : vector<256x128xf32>
    %38 = vector.extract_strided_slice %0 {offsets = [0, 2, 0, 0], sizes = [1, 16, 16, 128], strides = [1, 1, 1, 1]} : vector<1x18x18x128xbf16> to vector<1x16x16x128xbf16>
    %39 = vector.shape_cast %38 : vector<1x16x16x128xbf16> to vector<256x128xbf16>
    %c6 = arith.constant 6 : index
    %c0_22 = arith.constant 0 : index
    %c0_23 = arith.constant 0 : index
    %40 = vector.load %arg2[%c6, %c0_22, %c0_23] : memref<9x128x128xbf16, #tpu.memory_space<vmem>>, vector<1x128x128xbf16>
    %41 = vector.shape_cast %40 : vector<1x128x128xbf16> to vector<128x128xbf16>
    %cst_24 = arith.constant dense<0.000000e+00> : vector<256x128xf32>
    %42 = tpu.matmul %39, %41, %cst_24 {dimension_numbers = #tpu.dot_dimension_numbers<[1], [0], [0], [1], [0, 0, 1, 1], [], []>} : vector<256x128xbf16>, vector<128x128xbf16>, vector<256x128xf32> -> vector<256x128xf32>
    %43 = arith.addf %37, %42 : vector<256x128xf32>
    %44 = vector.extract_strided_slice %0 {offsets = [0, 2, 1, 0], sizes = [1, 16, 16, 128], strides = [1, 1, 1, 1]} : vector<1x18x18x128xbf16> to vector<1x16x16x128xbf16>
    %45 = vector.shape_cast %44 : vector<1x16x16x128xbf16> to vector<256x128xbf16>
    %c7 = arith.constant 7 : index
    %c0_25 = arith.constant 0 : index
    %c0_26 = arith.constant 0 : index
    %46 = vector.load %arg2[%c7, %c0_25, %c0_26] : memref<9x128x128xbf16, #tpu.memory_space<vmem>>, vector<1x128x128xbf16>
    %47 = vector.shape_cast %46 : vector<1x128x128xbf16> to vector<128x128xbf16>
    %cst_27 = arith.constant dense<0.000000e+00> : vector<256x128xf32>
    %48 = tpu.matmul %45, %47, %cst_27 {dimension_numbers = #tpu.dot_dimension_numbers<[1], [0], [0], [1], [0, 0, 1, 1], [], []>} : vector<256x128xbf16>, vector<128x128xbf16>, vector<256x128xf32> -> vector<256x128xf32>
    %49 = arith.addf %43, %48 : vector<256x128xf32>
    %50 = vector.extract_strided_slice %0 {offsets = [0, 2, 2, 0], sizes = [1, 16, 16, 128], strides = [1, 1, 1, 1]} : vector<1x18x18x128xbf16> to vector<1x16x16x128xbf16>
    %51 = vector.shape_cast %50 : vector<1x16x16x128xbf16> to vector<256x128xbf16>
    %c8 = arith.constant 8 : index
    %c0_28 = arith.constant 0 : index
    %c0_29 = arith.constant 0 : index
    %52 = vector.load %arg2[%c8, %c0_28, %c0_29] : memref<9x128x128xbf16, #tpu.memory_space<vmem>>, vector<1x128x128xbf16>
    %53 = vector.shape_cast %52 : vector<1x128x128xbf16> to vector<128x128xbf16>
    %cst_30 = arith.constant dense<0.000000e+00> : vector<256x128xf32>
    %54 = tpu.matmul %51, %53, %cst_30 {dimension_numbers = #tpu.dot_dimension_numbers<[1], [0], [0], [1], [0, 0, 1, 1], [], []>} : vector<256x128xbf16>, vector<128x128xbf16>, vector<256x128xf32> -> vector<256x128xf32>
    %55 = arith.addf %49, %54 : vector<256x128xf32>
    %c0_31 = arith.constant 0 : index
    %c0_32 = arith.constant 0 : index
    %56 = vector.load %arg3[%c0_31, %c0_32] : memref<1x128xf32, #tpu.memory_space<vmem>>, vector<1x128xf32>
    %57 = vector.broadcast %56 : vector<1x128xf32> to vector<256x128xf32>
    %58 = arith.addf %55, %57 : vector<256x128xf32>
    %cst_33 = arith.constant 0.000000e+00 : f32
    %59 = vector.broadcast %cst_33 : f32 to vector<256x128xf32>
    %60 = arith.maximumf %58, %59 : vector<256x128xf32>
    %61 = arith.truncf %60 : vector<256x128xf32> to vector<256x128xbf16>
    %62 = vector.shape_cast %61 : vector<256x128xbf16> to vector<1x16x16x128xbf16>
    %cst_34 = arith.constant 0.000000e+00 : bf16
    %63 = vector.broadcast %cst_34 : bf16 to vector<1x16x1x128xbf16>
    %cst_35 = arith.constant 0.000000e+00 : bf16
    %64 = vector.broadcast %cst_35 : bf16 to vector<1x1x18x128xbf16>
    %c0_36 = arith.constant 0 : index
    %c0_37 = arith.constant 0 : index
    %c0_38 = arith.constant 0 : index
    %c0_39 = arith.constant 0 : index
    %65 = vector.load %arg7[%c0_36, %c0_37, %c0_38, %c0_39] : memref<1x18x18x128xbf16, #tpu.memory_space<vmem>>, vector<1x1x18x128xbf16>
    tpu.vector_store %arg7[%c0_36, %c0_37, %c0_38, %c0_39], %64 {strides = array<i32>} : memref<1x18x18x128xbf16, #tpu.memory_space<vmem>>, vector<1x1x18x128xbf16>,
    %c0_40 = arith.constant 0 : index
    %c17 = arith.constant 17 : index
    %c0_41 = arith.constant 0 : index
    %c0_42 = arith.constant 0 : index
    %66 = vector.load %arg7[%c0_40, %c17, %c0_41, %c0_42] : memref<1x18x18x128xbf16, #tpu.memory_space<vmem>>, vector<1x1x18x128xbf16>
    tpu.vector_store %arg7[%c0_40, %c17, %c0_41, %c0_42], %64 {strides = array<i32>} : memref<1x18x18x128xbf16, #tpu.memory_space<vmem>>, vector<1x1x18x128xbf16>,
    %67 = tpu.concatenate %63, %62, %63 in 2 : vector<1x16x1x128xbf16>, vector<1x16x16x128xbf16>, vector<1x16x1x128xbf16> -> vector<1x16x18x128xbf16>
    %c0_43 = arith.constant 0 : index
    %c1_44 = arith.constant 1 : index
    %c0_45 = arith.constant 0 : index
    %c0_46 = arith.constant 0 : index
    %68 = vector.load %arg7[%c0_43, %c1_44, %c0_45, %c0_46] : memref<1x18x18x128xbf16, #tpu.memory_space<vmem>>, vector<1x16x18x128xbf16>
    tpu.vector_store %arg7[%c0_43, %c1_44, %c0_45, %c0_46], %67 {strides = array<i32>} : memref<1x18x18x128xbf16, #tpu.memory_space<vmem>>, vector<1x16x18x128xbf16>,
    %c0_47 = arith.constant 0 : index
    %c0_48 = arith.constant 0 : index
    %c0_49 = arith.constant 0 : index
    %c0_50 = arith.constant 0 : index
    %69 = vector.load %arg7[%c0_47, %c0_48, %c0_49, %c0_50] : memref<1x18x18x128xbf16, #tpu.memory_space<vmem>>, vector<1x18x18x128xbf16>
    %cst_51 = arith.constant 0.000000e+00 : f32
    %70 = vector.broadcast %cst_51 : f32 to vector<256x128xf32>
    %71 = vector.extract_strided_slice %69 {offsets = [0, 0, 0, 0], sizes = [1, 16, 16, 128], strides = [1, 1, 1, 1]} : vector<1x18x18x128xbf16> to vector<1x16x16x128xbf16>
    %72 = vector.shape_cast %71 : vector<1x16x16x128xbf16> to vector<256x128xbf16>
    %c0_52 = arith.constant 0 : index
    %c0_53 = arith.constant 0 : index
    %c0_54 = arith.constant 0 : index
    %73 = vector.load %arg4[%c0_52, %c0_53, %c0_54] : memref<9x128x128xbf16, #tpu.memory_space<vmem>>, vector<1x128x128xbf16>
    %74 = vector.shape_cast %73 : vector<1x128x128xbf16> to vector<128x128xbf16>
    %cst_55 = arith.constant dense<0.000000e+00> : vector<256x128xf32>
    %75 = tpu.matmul %72, %74, %cst_55 {dimension_numbers = #tpu.dot_dimension_numbers<[1], [0], [0], [1], [0, 0, 1, 1], [], []>} : vector<256x128xbf16>, vector<128x128xbf16>, vector<256x128xf32> -> vector<256x128xf32>
    %76 = arith.addf %70, %75 : vector<256x128xf32>
    %77 = vector.extract_strided_slice %69 {offsets = [0, 0, 1, 0], sizes = [1, 16, 16, 128], strides = [1, 1, 1, 1]} : vector<1x18x18x128xbf16> to vector<1x16x16x128xbf16>
    %78 = vector.shape_cast %77 : vector<1x16x16x128xbf16> to vector<256x128xbf16>
    %c1_56 = arith.constant 1 : index
    %c0_57 = arith.constant 0 : index
    %c0_58 = arith.constant 0 : index
    %79 = vector.load %arg4[%c1_56, %c0_57, %c0_58] : memref<9x128x128xbf16, #tpu.memory_space<vmem>>, vector<1x128x128xbf16>
    %80 = vector.shape_cast %79 : vector<1x128x128xbf16> to vector<128x128xbf16>
    %cst_59 = arith.constant dense<0.000000e+00> : vector<256x128xf32>
    %81 = tpu.matmul %78, %80, %cst_59 {dimension_numbers = #tpu.dot_dimension_numbers<[1], [0], [0], [1], [0, 0, 1, 1], [], []>} : vector<256x128xbf16>, vector<128x128xbf16>, vector<256x128xf32> -> vector<256x128xf32>
    %82 = arith.addf %76, %81 : vector<256x128xf32>
    %83 = vector.extract_strided_slice %69 {offsets = [0, 0, 2, 0], sizes = [1, 16, 16, 128], strides = [1, 1, 1, 1]} : vector<1x18x18x128xbf16> to vector<1x16x16x128xbf16>
    %84 = vector.shape_cast %83 : vector<1x16x16x128xbf16> to vector<256x128xbf16>
    %c2_60 = arith.constant 2 : index
    %c0_61 = arith.constant 0 : index
    %c0_62 = arith.constant 0 : index
    %85 = vector.load %arg4[%c2_60, %c0_61, %c0_62] : memref<9x128x128xbf16, #tpu.memory_space<vmem>>, vector<1x128x128xbf16>
    %86 = vector.shape_cast %85 : vector<1x128x128xbf16> to vector<128x128xbf16>
    %cst_63 = arith.constant dense<0.000000e+00> : vector<256x128xf32>
    %87 = tpu.matmul %84, %86, %cst_63 {dimension_numbers = #tpu.dot_dimension_numbers<[1], [0], [0], [1], [0, 0, 1, 1], [], []>} : vector<256x128xbf16>, vector<128x128xbf16>, vector<256x128xf32> -> vector<256x128xf32>
    %88 = arith.addf %82, %87 : vector<256x128xf32>
    %89 = vector.extract_strided_slice %69 {offsets = [0, 1, 0, 0], sizes = [1, 16, 16, 128], strides = [1, 1, 1, 1]} : vector<1x18x18x128xbf16> to vector<1x16x16x128xbf16>
    %90 = vector.shape_cast %89 : vector<1x16x16x128xbf16> to vector<256x128xbf16>
    %c3_64 = arith.constant 3 : index
    %c0_65 = arith.constant 0 : index
    %c0_66 = arith.constant 0 : index
    %91 = vector.load %arg4[%c3_64, %c0_65, %c0_66] : memref<9x128x128xbf16, #tpu.memory_space<vmem>>, vector<1x128x128xbf16>
    %92 = vector.shape_cast %91 : vector<1x128x128xbf16> to vector<128x128xbf16>
    %cst_67 = arith.constant dense<0.000000e+00> : vector<256x128xf32>
    %93 = tpu.matmul %90, %92, %cst_67 {dimension_numbers = #tpu.dot_dimension_numbers<[1], [0], [0], [1], [0, 0, 1, 1], [], []>} : vector<256x128xbf16>, vector<128x128xbf16>, vector<256x128xf32> -> vector<256x128xf32>
    %94 = arith.addf %88, %93 : vector<256x128xf32>
    %95 = vector.extract_strided_slice %69 {offsets = [0, 1, 1, 0], sizes = [1, 16, 16, 128], strides = [1, 1, 1, 1]} : vector<1x18x18x128xbf16> to vector<1x16x16x128xbf16>
    %96 = vector.shape_cast %95 : vector<1x16x16x128xbf16> to vector<256x128xbf16>
    %c4_68 = arith.constant 4 : index
    %c0_69 = arith.constant 0 : index
    %c0_70 = arith.constant 0 : index
    %97 = vector.load %arg4[%c4_68, %c0_69, %c0_70] : memref<9x128x128xbf16, #tpu.memory_space<vmem>>, vector<1x128x128xbf16>
    %98 = vector.shape_cast %97 : vector<1x128x128xbf16> to vector<128x128xbf16>
    %cst_71 = arith.constant dense<0.000000e+00> : vector<256x128xf32>
    %99 = tpu.matmul %96, %98, %cst_71 {dimension_numbers = #tpu.dot_dimension_numbers<[1], [0], [0], [1], [0, 0, 1, 1], [], []>} : vector<256x128xbf16>, vector<128x128xbf16>, vector<256x128xf32> -> vector<256x128xf32>
    %100 = arith.addf %94, %99 : vector<256x128xf32>
    %101 = vector.extract_strided_slice %69 {offsets = [0, 1, 2, 0], sizes = [1, 16, 16, 128], strides = [1, 1, 1, 1]} : vector<1x18x18x128xbf16> to vector<1x16x16x128xbf16>
    %102 = vector.shape_cast %101 : vector<1x16x16x128xbf16> to vector<256x128xbf16>
    %c5_72 = arith.constant 5 : index
    %c0_73 = arith.constant 0 : index
    %c0_74 = arith.constant 0 : index
    %103 = vector.load %arg4[%c5_72, %c0_73, %c0_74] : memref<9x128x128xbf16, #tpu.memory_space<vmem>>, vector<1x128x128xbf16>
    %104 = vector.shape_cast %103 : vector<1x128x128xbf16> to vector<128x128xbf16>
    %cst_75 = arith.constant dense<0.000000e+00> : vector<256x128xf32>
    %105 = tpu.matmul %102, %104, %cst_75 {dimension_numbers = #tpu.dot_dimension_numbers<[1], [0], [0], [1], [0, 0, 1, 1], [], []>} : vector<256x128xbf16>, vector<128x128xbf16>, vector<256x128xf32> -> vector<256x128xf32>
    %106 = arith.addf %100, %105 : vector<256x128xf32>
    %107 = vector.extract_strided_slice %69 {offsets = [0, 2, 0, 0], sizes = [1, 16, 16, 128], strides = [1, 1, 1, 1]} : vector<1x18x18x128xbf16> to vector<1x16x16x128xbf16>
    %108 = vector.shape_cast %107 : vector<1x16x16x128xbf16> to vector<256x128xbf16>
    %c6_76 = arith.constant 6 : index
    %c0_77 = arith.constant 0 : index
    %c0_78 = arith.constant 0 : index
    %109 = vector.load %arg4[%c6_76, %c0_77, %c0_78] : memref<9x128x128xbf16, #tpu.memory_space<vmem>>, vector<1x128x128xbf16>
    %110 = vector.shape_cast %109 : vector<1x128x128xbf16> to vector<128x128xbf16>
    %cst_79 = arith.constant dense<0.000000e+00> : vector<256x128xf32>
    %111 = tpu.matmul %108, %110, %cst_79 {dimension_numbers = #tpu.dot_dimension_numbers<[1], [0], [0], [1], [0, 0, 1, 1], [], []>} : vector<256x128xbf16>, vector<128x128xbf16>, vector<256x128xf32> -> vector<256x128xf32>
    %112 = arith.addf %106, %111 : vector<256x128xf32>
    %113 = vector.extract_strided_slice %69 {offsets = [0, 2, 1, 0], sizes = [1, 16, 16, 128], strides = [1, 1, 1, 1]} : vector<1x18x18x128xbf16> to vector<1x16x16x128xbf16>
    %114 = vector.shape_cast %113 : vector<1x16x16x128xbf16> to vector<256x128xbf16>
    %c7_80 = arith.constant 7 : index
    %c0_81 = arith.constant 0 : index
    %c0_82 = arith.constant 0 : index
    %115 = vector.load %arg4[%c7_80, %c0_81, %c0_82] : memref<9x128x128xbf16, #tpu.memory_space<vmem>>, vector<1x128x128xbf16>
    %116 = vector.shape_cast %115 : vector<1x128x128xbf16> to vector<128x128xbf16>
    %cst_83 = arith.constant dense<0.000000e+00> : vector<256x128xf32>
    %117 = tpu.matmul %114, %116, %cst_83 {dimension_numbers = #tpu.dot_dimension_numbers<[1], [0], [0], [1], [0, 0, 1, 1], [], []>} : vector<256x128xbf16>, vector<128x128xbf16>, vector<256x128xf32> -> vector<256x128xf32>
    %118 = arith.addf %112, %117 : vector<256x128xf32>
    %119 = vector.extract_strided_slice %69 {offsets = [0, 2, 2, 0], sizes = [1, 16, 16, 128], strides = [1, 1, 1, 1]} : vector<1x18x18x128xbf16> to vector<1x16x16x128xbf16>
    %120 = vector.shape_cast %119 : vector<1x16x16x128xbf16> to vector<256x128xbf16>
    %c8_84 = arith.constant 8 : index
    %c0_85 = arith.constant 0 : index
    %c0_86 = arith.constant 0 : index
    %121 = vector.load %arg4[%c8_84, %c0_85, %c0_86] : memref<9x128x128xbf16, #tpu.memory_space<vmem>>, vector<1x128x128xbf16>
    %122 = vector.shape_cast %121 : vector<1x128x128xbf16> to vector<128x128xbf16>
    %cst_87 = arith.constant dense<0.000000e+00> : vector<256x128xf32>
    %123 = tpu.matmul %120, %122, %cst_87 {dimension_numbers = #tpu.dot_dimension_numbers<[1], [0], [0], [1], [0, 0, 1, 1], [], []>} : vector<256x128xbf16>, vector<128x128xbf16>, vector<256x128xf32> -> vector<256x128xf32>
    %124 = arith.addf %118, %123 : vector<256x128xf32>
    %125 = vector.extract_strided_slice %0 {offsets = [0, 1, 1, 0], sizes = [1, 16, 16, 128], strides = [1, 1, 1, 1]} : vector<1x18x18x128xbf16> to vector<1x16x16x128xbf16>
    %126 = vector.shape_cast %125 : vector<1x16x16x128xbf16> to vector<256x128xbf16>
    %127 = arith.extf %126 : vector<256x128xbf16> to vector<256x128xf32>
    %c0_88 = arith.constant 0 : index
    %c0_89 = arith.constant 0 : index
    %128 = vector.load %arg5[%c0_88, %c0_89] : memref<1x128xf32, #tpu.memory_space<vmem>>, vector<1x128xf32>
    %129 = vector.broadcast %128 : vector<1x128xf32> to vector<256x128xf32>
    %130 = arith.addf %124, %129 : vector<256x128xf32>
    %131 = arith.addf %130, %127 : vector<256x128xf32>
    %cst_90 = arith.constant 0.000000e+00 : f32
    %132 = vector.broadcast %cst_90 : f32 to vector<256x128xf32>
    %133 = arith.maximumf %131, %132 : vector<256x128xf32>
    %134 = vector.shape_cast %133 : vector<256x128xf32> to vector<1x16x16x128xf32>
    %c0_91 = arith.constant 0 : index
    %c0_92 = arith.constant 0 : index
    %c0_93 = arith.constant 0 : index
    %c0_94 = arith.constant 0 : index
    %135 = vector.load %arg6[%c0_91, %c0_92, %c0_93, %c0_94] : memref<1x16x16x128xf32, #tpu.memory_space<vmem>>, vector<1x16x16x128xf32>
    tpu.vector_store %arg6[%c0_91, %c0_92, %c0_93, %c0_94], %134 {strides = array<i32>} : memref<1x16x16x128xf32, #tpu.memory_space<vmem>>, vector<1x16x16x128xf32>,
    return
  }
  func.func @transform_0(%arg0: i32) -> (i32, i32, i32, i32) {
    %c0_i32 = arith.constant 0 : i32
    %c0_i32_0 = arith.constant 0 : i32
    %c0_i32_1 = arith.constant 0 : i32
    %c0_i32_2 = arith.constant 0 : i32
    return %arg0, %c0_i32, %c0_i32_0, %c0_i32_1 : i32, i32, i32, i32
  }
  func.func @transform_1(%arg0: i32) -> (i32, i32, i32) {
    %c0_i32 = arith.constant 0 : i32
    %c0_i32_0 = arith.constant 0 : i32
    %c0_i32_1 = arith.constant 0 : i32
    %c0_i32_2 = arith.constant 0 : i32
    return %c0_i32, %c0_i32_0, %c0_i32_1 : i32, i32, i32
  }
  func.func @transform_2(%arg0: i32) -> (i32, i32) {
    %c0_i32 = arith.constant 0 : i32
    %c0_i32_0 = arith.constant 0 : i32
    %c0_i32_1 = arith.constant 0 : i32
    return %c0_i32, %c0_i32_0 : i32, i32
  }
  func.func @transform_3(%arg0: i32) -> (i32, i32, i32) {
    %c0_i32 = arith.constant 0 : i32
    %c0_i32_0 = arith.constant 0 : i32
    %c0_i32_1 = arith.constant 0 : i32
    %c0_i32_2 = arith.constant 0 : i32
    return %c0_i32, %c0_i32_0, %c0_i32_1 : i32, i32, i32
  }
  func.func @transform_4(%arg0: i32) -> (i32, i32) {
    %c0_i32 = arith.constant 0 : i32
    %c0_i32_0 = arith.constant 0 : i32
    %c0_i32_1 = arith.constant 0 : i32
    return %c0_i32, %c0_i32_0 : i32, i32
  }
  func.func @transform_5(%arg0: i32) -> (i32, i32, i32, i32) {
    %c0_i32 = arith.constant 0 : i32
    %c0_i32_0 = arith.constant 0 : i32
    %c0_i32_1 = arith.constant 0 : i32
    %c0_i32_2 = arith.constant 0 : i32
    return %arg0, %c0_i32, %c0_i32_0, %c0_i32_1 : i32, i32, i32, i32
  }
}

</mosaic_0001>

<llo_original>
// kernel: tpu_custom_call.1
$region0: #{tpu_custom_call.1}
  #allocation0 [shape = 'u32[]', space=smem, size = 0x4, offset = 0x4, fixed_abs, tag = 'smem constant byte address 0x4 - core index']
  #allocation1 [shape = 'u32[144,128]{1,0:T(1,128)}', space=vmem, size = 0x12000, scoped, tag = 'internal scratch']
  #allocation2 [shape = 'bf16[1,18,18,128]{3,2,1,0:T(8,128)(2,1)}', space=vmem, size = 0x1b000, scoped, tag = 'scratch operand']
  %s0 = inlined_call_operand.vmem [shape: bf16[2,18,18,128], index: 0, kind: input, shape index: {}]
  %s1 = inlined_call_operand.vmem [shape: bf16[9,128,128], index: 1, kind: input, shape index: {}]
  %s2 = inlined_call_operand.vmem [shape: f32[1,128], index: 2, kind: input, shape index: {}]
  %s3 = inlined_call_operand.hbm [shape: bf16[9,128,128], index: 3, kind: input, shape index: {}]
  %s4 = inlined_call_operand.vmem [shape: f32[1,128], index: 4, kind: input, shape index: {}]
  %s5 = inlined_call_operand.hbm [shape: f32[2,16,16,128], index: 5, kind: output, shape index: {}]
  %s6 = sld [smem:[#allocation0]]
  $region57: #{tpu_custom_call.1} parent=0
    _
  %s8 = ssub.s32 1, %s6
  %s9 = scalar_select 0, %s8, %s6
  $region1: #{tpu_custom_call.1} parent=0
    #allocation3 [shape = 'u8[294912]{0}', space=vmem, size = 0x48000, scoped, tag = 'input window, operand 3, single buffered']
    #allocation4 [shape = 's32[2]{0}', space=sflag, size = 0x8, scoped, tag = 'scoped memory for tpu_custom_call.1']
    #allocation5 [shape = 's32[2]{0}', space=sflag, size = 0x8, scoped, tag = 'scoped memory for tpu_custom_call.1']
    #allocation6 [shape = 'u8[262144]{0}', space=vmem, size = 0x40000, scoped, tag = 'output window, operand 0']
    %10 = vsyncpa [#allocation4], 0
    %11 = vsyncpa [#allocation5], 0
    %s12 = scalar_lea.sflag [#allocation5], 1
    %13 = vsyncpa %s12, 0
    loop: start=0, step=1, limit=4
    $region2: #{tpu_custom_call.1} parent=1 // loop_pre_header
      _
    $region3: #{tpu_custom_call.1} parent=1 // loop_header
      %s15 = sphi 0, %s19
      %p16 = scmp.ge.s32.totalorder %s15, 4
      %s25 = sphi 0, %s27
      %s28 = sphi 0, %s25
      %s29 = sphi 0, %s28
      %s45 = sphi 0, %s29
      %s49 = sphi 0, %s49
      %s51 = sphi 0, %s49
      %s52 = sphi 0, %s51
      %s66 = sphi 0, %s52
      %s70 = sphi 0, %s70
      %s72 = sphi 0, %s70
      %s73 = sphi 0, %s72
      %s87 = sphi 0, %s73
      %s91 = sphi 0, %s91
      %s93 = sphi 0, %s91
      %s94 = sphi 0, %s93
      %s108 = sphi 0, %s94
      %s112 = sphi 0, %s112
      %s114 = sphi 0, %s112
      %s115 = sphi 0, %s114
      %s129 = sphi 0, %s115
      %s135 = sphi 0, %s137
      %s138 = sphi 0, %s135
      %s139 = sphi 0, %s138
      %s155 = sphi 0, %s139
    $region4: #{tpu_custom_call.1} parent=1 // loop_header_branch
      %18 = sbr.rel (%p16) target = $region8
    $region5: #{tpu_custom_call.1} parent=1 // loop_body
      %s20 = ssub.s32 %s15, 1
      %s21 = ssub.s32 %s15, 2
      %s22 = sadd.s32 %s15, 1
      %s23 = ssub.s32 %s15, %s22
      %p24 = scmp.eq.s32.totalorder %s23, 0
      %s26 = sadd.s32 %s25, 1
      %s27 = scalar_select %p24, %s25, %s26
      %p30 = pneg %p24
      %p31 = scmp.eq.s32.totalorder %s15, 1
      %p32 = por %p30, %p31
      %p33 = scmp.ne.s32.totalorder %s25, %s28
      %p34 = scmp.eq.s32.totalorder %s15, 0
      %p35 = por %p33, %p34
      %p36 = scmp.ne.s32.totalorder %s25, %s28
      %p37 = scmp.eq.s32.totalorder %s20, 1
      %p38 = por %p36, %p37
      %p39 = scmp.ne.s32.totalorder %s28, %s29
      %p40 = scmp.eq.s32.totalorder %s20, 0
      %p41 = por %p39, %p40
      %p42 = scmp.ne.s32.totalorder %s28, %s29
      %p43 = scmp.eq.s32.totalorder %s21, 1
      %p44 = por %p42, %p43
      %p46 = scmp.ne.s32.totalorder %s29, %s45
      %p47 = scmp.eq.s32.totalorder %s21, 0
      %p48 = por %p46, %p47
      %s50 = sadd.s32 %s49, 1
      %p53 = scmp.eq.s32.totalorder %s15, 1
      %p54 = scmp.ne.s32.totalorder %s49, %s51
      %p55 = scmp.eq.s32.totalorder %s15, 0
      %p56 = por %p54, %p55
      %p57 = scmp.ne.s32.totalorder %s49, %s51
      %p58 = scmp.eq.s32.totalorder %s20, 1
      %p59 = por %p57, %p58
      %p60 = scmp.ne.s32.totalorder %s51, %s52
      %p61 = scmp.eq.s32.totalorder %s20, 0
      %p62 = por %p60, %p61
      %p63 = scmp.ne.s32.totalorder %s51, %s52
      %p64 = scmp.eq.s32.totalorder %s21, 1
      %p65 = por %p63, %p64
      %p67 = scmp.ne.s32.totalorder %s52, %s66
      %p68 = scmp.eq.s32.totalorder %s21, 0
      %p69 = por %p67, %p68
      %s71 = sadd.s32 %s70, 1
      %p74 = scmp.eq.s32.totalorder %s15, 1
      %p75 = scmp.ne.s32.totalorder %s70, %s72
      %p76 = scmp.eq.s32.totalorder %s15, 0
      %p77 = por %p75, %p76
      %p78 = scmp.ne.s32.totalorder %s70, %s72
      %p79 = scmp.eq.s32.totalorder %s20, 1
      %p80 = por %p78, %p79
      %p81 = scmp.ne.s32.totalorder %s72, %s73
      %p82 = scmp.eq.s32.totalorder %s20, 0
      %p83 = por %p81, %p82
      %p84 = scmp.ne.s32.totalorder %s72, %s73
      %p85 = scmp.eq.s32.totalorder %s21, 1
      %p86 = por %p84, %p85
      %p88 = scmp.ne.s32.totalorder %s73, %s87
      %p89 = scmp.eq.s32.totalorder %s21, 0
      %p90 = por %p88, %p89
      %s92 = sadd.s32 %s91, 1
      %p95 = scmp.eq.s32.totalorder %s15, 1
      %p96 = scmp.ne.s32.totalorder %s91, %s93
      %p97 = scmp.eq.s32.totalorder %s15, 0
      %p98 = por %p96, %p97
      %p99 = scmp.ne.s32.totalorder %s91, %s93
      %p100 = scmp.eq.s32.totalorder %s20, 1
      %p101 = por %p99, %p100
      %p102 = scmp.ne.s32.totalorder %s93, %s94
      %p103 = scmp.eq.s32.totalorder %s20, 0
      %p104 = por %p102, %p103
      %p105 = scmp.ne.s32.totalorder %s93, %s94
      %p106 = scmp.eq.s32.totalorder %s21, 1
      %p107 = por %p105, %p106
      %p109 = scmp.ne.s32.totalorder %s94, %s108
      %p110 = scmp.eq.s32.totalorder %s21, 0
      %p111 = por %p109, %p110
      %s113 = sadd.s32 %s112, 1
      %p116 = scmp.eq.s32.totalorder %s15, 1
      %p117 = scmp.ne.s32.totalorder %s112, %s114
      %p118 = scmp.eq.s32.totalorder %s15, 0
      %p119 = por %p117, %p118
      %p120 = scmp.ne.s32.totalorder %s112, %s114
      %p121 = scmp.eq.s32.totalorder %s20, 1
      %p122 = por %p120, %p121
      %p123 = scmp.ne.s32.totalorder %s114, %s115
      %p124 = scmp.eq.s32.totalorder %s20, 0
      %p125 = por %p123, %p124
      %p126 = scmp.ne.s32.totalorder %s114, %s115
      %p127 = scmp.eq.s32.totalorder %s21, 1
      %p128 = por %p126, %p127
      %p130 = scmp.ne.s32.totalorder %s115, %s129
      %p131 = scmp.eq.s32.totalorder %s21, 0
      %p132 = por %p130, %p131
      %s133 = ssub.s32 %s15, %s22
      %p134 = scmp.eq.s32.totalorder %s133, 0
      %s136 = sadd.s32 %s135, 1
      %s137 = scalar_select %p134, %s135, %s136
      %p140 = pneg %p134
      %p141 = scmp.eq.s32.totalorder %s15, 1
      %p142 = por %p140, %p141
      %p143 = scmp.ne.s32.totalorder %s135, %s138
      %p144 = scmp.eq.s32.totalorder %s15, 0
      %p145 = por %p143, %p144
      %p146 = scmp.ne.s32.totalorder %s135, %s138
      %p147 = scmp.eq.s32.totalorder %s20, 1
      %p148 = por %p146, %p147
      %p149 = scmp.ne.s32.totalorder %s138, %s139
      %p150 = scmp.eq.s32.totalorder %s20, 0
      %p151 = por %p149, %p150
      %p152 = scmp.ne.s32.totalorder %s138, %s139
      %p153 = scmp.eq.s32.totalorder %s21, 1
      %p154 = por %p152, %p153
      %p156 = scmp.ne.s32.totalorder %s139, %s155
      %p157 = scmp.eq.s32.totalorder %s21, 0
      %p158 = por %p156, %p157
      %p159 = scmp.le.s32.totalorder 1, %s15
      %p160 = scmp.lt.s32.totalorder %s15, 3
      %p161 = pnand %p159, %p160
      %p162 = pneg %p161
      // Predicated region
      $region9: #{tpu_custom_call.1} parent=5 // pred_check
        _
      $region10: #{tpu_custom_call.1} parent=5 // pred_check_branch
        %164 = sbr.rel (%p161) target = $region12
      $region11: #{tpu_custom_call.1} parent=5 // pred_region
        %s165 = ssub.s32 %s15, 1
        // Predicated region
        $region13: #{tpu_custom_call.1} parent=11 // pred_check
          %p166 = pneg %p62
        $region14: #{tpu_custom_call.1} parent=11 // pred_check_branch
          %168 = sbr.rel (%p166) target = $region16
        $region15: #{tpu_custom_call.1} parent=11 // pred_region
          _
        $region16: #{tpu_custom_call.1} parent=11 // pred_fallthru
          _
        // Predicated region
        $region17: #{tpu_custom_call.1} parent=11 // pred_check
          %p169 = pneg %p83
        $region18: #{tpu_custom_call.1} parent=11 // pred_check_branch
          %171 = sbr.rel (%p169) target = $region20
        $region19: #{tpu_custom_call.1} parent=11 // pred_region
          _
        $region20: #{tpu_custom_call.1} parent=11 // pred_fallthru
          _
        // Predicated region
        $region21: #{tpu_custom_call.1} parent=11 // pred_check
          %p172 = pneg %p104
        $region22: #{tpu_custom_call.1} parent=11 // pred_check_branch
          %174 = sbr.rel (%p172) target = $region24
        $region23: #{tpu_custom_call.1} parent=11 // pred_region
          %s176 = ssub.s32 9216, 9216
          %177 = vsyncadd [#allocation4], %s176
          %s178 = sshll.u32 [#allocation3], 4
          %s179 = int_to_ptr.vmem [resolvable:$true] %s178
          %184 = dma.hbm_to_vmem [thread:$0]  %s3, 9216, %s179, [#allocation4], 64, 64, 4
        $region24: #{tpu_custom_call.1} parent=11 // pred_fallthru
          _
        // Predicated region
        $region25: #{tpu_custom_call.1} parent=11 // pred_check
          %p185 = pneg %p125
        $region26: #{tpu_custom_call.1} parent=11 // pred_check_branch
          %187 = sbr.rel (%p185) target = $region28
        $region27: #{tpu_custom_call.1} parent=11 // pred_region
          _
        $region28: #{tpu_custom_call.1} parent=11 // pred_fallthru
          _
      $region12: #{tpu_custom_call.1} parent=5 // pred_fallthru
        _
      %p188 = scmp.lt.s32.totalorder %s15, 2
      // Predicated region
      $region29: #{tpu_custom_call.1} parent=5 // pred_check
        %p189 = pneg %p188
      $region30: #{tpu_custom_call.1} parent=5 // pred_check_branch
        %191 = sbr.rel (%p189) target = $region32
      $region31: #{tpu_custom_call.1} parent=5 // pred_region
        // Predicated region
        $region33: #{tpu_custom_call.1} parent=31 // pred_check
          %p192 = pneg %p35
        $region34: #{tpu_custom_call.1} parent=31 // pred_check_branch
          %194 = sbr.rel (%p192) target = $region36
        $region35: #{tpu_custom_call.1} parent=31 // pred_region
          %p195 = scmp.lt.s32.totalorder %s15, 1
          %s196 = scalar_select %p195, %s15, 1
          %s197 = smul.addr %s196, 54
          %s198 = smul.addr %s197, 4
          %s199 = scalar_lea.vmem %s0, %s198
        $region36: #{tpu_custom_call.1} parent=31 // pred_fallthru
          _
      $region32: #{tpu_custom_call.1} parent=5 // pred_fallthru
        _
      %p200 = scmp.le.s32.totalorder 1, %s15
      %p201 = scmp.lt.s32.totalorder %s15, 3
      %p202 = pnand %p200, %p201
      %p203 = pneg %p202
      // Predicated region
      $region37: #{tpu_custom_call.1} parent=5 // pred_check
        _
      $region38: #{tpu_custom_call.1} parent=5 // pred_check_branch
        %205 = sbr.rel (%p202) target = $region40
      $region39: #{tpu_custom_call.1} parent=5 // pred_region
        %s206 = ssub.s32 %s15, 1
        // Predicated region
        $region41: #{tpu_custom_call.1} parent=39 // pred_check
          %p207 = pneg %p104
        $region42: #{tpu_custom_call.1} parent=39 // pred_check_branch
          %209 = sbr.rel (%p207) target = $region44
        $region43: #{tpu_custom_call.1} parent=39 // pred_region
          %210 = dma.done [#allocation4], 9216
        $region44: #{tpu_custom_call.1} parent=39 // pred_fallthru
          _
        %p211 = scmp.lt.s32.totalorder %s20, 1
        %s212 = scalar_select %p211, %s20, 1
        %s213 = smul.addr %s212, 54
        %s214 = smul.addr %s213, 4
        %s215 = scalar_lea.vmem %s0, %s214
        %p216 = pneg %p41
        %p217 = pneg %p38
        %p218 = pneg %p62
        %p219 = pneg %p59
        %p220 = pneg %p83
        %p221 = pneg %p80
        %p222 = pneg %p104
        %p223 = pneg %p101
        %p224 = pneg %p125
        %p225 = pneg %p122
        %p226 = pneg %p151
        %p227 = pneg %p148
        %s228 = sand.u32 %s138, 1
        %s229 = scalar_lea.sflag [#allocation5], %s228
        %s230 = sand.u32 %s138, 1
        %s231 = smul.addr %s230, 256
        %s232 = scalar_lea.vmem [#allocation6], %s231
        %p233 = scmp.lt.s32.totalorder %s20, 1
        %s234 = scalar_select %p233, %s20, 1
        %s235 = smul.addr %s234, 54
        %s236 = smul.addr %s235, 4
        %s237 = scalar_lea.vmem %s0, %s236
        %v239 = vld [vmem:[%s237] sm:$0xf]
        %v240 = vld [vmem:[%s237 + $0x4] sm:$0xf]
        %v241 = vld [vmem:[%s237 + $0x8] sm:$0x1]
        %v242 = vld [vmem:[%s237 + $0xc] sm:$0xf]
        %v243 = vld [vmem:[%s237 + $0x10] sm:$0xf]
        %v244 = vld [vmem:[%s237 + $0x14] sm:$0x1]
        %v245 = vld [vmem:[%s237 + $0x18] sm:$0xf]
        %v246 = vld [vmem:[%s237 + $0x1c] sm:$0xf]
        %v247 = vld [vmem:[%s237 + $0x20] sm:$0x1]
        %v248 = vld [vmem:[%s237 + $0x24] sm:$0xf]
        %v249 = vld [vmem:[%s237 + $0x28] sm:$0xf]
        %v250 = vld [vmem:[%s237 + $0x2c] sm:$0x1]
        %v251 = vld [vmem:[%s237 + $0x30] sm:$0xf]
        %v252 = vld [vmem:[%s237 + $0x34] sm:$0xf]
        %v253 = vld [vmem:[%s237 + $0x38] sm:$0x1]
        %v254 = vld [vmem:[%s237 + $0x3c] sm:$0xf]
        %v255 = vld [vmem:[%s237 + $0x40] sm:$0xf]
        %v256 = vld [vmem:[%s237 + $0x44] sm:$0x1]
        %v257 = vld [vmem:[%s237 + $0x48] sm:$0xf]
        %v258 = vld [vmem:[%s237 + $0x4c] sm:$0xf]
        %v259 = vld [vmem:[%s237 + $0x50] sm:$0x1]
        %v260 = vld [vmem:[%s237 + $0x54] sm:$0xf]
        %v261 = vld [vmem:[%s237 + $0x58] sm:$0xf]
        %v262 = vld [vmem:[%s237 + $0x5c] sm:$0x1]
        %v263 = vld [vmem:[%s237 + $0x60] sm:$0xf]
        %v264 = vld [vmem:[%s237 + $0x64] sm:$0xf]
        %v265 = vld [vmem:[%s237 + $0x68] sm:$0x1]
        %v266 = vld [vmem:[%s237 + $0x6c] sm:$0xf]
        %v267 = vld [vmem:[%s237 + $0x70] sm:$0xf]
        %v268 = vld [vmem:[%s237 + $0x74] sm:$0x1]
        %v269 = vld [vmem:[%s237 + $0x78] sm:$0xf]
        %v270 = vld [vmem:[%s237 + $0x7c] sm:$0xf]
        %v271 = vld [vmem:[%s237 + $0x80] sm:$0x1]
        %v272 = vld [vmem:[%s237 + $0x84] sm:$0xf]
        %v273 = vld [vmem:[%s237 + $0x88] sm:$0xf]
        %v274 = vld [vmem:[%s237 + $0x8c] sm:$0x1]
        %v275 = vld [vmem:[%s237 + $0x90] sm:$0xf]
        %v276 = vld [vmem:[%s237 + $0x94] sm:$0xf]
        %v277 = vld [vmem:[%s237 + $0x98] sm:$0x1]
        %v278 = vld [vmem:[%s237 + $0x9c] sm:$0xf]
        %v279 = vld [vmem:[%s237 + $0xa0] sm:$0xf]
        %v280 = vld [vmem:[%s237 + $0xa4] sm:$0x1]
        %v281 = vld [vmem:[%s237 + $0xa8] sm:$0xf]
        %v282 = vld [vmem:[%s237 + $0xac] sm:$0xf]
        %v283 = vld [vmem:[%s237 + $0xb0] sm:$0x1]
        %v284 = vld [vmem:[%s237 + $0xb4] sm:$0xf]
        %v285 = vld [vmem:[%s237 + $0xb8] sm:$0xf]
        %v286 = vld [vmem:[%s237 + $0xbc] sm:$0x1]
        %v287 = vld [vmem:[%s237 + $0xc0] sm:$0xf]
        %v288 = vld [vmem:[%s237 + $0xc4] sm:$0xf]
        %v289 = vld [vmem:[%s237 + $0xc8] sm:$0x1]
        %v290 = vld [vmem:[%s237 + $0xcc] sm:$0xf]
        %v291 = vld [vmem:[%s237 + $0xd0] sm:$0xf]
        %v292 = vld [vmem:[%s237 + $0xd4] sm:$0x1]
        %v293 = vld [vmem:[%s1] sm:$0xf]
        %v294 = vld [vmem:[%s1 + $0x4] sm:$0xf]
        %v295 = vld [vmem:[%s1 + $0x8] sm:$0xf]
        %v296 = vld [vmem:[%s1 + $0xc] sm:$0xf]
        %v297 = vld [vmem:[%s1 + $0x10] sm:$0xf]
        %v298 = vld [vmem:[%s1 + $0x14] sm:$0xf]
        %v299 = vld [vmem:[%s1 + $0x18] sm:$0xf]
        %v300 = vld [vmem:[%s1 + $0x1c] sm:$0xf]
        %v301 = vld [vmem:[%s1 + $0x20] sm:$0xf]
        %v302 = vld [vmem:[%s1 + $0x24] sm:$0xf]
        %v303 = vld [vmem:[%s1 + $0x28] sm:$0xf]
        %v304 = vld [vmem:[%s1 + $0x2c] sm:$0xf]
        %v305 = vld [vmem:[%s1 + $0x30] sm:$0xf]
        %v306 = vld [vmem:[%s1 + $0x34] sm:$0xf]
        %v307 = vld [vmem:[%s1 + $0x38] sm:$0xf]
        %v308 = vld [vmem:[%s1 + $0x3c] sm:$0xf]
        %vm309 = vsmask.f32 3328
        %vm310 = vsmask.f32 7440
        %vm311 = vmor %vm309, %vm310
        %v313 = vshrl.u32 %v239, 16
        %v315 = vrot.slane %v313, 4
        %v316 = vshll.u32 %v239, 16
        %v318 = vrot.slane %v316, 5
        %v319 = vor.u32 %v315, %v318
        %v320 = vrot.slane %v319, 4
        %v322 = vshll.u32 %v240, 16
        %v324 = vrot.slane %v322, 5
        %v325 = vsel %vm311, %v320, %v324
        %v326 = vshrl.u32 %v240, 16
        %v328 = vrot.slane %v326, 4
        %v329 = vor.u32 %v328, %v324
        %v330 = vrot.slane %v329, 4
        %v332 = vshll.u32 %v241, 16
        %v334 = vrot.slane %v332, 5
        %v335 = vsel %vm311, %v330, %v334
        %v337 = vshrl.u32 %v242, 16
        %v339 = vrot.slane %v337, 4
        %v340 = vshll.u32 %v242, 16
        %v342 = vrot.slane %v340, 5
        %v343 = vor.u32 %v339, %v342
        %v344 = vrot.slane %v343, 4
        %v346 = vshll.u32 %v243, 16
        %v348 = vrot.slane %v346, 5
        %v349 = vsel %vm311, %v344, %v348
        %v350 = vshrl.u32 %v243, 16
        %v352 = vrot.slane %v350, 4
        %v353 = vor.u32 %v352, %v348
        %v354 = vrot.slane %v353, 4
        %v356 = vshll.u32 %v244, 16
        %v358 = vrot.slane %v356, 5
        %v359 = vsel %vm311, %v354, %v358
        %v361 = vshrl.u32 %v245, 16
        %v363 = vrot.slane %v361, 4
        %v364 = vshll.u32 %v245, 16
        %v366 = vrot.slane %v364, 5
        %v367 = vor.u32 %v363, %v366
        %v368 = vrot.slane %v367, 4
        %v370 = vshll.u32 %v246, 16
        %v372 = vrot.slane %v370, 5
        %v373 = vsel %vm311, %v368, %v372
        %v374 = vshrl.u32 %v246, 16
        %v376 = vrot.slane %v374, 4
        %v377 = vor.u32 %v376, %v372
        %v378 = vrot.slane %v377, 4
        %v380 = vshll.u32 %v247, 16
        %v382 = vrot.slane %v380, 5
        %v383 = vsel %vm311, %v378, %v382
        %v385 = vshrl.u32 %v248, 16
        %v387 = vrot.slane %v385, 4
        %v388 = vshll.u32 %v248, 16
        %v390 = vrot.slane %v388, 5
        %v391 = vor.u32 %v387, %v390
        %v392 = vrot.slane %v391, 4
        %v394 = vshll.u32 %v249, 16
        %v396 = vrot.slane %v394, 5
        %v397 = vsel %vm311, %v392, %v396
        %v398 = vshrl.u32 %v249, 16
        %v400 = vrot.slane %v398, 4
        %v401 = vor.u32 %v400, %v396
        %v402 = vrot.slane %v401, 4
        %v404 = vshll.u32 %v250, 16
        %v406 = vrot.slane %v404, 5
        %v407 = vsel %vm311, %v402, %v406
        %v409 = vshrl.u32 %v251, 16
        %v411 = vrot.slane %v409, 4
        %v412 = vshll.u32 %v251, 16
        %v414 = vrot.slane %v412, 5
        %v415 = vor.u32 %v411, %v414
        %v416 = vrot.slane %v415, 4
        %v418 = vshll.u32 %v252, 16
        %v420 = vrot.slane %v418, 5
        %v421 = vsel %vm311, %v416, %v420
        %v422 = vshrl.u32 %v252, 16
        %v424 = vrot.slane %v422, 4
        %v425 = vor.u32 %v424, %v420
        %v426 = vrot.slane %v425, 4
        %v428 = vshll.u32 %v253, 16
        %v430 = vrot.slane %v428, 5
        %v431 = vsel %vm311, %v426, %v430
        %v433 = vshrl.u32 %v254, 16
        %v435 = vrot.slane %v433, 4
        %v436 = vshll.u32 %v254, 16
        %v438 = vrot.slane %v436, 5
        %v439 = vor.u32 %v435, %v438
        %v440 = vrot.slane %v439, 4
        %v442 = vshll.u32 %v255, 16
        %v444 = vrot.slane %v442, 5
        %v445 = vsel %vm311, %v440, %v444
        %v446 = vshrl.u32 %v255, 16
        %v448 = vrot.slane %v446, 4
        %v449 = vor.u32 %v448, %v444
        %v450 = vrot.slane %v449, 4
        %v452 = vshll.u32 %v256, 16
        %v454 = vrot.slane %v452, 5
        %v455 = vsel %vm311, %v450, %v454
        %v457 = vshrl.u32 %v257, 16
        %v459 = vrot.slane %v457, 4
        %v460 = vshll.u32 %v257, 16
        %v462 = vrot.slane %v460, 5
        %v463 = vor.u32 %v459, %v462
        %v464 = vrot.slane %v463, 4
        %v466 = vshll.u32 %v258, 16
        %v468 = vrot.slane %v466, 5
        %v469 = vsel %vm311, %v464, %v468
        %v470 = vshrl.u32 %v258, 16
        %v472 = vrot.slane %v470, 4
        %v473 = vor.u32 %v472, %v468
        %v474 = vrot.slane %v473, 4
        %v476 = vshll.u32 %v259, 16
        %v478 = vrot.slane %v476, 5
        %v479 = vsel %vm311, %v474, %v478
        %v481 = vshrl.u32 %v260, 16
        %v483 = vrot.slane %v481, 4
        %v484 = vshll.u32 %v260, 16
        %v486 = vrot.slane %v484, 5
        %v487 = vor.u32 %v483, %v486
        %v488 = vrot.slane %v487, 4
        %v490 = vshll.u32 %v261, 16
        %v492 = vrot.slane %v490, 5
        %v493 = vsel %vm311, %v488, %v492
        %v494 = vshrl.u32 %v261, 16
        %v496 = vrot.slane %v494, 4
        %v497 = vor.u32 %v496, %v492
        %v498 = vrot.slane %v497, 4
        %v500 = vshll.u32 %v262, 16
        %v502 = vrot.slane %v500, 5
        %v503 = vsel %vm311, %v498, %v502
        %v505 = vshrl.u32 %v263, 16
        %v507 = vrot.slane %v505, 4
        %v508 = vshll.u32 %v263, 16
        %v510 = vrot.slane %v508, 5
        %v511 = vor.u32 %v507, %v510
        %v512 = vrot.slane %v511, 4
        %v514 = vshll.u32 %v264, 16
        %v516 = vrot.slane %v514, 5
        %v517 = vsel %vm311, %v512, %v516
        %v518 = vshrl.u32 %v264, 16
        %v520 = vrot.slane %v518, 4
        %v521 = vor.u32 %v520, %v516
        %v522 = vrot.slane %v521, 4
        %v524 = vshll.u32 %v265, 16
        %v526 = vrot.slane %v524, 5
        %v527 = vsel %vm311, %v522, %v526
        %v529 = vshrl.u32 %v266, 16
        %v531 = vrot.slane %v529, 4
        %v532 = vshll.u32 %v266, 16
        %v534 = vrot.slane %v532, 5
        %v535 = vor.u32 %v531, %v534
        %v536 = vrot.slane %v535, 4
        %v538 = vshll.u32 %v267, 16
        %v540 = vrot.slane %v538, 5
        %v541 = vsel %vm311, %v536, %v540
        %v542 = vshrl.u32 %v267, 16
        %v544 = vrot.slane %v542, 4
        %v545 = vor.u32 %v544, %v540
        %v546 = vrot.slane %v545, 4
        %v548 = vshll.u32 %v268, 16
        %v550 = vrot.slane %v548, 5
        %v551 = vsel %vm311, %v546, %v550
        %v553 = vshrl.u32 %v269, 16
        %v555 = vrot.slane %v553, 4
        %v556 = vshll.u32 %v269, 16
        %v558 = vrot.slane %v556, 5
        %v559 = vor.u32 %v555, %v558
        %v560 = vrot.slane %v559, 4
        %v562 = vshll.u32 %v270, 16
        %v564 = vrot.slane %v562, 5
        %v565 = vsel %vm311, %v560, %v564
        %v566 = vshrl.u32 %v270, 16
        %v568 = vrot.slane %v566, 4
        %v569 = vor.u32 %v568, %v564
        %v570 = vrot.slane %v569, 4
        %v572 = vshll.u32 %v271, 16
        %v574 = vrot.slane %v572, 5
        %v575 = vsel %vm311, %v570, %v574
        %v577 = vshrl.u32 %v272, 16
        %v579 = vrot.slane %v577, 4
        %v580 = vshll.u32 %v272, 16
        %v582 = vrot.slane %v580, 5
        %v583 = vor.u32 %v579, %v582
        %v584 = vrot.slane %v583, 4
        %v586 = vshll.u32 %v273, 16
        %v588 = vrot.slane %v586, 5
        %v589 = vsel %vm311, %v584, %v588
        %v590 = vshrl.u32 %v273, 16
        %v592 = vrot.slane %v590, 4
        %v593 = vor.u32 %v592, %v588
        %v594 = vrot.slane %v593, 4
        %v596 = vshll.u32 %v274, 16
        %v598 = vrot.slane %v596, 5
        %v599 = vsel %vm311, %v594, %v598
        %v601 = vshrl.u32 %v275, 16
        %v603 = vrot.slane %v601, 4
        %v604 = vshll.u32 %v275, 16
        %v606 = vrot.slane %v604, 5
        %v607 = vor.u32 %v603, %v606
        %v608 = vrot.slane %v607, 4
        %v610 = vshll.u32 %v276, 16
        %v612 = vrot.slane %v610, 5
        %v613 = vsel %vm311, %v608, %v612
        %v614 = vshrl.u32 %v276, 16
        %v616 = vrot.slane %v614, 4
        %v617 = vor.u32 %v616, %v612
        %v618 = vrot.slane %v617, 4
        %v620 = vshll.u32 %v277, 16
        %v622 = vrot.slane %v620, 5
        %v623 = vsel %vm311, %v618, %v622
        %v625 = vshrl.u32 %v278, 16
        %v627 = vrot.slane %v625, 4
        %v628 = vshll.u32 %v278, 16
        %v630 = vrot.slane %v628, 5
        %v631 = vor.u32 %v627, %v630
        %v632 = vrot.slane %v631, 4
        %v634 = vshll.u32 %v279, 16
        %v636 = vrot.slane %v634, 5
        %v637 = vsel %vm311, %v632, %v636
        %v638 = vshrl.u32 %v279, 16
        %v640 = vrot.slane %v638, 4
        %v641 = vor.u32 %v640, %v636
        %v642 = vrot.slane %v641, 4
        %v644 = vshll.u32 %v280, 16
        %v646 = vrot.slane %v644, 5
        %v647 = vsel %vm311, %v642, %v646
        %v649 = vshrl.u32 %v281, 16
        %v651 = vrot.slane %v649, 4
        %v652 = vshll.u32 %v281, 16
        %v654 = vrot.slane %v652, 5
        %v655 = vor.u32 %v651, %v654
        %v656 = vrot.slane %v655, 4
        %v658 = vshll.u32 %v282, 16
        %v660 = vrot.slane %v658, 5
        %v661 = vsel %vm311, %v656, %v660
        %v662 = vshrl.u32 %v282, 16
        %v664 = vrot.slane %v662, 4
        %v665 = vor.u32 %v664, %v660
        %v666 = vrot.slane %v665, 4
        %v668 = vshll.u32 %v283, 16
        %v670 = vrot.slane %v668, 5
        %v671 = vsel %vm311, %v666, %v670
        %v673 = vshrl.u32 %v284, 16
        %v675 = vrot.slane %v673, 4
        %v676 = vshll.u32 %v284, 16
        %v678 = vrot.slane %v676, 5
        %v679 = vor.u32 %v675, %v678
        %v680 = vrot.slane %v679, 4
        %v682 = vshll.u32 %v285, 16
        %v684 = vrot.slane %v682, 5
        %v685 = vsel %vm311, %v680, %v684
        %v686 = vshrl.u32 %v285, 16
        %v688 = vrot.slane %v686, 4
        %v689 = vor.u32 %v688, %v684
        %v690 = vrot.slane %v689, 4
        %v692 = vshll.u32 %v286, 16
        %v694 = vrot.slane %v692, 5
        %v695 = vsel %vm311, %v690, %v694
        %s696 = scalar_lea.vmem %s1, 64
        %v697 = vld [vmem:[%s696] sm:$0xf]
        %v698 = vld [vmem:[%s696 + $0x4] sm:$0xf]
        %v699 = vld [vmem:[%s696 + $0x8] sm:$0xf]
        %v700 = vld [vmem:[%s696 + $0xc] sm:$0xf]
        %v701 = vld [vmem:[%s696 + $0x10] sm:$0xf]
        %v702 = vld [vmem:[%s696 + $0x14] sm:$0xf]
        %v703 = vld [vmem:[%s696 + $0x18] sm:$0xf]
        %v704 = vld [vmem:[%s696 + $0x1c] sm:$0xf]
        %v705 = vld [vmem:[%s696 + $0x20] sm:$0xf]
        %v706 = vld [vmem:[%s696 + $0x24] sm:$0xf]
        %v707 = vld [vmem:[%s696 + $0x28] sm:$0xf]
        %v708 = vld [vmem:[%s696 + $0x2c] sm:$0xf]
        %v709 = vld [vmem:[%s696 + $0x30] sm:$0xf]
        %v710 = vld [vmem:[%s696 + $0x34] sm:$0xf]
        %v711 = vld [vmem:[%s696 + $0x38] sm:$0xf]
        %v712 = vld [vmem:[%s696 + $0x3c] sm:$0xf]
        %v713 = vunpack.c.l.b16 %v325
        %v714 = vunpack.c.l.b16 %v335
        %v715 = vunpack.c.l.b16 %v349
        %v716 = vunpack.c.l.b16 %v359
        %v717 = vunpack.c.l.b16 %v373
        %v718 = vunpack.c.l.b16 %v383
        %v719 = vunpack.c.l.b16 %v397
        %v720 = vunpack.c.l.b16 %v407
        %v721 = vunpack.c.l.b16 %v421
        %v722 = vunpack.c.l.b16 %v431
        %v723 = vunpack.c.l.b16 %v445
        %v724 = vunpack.c.l.b16 %v455
        %v725 = vunpack.c.l.b16 %v469
        %v726 = vunpack.c.l.b16 %v479
        %v727 = vunpack.c.l.b16 %v493
        %v728 = vunpack.c.l.b16 %v503
        %v729 = vunpack.c.l.b16 %v517
        %v730 = vunpack.c.l.b16 %v527
        %v731 = vunpack.c.l.b16 %v541
        %v732 = vunpack.c.l.b16 %v551
        %v733 = vunpack.c.l.b16 %v565
        %v734 = vunpack.c.l.b16 %v575
        %v735 = vunpack.c.l.b16 %v589
        %v736 = vunpack.c.l.b16 %v599
        %v737 = vunpack.c.l.b16 %v613
        %v738 = vunpack.c.l.b16 %v623
        %v739 = vunpack.c.l.b16 %v637
        %v740 = vunpack.c.l.b16 %v647
        %v741 = vunpack.c.l.b16 %v661
        %v742 = vunpack.c.l.b16 %v671
        %v743 = vunpack.c.l.b16 %v685
        %v744 = vunpack.c.l.b16 %v695
        %v745 = vpack.c.b16 %v714, %v713
        %v746 = vpack.c.b16 %v716, %v715
        %v747 = vpack.c.b16 %v718, %v717
        %v748 = vpack.c.b16 %v720, %v719
        %v749 = vpack.c.b16 %v722, %v721
        %v750 = vpack.c.b16 %v724, %v723
        %v751 = vpack.c.b16 %v726, %v725
        %v752 = vpack.c.b16 %v728, %v727
        %v753 = vpack.c.b16 %v730, %v729
        %v754 = vpack.c.b16 %v732, %v731
        %v755 = vpack.c.b16 %v734, %v733
        %v756 = vpack.c.b16 %v736, %v735
        %v757 = vpack.c.b16 %v738, %v737
        %v758 = vpack.c.b16 %v740, %v739
        %v759 = vpack.c.b16 %v742, %v741
        %v760 = vpack.c.b16 %v744, %v743
        %v793 = vunpack.c.l.b16 %v697
        %v794 = vunpack.c.l.b16 %v698
        %v795 = vunpack.c.l.b16 %v699
        %v796 = vunpack.c.l.b16 %v700
        %v797 = vunpack.c.l.b16 %v701
        %v798 = vunpack.c.l.b16 %v702
        %v799 = vunpack.c.l.b16 %v703
        %v800 = vunpack.c.l.b16 %v704
        %v801 = vunpack.c.l.b16 %v705
        %v802 = vunpack.c.l.b16 %v706
        %v803 = vunpack.c.l.b16 %v707
        %v804 = vunpack.c.l.b16 %v708
        %v805 = vunpack.c.l.b16 %v709
        %v806 = vunpack.c.l.b16 %v710
        %v807 = vunpack.c.l.b16 %v711
        %v808 = vunpack.c.l.b16 %v712
        %v809 = vpack.c.b16 %v794, %v793
        %v810 = vpack.c.b16 %v796, %v795
        %v811 = vpack.c.b16 %v798, %v797
        %v812 = vpack.c.b16 %v800, %v799
        %v813 = vpack.c.b16 %v802, %v801
        %v814 = vpack.c.b16 %v804, %v803
        %v815 = vpack.c.b16 %v806, %v805
        %v816 = vpack.c.b16 %v808, %v807
        %825 = vmatprep.subr.bf16.mxu0 0
        %826 = vmatpush1.bf16.msra.mxu0 %v809
        %827 = vmatprep.subr.bf16.mxu0 0
        %828 = vmatpush1.bf16.msra.mxu0 %v810
        %829 = vmatprep.subr.bf16.mxu0 0
        %830 = vmatpush1.bf16.msra.mxu0 %v811
        %831 = vmatprep.subr.bf16.mxu0 0
        %832 = vmatpush1.bf16.msra.mxu0 %v812
        %833 = vmatprep.subr.bf16.mxu0 0
        %834 = vmatpush1.bf16.msra.mxu0 %v813
        %835 = vmatprep.subr.bf16.mxu0 0
        %836 = vmatpush1.bf16.msra.mxu0 %v814
        %837 = vmatprep.subr.bf16.mxu0 0
        %838 = vmatpush1.bf16.msra.mxu0 %v815
        %839 = vmatprep.subr.bf16.mxu0 0
        %840 = vmatpush1.bf16.msra.mxu0 %v816
        %841 = vmatprep.subr.bf16.mxu0 0
        %842 = vmatpush1.bf16.msra.mxu0 0
        %843 = vmatprep.subr.bf16.mxu0 0
        %844 = vmatpush1.bf16.msra.mxu0 0
        %845 = vmatprep.subr.bf16.mxu0 0
        %846 = vmatpush1.bf16.msra.mxu0 0
        %847 = vmatprep.subr.bf16.mxu0 0
        %848 = vmatpush1.bf16.msra.mxu0 0
        %849 = vmatprep.subr.bf16.mxu0 0
        %850 = vmatpush1.bf16.msra.mxu0 0
        %851 = vmatprep.subr.bf16.mxu0 0
        %852 = vmatpush1.bf16.msra.mxu0 0
        %853 = vmatprep.subr.bf16.mxu0 0
        %854 = vmatpush1.bf16.msra.mxu0 0
        %855 = vmatprep.subr.bf16.mxu0 0
        %856 = vmatpush1.bf16.msra.mxu0 0
        %857 = vmatprep.mubr.bf16.mxu0 0
        %858 = vmatmul.mubr.bf16.gmra.mrb[0].mxu0 %v745
        %v859 = vpop.f32.mrb[0].mxu0
        %v860 = vadd.f32 0.0, %v859
        %v861 = vpop.f32.mrb[0].mxu0
        %v862 = vpop.f32.mrb[0].mxu0
        %v863 = vadd.f32 0.0, %v862
        %v864 = vpop.f32.mrb[0].mxu0
        %865 = vmatprep.mubr.bf16.mxu0 0
        %866 = vmatmul.mubr.bf16.gmra.mrb[0].mxu0 %v746
        %v867 = vpop.f32.mrb[0].mxu0
        %v868 = vadd.f32 0.0, %v867
        %v869 = vpop.f32.mrb[0].mxu0
        %v870 = vpop.f32.mrb[0].mxu0
        %v871 = vadd.f32 0.0, %v870
        %v872 = vpop.f32.mrb[0].mxu0
        %873 = vmatprep.mubr.bf16.mxu0 0
        %874 = vmatmul.mubr.bf16.gmra.mrb[0].mxu0 %v747
        %v875 = vpop.f32.mrb[0].mxu0
        %v876 = vadd.f32 0.0, %v875
        %v877 = vpop.f32.mrb[0].mxu0
        %v878 = vpop.f32.mrb[0].mxu0
        %v879 = vadd.f32 0.0, %v878
        %v880 = vpop.f32.mrb[0].mxu0
        %881 = vmatprep.mubr.bf16.mxu0 0
        %882 = vmatmul.mubr.bf16.gmra.mrb[0].mxu0 %v748
        %v883 = vpop.f32.mrb[0].mxu0
        %v884 = vadd.f32 0.0, %v883
        %v885 = vpop.f32.mrb[0].mxu0
        %v886 = vpop.f32.mrb[0].mxu0
        %v887 = vadd.f32 0.0, %v886
        %v888 = vpop.f32.mrb[0].mxu0
        %889 = vmatprep.mubr.bf16.mxu0 0
        %890 = vmatmul.mubr.bf16.gmra.mrb[0].mxu0 %v749
        %v891 = vpop.f32.mrb[0].mxu0
        %v892 = vadd.f32 0.0, %v891
        %v893 = vpop.f32.mrb[0].mxu0
        %v894 = vpop.f32.mrb[0].mxu0
        %v895 = vadd.f32 0.0, %v894
        %v896 = vpop.f32.mrb[0].mxu0
        %897 = vmatprep.mubr.bf16.mxu0 0
        %898 = vmatmul.mubr.bf16.gmra.mrb[0].mxu0 %v750
        %v899 = vpop.f32.mrb[0].mxu0
        %v900 = vadd.f32 0.0, %v899
        %v901 = vpop.f32.mrb[0].mxu0
        %v902 = vpop.f32.mrb[0].mxu0
        %v903 = vadd.f32 0.0, %v902
        %v904 = vpop.f32.mrb[0].mxu0
        %905 = vmatprep.mubr.bf16.mxu0 0
        %906 = vmatmul.mubr.bf16.gmra.mrb[0].mxu0 %v751
        %v907 = vpop.f32.mrb[0].mxu0
        %v908 = vadd.f32 0.0, %v907
        %v909 = vpop.f32.mrb[0].mxu0
        %v910 = vpop.f32.mrb[0].mxu0
        %v911 = vadd.f32 0.0, %v910
        %v912 = vpop.f32.mrb[0].mxu0
        %913 = vmatprep.mubr.bf16.mxu0 0
        %914 = vmatmul.mubr.bf16.gmra.mrb[0].mxu0 %v752
        %v915 = vpop.f32.mrb[0].mxu0
        %v916 = vadd.f32 0.0, %v915
        %v917 = vpop.f32.mrb[0].mxu0
        %v918 = vpop.f32.mrb[0].mxu0
        %v919 = vadd.f32 0.0, %v918
        %v920 = vpop.f32.mrb[0].mxu0
        %921 = vmatprep.mubr.bf16.mxu0 0
        %922 = vmatmul.mubr.bf16.gmra.mrb[0].mxu0 %v753
        %v923 = vpop.f32.mrb[0].mxu0
        %v924 = vadd.f32 0.0, %v923
        %v925 = vpop.f32.mrb[0].mxu0
        %v926 = vpop.f32.mrb[0].mxu0
        %v927 = vadd.f32 0.0, %v926
        %v928 = vpop.f32.mrb[0].mxu0
        %929 = vmatprep.mubr.bf16.mxu0 0
        %930 = vmatmul.mubr.bf16.gmra.mrb[0].mxu0 %v754
        %v931 = vpop.f32.mrb[0].mxu0
        %v932 = vadd.f32 0.0, %v931
        %v933 = vpop.f32.mrb[0].mxu0
        %v934 = vpop.f32.mrb[0].mxu0
        %v935 = vadd.f32 0.0, %v934
        %v936 = vpop.f32.mrb[0].mxu0
        %937 = vmatprep.mubr.bf16.mxu0 0
        %938 = vmatmul.mubr.bf16.gmra.mrb[0].mxu0 %v755
        %v939 = vpop.f32.mrb[0].mxu0
        %v940 = vadd.f32 0.0, %v939
        %v941 = vpop.f32.mrb[0].mxu0
        %v942 = vpop.f32.mrb[0].mxu0
        %v943 = vadd.f32 0.0, %v942
        %v944 = vpop.f32.mrb[0].mxu0
        %945 = vmatprep.mubr.bf16.mxu0 0
        %946 = vmatmul.mubr.bf16.gmra.mrb[0].mxu0 %v756
        %v947 = vpop.f32.mrb[0].mxu0
        %v948 = vadd.f32 0.0, %v947
        %v949 = vpop.f32.mrb[0].mxu0
        %v950 = vpop.f32.mrb[0].mxu0
        %v951 = vadd.f32 0.0, %v950
        %v952 = vpop.f32.mrb[0].mxu0
        %953 = vmatprep.mubr.bf16.mxu0 0
        %954 = vmatmul.mubr.bf16.gmra.mrb[0].mxu0 %v757
        %v955 = vpop.f32.mrb[0].mxu0
        %v956 = vadd.f32 0.0, %v955
        %v957 = vpop.f32.mrb[0].mxu0
        %v958 = vpop.f32.mrb[0].mxu0
        %v959 = vadd.f32 0.0, %v958
        %v960 = vpop.f32.mrb[0].mxu0
        %961 = vmatprep.mubr.bf16.mxu0 0
        %962 = vmatmul.mubr.bf16.gmra.mrb[0].mxu0 %v758
        %v963 = vpop.f32.mrb[0].mxu0
        %v964 = vadd.f32 0.0, %v963
        %v965 = vpop.f32.mrb[0].mxu0
        %v966 = vpop.f32.mrb[0].mxu0
        %v967 = vadd.f32 0.0, %v966
        %v968 = vpop.f32.mrb[0].mxu0
        %969 = vmatprep.mubr.bf16.mxu0 0
        %970 = vmatmul.mubr.bf16.gmra.mrb[0].mxu0 %v759
        %v971 = vpop.f32.mrb[0].mxu0
        %v972 = vadd.f32 0.0, %v971
        %v973 = vpop.f32.mrb[0].mxu0
        %v974 = vpop.f32.mrb[0].mxu0
        %v975 = vadd.f32 0.0, %v974
        %v976 = vpop.f32.mrb[0].mxu0
        %977 = vmatprep.mubr.bf16.mxu0 0
        %978 = vmatmul.mubr.bf16.gmra.mrb[0].mxu0 %v760
        %v979 = vpop.f32.mrb[0].mxu0
        %v980 = vadd.f32 0.0, %v979
        %v981 = vpop.f32.mrb[0].mxu0
        %v982 = vpop.f32.mrb[0].mxu0
        %v983 = vadd.f32 0.0, %v982
        %v984 = vpop.f32.mrb[0].mxu0
        %985 = vdwg.mxu0
        %v1018 = vunpack.c.l.b16 %v239
        %v1019 = vunpack.c.l.b16 %v240
        %v1020 = vunpack.c.l.b16 %v242
        %v1021 = vunpack.c.l.b16 %v243
        %v1022 = vunpack.c.l.b16 %v245
        %v1023 = vunpack.c.l.b16 %v246
        %v1024 = vunpack.c.l.b16 %v248
        %v1025 = vunpack.c.l.b16 %v249
        %v1026 = vunpack.c.l.b16 %v251
        %v1027 = vunpack.c.l.b16 %v252
        %v1028 = vunpack.c.l.b16 %v254
        %v1029 = vunpack.c.l.b16 %v255
        %v1030 = vunpack.c.l.b16 %v257
        %v1031 = vunpack.c.l.b16 %v258
        %v1032 = vunpack.c.l.b16 %v260
        %v1033 = vunpack.c.l.b16 %v261
        %v1034 = vunpack.c.l.b16 %v263
        %v1035 = vunpack.c.l.b16 %v264
        %v1036 = vunpack.c.l.b16 %v266
        %v1037 = vunpack.c.l.b16 %v267
        %v1038 = vunpack.c.l.b16 %v269
        %v1039 = vunpack.c.l.b16 %v270
        %v1040 = vunpack.c.l.b16 %v272
        %v1041 = vunpack.c.l.b16 %v273
        %v1042 = vunpack.c.l.b16 %v275
        %v1043 = vunpack.c.l.b16 %v276
        %v1044 = vunpack.c.l.b16 %v278
        %v1045 = vunpack.c.l.b16 %v279
        %v1046 = vunpack.c.l.b16 %v281
        %v1047 = vunpack.c.l.b16 %v282
        %v1048 = vunpack.c.l.b16 %v284
        %v1049 = vunpack.c.l.b16 %v285
        %v1050 = vpack.c.b16 %v1019, %v1018
        %v1051 = vpack.c.b16 %v1021, %v1020
        %v1052 = vpack.c.b16 %v1023, %v1022
        %v1053 = vpack.c.b16 %v1025, %v1024
        %v1054 = vpack.c.b16 %v1027, %v1026
        %v1055 = vpack.c.b16 %v1029, %v1028
        %v1056 = vpack.c.b16 %v1031, %v1030
        %v1057 = vpack.c.b16 %v1033, %v1032
        %v1058 = vpack.c.b16 %v1035, %v1034
        %v1059 = vpack.c.b16 %v1037, %v1036
        %v1060 = vpack.c.b16 %v1039, %v1038
        %v1061 = vpack.c.b16 %v1041, %v1040
        %v1062 = vpack.c.b16 %v1043, %v1042
        %v1063 = vpack.c.b16 %v1045, %v1044
        %v1064 = vpack.c.b16 %v1047, %v1046
        %v1065 = vpack.c.b16 %v1049, %v1048
        %v1098 = vunpack.c.l.b16 %v293
        %v1099 = vunpack.c.l.b16 %v294
        %v1100 = vunpack.c.l.b16 %v295
        %v1101 = vunpack.c.l.b16 %v296
        %v1102 = vunpack.c.l.b16 %v297
        %v1103 = vunpack.c.l.b16 %v298
        %v1104 = vunpack.c.l.b16 %v299
        %v1105 = vunpack.c.l.b16 %v300
        %v1106 = vunpack.c.l.b16 %v301
        %v1107 = vunpack.c.l.b16 %v302
        %v1108 = vunpack.c.l.b16 %v303
        %v1109 = vunpack.c.l.b16 %v304
        %v1110 = vunpack.c.l.b16 %v305
        %v1111 = vunpack.c.l.b16 %v306
        %v1112 = vunpack.c.l.b16 %v307
        %v1113 = vunpack.c.l.b16 %v308
        %v1114 = vpack.c.b16 %v1099, %v1098
        %v1115 = vpack.c.b16 %v1101, %v1100
        %v1116 = vpack.c.b16 %v1103, %v1102
        %v1117 = vpack.c.b16 %v1105, %v1104
        %v1118 = vpack.c.b16 %v1107, %v1106
        %v1119 = vpack.c.b16 %v1109, %v1108
        %v1120 = vpack.c.b16 %v1111, %v1110
        %v1121 = vpack.c.b16 %v1113, %v1112
        %1130 = vmatprep.subr.bf16.mxu0 0
        %1131 = vmatpush1.bf16.msra.mxu0 %v1114
        %1132 = vmatprep.subr.bf16.mxu0 0
        %1133 = vmatpush1.bf16.msra.mxu0 %v1115
        %1134 = vmatprep.subr.bf16.mxu0 0
        %1135 = vmatpush1.bf16.msra.mxu0 %v1116
        %1136 = vmatprep.subr.bf16.mxu0 0
        %1137 = vmatpush1.bf16.msra.mxu0 %v1117
        %1138 = vmatprep.subr.bf16.mxu0 0
        %1139 = vmatpush1.bf16.msra.mxu0 %v1118
        %1140 = vmatprep.subr.bf16.mxu0 0
        %1141 = vmatpush1.bf16.msra.mxu0 %v1119
        %1142 = vmatprep.subr.bf16.mxu0 0
        %1143 = vmatpush1.bf16.msra.mxu0 %v1120
        %1144 = vmatprep.subr.bf16.mxu0 0
        %1145 = vmatpush1.bf16.msra.mxu0 %v1121
        %1146 = vmatprep.subr.bf16.mxu0 0
        %1147 = vmatpush1.bf16.msra.mxu0 0
        %1148 = vmatprep.subr.bf16.mxu0 0
        %1149 = vmatpush1.bf16.msra.mxu0 0
        %1150 = vmatprep.subr.bf16.mxu0 0
        %1151 = vmatpush1.bf16.msra.mxu0 0
        %1152 = vmatprep.subr.bf16.mxu0 0
        %1153 = vmatpush1.bf16.msra.mxu0 0
        %1154 = vmatprep.subr.bf16.mxu0 0
        %1155 = vmatpush1.bf16.msra.mxu0 0
        %1156 = vmatprep.subr.bf16.mxu0 0
        %1157 = vmatpush1.bf16.msra.mxu0 0
        %1158 = vmatprep.subr.bf16.mxu0 0
        %1159 = vmatpush1.bf16.msra.mxu0 0
        %1160 = vmatprep.subr.bf16.mxu0 0
        %1161 = vmatpush1.bf16.msra.mxu0 0
        %1162 = vmatprep.mubr.bf16.mxu0 0
        %1163 = vmatmul.mubr.bf16.gmra.mrb[0].mxu0 %v1050
        %v1164 = vpop.f32.mrb[0].mxu0
        %v1165 = vadd.f32 %v860, %v1164
        %v1166 = vpop.f32.mrb[0].mxu0
        %v1167 = vpop.f32.mrb[0].mxu0
        %v1168 = vadd.f32 %v863, %v1167
        %v1169 = vpop.f32.mrb[0].mxu0
        %1170 = vmatprep.mubr.bf16.mxu0 0
        %1171 = vmatmul.mubr.bf16.gmra.mrb[0].mxu0 %v1051
        %v1172 = vpop.f32.mrb[0].mxu0
        %v1173 = vadd.f32 %v868, %v1172
        %v1174 = vpop.f32.mrb[0].mxu0
        %v1175 = vpop.f32.mrb[0].mxu0
        %v1176 = vadd.f32 %v871, %v1175
        %v1177 = vpop.f32.mrb[0].mxu0
        %1178 = vmatprep.mubr.bf16.mxu0 0
        %1179 = vmatmul.mubr.bf16.gmra.mrb[0].mxu0 %v1052
        %v1180 = vpop.f32.mrb[0].mxu0
        %v1181 = vadd.f32 %v876, %v1180
        %v1182 = vpop.f32.mrb[0].mxu0
        %v1183 = vpop.f32.mrb[0].mxu0
        %v1184 = vadd.f32 %v879, %v1183
        %v1185 = vpop.f32.mrb[0].mxu0
        %1186 = vmatprep.mubr.bf16.mxu0 0
        %1187 = vmatmul.mubr.bf16.gmra.mrb[0].mxu0 %v1053
        %v1188 = vpop.f32.mrb[0].mxu0
        %v1189 = vadd.f32 %v884, %v1188
        %v1190 = vpop.f32.mrb[0].mxu0
        %v1191 = vpop.f32.mrb[0].mxu0
        %v1192 = vadd.f32 %v887, %v1191
        %v1193 = vpop.f32.mrb[0].mxu0
        %1194 = vmatprep.mubr.bf16.mxu0 0
        %1195 = vmatmul.mubr.bf16.gmra.mrb[0].mxu0 %v1054
        %v1196 = vpop.f32.mrb[0].mxu0
        %v1197 = vadd.f32 %v892, %v1196
        %v1198 = vpop.f32.mrb[0].mxu0
        %v1199 = vpop.f32.mrb[0].mxu0
        %v1200 = vadd.f32 %v895, %v1199
        %v1201 = vpop.f32.mrb[0].mxu0
        %1202 = vmatprep.mubr.bf16.mxu0 0
        %1203 = vmatmul.mubr.bf16.gmra.mrb[0].mxu0 %v1055
        %v1204 = vpop.f32.mrb[0].mxu0
        %v1205 = vadd.f32 %v900, %v1204
        %v1206 = vpop.f32.mrb[0].mxu0
        %v1207 = vpop.f32.mrb[0].mxu0
        %v1208 = vadd.f32 %v903, %v1207
        %v1209 = vpop.f32.mrb[0].mxu0
        %1210 = vmatprep.mubr.bf16.mxu0 0
        %1211 = vmatmul.mubr.bf16.gmra.mrb[0].mxu0 %v1056
        %v1212 = vpop.f32.mrb[0].mxu0
        %v1213 = vadd.f32 %v908, %v1212
        %v1214 = vpop.f32.mrb[0].mxu0
        %v1215 = vpop.f32.mrb[0].mxu0
        %v1216 = vadd.f32 %v911, %v1215
        %v1217 = vpop.f32.mrb[0].mxu0
        %1218 = vmatprep.mubr.bf16.mxu0 0
        %1219 = vmatmul.mubr.bf16.gmra.mrb[0].mxu0 %v1057
        %v1220 = vpop.f32.mrb[0].mxu0
        %v1221 = vadd.f32 %v916, %v1220
        %v1222 = vpop.f32.mrb[0].mxu0
        %v1223 = vpop.f32.mrb[0].mxu0
        %v1224 = vadd.f32 %v919, %v1223
        %v1225 = vpop.f32.mrb[0].mxu0
        %1226 = vmatprep.mubr.bf16.mxu0 0
        %1227 = vmatmul.mubr.bf16.gmra.mrb[0].mxu0 %v1058
        %v1228 = vpop.f32.mrb[0].mxu0
        %v1229 = vadd.f32 %v924, %v1228
        %v1230 = vpop.f32.mrb[0].mxu0
        %v1231 = vpop.f32.mrb[0].mxu0
        %v1232 = vadd.f32 %v927, %v1231
        %v1233 = vpop.f32.mrb[0].mxu0
        %1234 = vmatprep.mubr.bf16.mxu0 0
        %1235 = vmatmul.mubr.bf16.gmra.mrb[0].mxu0 %v1059
        %v1236 = vpop.f32.mrb[0].mxu0
        %v1237 = vadd.f32 %v932, %v1236
        %v1238 = vpop.f32.mrb[0].mxu0
        %v1239 = vpop.f32.mrb[0].mxu0
        %v1240 = vadd.f32 %v935, %v1239
        %v1241 = vpop.f32.mrb[0].mxu0
        %1242 = vmatprep.mubr.bf16.mxu0 0
        %1243 = vmatmul.mubr.bf16.gmra.mrb[0].mxu0 %v1060
        %v1244 = vpop.f32.mrb[0].mxu0
        %v1245 = vadd.f32 %v940, %v1244
        %v1246 = vpop.f32.mrb[0].mxu0
        %v1247 = vpop.f32.mrb[0].mxu0
        %v1248 = vadd.f32 %v943, %v1247
        %v1249 = vpop.f32.mrb[0].mxu0
        %1250 = vmatprep.mubr.bf16.mxu0 0
        %1251 = vmatmul.mubr.bf16.gmra.mrb[0].mxu0 %v1061
        %v1252 = vpop.f32.mrb[0].mxu0
        %v1253 = vadd.f32 %v948, %v1252
        %v1254 = vpop.f32.mrb[0].mxu0
        %v1255 = vpop.f32.mrb[0].mxu0
        %v1256 = vadd.f32 %v951, %v1255
        %v1257 = vpop.f32.mrb[0].mxu0
        %1258 = vmatprep.mubr.bf16.mxu0 0
        %1259 = vmatmul.mubr.bf16.gmra.mrb[0].mxu0 %v1062
        %v1260 = vpop.f32.mrb[0].mxu0
        %v1261 = vadd.f32 %v956, %v1260
        %v1262 = vpop.f32.mrb[0].mxu0
        %v1263 = vpop.f32.mrb[0].mxu0
        %v1264 = vadd.f32 %v959, %v1263
        %v1265 = vpop.f32.mrb[0].mxu0
        %1266 = vmatprep.mubr.bf16.mxu0 0
        %1267 = vmatmul.mubr.bf16.gmra.mrb[0].mxu0 %v1063
        %v1268 = vpop.f32.mrb[0].mxu0
        %v1269 = vadd.f32 %v964, %v1268
        %v1270 = vpop.f32.mrb[0].mxu0
        %v1271 = vpop.f32.mrb[0].mxu0
        %v1272 = vadd.f32 %v967, %v1271
        %v1273 = vpop.f32.mrb[0].mxu0
        %1274 = vmatprep.mubr.bf16.mxu0 0
        %1275 = vmatmul.mubr.bf16.gmra.mrb[0].mxu0 %v1064
        %v1276 = vpop.f32.mrb[0].mxu0
        %v1277 = vadd.f32 %v972, %v1276
        %v1278 = vpop.f32.mrb[0].mxu0
        %v1279 = vpop.f32.mrb[0].mxu0
        %v1280 = vadd.f32 %v975, %v1279
        %v1281 = vpop.f32.mrb[0].mxu0
        %1282 = vmatprep.mubr.bf16.mxu0 0
        %1283 = vmatmul.mubr.bf16.gmra.mrb[0].mxu0 %v1065
        %v1284 = vpop.f32.mrb[0].mxu0
        %v1285 = vadd.f32 %v980, %v1284
        %v1286 = vpop.f32.mrb[0].mxu0
        %v1287 = vpop.f32.mrb[0].mxu0
        %v1288 = vadd.f32 %v983, %v1287
        %v1289 = vpop.f32.mrb[0].mxu0
        %1290 = vdwg.mxu0
        %vm1307 = vcmask 1042432
        %vm1308 = vcmask 1046532
        %vm1309 = vmor %vm1307, %vm1308
        %v1310 = vrot.slane %v239, 5
        %v1311 = vrot.slane %v1310, 4
        %v1312 = vrot.slane %v240, 5
        %v1313 = vsel %vm1309, %v1311, %v1312
        %v1314 = vrot.slane %v1312, 4
        %v1315 = vrot.slane %v241, 5
        %v1316 = vsel %vm1309, %v1314, %v1315
        %v1317 = vrot.slane %v242, 5
        %v1318 = vrot.slane %v1317, 4
        %v1319 = vrot.slane %v243, 5
        %v1320 = vsel %vm1309, %v1318, %v1319
        %v1321 = vrot.slane %v1319, 4
        %v1322 = vrot.slane %v244, 5
        %v1323 = vsel %vm1309, %v1321, %v1322
        %v1324 = vrot.slane %v245, 5
        %v1325 = vrot.slane %v1324, 4
        %v1326 = vrot.slane %v246, 5
        %v1327 = vsel %vm1309, %v1325, %v1326
        %v1328 = vrot.slane %v1326, 4
        %v1329 = vrot.slane %v247, 5
        %v1330 = vsel %vm1309, %v1328, %v1329
        %v1331 = vrot.slane %v248, 5
        %v1332 = vrot.slane %v1331, 4
        %v1333 = vrot.slane %v249, 5
        %v1334 = vsel %vm1309, %v1332, %v1333
        %v1335 = vrot.slane %v1333, 4
        %v1336 = vrot.slane %v250, 5
        %v1337 = vsel %vm1309, %v1335, %v1336
        %v1338 = vrot.slane %v251, 5
        %v1339 = vrot.slane %v1338, 4
        %v1340 = vrot.slane %v252, 5
        %v1341 = vsel %vm1309, %v1339, %v1340
        %v1342 = vrot.slane %v1340, 4
        %v1343 = vrot.slane %v253, 5
        %v1344 = vsel %vm1309, %v1342, %v1343
        %v1345 = vrot.slane %v254, 5
        %v1346 = vrot.slane %v1345, 4
        %v1347 = vrot.slane %v255, 5
        %v1348 = vsel %vm1309, %v1346, %v1347
        %v1349 = vrot.slane %v1347, 4
        %v1350 = vrot.slane %v256, 5
        %v1351 = vsel %vm1309, %v1349, %v1350
        %v1352 = vrot.slane %v257, 5
        %v1353 = vrot.slane %v1352, 4
        %v1354 = vrot.slane %v258, 5
        %v1355 = vsel %vm1309, %v1353, %v1354
        %v1356 = vrot.slane %v1354, 4
        %v1357 = vrot.slane %v259, 5
        %v1358 = vsel %vm1309, %v1356, %v1357
        %v1359 = vrot.slane %v260, 5
        %v1360 = vrot.slane %v1359, 4
        %v1361 = vrot.slane %v261, 5
        %v1362 = vsel %vm1309, %v1360, %v1361
        %v1363 = vrot.slane %v1361, 4
        %v1364 = vrot.slane %v262, 5
        %v1365 = vsel %vm1309, %v1363, %v1364
        %v1366 = vrot.slane %v263, 5
        %v1367 = vrot.slane %v1366, 4
        %v1368 = vrot.slane %v264, 5
        %v1369 = vsel %vm1309, %v1367, %v1368
        %v1370 = vrot.slane %v1368, 4
        %v1371 = vrot.slane %v265, 5
        %v1372 = vsel %vm1309, %v1370, %v1371
        %v1373 = vrot.slane %v266, 5
        %v1374 = vrot.slane %v1373, 4
        %v1375 = vrot.slane %v267, 5
        %v1376 = vsel %vm1309, %v1374, %v1375
        %v1377 = vrot.slane %v1375, 4
        %v1378 = vrot.slane %v268, 5
        %v1379 = vsel %vm1309, %v1377, %v1378
        %v1380 = vrot.slane %v269, 5
        %v1381 = vrot.slane %v1380, 4
        %v1382 = vrot.slane %v270, 5
        %v1383 = vsel %vm1309, %v1381, %v1382
        %v1384 = vrot.slane %v1382, 4
        %v1385 = vrot.slane %v271, 5
        %v1386 = vsel %vm1309, %v1384, %v1385
        %v1387 = vrot.slane %v272, 5
        %v1388 = vrot.slane %v1387, 4
        %v1389 = vrot.slane %v273, 5
        %v1390 = vsel %vm1309, %v1388, %v1389
        %v1391 = vrot.slane %v1389, 4
        %v1392 = vrot.slane %v274, 5
        %v1393 = vsel %vm1309, %v1391, %v1392
        %v1394 = vrot.slane %v275, 5
        %v1395 = vrot.slane %v1394, 4
        %v1396 = vrot.slane %v276, 5
        %v1397 = vsel %vm1309, %v1395, %v1396
        %v1398 = vrot.slane %v1396, 4
        %v1399 = vrot.slane %v277, 5
        %v1400 = vsel %vm1309, %v1398, %v1399
        %v1401 = vrot.slane %v278, 5
        %v1402 = vrot.slane %v1401, 4
        %v1403 = vrot.slane %v279, 5
        %v1404 = vsel %vm1309, %v1402, %v1403
        %v1405 = vrot.slane %v1403, 4
        %v1406 = vrot.slane %v280, 5
        %v1407 = vsel %vm1309, %v1405, %v1406
        %v1408 = vrot.slane %v281, 5
        %v1409 = vrot.slane %v1408, 4
        %v1410 = vrot.slane %v282, 5
        %v1411 = vsel %vm1309, %v1409, %v1410
        %v1412 = vrot.slane %v1410, 4
        %v1413 = vrot.slane %v283, 5
        %v1414 = vsel %vm1309, %v1412, %v1413
        %v1415 = vrot.slane %v284, 5
        %v1416 = vrot.slane %v1415, 4
        %v1417 = vrot.slane %v285, 5
        %v1418 = vsel %vm1309, %v1416, %v1417
        %v1419 = vrot.slane %v1417, 4
        %v1420 = vrot.slane %v286, 5
        %v1421 = vsel %vm1309, %v1419, %v1420
        %s1422 = scalar_lea.vmem %s1, 128
        %v1423 = vld [vmem:[%s1422] sm:$0xf]
        %v1424 = vld [vmem:[%s1422 + $0x4] sm:$0xf]
        %v1425 = vld [vmem:[%s1422 + $0x8] sm:$0xf]
        %v1426 = vld [vmem:[%s1422 + $0xc] sm:$0xf]
        %v1427 = vld [vmem:[%s1422 + $0x10] sm:$0xf]
        %v1428 = vld [vmem:[%s1422 + $0x14] sm:$0xf]
        %v1429 = vld [vmem:[%s1422 + $0x18] sm:$0xf]
        %v1430 = vld [vmem:[%s1422 + $0x1c] sm:$0xf]
        %v1431 = vld [vmem:[%s1422 + $0x20] sm:$0xf]
        %v1432 = vld [vmem:[%s1422 + $0x24] sm:$0xf]
        %v1433 = vld [vmem:[%s1422 + $0x28] sm:$0xf]
        %v1434 = vld [vmem:[%s1422 + $0x2c] sm:$0xf]
        %v1435 = vld [vmem:[%s1422 + $0x30] sm:$0xf]
        %v1436 = vld [vmem:[%s1422 + $0x34] sm:$0xf]
        %v1437 = vld [vmem:[%s1422 + $0x38] sm:$0xf]
        %v1438 = vld [vmem:[%s1422 + $0x3c] sm:$0xf]
        %v1439 = vunpack.c.l.b16 %v1313
        %v1440 = vunpack.c.l.b16 %v1316
        %v1441 = vunpack.c.l.b16 %v1320
        %v1442 = vunpack.c.l.b16 %v1323
        %v1443 = vunpack.c.l.b16 %v1327
        %v1444 = vunpack.c.l.b16 %v1330
        %v1445 = vunpack.c.l.b16 %v1334
        %v1446 = vunpack.c.l.b16 %v1337
        %v1447 = vunpack.c.l.b16 %v1341
        %v1448 = vunpack.c.l.b16 %v1344
        %v1449 = vunpack.c.l.b16 %v1348
        %v1450 = vunpack.c.l.b16 %v1351
        %v1451 = vunpack.c.l.b16 %v1355
        %v1452 = vunpack.c.l.b16 %v1358
        %v1453 = vunpack.c.l.b16 %v1362
        %v1454 = vunpack.c.l.b16 %v1365
        %v1455 = vunpack.c.l.b16 %v1369
        %v1456 = vunpack.c.l.b16 %v1372
        %v1457 = vunpack.c.l.b16 %v1376
        %v1458 = vunpack.c.l.b16 %v1379
        %v1459 = vunpack.c.l.b16 %v1383
        %v1460 = vunpack.c.l.b16 %v1386
        %v1461 = vunpack.c.l.b16 %v1390
        %v1462 = vunpack.c.l.b16 %v1393
        %v1463 = vunpack.c.l.b16 %v1397
        %v1464 = vunpack.c.l.b16 %v1400
        %v1465 = vunpack.c.l.b16 %v1404
        %v1466 = vunpack.c.l.b16 %v1407
        %v1467 = vunpack.c.l.b16 %v1411
        %v1468 = vunpack.c.l.b16 %v1414
        %v1469 = vunpack.c.l.b16 %v1418
        %v1470 = vunpack.c.l.b16 %v1421
        %v1471 = vpack.c.b16 %v1440, %v1439
        %v1472 = vpack.c.b16 %v1442, %v1441
        %v1473 = vpack.c.b16 %v1444, %v1443
        %v1474 = vpack.c.b16 %v1446, %v1445
        %v1475 = vpack.c.b16 %v1448, %v1447
        %v1476 = vpack.c.b16 %v1450, %v1449
        %v1477 = vpack.c.b16 %v1452, %v1451
        %v1478 = vpack.c.b16 %v1454, %v1453
        %v1479 = vpack.c.b16 %v1456, %v1455
        %v1480 = vpack.c.b16 %v1458, %v1457
        %v1481 = vpack.c.b16 %v1460, %v1459
        %v1482 = vpack.c.b16 %v1462, %v1461
        %v1483 = vpack.c.b16 %v1464, %v1463
        %v1484 = vpack.c.b16 %v1466, %v1465
        %v1485 = vpack.c.b16 %v1468, %v1467
        %v1486 = vpack.c.b16 %v1470, %v1469
        %v1519 = vunpack.c.l.b16 %v1423
        %v1520 = vunpack.c.l.b16 %v1424
        %v1521 = vunpack.c.l.b16 %v1425
        %v1522 = vunpack.c.l.b16 %v1426
        %v1523 = vunpack.c.l.b16 %v1427
        %v1524 = vunpack.c.l.b16 %v1428
        %v1525 = vunpack.c.l.b16 %v1429
        %v1526 = vunpack.c.l.b16 %v1430
        %v1527 = vunpack.c.l.b16 %v1431
        %v1528 = vunpack.c.l.b16 %v1432
        %v1529 = vunpack.c.l.b16 %v1433
        %v1530 = vunpack.c.l.b16 %v1434
        %v1531 = vunpack.c.l.b16 %v1435
        %v1532 = vunpack.c.l.b16 %v1436
        %v1533 = vunpack.c.l.b16 %v1437
        %v1534 = vunpack.c.l.b16 %v1438
        %v1535 = vpack.c.b16 %v1520, %v1519
        %v1536 = vpack.c.b16 %v1522, %v1521
        %v1537 = vpack.c.b16 %v1524, %v1523
        %v1538 = vpack.c.b16 %v1526, %v1525
        %v1539 = vpack.c.b16 %v1528, %v1527
        %v1540 = vpack.c.b16 %v1530, %v1529
        %v1541 = vpack.c.b16 %v1532, %v1531
        %v1542 = vpack.c.b16 %v1534, %v1533
        %1551 = vmatprep.subr.bf16.mxu0 0
        %1552 = vmatpush1.bf16.msra.mxu0 %v1535
        %1553 = vmatprep.subr.bf16.mxu0 0
        %1554 = vmatpush1.bf16.msra.mxu0 %v1536
        %1555 = vmatprep.subr.bf16.mxu0 0
        %1556 = vmatpush1.bf16.msra.mxu0 %v1537
        %1557 = vmatprep.subr.bf16.mxu0 0
        %1558 = vmatpush1.bf16.msra.mxu0 %v1538
        %1559 = vmatprep.subr.bf16.mxu0 0
        %1560 = vmatpush1.bf16.msra.mxu0 %v1539
        %1561 = vmatprep.subr.bf16.mxu0 0
        %1562 = vmatpush1.bf16.msra.mxu0 %v1540
        %1563 = vmatprep.subr.bf16.mxu0 0
        %1564 = vmatpush1.bf16.msra.mxu0 %v1541
        %1565 = vmatprep.subr.bf16.mxu0 0
        %1566 = vmatpush1.bf16.msra.mxu0 %v1542
        %1567 = vmatprep.subr.bf16.mxu0 0
        %1568 = vmatpush1.bf16.msra.mxu0 0
        %1569 = vmatprep.subr.bf16.mxu0 0
        %1570 = vmatpush1.bf16.msra.mxu0 0
        %1571 = vmatprep.subr.bf16.mxu0 0
        %1572 = vmatpush1.bf16.msra.mxu0 0
        %1573 = vmatprep.subr.bf16.mxu0 0
        %1574 = vmatpush1.bf16.msra.mxu0 0
        %1575 = vmatprep.subr.bf16.mxu0 0
        %1576 = vmatpush1.bf16.msra.mxu0 0
        %1577 = vmatprep.subr.bf16.mxu0 0
        %1578 = vmatpush1.bf16.msra.mxu0 0
        %1579 = vmatprep.subr.bf16.mxu0 0
        %1580 = vmatpush1.bf16.msra.mxu0 0
        %1581 = vmatprep.subr.bf16.mxu0 0
        %1582 = vmatpush1.bf16.msra.mxu0 0
        %1583 = vmatprep.mubr.bf16.mxu0 0
        %1584 = vmatmul.mubr.bf16.gmra.mrb[0].mxu0 %v1471
        %v1585 = vpop.f32.mrb[0].mxu0
        %v1586 = vadd.f32 0.0, %v1585
        %v1587 = vpop.f32.mrb[0].mxu0
        %v1588 = vpop.f32.mrb[0].mxu0
        %v1589 = vadd.f32 0.0, %v1588
        %v1590 = vpop.f32.mrb[0].mxu0
        %1591 = vmatprep.mubr.bf16.mxu0 0
        %1592 = vmatmul.mubr.bf16.gmra.mrb[0].mxu0 %v1472
        %v1593 = vpop.f32.mrb[0].mxu0
        %v1594 = vadd.f32 0.0, %v1593
        %v1595 = vpop.f32.mrb[0].mxu0
        %v1596 = vpop.f32.mrb[0].mxu0
        %v1597 = vadd.f32 0.0, %v1596
        %v1598 = vpop.f32.mrb[0].mxu0
        %1599 = vmatprep.mubr.bf16.mxu0 0
        %1600 = vmatmul.mubr.bf16.gmra.mrb[0].mxu0 %v1473
        %v1601 = vpop.f32.mrb[0].mxu0
        %v1602 = vadd.f32 0.0, %v1601
        %v1603 = vpop.f32.mrb[0].mxu0
        %v1604 = vpop.f32.mrb[0].mxu0
        %v1605 = vadd.f32 0.0, %v1604
        %v1606 = vpop.f32.mrb[0].mxu0
        %1607 = vmatprep.mubr.bf16.mxu0 0
        %1608 = vmatmul.mubr.bf16.gmra.mrb[0].mxu0 %v1474
        %v1609 = vpop.f32.mrb[0].mxu0
        %v1610 = vadd.f32 0.0, %v1609
        %v1611 = vpop.f32.mrb[0].mxu0
        %v1612 = vpop.f32.mrb[0].mxu0
        %v1613 = vadd.f32 0.0, %v1612
        %v1614 = vpop.f32.mrb[0].mxu0
        %1615 = vmatprep.mubr.bf16.mxu0 0
        %1616 = vmatmul.mubr.bf16.gmra.mrb[0].mxu0 %v1475
        %v1617 = vpop.f32.mrb[0].mxu0
        %v1618 = vadd.f32 0.0, %v1617
        %v1619 = vpop.f32.mrb[0].mxu0
        %v1620 = vpop.f32.mrb[0].mxu0
        %v1621 = vadd.f32 0.0, %v1620
        %v1622 = vpop.f32.mrb[0].mxu0
        %1623 = vmatprep.mubr.bf16.mxu0 0
        %1624 = vmatmul.mubr.bf16.gmra.mrb[0].mxu0 %v1476
        %v1625 = vpop.f32.mrb[0].mxu0
        %v1626 = vadd.f32 0.0, %v1625
        %v1627 = vpop.f32.mrb[0].mxu0
        %v1628 = vpop.f32.mrb[0].mxu0
        %v1629 = vadd.f32 0.0, %v1628
        %v1630 = vpop.f32.mrb[0].mxu0
        %1631 = vmatprep.mubr.bf16.mxu0 0
        %1632 = vmatmul.mubr.bf16.gmra.mrb[0].mxu0 %v1477
        %v1633 = vpop.f32.mrb[0].mxu0
        %v1634 = vadd.f32 0.0, %v1633
        %v1635 = vpop.f32.mrb[0].mxu0
        %v1636 = vpop.f32.mrb[0].mxu0
        %v1637 = vadd.f32 0.0, %v1636
        %v1638 = vpop.f32.mrb[0].mxu0
        %1639 = vmatprep.mubr.bf16.mxu0 0
        %1640 = vmatmul.mubr.bf16.gmra.mrb[0].mxu0 %v1478
        %v1641 = vpop.f32.mrb[0].mxu0
        %v1642 = vadd.f32 0.0, %v1641
        %v1643 = vpop.f32.mrb[0].mxu0
        %v1644 = vpop.f32.mrb[0].mxu0
        %v1645 = vadd.f32 0.0, %v1644
        %v1646 = vpop.f32.mrb[0].mxu0
        %1647 = vmatprep.mubr.bf16.mxu0 0
        %1648 = vmatmul.mubr.bf16.gmra.mrb[0].mxu0 %v1479
        %v1649 = vpop.f32.mrb[0].mxu0
        %v1650 = vadd.f32 0.0, %v1649
        %v1651 = vpop.f32.mrb[0].mxu0
        %v1652 = vpop.f32.mrb[0].mxu0
        %v1653 = vadd.f32 0.0, %v1652
        %v1654 = vpop.f32.mrb[0].mxu0
        %1655 = vmatprep.mubr.bf16.mxu0 0
        %1656 = vmatmul.mubr.bf16.gmra.mrb[0].mxu0 %v1480
        %v1657 = vpop.f32.mrb[0].mxu0
        %v1658 = vadd.f32 0.0, %v1657
        %v1659 = vpop.f32.mrb[0].mxu0
        %v1660 = vpop.f32.mrb[0].mxu0
        %v1661 = vadd.f32 0.0, %v1660
        %v1662 = vpop.f32.mrb[0].mxu0
        %1663 = vmatprep.mubr.bf16.mxu0 0
        %1664 = vmatmul.mubr.bf16.gmra.mrb[0].mxu0 %v1481
        %v1665 = vpop.f32.mrb[0].mxu0
        %v1666 = vadd.f32 0.0, %v1665
        %v1667 = vpop.f32.mrb[0].mxu0
        %v1668 = vpop.f32.mrb[0].mxu0
        %v1669 = vadd.f32 0.0, %v1668
        %v1670 = vpop.f32.mrb[0].mxu0
        %1671 = vmatprep.mubr.bf16.mxu0 0
        %1672 = vmatmul.mubr.bf16.gmra.mrb[0].mxu0 %v1482
        %v1673 = vpop.f32.mrb[0].mxu0
        %v1674 = vadd.f32 0.0, %v1673
        %v1675 = vpop.f32.mrb[0].mxu0
        %v1676 = vpop.f32.mrb[0].mxu0
        %v1677 = vadd.f32 0.0, %v1676
        %v1678 = vpop.f32.mrb[0].mxu0
        %1679 = vmatprep.mubr.bf16.mxu0 0
        %1680 = vmatmul.mubr.bf16.gmra.mrb[0].mxu0 %v1483
        %v1681 = vpop.f32.mrb[0].mxu0
        %v1682 = vadd.f32 0.0, %v1681
        %v1683 = vpop.f32.mrb[0].mxu0
        %v1684 = vpop.f32.mrb[0].mxu0
        %v1685 = vadd.f32 0.0, %v1684
        %v1686 = vpop.f32.mrb[0].mxu0
        %1687 = vmatprep.mubr.bf16.mxu0 0
        %1688 = vmatmul.mubr.bf16.gmra.mrb[0].mxu0 %v1484
        %v1689 = vpop.f32.mrb[0].mxu0
        %v1690 = vadd.f32 0.0, %v1689
        %v1691 = vpop.f32.mrb[0].mxu0
        %v1692 = vpop.f32.mrb[0].mxu0
        %v1693 = vadd.f32 0.0, %v1692
        %v1694 = vpop.f32.mrb[0].mxu0
        %1695 = vmatprep.mubr.bf16.mxu0 0
        %1696 = vmatmul.mubr.bf16.gmra.mrb[0].mxu0 %v1485
        %v1697 = vpop.f32.mrb[0].mxu0
        %v1698 = vadd.f32 0.0, %v1697
        %v1699 = vpop.f32.mrb[0].mxu0
        %v1700 = vpop.f32.mrb[0].mxu0
        %v1701 = vadd.f32 0.0, %v1700
        %v1702 = vpop.f32.mrb[0].mxu0
        %1703 = vmatprep.mubr.bf16.mxu0 0
        %1704 = vmatmul.mubr.bf16.gmra.mrb[0].mxu0 %v1486
        %v1705 = vpop.f32.mrb[0].mxu0
        %v1706 = vadd.f32 0.0, %v1705
        %v1707 = vpop.f32.mrb[0].mxu0
        %v1708 = vpop.f32.mrb[0].mxu0
        %v1709 = vadd.f32 0.0, %v1708
        %v1710 = vpop.f32.mrb[0].mxu0
        %1711 = vdwg.mxu0
        %v1712 = vadd.f32 %v1165, %v1586
        %v1713 = vadd.f32 %v1168, %v1589
        %v1714 = vadd.f32 %v1173, %v1594
        %v1715 = vadd.f32 %v1176, %v1597
        %v1716 = vadd.f32 %v1181, %v1602
        %v1717 = vadd.f32 %v1184, %v1605
        %v1718 = vadd.f32 %v1189, %v1610
        %v1719 = vadd.f32 %v1192, %v1613
        %v1720 = vadd.f32 %v1197, %v1618
        %v1721 = vadd.f32 %v1200, %v1621
        %v1722 = vadd.f32 %v1205, %v1626
        %v1723 = vadd.f32 %v1208, %v1629
        %v1724 = vadd.f32 %v1213, %v1634
        %v1725 = vadd.f32 %v1216, %v1637
        %v1726 = vadd.f32 %v1221, %v1642
        %v1727 = vadd.f32 %v1224, %v1645
        %v1728 = vadd.f32 %v1229, %v1650
        %v1729 = vadd.f32 %v1232, %v1653
        %v1730 = vadd.f32 %v1237, %v1658
        %v1731 = vadd.f32 %v1240, %v1661
        %v1732 = vadd.f32 %v1245, %v1666
        %v1733 = vadd.f32 %v1248, %v1669
        %v1734 = vadd.f32 %v1253, %v1674
        %v1735 = vadd.f32 %v1256, %v1677
        %v1736 = vadd.f32 %v1261, %v1682
        %v1737 = vadd.f32 %v1264, %v1685
        %v1738 = vadd.f32 %v1269, %v1690
        %v1739 = vadd.f32 %v1272, %v1693
        %v1740 = vadd.f32 %v1277, %v1698
        %v1741 = vadd.f32 %v1280, %v1701
        %v1742 = vadd.f32 %v1285, %v1706
        %v1743 = vadd.f32 %v1288, %v1709
        %s1744 = scalar_lea.vmem %s1, 192
        %v1745 = vld [vmem:[%s1744] sm:$0xf]
        %v1746 = vld [vmem:[%s1744 + $0x4] sm:$0xf]
        %v1747 = vld [vmem:[%s1744 + $0x8] sm:$0xf]
        %v1748 = vld [vmem:[%s1744 + $0xc] sm:$0xf]
        %v1749 = vld [vmem:[%s1744 + $0x10] sm:$0xf]
        %v1750 = vld [vmem:[%s1744 + $0x14] sm:$0xf]
        %v1751 = vld [vmem:[%s1744 + $0x18] sm:$0xf]
        %v1752 = vld [vmem:[%s1744 + $0x1c] sm:$0xf]
        %v1753 = vld [vmem:[%s1744 + $0x20] sm:$0xf]
        %v1754 = vld [vmem:[%s1744 + $0x24] sm:$0xf]
        %v1755 = vld [vmem:[%s1744 + $0x28] sm:$0xf]
        %v1756 = vld [vmem:[%s1744 + $0x2c] sm:$0xf]
        %v1757 = vld [vmem:[%s1744 + $0x30] sm:$0xf]
        %v1758 = vld [vmem:[%s1744 + $0x34] sm:$0xf]
        %v1759 = vld [vmem:[%s1744 + $0x38] sm:$0xf]
        %v1760 = vld [vmem:[%s1744 + $0x3c] sm:$0xf]
        %v1763 = vunpack.c.l.b16 %v287
        %v1764 = vunpack.c.l.b16 %v288
        %v1765 = vpack.c.b16 %v1764, %v1763
        %v1783 = vunpack.c.l.b16 %v1745
        %v1784 = vunpack.c.l.b16 %v1746
        %v1785 = vunpack.c.l.b16 %v1747
        %v1786 = vunpack.c.l.b16 %v1748
        %v1787 = vunpack.c.l.b16 %v1749
        %v1788 = vunpack.c.l.b16 %v1750
        %v1789 = vunpack.c.l.b16 %v1751
        %v1790 = vunpack.c.l.b16 %v1752
        %v1791 = vunpack.c.l.b16 %v1753
        %v1792 = vunpack.c.l.b16 %v1754
        %v1793 = vunpack.c.l.b16 %v1755
        %v1794 = vunpack.c.l.b16 %v1756
        %v1795 = vunpack.c.l.b16 %v1757
        %v1796 = vunpack.c.l.b16 %v1758
        %v1797 = vunpack.c.l.b16 %v1759
        %v1798 = vunpack.c.l.b16 %v1760
        %v1799 = vpack.c.b16 %v1784, %v1783
        %v1800 = vpack.c.b16 %v1786, %v1785
        %v1801 = vpack.c.b16 %v1788, %v1787
        %v1802 = vpack.c.b16 %v1790, %v1789
        %v1803 = vpack.c.b16 %v1792, %v1791
        %v1804 = vpack.c.b16 %v1794, %v1793
        %v1805 = vpack.c.b16 %v1796, %v1795
        %v1806 = vpack.c.b16 %v1798, %v1797
        %1815 = vmatprep.subr.bf16.mxu0 0
        %1816 = vmatpush1.bf16.msra.mxu0 %v1799
        %1817 = vmatprep.subr.bf16.mxu0 0
        %1818 = vmatpush1.bf16.msra.mxu0 %v1800
        %1819 = vmatprep.subr.bf16.mxu0 0
        %1820 = vmatpush1.bf16.msra.mxu0 %v1801
        %1821 = vmatprep.subr.bf16.mxu0 0
        %1822 = vmatpush1.bf16.msra.mxu0 %v1802
        %1823 = vmatprep.subr.bf16.mxu0 0
        %1824 = vmatpush1.bf16.msra.mxu0 %v1803
        %1825 = vmatprep.subr.bf16.mxu0 0
        %1826 = vmatpush1.bf16.msra.mxu0 %v1804
        %1827 = vmatprep.subr.bf16.mxu0 0
        %1828 = vmatpush1.bf16.msra.mxu0 %v1805
        %1829 = vmatprep.subr.bf16.mxu0 0
        %1830 = vmatpush1.bf16.msra.mxu0 %v1806
        %1831 = vmatprep.subr.bf16.mxu0 0
        %1832 = vmatpush1.bf16.msra.mxu0 0
        %1833 = vmatprep.subr.bf16.mxu0 0
        %1834 = vmatpush1.bf16.msra.mxu0 0
        %1835 = vmatprep.subr.bf16.mxu0 0
        %1836 = vmatpush1.bf16.msra.mxu0 0
        %1837 = vmatprep.subr.bf16.mxu0 0
        %1838 = vmatpush1.bf16.msra.mxu0 0
        %1839 = vmatprep.subr.bf16.mxu0 0
        %1840 = vmatpush1.bf16.msra.mxu0 0
        %1841 = vmatprep.subr.bf16.mxu0 0
        %1842 = vmatpush1.bf16.msra.mxu0 0
        %1843 = vmatprep.subr.bf16.mxu0 0
        %1844 = vmatpush1.bf16.msra.mxu0 0
        %1845 = vmatprep.subr.bf16.mxu0 0
        %1846 = vmatpush1.bf16.msra.mxu0 0
        %1847 = vmatprep.mubr.bf16.mxu0 0
        %1848 = vmatmul.mubr.bf16.gmra.mrb[0].mxu0 %v1051
        %v1849 = vpop.f32.mrb[0].mxu0
        %v1850 = vadd.f32 0.0, %v1849
        %v1851 = vpop.f32.mrb[0].mxu0
        %v1852 = vpop.f32.mrb[0].mxu0
        %v1853 = vadd.f32 0.0, %v1852
        %v1854 = vpop.f32.mrb[0].mxu0
        %1855 = vmatprep.mubr.bf16.mxu0 0
        %1856 = vmatmul.mubr.bf16.gmra.mrb[0].mxu0 %v1052
        %v1857 = vpop.f32.mrb[0].mxu0
        %v1858 = vadd.f32 0.0, %v1857
        %v1859 = vpop.f32.mrb[0].mxu0
        %v1860 = vpop.f32.mrb[0].mxu0
        %v1861 = vadd.f32 0.0, %v1860
        %v1862 = vpop.f32.mrb[0].mxu0
        %1863 = vmatprep.mubr.bf16.mxu0 0
        %1864 = vmatmul.mubr.bf16.gmra.mrb[0].mxu0 %v1053
        %v1865 = vpop.f32.mrb[0].mxu0
        %v1866 = vadd.f32 0.0, %v1865
        %v1867 = vpop.f32.mrb[0].mxu0
        %v1868 = vpop.f32.mrb[0].mxu0
        %v1869 = vadd.f32 0.0, %v1868
        %v1870 = vpop.f32.mrb[0].mxu0
        %1871 = vmatprep.mubr.bf16.mxu0 0
        %1872 = vmatmul.mubr.bf16.gmra.mrb[0].mxu0 %v1054
        %v1873 = vpop.f32.mrb[0].mxu0
        %v1874 = vadd.f32 0.0, %v1873
        %v1875 = vpop.f32.mrb[0].mxu0
        %v1876 = vpop.f32.mrb[0].mxu0
        %v1877 = vadd.f32 0.0, %v1876
        %v1878 = vpop.f32.mrb[0].mxu0
        %1879 = vmatprep.mubr.bf16.mxu0 0
        %1880 = vmatmul.mubr.bf16.gmra.mrb[0].mxu0 %v1055
        %v1881 = vpop.f32.mrb[0].mxu0
        %v1882 = vadd.f32 0.0, %v1881
        %v1883 = vpop.f32.mrb[0].mxu0
        %v1884 = vpop.f32.mrb[0].mxu0
        %v1885 = vadd.f32 0.0, %v1884
        %v1886 = vpop.f32.mrb[0].mxu0
        %1887 = vmatprep.mubr.bf16.mxu0 0
        %1888 = vmatmul.mubr.bf16.gmra.mrb[0].mxu0 %v1056
        %v1889 = vpop.f32.mrb[0].mxu0
        %v1890 = vadd.f32 0.0, %v1889
        %v1891 = vpop.f32.mrb[0].mxu0
        %v1892 = vpop.f32.mrb[0].mxu0
        %v1893 = vadd.f32 0.0, %v1892
        %v1894 = vpop.f32.mrb[0].mxu0
        %1895 = vmatprep.mubr.bf16.mxu0 0
        %1896 = vmatmul.mubr.bf16.gmra.mrb[0].mxu0 %v1057
        %v1897 = vpop.f32.mrb[0].mxu0
        %v1898 = vadd.f32 0.0, %v1897
        %v1899 = vpop.f32.mrb[0].mxu0
        %v1900 = vpop.f32.mrb[0].mxu0
        %v1901 = vadd.f32 0.0, %v1900
        %v1902 = vpop.f32.mrb[0].mxu0
        %1903 = vmatprep.mubr.bf16.mxu0 0
        %1904 = vmatmul.mubr.bf16.gmra.mrb[0].mxu0 %v1058
        %v1905 = vpop.f32.mrb[0].mxu0
        %v1906 = vadd.f32 0.0, %v1905
        %v1907 = vpop.f32.mrb[0].mxu0
        %v1908 = vpop.f32.mrb[0].mxu0
        %v1909 = vadd.f32 0.0, %v1908
        %v1910 = vpop.f32.mrb[0].mxu0
        %1911 = vmatprep.mubr.bf16.mxu0 0
        %1912 = vmatmul.mubr.bf16.gmra.mrb[0].mxu0 %v1059
        %v1913 = vpop.f32.mrb[0].mxu0
        %v1914 = vadd.f32 0.0, %v1913
        %v1915 = vpop.f32.mrb[0].mxu0
        %v1916 = vpop.f32.mrb[0].mxu0
        %v1917 = vadd.f32 0.0, %v1916
        %v1918 = vpop.f32.mrb[0].mxu0
        %1919 = vmatprep.mubr.bf16.mxu0 0
        %1920 = vmatmul.mubr.bf16.gmra.mrb[0].mxu0 %v1060
        %v1921 = vpop.f32.mrb[0].mxu0
        %v1922 = vadd.f32 0.0, %v1921
        %v1923 = vpop.f32.mrb[0].mxu0
        %v1924 = vpop.f32.mrb[0].mxu0
        %v1925 = vadd.f32 0.0, %v1924
        %v1926 = vpop.f32.mrb[0].mxu0
        %1927 = vmatprep.mubr.bf16.mxu0 0
        %1928 = vmatmul.mubr.bf16.gmra.mrb[0].mxu0 %v1061
        %v1929 = vpop.f32.mrb[0].mxu0
        %v1930 = vadd.f32 0.0, %v1929
        %v1931 = vpop.f32.mrb[0].mxu0
        %v1932 = vpop.f32.mrb[0].mxu0
        %v1933 = vadd.f32 0.0, %v1932
        %v1934 = vpop.f32.mrb[0].mxu0
        %1935 = vmatprep.mubr.bf16.mxu0 0
        %1936 = vmatmul.mubr.bf16.gmra.mrb[0].mxu0 %v1062
        %v1937 = vpop.f32.mrb[0].mxu0
        %v1938 = vadd.f32 0.0, %v1937
        %v1939 = vpop.f32.mrb[0].mxu0
        %v1940 = vpop.f32.mrb[0].mxu0
        %v1941 = vadd.f32 0.0, %v1940
        %v1942 = vpop.f32.mrb[0].mxu0
        %1943 = vmatprep.mubr.bf16.mxu0 0
        %1944 = vmatmul.mubr.bf16.gmra.mrb[0].mxu0 %v1063
        %v1945 = vpop.f32.mrb[0].mxu0
        %v1946 = vadd.f32 0.0, %v1945
        %v1947 = vpop.f32.mrb[0].mxu0
        %v1948 = vpop.f32.mrb[0].mxu0
        %v1949 = vadd.f32 0.0, %v1948
        %v1950 = vpop.f32.mrb[0].mxu0
        %1951 = vmatprep.mubr.bf16.mxu0 0
        %1952 = vmatmul.mubr.bf16.gmra.mrb[0].mxu0 %v1064
        %v1953 = vpop.f32.mrb[0].mxu0
        %v1954 = vadd.f32 0.0, %v1953
        %v1955 = vpop.f32.mrb[0].mxu0
        %v1956 = vpop.f32.mrb[0].mxu0
        %v1957 = vadd.f32 0.0, %v1956
        %v1958 = vpop.f32.mrb[0].mxu0
        %1959 = vmatprep.mubr.bf16.mxu0 0
        %1960 = vmatmul.mubr.bf16.gmra.mrb[0].mxu0 %v1065
        %v1961 = vpop.f32.mrb[0].mxu0
        %v1962 = vadd.f32 0.0, %v1961
        %v1963 = vpop.f32.mrb[0].mxu0
        %v1964 = vpop.f32.mrb[0].mxu0
        %v1965 = vadd.f32 0.0, %v1964
        %v1966 = vpop.f32.mrb[0].mxu0
        %1967 = vmatprep.mubr.bf16.mxu0 0
        %1968 = vmatmul.mubr.bf16.gmra.mrb[0].mxu0 %v1765
        %v1969 = vpop.f32.mrb[0].mxu0
        %v1970 = vadd.f32 0.0, %v1969
        %v1971 = vpop.f32.mrb[0].mxu0
        %v1972 = vpop.f32.mrb[0].mxu0
        %v1973 = vadd.f32 0.0, %v1972
        %v1974 = vpop.f32.mrb[0].mxu0
        %1975 = vdwg.mxu0
        %v1976 = vadd.f32 %v1712, %v1850
        %v1977 = vadd.f32 %v1713, %v1853
        %v1978 = vadd.f32 %v1714, %v1858
        %v1979 = vadd.f32 %v1715, %v1861
        %v1980 = vadd.f32 %v1716, %v1866
        %v1981 = vadd.f32 %v1717, %v1869
        %v1982 = vadd.f32 %v1718, %v1874
        %v1983 = vadd.f32 %v1719, %v1877
        %v1984 = vadd.f32 %v1720, %v1882
        %v1985 = vadd.f32 %v1721, %v1885
        %v1986 = vadd.f32 %v1722, %v1890
        %v1987 = vadd.f32 %v1723, %v1893
        %v1988 = vadd.f32 %v1724, %v1898
        %v1989 = vadd.f32 %v1725, %v1901
        %v1990 = vadd.f32 %v1726, %v1906
        %v1991 = vadd.f32 %v1727, %v1909
        %v1992 = vadd.f32 %v1728, %v1914
        %v1993 = vadd.f32 %v1729, %v1917
        %v1994 = vadd.f32 %v1730, %v1922
        %v1995 = vadd.f32 %v1731, %v1925
        %v1996 = vadd.f32 %v1732, %v1930
        %v1997 = vadd.f32 %v1733, %v1933
        %v1998 = vadd.f32 %v1734, %v1938
        %v1999 = vadd.f32 %v1735, %v1941
        %v2000 = vadd.f32 %v1736, %v1946
        %v2001 = vadd.f32 %v1737, %v1949
        %v2002 = vadd.f32 %v1738, %v1954
        %v2003 = vadd.f32 %v1739, %v1957
        %v2004 = vadd.f32 %v1740, %v1962
        %v2005 = vadd.f32 %v1741, %v1965
        %v2006 = vadd.f32 %v1742, %v1970
        %v2007 = vadd.f32 %v1743, %v1973
        %v2009 = vshrl.u32 %v287, 16
        %v2011 = vrot.slane %v2009, 4
        %v2012 = vshll.u32 %v287, 16
        %v2014 = vrot.slane %v2012, 5
        %v2015 = vor.u32 %v2011, %v2014
        %v2016 = vrot.slane %v2015, 4
        %v2018 = vshll.u32 %v288, 16
        %v2020 = vrot.slane %v2018, 5
        %v2021 = vsel %vm311, %v2016, %v2020
        %v2022 = vshrl.u32 %v288, 16
        %v2024 = vrot.slane %v2022, 4
        %v2025 = vor.u32 %v2024, %v2020
        %v2026 = vrot.slane %v2025, 4
        %v2028 = vshll.u32 %v289, 16
        %v2030 = vrot.slane %v2028, 5
        %v2031 = vsel %vm311, %v2026, %v2030
        %s2064 = scalar_lea.vmem %s1, 256
        %v2065 = vld [vmem:[%s2064] sm:$0xf]
        %v2066 = vld [vmem:[%s2064 + $0x4] sm:$0xf]
        %v2067 = vld [vmem:[%s2064 + $0x8] sm:$0xf]
        %v2068 = vld [vmem:[%s2064 + $0xc] sm:$0xf]
        %v2069 = vld [vmem:[%s2064 + $0x10] sm:$0xf]
        %v2070 = vld [vmem:[%s2064 + $0x14] sm:$0xf]
        %v2071 = vld [vmem:[%s2064 + $0x18] sm:$0xf]
        %v2072 = vld [vmem:[%s2064 + $0x1c] sm:$0xf]
        %v2073 = vld [vmem:[%s2064 + $0x20] sm:$0xf]
        %v2074 = vld [vmem:[%s2064 + $0x24] sm:$0xf]
        %v2075 = vld [vmem:[%s2064 + $0x28] sm:$0xf]
        %v2076 = vld [vmem:[%s2064 + $0x2c] sm:$0xf]
        %v2077 = vld [vmem:[%s2064 + $0x30] sm:$0xf]
        %v2078 = vld [vmem:[%s2064 + $0x34] sm:$0xf]
        %v2079 = vld [vmem:[%s2064 + $0x38] sm:$0xf]
        %v2080 = vld [vmem:[%s2064 + $0x3c] sm:$0xf]
        %v2081 = vunpack.c.l.b16 %v2021
        %v2082 = vunpack.c.l.b16 %v2031
        %v2083 = vpack.c.b16 %v2082, %v2081
        %v2101 = vunpack.c.l.b16 %v2065
        %v2102 = vunpack.c.l.b16 %v2066
        %v2103 = vunpack.c.l.b16 %v2067
        %v2104 = vunpack.c.l.b16 %v2068
        %v2105 = vunpack.c.l.b16 %v2069
        %v2106 = vunpack.c.l.b16 %v2070
        %v2107 = vunpack.c.l.b16 %v2071
        %v2108 = vunpack.c.l.b16 %v2072
        %v2109 = vunpack.c.l.b16 %v2073
        %v2110 = vunpack.c.l.b16 %v2074
        %v2111 = vunpack.c.l.b16 %v2075
        %v2112 = vunpack.c.l.b16 %v2076
        %v2113 = vunpack.c.l.b16 %v2077
        %v2114 = vunpack.c.l.b16 %v2078
        %v2115 = vunpack.c.l.b16 %v2079
        %v2116 = vunpack.c.l.b16 %v2080
        %v2117 = vpack.c.b16 %v2102, %v2101
        %v2118 = vpack.c.b16 %v2104, %v2103
        %v2119 = vpack.c.b16 %v2106, %v2105
        %v2120 = vpack.c.b16 %v2108, %v2107
        %v2121 = vpack.c.b16 %v2110, %v2109
        %v2122 = vpack.c.b16 %v2112, %v2111
        %v2123 = vpack.c.b16 %v2114, %v2113
        %v2124 = vpack.c.b16 %v2116, %v2115
        %2133 = vmatprep.subr.bf16.mxu0 0
        %2134 = vmatpush1.bf16.msra.mxu0 %v2117
        %2135 = vmatprep.subr.bf16.mxu0 0
        %2136 = vmatpush1.bf16.msra.mxu0 %v2118
        %2137 = vmatprep.subr.bf16.mxu0 0
        %2138 = vmatpush1.bf16.msra.mxu0 %v2119
        %2139 = vmatprep.subr.bf16.mxu0 0
        %2140 = vmatpush1.bf16.msra.mxu0 %v2120
        %2141 = vmatprep.subr.bf16.mxu0 0
        %2142 = vmatpush1.bf16.msra.mxu0 %v2121
        %2143 = vmatprep.subr.bf16.mxu0 0
        %2144 = vmatpush1.bf16.msra.mxu0 %v2122
        %2145 = vmatprep.subr.bf16.mxu0 0
        %2146 = vmatpush1.bf16.msra.mxu0 %v2123
        %2147 = vmatprep.subr.bf16.mxu0 0
        %2148 = vmatpush1.bf16.msra.mxu0 %v2124
        %2149 = vmatprep.subr.bf16.mxu0 0
        %2150 = vmatpush1.bf16.msra.mxu0 0
        %2151 = vmatprep.subr.bf16.mxu0 0
        %2152 = vmatpush1.bf16.msra.mxu0 0
        %2153 = vmatprep.subr.bf16.mxu0 0
        %2154 = vmatpush1.bf16.msra.mxu0 0
        %2155 = vmatprep.subr.bf16.mxu0 0
        %2156 = vmatpush1.bf16.msra.mxu0 0
        %2157 = vmatprep.subr.bf16.mxu0 0
        %2158 = vmatpush1.bf16.msra.mxu0 0
        %2159 = vmatprep.subr.bf16.mxu0 0
        %2160 = vmatpush1.bf16.msra.mxu0 0
        %2161 = vmatprep.subr.bf16.mxu0 0
        %2162 = vmatpush1.bf16.msra.mxu0 0
        %2163 = vmatprep.subr.bf16.mxu0 0
        %2164 = vmatpush1.bf16.msra.mxu0 0
        %2165 = vmatprep.mubr.bf16.mxu0 0
        %2166 = vmatmul.mubr.bf16.gmra.mrb[0].mxu0 %v746
        %v2167 = vpop.f32.mrb[0].mxu0
        %v2168 = vadd.f32 0.0, %v2167
        %v2169 = vpop.f32.mrb[0].mxu0
        %v2170 = vpop.f32.mrb[0].mxu0
        %v2171 = vadd.f32 0.0, %v2170
        %v2172 = vpop.f32.mrb[0].mxu0
        %2173 = vmatprep.mubr.bf16.mxu0 0
        %2174 = vmatmul.mubr.bf16.gmra.mrb[0].mxu0 %v747
        %v2175 = vpop.f32.mrb[0].mxu0
        %v2176 = vadd.f32 0.0, %v2175
        %v2177 = vpop.f32.mrb[0].mxu0
        %v2178 = vpop.f32.mrb[0].mxu0
        %v2179 = vadd.f32 0.0, %v2178
        %v2180 = vpop.f32.mrb[0].mxu0
        %2181 = vmatprep.mubr.bf16.mxu0 0
        %2182 = vmatmul.mubr.bf16.gmra.mrb[0].mxu0 %v748
        %v2183 = vpop.f32.mrb[0].mxu0
        %v2184 = vadd.f32 0.0, %v2183
        %v2185 = vpop.f32.mrb[0].mxu0
        %v2186 = vpop.f32.mrb[0].mxu0
        %v2187 = vadd.f32 0.0, %v2186
        %v2188 = vpop.f32.mrb[0].mxu0
        %2189 = vmatprep.mubr.bf16.mxu0 0
        %2190 = vmatmul.mubr.bf16.gmra.mrb[0].mxu0 %v749
        %v2191 = vpop.f32.mrb[0].mxu0
        %v2192 = vadd.f32 0.0, %v2191
        %v2193 = vpop.f32.mrb[0].mxu0
        %v2194 = vpop.f32.mrb[0].mxu0
        %v2195 = vadd.f32 0.0, %v2194
        %v2196 = vpop.f32.mrb[0].mxu0
        %2197 = vmatprep.mubr.bf16.mxu0 0
        %2198 = vmatmul.mubr.bf16.gmra.mrb[0].mxu0 %v750
        %v2199 = vpop.f32.mrb[0].mxu0
        %v2200 = vadd.f32 0.0, %v2199
        %v2201 = vpop.f32.mrb[0].mxu0
        %v2202 = vpop.f32.mrb[0].mxu0
        %v2203 = vadd.f32 0.0, %v2202
        %v2204 = vpop.f32.mrb[0].mxu0
        %2205 = vmatprep.mubr.bf16.mxu0 0
        %2206 = vmatmul.mubr.bf16.gmra.mrb[0].mxu0 %v751
        %v2207 = vpop.f32.mrb[0].mxu0
        %v2208 = vadd.f32 0.0, %v2207
        %v2209 = vpop.f32.mrb[0].mxu0
        %v2210 = vpop.f32.mrb[0].mxu0
        %v2211 = vadd.f32 0.0, %v2210
        %v2212 = vpop.f32.mrb[0].mxu0
        %2213 = vmatprep.mubr.bf16.mxu0 0
        %2214 = vmatmul.mubr.bf16.gmra.mrb[0].mxu0 %v752
        %v2215 = vpop.f32.mrb[0].mxu0
        %v2216 = vadd.f32 0.0, %v2215
        %v2217 = vpop.f32.mrb[0].mxu0
        %v2218 = vpop.f32.mrb[0].mxu0
        %v2219 = vadd.f32 0.0, %v2218
        %v2220 = vpop.f32.mrb[0].mxu0
        %2221 = vmatprep.mubr.bf16.mxu0 0
        %2222 = vmatmul.mubr.bf16.gmra.mrb[0].mxu0 %v753
        %v2223 = vpop.f32.mrb[0].mxu0
        %v2224 = vadd.f32 0.0, %v2223
        %v2225 = vpop.f32.mrb[0].mxu0
        %v2226 = vpop.f32.mrb[0].mxu0
        %v2227 = vadd.f32 0.0, %v2226
        %v2228 = vpop.f32.mrb[0].mxu0
        %2229 = vmatprep.mubr.bf16.mxu0 0
        %2230 = vmatmul.mubr.bf16.gmra.mrb[0].mxu0 %v754
        %v2231 = vpop.f32.mrb[0].mxu0
        %v2232 = vadd.f32 0.0, %v2231
        %v2233 = vpop.f32.mrb[0].mxu0
        %v2234 = vpop.f32.mrb[0].mxu0
        %v2235 = vadd.f32 0.0, %v2234
        %v2236 = vpop.f32.mrb[0].mxu0
        %2237 = vmatprep.mubr.bf16.mxu0 0
        %2238 = vmatmul.mubr.bf16.gmra.mrb[0].mxu0 %v755
        %v2239 = vpop.f32.mrb[0].mxu0
        %v2240 = vadd.f32 0.0, %v2239
        %v2241 = vpop.f32.mrb[0].mxu0
        %v2242 = vpop.f32.mrb[0].mxu0
        %v2243 = vadd.f32 0.0, %v2242
        %v2244 = vpop.f32.mrb[0].mxu0
        %2245 = vmatprep.mubr.bf16.mxu0 0
        %2246 = vmatmul.mubr.bf16.gmra.mrb[0].mxu0 %v756
        %v2247 = vpop.f32.mrb[0].mxu0
        %v2248 = vadd.f32 0.0, %v2247
        %v2249 = vpop.f32.mrb[0].mxu0
        %v2250 = vpop.f32.mrb[0].mxu0
        %v2251 = vadd.f32 0.0, %v2250
        %v2252 = vpop.f32.mrb[0].mxu0
        %2253 = vmatprep.mubr.bf16.mxu0 0
        %2254 = vmatmul.mubr.bf16.gmra.mrb[0].mxu0 %v757
        %v2255 = vpop.f32.mrb[0].mxu0
        %v2256 = vadd.f32 0.0, %v2255
        %v2257 = vpop.f32.mrb[0].mxu0
        %v2258 = vpop.f32.mrb[0].mxu0
        %v2259 = vadd.f32 0.0, %v2258
        %v2260 = vpop.f32.mrb[0].mxu0
        %2261 = vmatprep.mubr.bf16.mxu0 0
        %2262 = vmatmul.mubr.bf16.gmra.mrb[0].mxu0 %v758
        %v2263 = vpop.f32.mrb[0].mxu0
        %v2264 = vadd.f32 0.0, %v2263
        %v2265 = vpop.f32.mrb[0].mxu0
        %v2266 = vpop.f32.mrb[0].mxu0
        %v2267 = vadd.f32 0.0, %v2266
        %v2268 = vpop.f32.mrb[0].mxu0
        %2269 = vmatprep.mubr.bf16.mxu0 0
        %2270 = vmatmul.mubr.bf16.gmra.mrb[0].mxu0 %v759
        %v2271 = vpop.f32.mrb[0].mxu0
        %v2272 = vadd.f32 0.0, %v2271
        %v2273 = vpop.f32.mrb[0].mxu0
        %v2274 = vpop.f32.mrb[0].mxu0
        %v2275 = vadd.f32 0.0, %v2274
        %v2276 = vpop.f32.mrb[0].mxu0
        %2277 = vmatprep.mubr.bf16.mxu0 0
        %2278 = vmatmul.mubr.bf16.gmra.mrb[0].mxu0 %v760
        %v2279 = vpop.f32.mrb[0].mxu0
        %v2280 = vadd.f32 0.0, %v2279
        %v2281 = vpop.f32.mrb[0].mxu0
        %v2282 = vpop.f32.mrb[0].mxu0
        %v2283 = vadd.f32 0.0, %v2282
        %v2284 = vpop.f32.mrb[0].mxu0
        %2285 = vmatprep.mubr.bf16.mxu0 0
        %2286 = vmatmul.mubr.bf16.gmra.mrb[0].mxu0 %v2083
        %v2287 = vpop.f32.mrb[0].mxu0
        %v2288 = vadd.f32 0.0, %v2287
        %v2289 = vpop.f32.mrb[0].mxu0
        %v2290 = vpop.f32.mrb[0].mxu0
        %v2291 = vadd.f32 0.0, %v2290
        %v2292 = vpop.f32.mrb[0].mxu0
        %2293 = vdwg.mxu0
        %v2294 = vadd.f32 %v1976, %v2168
        %v2295 = vadd.f32 %v1977, %v2171
        %v2296 = vadd.f32 %v1978, %v2176
        %v2297 = vadd.f32 %v1979, %v2179
        %v2298 = vadd.f32 %v1980, %v2184
        %v2299 = vadd.f32 %v1981, %v2187
        %v2300 = vadd.f32 %v1982, %v2192
        %v2301 = vadd.f32 %v1983, %v2195
        %v2302 = vadd.f32 %v1984, %v2200
        %v2303 = vadd.f32 %v1985, %v2203
        %v2304 = vadd.f32 %v1986, %v2208
        %v2305 = vadd.f32 %v1987, %v2211
        %v2306 = vadd.f32 %v1988, %v2216
        %v2307 = vadd.f32 %v1989, %v2219
        %v2308 = vadd.f32 %v1990, %v2224
        %v2309 = vadd.f32 %v1991, %v2227
        %v2310 = vadd.f32 %v1992, %v2232
        %v2311 = vadd.f32 %v1993, %v2235
        %v2312 = vadd.f32 %v1994, %v2240
        %v2313 = vadd.f32 %v1995, %v2243
        %v2314 = vadd.f32 %v1996, %v2248
        %v2315 = vadd.f32 %v1997, %v2251
        %v2316 = vadd.f32 %v1998, %v2256
        %v2317 = vadd.f32 %v1999, %v2259
        %v2318 = vadd.f32 %v2000, %v2264
        %v2319 = vadd.f32 %v2001, %v2267
        %v2320 = vadd.f32 %v2002, %v2272
        %v2321 = vadd.f32 %v2003, %v2275
        %v2322 = vadd.f32 %v2004, %v2280
        %v2323 = vadd.f32 %v2005, %v2283
        %v2324 = vadd.f32 %v2006, %v2288
        %v2325 = vadd.f32 %v2007, %v2291
        %v2327 = vrot.slane %v287, 5
        %v2328 = vrot.slane %v2327, 4
        %v2329 = vrot.slane %v288, 5
        %v2330 = vsel %vm1309, %v2328, %v2329
        %v2331 = vrot.slane %v2329, 4
        %v2332 = vrot.slane %v289, 5
        %v2333 = vsel %vm1309, %v2331, %v2332
        %s2334 = scalar_lea.vmem %s1, 320
        %v2335 = vld [vmem:[%s2334] sm:$0xf]
        %v2336 = vld [vmem:[%s2334 + $0x4] sm:$0xf]
        %v2337 = vld [vmem:[%s2334 + $0x8] sm:$0xf]
        %v2338 = vld [vmem:[%s2334 + $0xc] sm:$0xf]
        %v2339 = vld [vmem:[%s2334 + $0x10] sm:$0xf]
        %v2340 = vld [vmem:[%s2334 + $0x14] sm:$0xf]
        %v2341 = vld [vmem:[%s2334 + $0x18] sm:$0xf]
        %v2342 = vld [vmem:[%s2334 + $0x1c] sm:$0xf]
        %v2343 = vld [vmem:[%s2334 + $0x20] sm:$0xf]
        %v2344 = vld [vmem:[%s2334 + $0x24] sm:$0xf]
        %v2345 = vld [vmem:[%s2334 + $0x28] sm:$0xf]
        %v2346 = vld [vmem:[%s2334 + $0x2c] sm:$0xf]
        %v2347 = vld [vmem:[%s2334 + $0x30] sm:$0xf]
        %v2348 = vld [vmem:[%s2334 + $0x34] sm:$0xf]
        %v2349 = vld [vmem:[%s2334 + $0x38] sm:$0xf]
        %v2350 = vld [vmem:[%s2334 + $0x3c] sm:$0xf]
        %v2351 = vunpack.c.l.b16 %v2330
        %v2352 = vunpack.c.l.b16 %v2333
        %v2353 = vpack.c.b16 %v2352, %v2351
        %v2371 = vunpack.c.l.b16 %v2335
        %v2372 = vunpack.c.l.b16 %v2336
        %v2373 = vunpack.c.l.b16 %v2337
        %v2374 = vunpack.c.l.b16 %v2338
        %v2375 = vunpack.c.l.b16 %v2339
        %v2376 = vunpack.c.l.b16 %v2340
        %v2377 = vunpack.c.l.b16 %v2341
        %v2378 = vunpack.c.l.b16 %v2342
        %v2379 = vunpack.c.l.b16 %v2343
        %v2380 = vunpack.c.l.b16 %v2344
        %v2381 = vunpack.c.l.b16 %v2345
        %v2382 = vunpack.c.l.b16 %v2346
        %v2383 = vunpack.c.l.b16 %v2347
        %v2384 = vunpack.c.l.b16 %v2348
        %v2385 = vunpack.c.l.b16 %v2349
        %v2386 = vunpack.c.l.b16 %v2350
        %v2387 = vpack.c.b16 %v2372, %v2371
        %v2388 = vpack.c.b16 %v2374, %v2373
        %v2389 = vpack.c.b16 %v2376, %v2375
        %v2390 = vpack.c.b16 %v2378, %v2377
        %v2391 = vpack.c.b16 %v2380, %v2379
        %v2392 = vpack.c.b16 %v2382, %v2381
        %v2393 = vpack.c.b16 %v2384, %v2383
        %v2394 = vpack.c.b16 %v2386, %v2385
        %2403 = vmatprep.subr.bf16.mxu0 0
        %2404 = vmatpush1.bf16.msra.mxu0 %v2387
        %2405 = vmatprep.subr.bf16.mxu0 0
        %2406 = vmatpush1.bf16.msra.mxu0 %v2388
        %2407 = vmatprep.subr.bf16.mxu0 0
        %2408 = vmatpush1.bf16.msra.mxu0 %v2389
        %2409 = vmatprep.subr.bf16.mxu0 0
        %2410 = vmatpush1.bf16.msra.mxu0 %v2390
        %2411 = vmatprep.subr.bf16.mxu0 0
        %2412 = vmatpush1.bf16.msra.mxu0 %v2391
        %2413 = vmatprep.subr.bf16.mxu0 0
        %2414 = vmatpush1.bf16.msra.mxu0 %v2392
        %2415 = vmatprep.subr.bf16.mxu0 0
        %2416 = vmatpush1.bf16.msra.mxu0 %v2393
        %2417 = vmatprep.subr.bf16.mxu0 0
        %2418 = vmatpush1.bf16.msra.mxu0 %v2394
        %2419 = vmatprep.subr.bf16.mxu0 0
        %2420 = vmatpush1.bf16.msra.mxu0 0
        %2421 = vmatprep.subr.bf16.mxu0 0
        %2422 = vmatpush1.bf16.msra.mxu0 0
        %2423 = vmatprep.subr.bf16.mxu0 0
        %2424 = vmatpush1.bf16.msra.mxu0 0
        %2425 = vmatprep.subr.bf16.mxu0 0
        %2426 = vmatpush1.bf16.msra.mxu0 0
        %2427 = vmatprep.subr.bf16.mxu0 0
        %2428 = vmatpush1.bf16.msra.mxu0 0
        %2429 = vmatprep.subr.bf16.mxu0 0
        %2430 = vmatpush1.bf16.msra.mxu0 0
        %2431 = vmatprep.subr.bf16.mxu0 0
        %2432 = vmatpush1.bf16.msra.mxu0 0
        %2433 = vmatprep.subr.bf16.mxu0 0
        %2434 = vmatpush1.bf16.msra.mxu0 0
        %2435 = vmatprep.mubr.bf16.mxu0 0
        %2436 = vmatmul.mubr.bf16.gmra.mrb[0].mxu0 %v1472
        %v2437 = vpop.f32.mrb[0].mxu0
        %v2438 = vadd.f32 0.0, %v2437
        %v2439 = vpop.f32.mrb[0].mxu0
        %v2440 = vpop.f32.mrb[0].mxu0
        %v2441 = vadd.f32 0.0, %v2440
        %v2442 = vpop.f32.mrb[0].mxu0
        %2443 = vmatprep.mubr.bf16.mxu0 0
        %2444 = vmatmul.mubr.bf16.gmra.mrb[0].mxu0 %v1473
        %v2445 = vpop.f32.mrb[0].mxu0
        %v2446 = vadd.f32 0.0, %v2445
        %v2447 = vpop.f32.mrb[0].mxu0
        %v2448 = vpop.f32.mrb[0].mxu0
        %v2449 = vadd.f32 0.0, %v2448
        %v2450 = vpop.f32.mrb[0].mxu0
        %2451 = vmatprep.mubr.bf16.mxu0 0
        %2452 = vmatmul.mubr.bf16.gmra.mrb[0].mxu0 %v1474
        %v2453 = vpop.f32.mrb[0].mxu0
        %v2454 = vadd.f32 0.0, %v2453
        %v2455 = vpop.f32.mrb[0].mxu0
        %v2456 = vpop.f32.mrb[0].mxu0
        %v2457 = vadd.f32 0.0, %v2456
        %v2458 = vpop.f32.mrb[0].mxu0
        %2459 = vmatprep.mubr.bf16.mxu0 0
        %2460 = vmatmul.mubr.bf16.gmra.mrb[0].mxu0 %v1475
        %v2461 = vpop.f32.mrb[0].mxu0
        %v2462 = vadd.f32 0.0, %v2461
        %v2463 = vpop.f32.mrb[0].mxu0
        %v2464 = vpop.f32.mrb[0].mxu0
        %v2465 = vadd.f32 0.0, %v2464
        %v2466 = vpop.f32.mrb[0].mxu0
        %2467 = vmatprep.mubr.bf16.mxu0 0
        %2468 = vmatmul.mubr.bf16.gmra.mrb[0].mxu0 %v1476
        %v2469 = vpop.f32.mrb[0].mxu0
        %v2470 = vadd.f32 0.0, %v2469
        %v2471 = vpop.f32.mrb[0].mxu0
        %v2472 = vpop.f32.mrb[0].mxu0
        %v2473 = vadd.f32 0.0, %v2472
        %v2474 = vpop.f32.mrb[0].mxu0
        %2475 = vmatprep.mubr.bf16.mxu0 0
        %2476 = vmatmul.mubr.bf16.gmra.mrb[0].mxu0 %v1477
        %v2477 = vpop.f32.mrb[0].mxu0
        %v2478 = vadd.f32 0.0, %v2477
        %v2479 = vpop.f32.mrb[0].mxu0
        %v2480 = vpop.f32.mrb[0].mxu0
        %v2481 = vadd.f32 0.0, %v2480
        %v2482 = vpop.f32.mrb[0].mxu0
        %2483 = vmatprep.mubr.bf16.mxu0 0
        %2484 = vmatmul.mubr.bf16.gmra.mrb[0].mxu0 %v1478
        %v2485 = vpop.f32.mrb[0].mxu0
        %v2486 = vadd.f32 0.0, %v2485
        %v2487 = vpop.f32.mrb[0].mxu0
        %v2488 = vpop.f32.mrb[0].mxu0
        %v2489 = vadd.f32 0.0, %v2488
        %v2490 = vpop.f32.mrb[0].mxu0
        %2491 = vmatprep.mubr.bf16.mxu0 0
        %2492 = vmatmul.mubr.bf16.gmra.mrb[0].mxu0 %v1479
        %v2493 = vpop.f32.mrb[0].mxu0
        %v2494 = vadd.f32 0.0, %v2493
        %v2495 = vpop.f32.mrb[0].mxu0
        %v2496 = vpop.f32.mrb[0].mxu0
        %v2497 = vadd.f32 0.0, %v2496
        %v2498 = vpop.f32.mrb[0].mxu0
        %2499 = vmatprep.mubr.bf16.mxu0 0
        %2500 = vmatmul.mubr.bf16.gmra.mrb[0].mxu0 %v1480
        %v2501 = vpop.f32.mrb[0].mxu0
        %v2502 = vadd.f32 0.0, %v2501
        %v2503 = vpop.f32.mrb[0].mxu0
        %v2504 = vpop.f32.mrb[0].mxu0
        %v2505 = vadd.f32 0.0, %v2504
        %v2506 = vpop.f32.mrb[0].mxu0
        %2507 = vmatprep.mubr.bf16.mxu0 0
        %2508 = vmatmul.mubr.bf16.gmra.mrb[0].mxu0 %v1481
        %v2509 = vpop.f32.mrb[0].mxu0
        %v2510 = vadd.f32 0.0, %v2509
        %v2511 = vpop.f32.mrb[0].mxu0
        %v2512 = vpop.f32.mrb[0].mxu0
        %v2513 = vadd.f32 0.0, %v2512
        %v2514 = vpop.f32.mrb[0].mxu0
        %2515 = vmatprep.mubr.bf16.mxu0 0
        %2516 = vmatmul.mubr.bf16.gmra.mrb[0].mxu0 %v1482
        %v2517 = vpop.f32.mrb[0].mxu0
        %v2518 = vadd.f32 0.0, %v2517
        %v2519 = vpop.f32.mrb[0].mxu0
        %v2520 = vpop.f32.mrb[0].mxu0
        %v2521 = vadd.f32 0.0, %v2520
        %v2522 = vpop.f32.mrb[0].mxu0
        %2523 = vmatprep.mubr.bf16.mxu0 0
        %2524 = vmatmul.mubr.bf16.gmra.mrb[0].mxu0 %v1483
        %v2525 = vpop.f32.mrb[0].mxu0
        %v2526 = vadd.f32 0.0, %v2525
        %v2527 = vpop.f32.mrb[0].mxu0
        %v2528 = vpop.f32.mrb[0].mxu0
        %v2529 = vadd.f32 0.0, %v2528
        %v2530 = vpop.f32.mrb[0].mxu0
        %2531 = vmatprep.mubr.bf16.mxu0 0
        %2532 = vmatmul.mubr.bf16.gmra.mrb[0].mxu0 %v1484
        %v2533 = vpop.f32.mrb[0].mxu0
        %v2534 = vadd.f32 0.0, %v2533
        %v2535 = vpop.f32.mrb[0].mxu0
        %v2536 = vpop.f32.mrb[0].mxu0
        %v2537 = vadd.f32 0.0, %v2536
        %v2538 = vpop.f32.mrb[0].mxu0
        %2539 = vmatprep.mubr.bf16.mxu0 0
        %2540 = vmatmul.mubr.bf16.gmra.mrb[0].mxu0 %v1485
        %v2541 = vpop.f32.mrb[0].mxu0
        %v2542 = vadd.f32 0.0, %v2541
        %v2543 = vpop.f32.mrb[0].mxu0
        %v2544 = vpop.f32.mrb[0].mxu0
        %v2545 = vadd.f32 0.0, %v2544
        %v2546 = vpop.f32.mrb[0].mxu0
        %2547 = vmatprep.mubr.bf16.mxu0 0
        %2548 = vmatmul.mubr.bf16.gmra.mrb[0].mxu0 %v1486
        %v2549 = vpop.f32.mrb[0].mxu0
        %v2550 = vadd.f32 0.0, %v2549
        %v2551 = vpop.f32.mrb[0].mxu0
        %v2552 = vpop.f32.mrb[0].mxu0
        %v2553 = vadd.f32 0.0, %v2552
        %v2554 = vpop.f32.mrb[0].mxu0
        %2555 = vmatprep.mubr.bf16.mxu0 0
        %2556 = vmatmul.mubr.bf16.gmra.mrb[0].mxu0 %v2353
        %v2557 = vpop.f32.mrb[0].mxu0
        %v2558 = vadd.f32 0.0, %v2557
        %v2559 = vpop.f32.mrb[0].mxu0
        %v2560 = vpop.f32.mrb[0].mxu0
        %v2561 = vadd.f32 0.0, %v2560
        %v2562 = vpop.f32.mrb[0].mxu0
        %2563 = vdwg.mxu0
        %v2564 = vadd.f32 %v2294, %v2438
        %v2565 = vadd.f32 %v2295, %v2441
        %v2566 = vadd.f32 %v2296, %v2446
        %v2567 = vadd.f32 %v2297, %v2449
        %v2568 = vadd.f32 %v2298, %v2454
        %v2569 = vadd.f32 %v2299, %v2457
        %v2570 = vadd.f32 %v2300, %v2462
        %v2571 = vadd.f32 %v2301, %v2465
        %v2572 = vadd.f32 %v2302, %v2470
        %v2573 = vadd.f32 %v2303, %v2473
        %v2574 = vadd.f32 %v2304, %v2478
        %v2575 = vadd.f32 %v2305, %v2481
        %v2576 = vadd.f32 %v2306, %v2486
        %v2577 = vadd.f32 %v2307, %v2489
        %v2578 = vadd.f32 %v2308, %v2494
        %v2579 = vadd.f32 %v2309, %v2497
        %v2580 = vadd.f32 %v2310, %v2502
        %v2581 = vadd.f32 %v2311, %v2505
        %v2582 = vadd.f32 %v2312, %v2510
        %v2583 = vadd.f32 %v2313, %v2513
        %v2584 = vadd.f32 %v2314, %v2518
        %v2585 = vadd.f32 %v2315, %v2521
        %v2586 = vadd.f32 %v2316, %v2526
        %v2587 = vadd.f32 %v2317, %v2529
        %v2588 = vadd.f32 %v2318, %v2534
        %v2589 = vadd.f32 %v2319, %v2537
        %v2590 = vadd.f32 %v2320, %v2542
        %v2591 = vadd.f32 %v2321, %v2545
        %v2592 = vadd.f32 %v2322, %v2550
        %v2593 = vadd.f32 %v2323, %v2553
        %v2594 = vadd.f32 %v2324, %v2558
        %v2595 = vadd.f32 %v2325, %v2561
        %s2596 = scalar_lea.vmem %s1, 384
        %v2597 = vld [vmem:[%s2596] sm:$0xf]
        %v2598 = vld [vmem:[%s2596 + $0x4] sm:$0xf]
        %v2599 = vld [vmem:[%s2596 + $0x8] sm:$0xf]
        %v2600 = vld [vmem:[%s2596 + $0xc] sm:$0xf]
        %v2601 = vld [vmem:[%s2596 + $0x10] sm:$0xf]
        %v2602 = vld [vmem:[%s2596 + $0x14] sm:$0xf]
        %v2603 = vld [vmem:[%s2596 + $0x18] sm:$0xf]
        %v2604 = vld [vmem:[%s2596 + $0x1c] sm:$0xf]
        %v2605 = vld [vmem:[%s2596 + $0x20] sm:$0xf]
        %v2606 = vld [vmem:[%s2596 + $0x24] sm:$0xf]
        %v2607 = vld [vmem:[%s2596 + $0x28] sm:$0xf]
        %v2608 = vld [vmem:[%s2596 + $0x2c] sm:$0xf]
        %v2609 = vld [vmem:[%s2596 + $0x30] sm:$0xf]
        %v2610 = vld [vmem:[%s2596 + $0x34] sm:$0xf]
        %v2611 = vld [vmem:[%s2596 + $0x38] sm:$0xf]
        %v2612 = vld [vmem:[%s2596 + $0x3c] sm:$0xf]
        %v2615 = vunpack.c.l.b16 %v290
        %v2616 = vunpack.c.l.b16 %v291
        %v2617 = vpack.c.b16 %v2616, %v2615
        %v2635 = vunpack.c.l.b16 %v2597
        %v2636 = vunpack.c.l.b16 %v2598
        %v2637 = vunpack.c.l.b16 %v2599
        %v2638 = vunpack.c.l.b16 %v2600
        %v2639 = vunpack.c.l.b16 %v2601
        %v2640 = vunpack.c.l.b16 %v2602
        %v2641 = vunpack.c.l.b16 %v2603
        %v2642 = vunpack.c.l.b16 %v2604
        %v2643 = vunpack.c.l.b16 %v2605
        %v2644 = vunpack.c.l.b16 %v2606
        %v2645 = vunpack.c.l.b16 %v2607
        %v2646 = vunpack.c.l.b16 %v2608
        %v2647 = vunpack.c.l.b16 %v2609
        %v2648 = vunpack.c.l.b16 %v2610
        %v2649 = vunpack.c.l.b16 %v2611
        %v2650 = vunpack.c.l.b16 %v2612
        %v2651 = vpack.c.b16 %v2636, %v2635
        %v2652 = vpack.c.b16 %v2638, %v2637
        %v2653 = vpack.c.b16 %v2640, %v2639
        %v2654 = vpack.c.b16 %v2642, %v2641
        %v2655 = vpack.c.b16 %v2644, %v2643
        %v2656 = vpack.c.b16 %v2646, %v2645
        %v2657 = vpack.c.b16 %v2648, %v2647
        %v2658 = vpack.c.b16 %v2650, %v2649
        %2667 = vmatprep.subr.bf16.mxu0 0
        %2668 = vmatpush1.bf16.msra.mxu0 %v2651
        %2669 = vmatprep.subr.bf16.mxu0 0
        %2670 = vmatpush1.bf16.msra.mxu0 %v2652
        %2671 = vmatprep.subr.bf16.mxu0 0
        %2672 = vmatpush1.bf16.msra.mxu0 %v2653
        %2673 = vmatprep.subr.bf16.mxu0 0
        %2674 = vmatpush1.bf16.msra.mxu0 %v2654
        %2675 = vmatprep.subr.bf16.mxu0 0
        %2676 = vmatpush1.bf16.msra.mxu0 %v2655
        %2677 = vmatprep.subr.bf16.mxu0 0
        %2678 = vmatpush1.bf16.msra.mxu0 %v2656
        %2679 = vmatprep.subr.bf16.mxu0 0
        %2680 = vmatpush1.bf16.msra.mxu0 %v2657
        %2681 = vmatprep.subr.bf16.mxu0 0
        %2682 = vmatpush1.bf16.msra.mxu0 %v2658
        %2683 = vmatprep.subr.bf16.mxu0 0
        %2684 = vmatpush1.bf16.msra.mxu0 0
        %2685 = vmatprep.subr.bf16.mxu0 0
        %2686 = vmatpush1.bf16.msra.mxu0 0
        %2687 = vmatprep.subr.bf16.mxu0 0
        %2688 = vmatpush1.bf16.msra.mxu0 0
        %2689 = vmatprep.subr.bf16.mxu0 0
        %2690 = vmatpush1.bf16.msra.mxu0 0
        %2691 = vmatprep.subr.bf16.mxu0 0
        %2692 = vmatpush1.bf16.msra.mxu0 0
        %2693 = vmatprep.subr.bf16.mxu0 0
        %2694 = vmatpush1.bf16.msra.mxu0 0
        %2695 = vmatprep.subr.bf16.mxu0 0
        %2696 = vmatpush1.bf16.msra.mxu0 0
        %2697 = vmatprep.subr.bf16.mxu0 0
        %2698 = vmatpush1.bf16.msra.mxu0 0
        %2699 = vmatprep.mubr.bf16.mxu0 0
        %2700 = vmatmul.mubr.bf16.gmra.mrb[0].mxu0 %v1052
        %v2701 = vpop.f32.mrb[0].mxu0
        %v2702 = vadd.f32 0.0, %v2701
        %v2703 = vpop.f32.mrb[0].mxu0
        %v2704 = vpop.f32.mrb[0].mxu0
        %v2705 = vadd.f32 0.0, %v2704
        %v2706 = vpop.f32.mrb[0].mxu0
        %2707 = vmatprep.mubr.bf16.mxu0 0
        %2708 = vmatmul.mubr.bf16.gmra.mrb[0].mxu0 %v1053
        %v2709 = vpop.f32.mrb[0].mxu0
        %v2710 = vadd.f32 0.0, %v2709
        %v2711 = vpop.f32.mrb[0].mxu0
        %v2712 = vpop.f32.mrb[0].mxu0
        %v2713 = vadd.f32 0.0, %v2712
        %v2714 = vpop.f32.mrb[0].mxu0
        %2715 = vmatprep.mubr.bf16.mxu0 0
        %2716 = vmatmul.mubr.bf16.gmra.mrb[0].mxu0 %v1054
        %v2717 = vpop.f32.mrb[0].mxu0
        %v2718 = vadd.f32 0.0, %v2717
        %v2719 = vpop.f32.mrb[0].mxu0
        %v2720 = vpop.f32.mrb[0].mxu0
        %v2721 = vadd.f32 0.0, %v2720
        %v2722 = vpop.f32.mrb[0].mxu0
        %2723 = vmatprep.mubr.bf16.mxu0 0
        %2724 = vmatmul.mubr.bf16.gmra.mrb[0].mxu0 %v1055
        %v2725 = vpop.f32.mrb[0].mxu0
        %v2726 = vadd.f32 0.0, %v2725
        %v2727 = vpop.f32.mrb[0].mxu0
        %v2728 = vpop.f32.mrb[0].mxu0
        %v2729 = vadd.f32 0.0, %v2728
        %v2730 = vpop.f32.mrb[0].mxu0
        %2731 = vmatprep.mubr.bf16.mxu0 0
        %2732 = vmatmul.mubr.bf16.gmra.mrb[0].mxu0 %v1056
        %v2733 = vpop.f32.mrb[0].mxu0
        %v2734 = vadd.f32 0.0, %v2733
        %v2735 = vpop.f32.mrb[0].mxu0
        %v2736 = vpop.f32.mrb[0].mxu0
        %v2737 = vadd.f32 0.0, %v2736
        %v2738 = vpop.f32.mrb[0].mxu0
        %2739 = vmatprep.mubr.bf16.mxu0 0
        %2740 = vmatmul.mubr.bf16.gmra.mrb[0].mxu0 %v1057
        %v2741 = vpop.f32.mrb[0].mxu0
        %v2742 = vadd.f32 0.0, %v2741
        %v2743 = vpop.f32.mrb[0].mxu0
        %v2744 = vpop.f32.mrb[0].mxu0
        %v2745 = vadd.f32 0.0, %v2744
        %v2746 = vpop.f32.mrb[0].mxu0
        %2747 = vmatprep.mubr.bf16.mxu0 0
        %2748 = vmatmul.mubr.bf16.gmra.mrb[0].mxu0 %v1058
        %v2749 = vpop.f32.mrb[0].mxu0
        %v2750 = vadd.f32 0.0, %v2749
        %v2751 = vpop.f32.mrb[0].mxu0
        %v2752 = vpop.f32.mrb[0].mxu0
        %v2753 = vadd.f32 0.0, %v2752
        %v2754 = vpop.f32.mrb[0].mxu0
        %2755 = vmatprep.mubr.bf16.mxu0 0
        %2756 = vmatmul.mubr.bf16.gmra.mrb[0].mxu0 %v1059
        %v2757 = vpop.f32.mrb[0].mxu0
        %v2758 = vadd.f32 0.0, %v2757
        %v2759 = vpop.f32.mrb[0].mxu0
        %v2760 = vpop.f32.mrb[0].mxu0
        %v2761 = vadd.f32 0.0, %v2760
        %v2762 = vpop.f32.mrb[0].mxu0
        %2763 = vmatprep.mubr.bf16.mxu0 0
        %2764 = vmatmul.mubr.bf16.gmra.mrb[0].mxu0 %v1060
        %v2765 = vpop.f32.mrb[0].mxu0
        %v2766 = vadd.f32 0.0, %v2765
        %v2767 = vpop.f32.mrb[0].mxu0
        %v2768 = vpop.f32.mrb[0].mxu0
        %v2769 = vadd.f32 0.0, %v2768
        %v2770 = vpop.f32.mrb[0].mxu0
        %2771 = vmatprep.mubr.bf16.mxu0 0
        %2772 = vmatmul.mubr.bf16.gmra.mrb[0].mxu0 %v1061
        %v2773 = vpop.f32.mrb[0].mxu0
        %v2774 = vadd.f32 0.0, %v2773
        %v2775 = vpop.f32.mrb[0].mxu0
        %v2776 = vpop.f32.mrb[0].mxu0
        %v2777 = vadd.f32 0.0, %v2776
        %v2778 = vpop.f32.mrb[0].mxu0
        %2779 = vmatprep.mubr.bf16.mxu0 0
        %2780 = vmatmul.mubr.bf16.gmra.mrb[0].mxu0 %v1062
        %v2781 = vpop.f32.mrb[0].mxu0
        %v2782 = vadd.f32 0.0, %v2781
        %v2783 = vpop.f32.mrb[0].mxu0
        %v2784 = vpop.f32.mrb[0].mxu0
        %v2785 = vadd.f32 0.0, %v2784
        %v2786 = vpop.f32.mrb[0].mxu0
        %2787 = vmatprep.mubr.bf16.mxu0 0
        %2788 = vmatmul.mubr.bf16.gmra.mrb[0].mxu0 %v1063
        %v2789 = vpop.f32.mrb[0].mxu0
        %v2790 = vadd.f32 0.0, %v2789
        %v2791 = vpop.f32.mrb[0].mxu0
        %v2792 = vpop.f32.mrb[0].mxu0
        %v2793 = vadd.f32 0.0, %v2792
        %v2794 = vpop.f32.mrb[0].mxu0
        %2795 = vmatprep.mubr.bf16.mxu0 0
        %2796 = vmatmul.mubr.bf16.gmra.mrb[0].mxu0 %v1064
        %v2797 = vpop.f32.mrb[0].mxu0
        %v2798 = vadd.f32 0.0, %v2797
        %v2799 = vpop.f32.mrb[0].mxu0
        %v2800 = vpop.f32.mrb[0].mxu0
        %v2801 = vadd.f32 0.0, %v2800
        %v2802 = vpop.f32.mrb[0].mxu0
        %2803 = vmatprep.mubr.bf16.mxu0 0
        %2804 = vmatmul.mubr.bf16.gmra.mrb[0].mxu0 %v1065
        %v2805 = vpop.f32.mrb[0].mxu0
        %v2806 = vadd.f32 0.0, %v2805
        %v2807 = vpop.f32.mrb[0].mxu0
        %v2808 = vpop.f32.mrb[0].mxu0
        %v2809 = vadd.f32 0.0, %v2808
        %v2810 = vpop.f32.mrb[0].mxu0
        %2811 = vmatprep.mubr.bf16.mxu0 0
        %2812 = vmatmul.mubr.bf16.gmra.mrb[0].mxu0 %v1765
        %v2813 = vpop.f32.mrb[0].mxu0
        %v2814 = vadd.f32 0.0, %v2813
        %v2815 = vpop.f32.mrb[0].mxu0
        %v2816 = vpop.f32.mrb[0].mxu0
        %v2817 = vadd.f32 0.0, %v2816
        %v2818 = vpop.f32.mrb[0].mxu0
        %2819 = vmatprep.mubr.bf16.mxu0 0
        %2820 = vmatmul.mubr.bf16.gmra.mrb[0].mxu0 %v2617
        %v2821 = vpop.f32.mrb[0].mxu0
        %v2822 = vadd.f32 0.0, %v2821
        %v2823 = vpop.f32.mrb[0].mxu0
        %v2824 = vpop.f32.mrb[0].mxu0
        %v2825 = vadd.f32 0.0, %v2824
        %v2826 = vpop.f32.mrb[0].mxu0
        %2827 = vdwg.mxu0
        %v2828 = vadd.f32 %v2564, %v2702
        %v2829 = vadd.f32 %v2565, %v2705
        %v2830 = vadd.f32 %v2566, %v2710
        %v2831 = vadd.f32 %v2567, %v2713
        %v2832 = vadd.f32 %v2568, %v2718
        %v2833 = vadd.f32 %v2569, %v2721
        %v2834 = vadd.f32 %v2570, %v2726
        %v2835 = vadd.f32 %v2571, %v2729
        %v2836 = vadd.f32 %v2572, %v2734
        %v2837 = vadd.f32 %v2573, %v2737
        %v2838 = vadd.f32 %v2574, %v2742
        %v2839 = vadd.f32 %v2575, %v2745
        %v2840 = vadd.f32 %v2576, %v2750
        %v2841 = vadd.f32 %v2577, %v2753
        %v2842 = vadd.f32 %v2578, %v2758
        %v2843 = vadd.f32 %v2579, %v2761
        %v2844 = vadd.f32 %v2580, %v2766
        %v2845 = vadd.f32 %v2581, %v2769
        %v2846 = vadd.f32 %v2582, %v2774
        %v2847 = vadd.f32 %v2583, %v2777
        %v2848 = vadd.f32 %v2584, %v2782
        %v2849 = vadd.f32 %v2585, %v2785
        %v2850 = vadd.f32 %v2586, %v2790
        %v2851 = vadd.f32 %v2587, %v2793
        %v2852 = vadd.f32 %v2588, %v2798
        %v2853 = vadd.f32 %v2589, %v2801
        %v2854 = vadd.f32 %v2590, %v2806
        %v2855 = vadd.f32 %v2591, %v2809
        %v2856 = vadd.f32 %v2592, %v2814
        %v2857 = vadd.f32 %v2593, %v2817
        %v2858 = vadd.f32 %v2594, %v2822
        %v2859 = vadd.f32 %v2595, %v2825
        %v2861 = vshrl.u32 %v290, 16
        %v2863 = vrot.slane %v2861, 4
        %v2864 = vshll.u32 %v290, 16
        %v2866 = vrot.slane %v2864, 5
        %v2867 = vor.u32 %v2863, %v2866
        %v2868 = vrot.slane %v2867, 4
        %v2870 = vshll.u32 %v291, 16
        %v2872 = vrot.slane %v2870, 5
        %v2873 = vsel %vm311, %v2868, %v2872
        %v2874 = vshrl.u32 %v291, 16
        %v2876 = vrot.slane %v2874, 4
        %v2877 = vor.u32 %v2876, %v2872
        %v2878 = vrot.slane %v2877, 4
        %v2880 = vshll.u32 %v292, 16
        %v2882 = vrot.slane %v2880, 5
        %v2883 = vsel %vm311, %v2878, %v2882
        %s2884 = scalar_lea.vmem %s1, 448
        %v2885 = vld [vmem:[%s2884] sm:$0xf]
        %v2886 = vld [vmem:[%s2884 + $0x4] sm:$0xf]
        %v2887 = vld [vmem:[%s2884 + $0x8] sm:$0xf]
        %v2888 = vld [vmem:[%s2884 + $0xc] sm:$0xf]
        %v2889 = vld [vmem:[%s2884 + $0x10] sm:$0xf]
        %v2890 = vld [vmem:[%s2884 + $0x14] sm:$0xf]
        %v2891 = vld [vmem:[%s2884 + $0x18] sm:$0xf]
        %v2892 = vld [vmem:[%s2884 + $0x1c] sm:$0xf]
        %v2893 = vld [vmem:[%s2884 + $0x20] sm:$0xf]
        %v2894 = vld [vmem:[%s2884 + $0x24] sm:$0xf]
        %v2895 = vld [vmem:[%s2884 + $0x28] sm:$0xf]
        %v2896 = vld [vmem:[%s2884 + $0x2c] sm:$0xf]
        %v2897 = vld [vmem:[%s2884 + $0x30] sm:$0xf]
        %v2898 = vld [vmem:[%s2884 + $0x34] sm:$0xf]
        %v2899 = vld [vmem:[%s2884 + $0x38] sm:$0xf]
        %v2900 = vld [vmem:[%s2884 + $0x3c] sm:$0xf]
        %v2901 = vunpack.c.l.b16 %v2873
        %v2902 = vunpack.c.l.b16 %v2883
        %v2903 = vpack.c.b16 %v2902, %v2901
        %v2921 = vunpack.c.l.b16 %v2885
        %v2922 = vunpack.c.l.b16 %v2886
        %v2923 = vunpack.c.l.b16 %v2887
        %v2924 = vunpack.c.l.b16 %v2888
        %v2925 = vunpack.c.l.b16 %v2889
        %v2926 = vunpack.c.l.b16 %v2890
        %v2927 = vunpack.c.l.b16 %v2891
        %v2928 = vunpack.c.l.b16 %v2892
        %v2929 = vunpack.c.l.b16 %v2893
        %v2930 = vunpack.c.l.b16 %v2894
        %v2931 = vunpack.c.l.b16 %v2895
        %v2932 = vunpack.c.l.b16 %v2896
        %v2933 = vunpack.c.l.b16 %v2897
        %v2934 = vunpack.c.l.b16 %v2898
        %v2935 = vunpack.c.l.b16 %v2899
        %v2936 = vunpack.c.l.b16 %v2900
        %v2937 = vpack.c.b16 %v2922, %v2921
        %v2938 = vpack.c.b16 %v2924, %v2923
        %v2939 = vpack.c.b16 %v2926, %v2925
        %v2940 = vpack.c.b16 %v2928, %v2927
        %v2941 = vpack.c.b16 %v2930, %v2929
        %v2942 = vpack.c.b16 %v2932, %v2931
        %v2943 = vpack.c.b16 %v2934, %v2933
        %v2944 = vpack.c.b16 %v2936, %v2935
        %2953 = vmatprep.subr.bf16.mxu0 0
        %2954 = vmatpush1.bf16.msra.mxu0 %v2937
        %2955 = vmatprep.subr.bf16.mxu0 0
        %2956 = vmatpush1.bf16.msra.mxu0 %v2938
        %2957 = vmatprep.subr.bf16.mxu0 0
        %2958 = vmatpush1.bf16.msra.mxu0 %v2939
        %2959 = vmatprep.subr.bf16.mxu0 0
        %2960 = vmatpush1.bf16.msra.mxu0 %v2940
        %2961 = vmatprep.subr.bf16.mxu0 0
        %2962 = vmatpush1.bf16.msra.mxu0 %v2941
        %2963 = vmatprep.subr.bf16.mxu0 0
        %2964 = vmatpush1.bf16.msra.mxu0 %v2942
        %2965 = vmatprep.subr.bf16.mxu0 0
        %2966 = vmatpush1.bf16.msra.mxu0 %v2943
        %2967 = vmatprep.subr.bf16.mxu0 0
        %2968 = vmatpush1.bf16.msra.mxu0 %v2944
        %2969 = vmatprep.subr.bf16.mxu0 0
        %2970 = vmatpush1.bf16.msra.mxu0 0
        %2971 = vmatprep.subr.bf16.mxu0 0
        %2972 = vmatpush1.bf16.msra.mxu0 0
        %2973 = vmatprep.subr.bf16.mxu0 0
        %2974 = vmatpush1.bf16.msra.mxu0 0
        %2975 = vmatprep.subr.bf16.mxu0 0
        %2976 = vmatpush1.bf16.msra.mxu0 0
        %2977 = vmatprep.subr.bf16.mxu0 0
        %2978 = vmatpush1.bf16.msra.mxu0 0
        %2979 = vmatprep.subr.bf16.mxu0 0
        %2980 = vmatpush1.bf16.msra.mxu0 0
        %2981 = vmatprep.subr.bf16.mxu0 0
        %2982 = vmatpush1.bf16.msra.mxu0 0
        %2983 = vmatprep.subr.bf16.mxu0 0
        %2984 = vmatpush1.bf16.msra.mxu0 0
        %2985 = vmatprep.mubr.bf16.mxu0 0
        %2986 = vmatmul.mubr.bf16.gmra.mrb[0].mxu0 %v747
        %v2987 = vpop.f32.mrb[0].mxu0
        %v2988 = vadd.f32 0.0, %v2987
        %v2989 = vpop.f32.mrb[0].mxu0
        %v2990 = vpop.f32.mrb[0].mxu0
        %v2991 = vadd.f32 0.0, %v2990
        %v2992 = vpop.f32.mrb[0].mxu0
        %2993 = vmatprep.mubr.bf16.mxu0 0
        %2994 = vmatmul.mubr.bf16.gmra.mrb[0].mxu0 %v748
        %v2995 = vpop.f32.mrb[0].mxu0
        %v2996 = vadd.f32 0.0, %v2995
        %v2997 = vpop.f32.mrb[0].mxu0
        %v2998 = vpop.f32.mrb[0].mxu0
        %v2999 = vadd.f32 0.0, %v2998
        %v3000 = vpop.f32.mrb[0].mxu0
        %3001 = vmatprep.mubr.bf16.mxu0 0
        %3002 = vmatmul.mubr.bf16.gmra.mrb[0].mxu0 %v749
        %v3003 = vpop.f32.mrb[0].mxu0
        %v3004 = vadd.f32 0.0, %v3003
        %v3005 = vpop.f32.mrb[0].mxu0
        %v3006 = vpop.f32.mrb[0].mxu0
        %v3007 = vadd.f32 0.0, %v3006
        %v3008 = vpop.f32.mrb[0].mxu0
        %3009 = vmatprep.mubr.bf16.mxu0 0
        %3010 = vmatmul.mubr.bf16.gmra.mrb[0].mxu0 %v750
        %v3011 = vpop.f32.mrb[0].mxu0
        %v3012 = vadd.f32 0.0, %v3011
        %v3013 = vpop.f32.mrb[0].mxu0
        %v3014 = vpop.f32.mrb[0].mxu0
        %v3015 = vadd.f32 0.0, %v3014
        %v3016 = vpop.f32.mrb[0].mxu0
        %3017 = vmatprep.mubr.bf16.mxu0 0
        %3018 = vmatmul.mubr.bf16.gmra.mrb[0].mxu0 %v751
        %v3019 = vpop.f32.mrb[0].mxu0
        %v3020 = vadd.f32 0.0, %v3019
        %v3021 = vpop.f32.mrb[0].mxu0
        %v3022 = vpop.f32.mrb[0].mxu0
        %v3023 = vadd.f32 0.0, %v3022
        %v3024 = vpop.f32.mrb[0].mxu0
        %3025 = vmatprep.mubr.bf16.mxu0 0
        %3026 = vmatmul.mubr.bf16.gmra.mrb[0].mxu0 %v752
        %v3027 = vpop.f32.mrb[0].mxu0
        %v3028 = vadd.f32 0.0, %v3027
        %v3029 = vpop.f32.mrb[0].mxu0
        %v3030 = vpop.f32.mrb[0].mxu0
        %v3031 = vadd.f32 0.0, %v3030
        %v3032 = vpop.f32.mrb[0].mxu0
        %3033 = vmatprep.mubr.bf16.mxu0 0
        %3034 = vmatmul.mubr.bf16.gmra.mrb[0].mxu0 %v753
        %v3035 = vpop.f32.mrb[0].mxu0
        %v3036 = vadd.f32 0.0, %v3035
        %v3037 = vpop.f32.mrb[0].mxu0
        %v3038 = vpop.f32.mrb[0].mxu0
        %v3039 = vadd.f32 0.0, %v3038
        %v3040 = vpop.f32.mrb[0].mxu0
        %3041 = vmatprep.mubr.bf16.mxu0 0
        %3042 = vmatmul.mubr.bf16.gmra.mrb[0].mxu0 %v754
        %v3043 = vpop.f32.mrb[0].mxu0
        %v3044 = vadd.f32 0.0, %v3043
        %v3045 = vpop.f32.mrb[0].mxu0
        %v3046 = vpop.f32.mrb[0].mxu0
        %v3047 = vadd.f32 0.0, %v3046
        %v3048 = vpop.f32.mrb[0].mxu0
        %3049 = vmatprep.mubr.bf16.mxu0 0
        %3050 = vmatmul.mubr.bf16.gmra.mrb[0].mxu0 %v755
        %v3051 = vpop.f32.mrb[0].mxu0
        %v3052 = vadd.f32 0.0, %v3051
        %v3053 = vpop.f32.mrb[0].mxu0
        %v3054 = vpop.f32.mrb[0].mxu0
        %v3055 = vadd.f32 0.0, %v3054
        %v3056 = vpop.f32.mrb[0].mxu0
        %3057 = vmatprep.mubr.bf16.mxu0 0
        %3058 = vmatmul.mubr.bf16.gmra.mrb[0].mxu0 %v756
        %v3059 = vpop.f32.mrb[0].mxu0
        %v3060 = vadd.f32 0.0, %v3059
        %v3061 = vpop.f32.mrb[0].mxu0
        %v3062 = vpop.f32.mrb[0].mxu0
        %v3063 = vadd.f32 0.0, %v3062
        %v3064 = vpop.f32.mrb[0].mxu0
        %3065 = vmatprep.mubr.bf16.mxu0 0
        %3066 = vmatmul.mubr.bf16.gmra.mrb[0].mxu0 %v757
        %v3067 = vpop.f32.mrb[0].mxu0
        %v3068 = vadd.f32 0.0, %v3067
        %v3069 = vpop.f32.mrb[0].mxu0
        %v3070 = vpop.f32.mrb[0].mxu0
        %v3071 = vadd.f32 0.0, %v3070
        %v3072 = vpop.f32.mrb[0].mxu0
        %3073 = vmatprep.mubr.bf16.mxu0 0
        %3074 = vmatmul.mubr.bf16.gmra.mrb[0].mxu0 %v758
        %v3075 = vpop.f32.mrb[0].mxu0
        %v3076 = vadd.f32 0.0, %v3075
        %v3077 = vpop.f32.mrb[0].mxu0
        %v3078 = vpop.f32.mrb[0].mxu0
        %v3079 = vadd.f32 0.0, %v3078
        %v3080 = vpop.f32.mrb[0].mxu0
        %3081 = vmatprep.mubr.bf16.mxu0 0
        %3082 = vmatmul.mubr.bf16.gmra.mrb[0].mxu0 %v759
        %v3083 = vpop.f32.mrb[0].mxu0
        %v3084 = vadd.f32 0.0, %v3083
        %v3085 = vpop.f32.mrb[0].mxu0
        %v3086 = vpop.f32.mrb[0].mxu0
        %v3087 = vadd.f32 0.0, %v3086
        %v3088 = vpop.f32.mrb[0].mxu0
        %3089 = vmatprep.mubr.bf16.mxu0 0
        %3090 = vmatmul.mubr.bf16.gmra.mrb[0].mxu0 %v760
        %v3091 = vpop.f32.mrb[0].mxu0
        %v3092 = vadd.f32 0.0, %v3091
        %v3093 = vpop.f32.mrb[0].mxu0
        %v3094 = vpop.f32.mrb[0].mxu0
        %v3095 = vadd.f32 0.0, %v3094
        %v3096 = vpop.f32.mrb[0].mxu0
        %3097 = vmatprep.mubr.bf16.mxu0 0
        %3098 = vmatmul.mubr.bf16.gmra.mrb[0].mxu0 %v2083
        %v3099 = vpop.f32.mrb[0].mxu0
        %v3100 = vadd.f32 0.0, %v3099
        %v3101 = vpop.f32.mrb[0].mxu0
        %v3102 = vpop.f32.mrb[0].mxu0
        %v3103 = vadd.f32 0.0, %v3102
        %v3104 = vpop.f32.mrb[0].mxu0
        %3105 = vmatprep.mubr.bf16.mxu0 0
        %3106 = vmatmul.mubr.bf16.gmra.mrb[0].mxu0 %v2903
        %v3107 = vpop.f32.mrb[0].mxu0
        %v3108 = vadd.f32 0.0, %v3107
        %v3109 = vpop.f32.mrb[0].mxu0
        %v3110 = vpop.f32.mrb[0].mxu0
        %v3111 = vadd.f32 0.0, %v3110
        %v3112 = vpop.f32.mrb[0].mxu0
        %3113 = vdwg.mxu0
        %v3114 = vadd.f32 %v2828, %v2988
        %v3115 = vadd.f32 %v2829, %v2991
        %v3116 = vadd.f32 %v2830, %v2996
        %v3117 = vadd.f32 %v2831, %v2999
        %v3118 = vadd.f32 %v2832, %v3004
        %v3119 = vadd.f32 %v2833, %v3007
        %v3120 = vadd.f32 %v2834, %v3012
        %v3121 = vadd.f32 %v2835, %v3015
        %v3122 = vadd.f32 %v2836, %v3020
        %v3123 = vadd.f32 %v2837, %v3023
        %v3124 = vadd.f32 %v2838, %v3028
        %v3125 = vadd.f32 %v2839, %v3031
        %v3126 = vadd.f32 %v2840, %v3036
        %v3127 = vadd.f32 %v2841, %v3039
        %v3128 = vadd.f32 %v2842, %v3044
        %v3129 = vadd.f32 %v2843, %v3047
        %v3130 = vadd.f32 %v2844, %v3052
        %v3131 = vadd.f32 %v2845, %v3055
        %v3132 = vadd.f32 %v2846, %v3060
        %v3133 = vadd.f32 %v2847, %v3063
        %v3134 = vadd.f32 %v2848, %v3068
        %v3135 = vadd.f32 %v2849, %v3071
        %v3136 = vadd.f32 %v2850, %v3076
        %v3137 = vadd.f32 %v2851, %v3079
        %v3138 = vadd.f32 %v2852, %v3084
        %v3139 = vadd.f32 %v2853, %v3087
        %v3140 = vadd.f32 %v2854, %v3092
        %v3141 = vadd.f32 %v2855, %v3095
        %v3142 = vadd.f32 %v2856, %v3100
        %v3143 = vadd.f32 %v2857, %v3103
        %v3144 = vadd.f32 %v2858, %v3108
        %v3145 = vadd.f32 %v2859, %v3111
        %v3147 = vrot.slane %v290, 5
        %v3148 = vrot.slane %v3147, 4
        %v3149 = vrot.slane %v291, 5
        %v3150 = vsel %vm1309, %v3148, %v3149
        %v3151 = vrot.slane %v3149, 4
        %v3152 = vrot.slane %v292, 5
        %v3153 = vsel %vm1309, %v3151, %v3152
        %s3154 = scalar_lea.vmem %s1, 512
        %v3155 = vld [vmem:[%s3154] sm:$0xf]
        %v3156 = vld [vmem:[%s3154 + $0x4] sm:$0xf]
        %v3157 = vld [vmem:[%s3154 + $0x8] sm:$0xf]
        %v3158 = vld [vmem:[%s3154 + $0xc] sm:$0xf]
        %v3159 = vld [vmem:[%s3154 + $0x10] sm:$0xf]
        %v3160 = vld [vmem:[%s3154 + $0x14] sm:$0xf]
        %v3161 = vld [vmem:[%s3154 + $0x18] sm:$0xf]
        %v3162 = vld [vmem:[%s3154 + $0x1c] sm:$0xf]
        %v3163 = vld [vmem:[%s3154 + $0x20] sm:$0xf]
        %v3164 = vld [vmem:[%s3154 + $0x24] sm:$0xf]
        %v3165 = vld [vmem:[%s3154 + $0x28] sm:$0xf]
        %v3166 = vld [vmem:[%s3154 + $0x2c] sm:$0xf]
        %v3167 = vld [vmem:[%s3154 + $0x30] sm:$0xf]
        %v3168 = vld [vmem:[%s3154 + $0x34] sm:$0xf]
        %v3169 = vld [vmem:[%s3154 + $0x38] sm:$0xf]
        %v3170 = vld [vmem:[%s3154 + $0x3c] sm:$0xf]
        %v3171 = vunpack.c.l.b16 %v3150
        %v3172 = vunpack.c.l.b16 %v3153
        %v3173 = vpack.c.b16 %v3172, %v3171
        %v3191 = vunpack.c.l.b16 %v3155
        %v3192 = vunpack.c.l.b16 %v3156
        %v3193 = vunpack.c.l.b16 %v3157
        %v3194 = vunpack.c.l.b16 %v3158
        %v3195 = vunpack.c.l.b16 %v3159
        %v3196 = vunpack.c.l.b16 %v3160
        %v3197 = vunpack.c.l.b16 %v3161
        %v3198 = vunpack.c.l.b16 %v3162
        %v3199 = vunpack.c.l.b16 %v3163
        %v3200 = vunpack.c.l.b16 %v3164
        %v3201 = vunpack.c.l.b16 %v3165
        %v3202 = vunpack.c.l.b16 %v3166
        %v3203 = vunpack.c.l.b16 %v3167
        %v3204 = vunpack.c.l.b16 %v3168
        %v3205 = vunpack.c.l.b16 %v3169
        %v3206 = vunpack.c.l.b16 %v3170
        %v3207 = vpack.c.b16 %v3192, %v3191
        %v3208 = vpack.c.b16 %v3194, %v3193
        %v3209 = vpack.c.b16 %v3196, %v3195
        %v3210 = vpack.c.b16 %v3198, %v3197
        %v3211 = vpack.c.b16 %v3200, %v3199
        %v3212 = vpack.c.b16 %v3202, %v3201
        %v3213 = vpack.c.b16 %v3204, %v3203
        %v3214 = vpack.c.b16 %v3206, %v3205
        %3223 = vmatprep.subr.bf16.mxu0 0
        %3224 = vmatpush1.bf16.msra.mxu0 %v3207
        %3225 = vmatprep.subr.bf16.mxu0 0
        %3226 = vmatpush1.bf16.msra.mxu0 %v3208
        %3227 = vmatprep.subr.bf16.mxu0 0
        %3228 = vmatpush1.bf16.msra.mxu0 %v3209
        %3229 = vmatprep.subr.bf16.mxu0 0
        %3230 = vmatpush1.bf16.msra.mxu0 %v3210
        %3231 = vmatprep.subr.bf16.mxu0 0
        %3232 = vmatpush1.bf16.msra.mxu0 %v3211
        %3233 = vmatprep.subr.bf16.mxu0 0
        %3234 = vmatpush1.bf16.msra.mxu0 %v3212
        %3235 = vmatprep.subr.bf16.mxu0 0
        %3236 = vmatpush1.bf16.msra.mxu0 %v3213
        %3237 = vmatprep.subr.bf16.mxu0 0
        %3238 = vmatpush1.bf16.msra.mxu0 %v3214
        %3239 = vmatprep.subr.bf16.mxu0 0
        %3240 = vmatpush1.bf16.msra.mxu0 0
        %3241 = vmatprep.subr.bf16.mxu0 0
        %3242 = vmatpush1.bf16.msra.mxu0 0
        %3243 = vmatprep.subr.bf16.mxu0 0
        %3244 = vmatpush1.bf16.msra.mxu0 0
        %3245 = vmatprep.subr.bf16.mxu0 0
        %3246 = vmatpush1.bf16.msra.mxu0 0
        %3247 = vmatprep.subr.bf16.mxu0 0
        %3248 = vmatpush1.bf16.msra.mxu0 0
        %3249 = vmatprep.subr.bf16.mxu0 0
        %3250 = vmatpush1.bf16.msra.mxu0 0
        %3251 = vmatprep.subr.bf16.mxu0 0
        %3252 = vmatpush1.bf16.msra.mxu0 0
        %3253 = vmatprep.subr.bf16.mxu0 0
        %3254 = vmatpush1.bf16.msra.mxu0 0
        %3255 = vmatprep.mubr.bf16.mxu0 0
        %3256 = vmatmul.mubr.bf16.gmra.mrb[0].mxu0 %v1473
        %v3257 = vpop.f32.mrb[0].mxu0
        %v3258 = vadd.f32 0.0, %v3257
        %v3259 = vpop.f32.mrb[0].mxu0
        %v3260 = vpop.f32.mrb[0].mxu0
        %v3261 = vadd.f32 0.0, %v3260
        %v3262 = vpop.f32.mrb[0].mxu0
        %3263 = vmatprep.mubr.bf16.mxu0 0
        %3264 = vmatmul.mubr.bf16.gmra.mrb[0].mxu0 %v1474
        %v3265 = vpop.f32.mrb[0].mxu0
        %v3266 = vadd.f32 0.0, %v3265
        %v3267 = vpop.f32.mrb[0].mxu0
        %v3268 = vpop.f32.mrb[0].mxu0
        %v3269 = vadd.f32 0.0, %v3268
        %v3270 = vpop.f32.mrb[0].mxu0
        %3271 = vmatprep.mubr.bf16.mxu0 0
        %3272 = vmatmul.mubr.bf16.gmra.mrb[0].mxu0 %v1475
        %v3273 = vpop.f32.mrb[0].mxu0
        %v3274 = vadd.f32 0.0, %v3273
        %v3275 = vpop.f32.mrb[0].mxu0
        %v3276 = vpop.f32.mrb[0].mxu0
        %v3277 = vadd.f32 0.0, %v3276
        %v3278 = vpop.f32.mrb[0].mxu0
        %3279 = vmatprep.mubr.bf16.mxu0 0
        %3280 = vmatmul.mubr.bf16.gmra.mrb[0].mxu0 %v1476
        %v3281 = vpop.f32.mrb[0].mxu0
        %v3282 = vadd.f32 0.0, %v3281
        %v3283 = vpop.f32.mrb[0].mxu0
        %v3284 = vpop.f32.mrb[0].mxu0
        %v3285 = vadd.f32 0.0, %v3284
        %v3286 = vpop.f32.mrb[0].mxu0
        %3287 = vmatprep.mubr.bf16.mxu0 0
        %3288 = vmatmul.mubr.bf16.gmra.mrb[0].mxu0 %v1477
        %v3289 = vpop.f32.mrb[0].mxu0
        %v3290 = vadd.f32 0.0, %v3289
        %v3291 = vpop.f32.mrb[0].mxu0
        %v3292 = vpop.f32.mrb[0].mxu0
        %v3293 = vadd.f32 0.0, %v3292
        %v3294 = vpop.f32.mrb[0].mxu0
        %3295 = vmatprep.mubr.bf16.mxu0 0
        %3296 = vmatmul.mubr.bf16.gmra.mrb[0].mxu0 %v1478
        %v3297 = vpop.f32.mrb[0].mxu0
        %v3298 = vadd.f32 0.0, %v3297
        %v3299 = vpop.f32.mrb[0].mxu0
        %v3300 = vpop.f32.mrb[0].mxu0
        %v3301 = vadd.f32 0.0, %v3300
        %v3302 = vpop.f32.mrb[0].mxu0
        %3303 = vmatprep.mubr.bf16.mxu0 0
        %3304 = vmatmul.mubr.bf16.gmra.mrb[0].mxu0 %v1479
        %v3305 = vpop.f32.mrb[0].mxu0
        %v3306 = vadd.f32 0.0, %v3305
        %v3307 = vpop.f32.mrb[0].mxu0
        %v3308 = vpop.f32.mrb[0].mxu0
        %v3309 = vadd.f32 0.0, %v3308
        %v3310 = vpop.f32.mrb[0].mxu0
        %3311 = vmatprep.mubr.bf16.mxu0 0
        %3312 = vmatmul.mubr.bf16.gmra.mrb[0].mxu0 %v1480
        %v3313 = vpop.f32.mrb[0].mxu0
        %v3314 = vadd.f32 0.0, %v3313
        %v3315 = vpop.f32.mrb[0].mxu0
        %v3316 = vpop.f32.mrb[0].mxu0
        %v3317 = vadd.f32 0.0, %v3316
        %v3318 = vpop.f32.mrb[0].mxu0
        %3319 = vmatprep.mubr.bf16.mxu0 0
        %3320 = vmatmul.mubr.bf16.gmra.mrb[0].mxu0 %v1481
        %v3321 = vpop.f32.mrb[0].mxu0
        %v3322 = vadd.f32 0.0, %v3321
        %v3323 = vpop.f32.mrb[0].mxu0
        %v3324 = vpop.f32.mrb[0].mxu0
        %v3325 = vadd.f32 0.0, %v3324
        %v3326 = vpop.f32.mrb[0].mxu0
        %3327 = vmatprep.mubr.bf16.mxu0 0
        %3328 = vmatmul.mubr.bf16.gmra.mrb[0].mxu0 %v1482
        %v3329 = vpop.f32.mrb[0].mxu0
        %v3330 = vadd.f32 0.0, %v3329
        %v3331 = vpop.f32.mrb[0].mxu0
        %v3332 = vpop.f32.mrb[0].mxu0
        %v3333 = vadd.f32 0.0, %v3332
        %v3334 = vpop.f32.mrb[0].mxu0
        %3335 = vmatprep.mubr.bf16.mxu0 0
        %3336 = vmatmul.mubr.bf16.gmra.mrb[0].mxu0 %v1483
        %v3337 = vpop.f32.mrb[0].mxu0
        %v3338 = vadd.f32 0.0, %v3337
        %v3339 = vpop.f32.mrb[0].mxu0
        %v3340 = vpop.f32.mrb[0].mxu0
        %v3341 = vadd.f32 0.0, %v3340
        %v3342 = vpop.f32.mrb[0].mxu0
        %3343 = vmatprep.mubr.bf16.mxu0 0
        %3344 = vmatmul.mubr.bf16.gmra.mrb[0].mxu0 %v1484
        %v3345 = vpop.f32.mrb[0].mxu0
        %v3346 = vadd.f32 0.0, %v3345
        %v3347 = vpop.f32.mrb[0].mxu0
        %v3348 = vpop.f32.mrb[0].mxu0
        %v3349 = vadd.f32 0.0, %v3348
        %v3350 = vpop.f32.mrb[0].mxu0
        %3351 = vmatprep.mubr.bf16.mxu0 0
        %3352 = vmatmul.mubr.bf16.gmra.mrb[0].mxu0 %v1485
        %v3353 = vpop.f32.mrb[0].mxu0
        %v3354 = vadd.f32 0.0, %v3353
        %v3355 = vpop.f32.mrb[0].mxu0
        %v3356 = vpop.f32.mrb[0].mxu0
        %v3357 = vadd.f32 0.0, %v3356
        %v3358 = vpop.f32.mrb[0].mxu0
        %3359 = vmatprep.mubr.bf16.mxu0 0
        %3360 = vmatmul.mubr.bf16.gmra.mrb[0].mxu0 %v1486
        %v3361 = vpop.f32.mrb[0].mxu0
        %v3362 = vadd.f32 0.0, %v3361
        %v3363 = vpop.f32.mrb[0].mxu0
        %v3364 = vpop.f32.mrb[0].mxu0
        %v3365 = vadd.f32 0.0, %v3364
        %v3366 = vpop.f32.mrb[0].mxu0
        %3367 = vmatprep.mubr.bf16.mxu0 0
        %3368 = vmatmul.mubr.bf16.gmra.mrb[0].mxu0 %v2353
        %v3369 = vpop.f32.mrb[0].mxu0
        %v3370 = vadd.f32 0.0, %v3369
        %v3371 = vpop.f32.mrb[0].mxu0
        %v3372 = vpop.f32.mrb[0].mxu0
        %v3373 = vadd.f32 0.0, %v3372
        %v3374 = vpop.f32.mrb[0].mxu0
        %3375 = vmatprep.mubr.bf16.mxu0 0
        %3376 = vmatmul.mubr.bf16.gmra.mrb[0].mxu0 %v3173
        %v3377 = vpop.f32.mrb[0].mxu0
        %v3378 = vadd.f32 0.0, %v3377
        %v3379 = vpop.f32.mrb[0].mxu0
        %v3380 = vpop.f32.mrb[0].mxu0
        %v3381 = vadd.f32 0.0, %v3380
        %v3382 = vpop.f32.mrb[0].mxu0
        %3383 = vdwg.mxu0
        %v3384 = vadd.f32 %v3114, %v3258
        %v3385 = vadd.f32 %v3115, %v3261
        %v3386 = vadd.f32 %v3116, %v3266
        %v3387 = vadd.f32 %v3117, %v3269
        %v3388 = vadd.f32 %v3118, %v3274
        %v3389 = vadd.f32 %v3119, %v3277
        %v3390 = vadd.f32 %v3120, %v3282
        %v3391 = vadd.f32 %v3121, %v3285
        %v3392 = vadd.f32 %v3122, %v3290
        %v3393 = vadd.f32 %v3123, %v3293
        %v3394 = vadd.f32 %v3124, %v3298
        %v3395 = vadd.f32 %v3125, %v3301
        %v3396 = vadd.f32 %v3126, %v3306
        %v3397 = vadd.f32 %v3127, %v3309
        %v3398 = vadd.f32 %v3128, %v3314
        %v3399 = vadd.f32 %v3129, %v3317
        %v3400 = vadd.f32 %v3130, %v3322
        %v3401 = vadd.f32 %v3131, %v3325
        %v3402 = vadd.f32 %v3132, %v3330
        %v3403 = vadd.f32 %v3133, %v3333
        %v3404 = vadd.f32 %v3134, %v3338
        %v3405 = vadd.f32 %v3135, %v3341
        %v3406 = vadd.f32 %v3136, %v3346
        %v3407 = vadd.f32 %v3137, %v3349
        %v3408 = vadd.f32 %v3138, %v3354
        %v3409 = vadd.f32 %v3139, %v3357
        %v3410 = vadd.f32 %v3140, %v3362
        %v3411 = vadd.f32 %v3141, %v3365
        %v3412 = vadd.f32 %v3142, %v3370
        %v3413 = vadd.f32 %v3143, %v3373
        %v3414 = vadd.f32 %v3144, %v3378
        %v3415 = vadd.f32 %v3145, %v3381
        %v3416 = vld [vmem:[%s2] sm:$0x1]
        %v3418 = vlaneseq
        %v3419 = vshrl.u32 %v3418, 7
        %v3420 = vsub.s32 0, %v3419
        %v3421 = vrot.slane %v3416, %v3420
        %v3423 = vadd.f32 %v3384, %v3421
        %v3424 = vadd.f32 %v3385, %v3421
        %v3425 = vadd.f32 %v3386, %v3421
        %v3426 = vadd.f32 %v3387, %v3421
        %v3427 = vadd.f32 %v3388, %v3421
        %v3428 = vadd.f32 %v3389, %v3421
        %v3429 = vadd.f32 %v3390, %v3421
        %v3430 = vadd.f32 %v3391, %v3421
        %v3431 = vadd.f32 %v3392, %v3421
        %v3432 = vadd.f32 %v3393, %v3421
        %v3433 = vadd.f32 %v3394, %v3421
        %v3434 = vadd.f32 %v3395, %v3421
        %v3435 = vadd.f32 %v3396, %v3421
        %v3436 = vadd.f32 %v3397, %v3421
        %v3437 = vadd.f32 %v3398, %v3421
        %v3438 = vadd.f32 %v3399, %v3421
        %v3439 = vadd.f32 %v3400, %v3421
        %v3440 = vadd.f32 %v3401, %v3421
        %v3441 = vadd.f32 %v3402, %v3421
        %v3442 = vadd.f32 %v3403, %v3421
        %v3443 = vadd.f32 %v3404, %v3421
        %v3444 = vadd.f32 %v3405, %v3421
        %v3445 = vadd.f32 %v3406, %v3421
        %v3446 = vadd.f32 %v3407, %v3421
        %v3447 = vadd.f32 %v3408, %v3421
        %v3448 = vadd.f32 %v3409, %v3421
        %v3449 = vadd.f32 %v3410, %v3421
        %v3450 = vadd.f32 %v3411, %v3421
        %v3451 = vadd.f32 %v3412, %v3421
        %v3452 = vadd.f32 %v3413, %v3421
        %v3453 = vadd.f32 %v3414, %v3421
        %v3454 = vadd.f32 %v3415, %v3421
        %v3455 = vmax.f32 %v3423, 0.0
        %v3456 = vmax.f32 %v3424, 0.0
        %v3457 = vmax.f32 %v3425, 0.0
        %v3458 = vmax.f32 %v3426, 0.0
        %v3459 = vmax.f32 %v3427, 0.0
        %v3460 = vmax.f32 %v3428, 0.0
        %v3461 = vmax.f32 %v3429, 0.0
        %v3462 = vmax.f32 %v3430, 0.0
        %v3463 = vmax.f32 %v3431, 0.0
        %v3464 = vmax.f32 %v3432, 0.0
        %v3465 = vmax.f32 %v3433, 0.0
        %v3466 = vmax.f32 %v3434, 0.0
        %v3467 = vmax.f32 %v3435, 0.0
        %v3468 = vmax.f32 %v3436, 0.0
        %v3469 = vmax.f32 %v3437, 0.0
        %v3470 = vmax.f32 %v3438, 0.0
        %v3471 = vmax.f32 %v3439, 0.0
        %v3472 = vmax.f32 %v3440, 0.0
        %v3473 = vmax.f32 %v3441, 0.0
        %v3474 = vmax.f32 %v3442, 0.0
        %v3475 = vmax.f32 %v3443, 0.0
        %v3476 = vmax.f32 %v3444, 0.0
        %v3477 = vmax.f32 %v3445, 0.0
        %v3478 = vmax.f32 %v3446, 0.0
        %v3479 = vmax.f32 %v3447, 0.0
        %v3480 = vmax.f32 %v3448, 0.0
        %v3481 = vmax.f32 %v3449, 0.0
        %v3482 = vmax.f32 %v3450, 0.0
        %v3483 = vmax.f32 %v3451, 0.0
        %v3484 = vmax.f32 %v3452, 0.0
        %v3485 = vmax.f32 %v3453, 0.0
        %v3486 = vmax.f32 %v3454, 0.0
        %v3487 = vpack.c.bf16 %v3456, %v3455
        %v3488 = vpack.c.bf16 %v3458, %v3457
        %v3489 = vpack.c.bf16 %v3460, %v3459
        %v3490 = vpack.c.bf16 %v3462, %v3461
        %v3491 = vpack.c.bf16 %v3464, %v3463
        %v3492 = vpack.c.bf16 %v3466, %v3465
        %v3493 = vpack.c.bf16 %v3468, %v3467
        %v3494 = vpack.c.bf16 %v3470, %v3469
        %v3495 = vpack.c.bf16 %v3472, %v3471
        %v3496 = vpack.c.bf16 %v3474, %v3473
        %v3497 = vpack.c.bf16 %v3476, %v3475
        %v3498 = vpack.c.bf16 %v3478, %v3477
        %v3499 = vpack.c.bf16 %v3480, %v3479
        %v3500 = vpack.c.bf16 %v3482, %v3481
        %v3501 = vpack.c.bf16 %v3484, %v3483
        %v3502 = vpack.c.bf16 %v3486, %v3485
        %3503 = vst [vmem:[#allocation2] sm:$0xf] 0
        %3504 = vst [vmem:[#allocation2 + $0x4] sm:$0xf] 0
        %3505 = vst [vmem:[#allocation2 + $0x8] sm:$0x1] 0
        %s3506 = scalar_lea.vmem [#allocation2], 204
        %3507 = vst [vmem:[%s3506] sm:$0xf] 0
        %3508 = vst [vmem:[%s3506 + $0x4] sm:$0xf] 0
        %3509 = vst [vmem:[%s3506 + $0x8] sm:$0x1] 0
        %v3511 = vshrl.u32 %v3487, 16
        %v3513 = vrot.slane %v3511, 7
        %v3514 = vshll.u32 %v3487, 16
        %v3516 = vor.u32 %v3513, %v3514
        %v3518 = vshrl.u32 %v3488, 16
        %v3520 = vrot.slane %v3518, 7
        %v3521 = vshll.u32 %v3488, 16
        %v3523 = vor.u32 %v3520, %v3521
        %v3525 = vshrl.u32 %v3489, 16
        %v3527 = vrot.slane %v3525, 7
        %v3528 = vshll.u32 %v3489, 16
        %v3530 = vor.u32 %v3527, %v3528
        %v3532 = vshrl.u32 %v3490, 16
        %v3534 = vrot.slane %v3532, 7
        %v3535 = vshll.u32 %v3490, 16
        %v3537 = vor.u32 %v3534, %v3535
        %v3539 = vshrl.u32 %v3491, 16
        %v3541 = vrot.slane %v3539, 7
        %v3542 = vshll.u32 %v3491, 16
        %v3544 = vor.u32 %v3541, %v3542
        %v3546 = vshrl.u32 %v3492, 16
        %v3548 = vrot.slane %v3546, 7
        %v3549 = vshll.u32 %v3492, 16
        %v3551 = vor.u32 %v3548, %v3549
        %v3553 = vshrl.u32 %v3493, 16
        %v3555 = vrot.slane %v3553, 7
        %v3556 = vshll.u32 %v3493, 16
        %v3558 = vor.u32 %v3555, %v3556
        %v3560 = vshrl.u32 %v3494, 16
        %v3562 = vrot.slane %v3560, 7
        %v3563 = vshll.u32 %v3494, 16
        %v3565 = vor.u32 %v3562, %v3563
        %v3567 = vshrl.u32 %v3495, 16
        %v3569 = vrot.slane %v3567, 7
        %v3570 = vshll.u32 %v3495, 16
        %v3572 = vor.u32 %v3569, %v3570
        %v3574 = vshrl.u32 %v3496, 16
        %v3576 = vrot.slane %v3574, 7
        %v3577 = vshll.u32 %v3496, 16
        %v3579 = vor.u32 %v3576, %v3577
        %v3581 = vshrl.u32 %v3497, 16
        %v3583 = vrot.slane %v3581, 7
        %v3584 = vshll.u32 %v3497, 16
        %v3586 = vor.u32 %v3583, %v3584
        %v3588 = vshrl.u32 %v3498, 16
        %v3590 = vrot.slane %v3588, 7
        %v3591 = vshll.u32 %v3498, 16
        %v3593 = vor.u32 %v3590, %v3591
        %v3595 = vshrl.u32 %v3499, 16
        %v3597 = vrot.slane %v3595, 7
        %v3598 = vshll.u32 %v3499, 16
        %v3600 = vor.u32 %v3597, %v3598
        %v3602 = vshrl.u32 %v3500, 16
        %v3604 = vrot.slane %v3602, 7
        %v3605 = vshll.u32 %v3500, 16
        %v3607 = vor.u32 %v3604, %v3605
        %v3609 = vshrl.u32 %v3501, 16
        %v3611 = vrot.slane %v3609, 7
        %v3612 = vshll.u32 %v3501, 16
        %v3614 = vor.u32 %v3611, %v3612
        %v3616 = vshrl.u32 %v3502, 16
        %v3618 = vrot.slane %v3616, 7
        %v3619 = vshll.u32 %v3502, 16
        %v3621 = vor.u32 %v3618, %v3619
        %vm3654 = vcmask 1040384
        %vm3655 = vsmask.f32 256
        %vm3656 = vmand %vm3654, %vm3655
        %v3657 = vsel %vm3656, 0, %v3516
        %v3658 = vsel %vm3656, 0, %v3523
        %v3659 = vsel %vm3656, 0, %v3530
        %v3660 = vsel %vm3656, 0, %v3537
        %v3661 = vsel %vm3656, 0, %v3544
        %v3662 = vsel %vm3656, 0, %v3551
        %v3663 = vsel %vm3656, 0, %v3558
        %v3664 = vsel %vm3656, 0, %v3565
        %v3665 = vsel %vm3656, 0, %v3572
        %v3666 = vsel %vm3656, 0, %v3579
        %v3667 = vsel %vm3656, 0, %v3586
        %v3668 = vsel %vm3656, 0, %v3593
        %v3669 = vsel %vm3656, 0, %v3600
        %v3670 = vsel %vm3656, 0, %v3607
        %v3671 = vsel %vm3656, 0, %v3614
        %v3672 = vsel %vm3656, 0, %v3621
        %v3673 = vsel %vm3656, %v3513, 0
        %v3674 = vsel %vm3656, %v3520, 0
        %v3675 = vsel %vm3656, %v3527, 0
        %v3676 = vsel %vm3656, %v3534, 0
        %v3677 = vsel %vm3656, %v3541, 0
        %v3678 = vsel %vm3656, %v3548, 0
        %v3679 = vsel %vm3656, %v3555, 0
        %v3680 = vsel %vm3656, %v3562, 0
        %v3681 = vsel %vm3656, %v3569, 0
        %v3682 = vsel %vm3656, %v3576, 0
        %v3683 = vsel %vm3656, %v3583, 0
        %v3684 = vsel %vm3656, %v3590, 0
        %v3685 = vsel %vm3656, %v3597, 0
        %v3686 = vsel %vm3656, %v3604, 0
        %v3687 = vsel %vm3656, %v3611, 0
        %v3688 = vsel %vm3656, %v3618, 0
        %v3721 = vunpack.c.l.b16 %v3657
        %v3722 = vunpack.c.h.b16 %v3657
        %v3723 = vunpack.c.l.b16 %v3673
        %v3724 = vunpack.c.l.b16 %v3658
        %v3725 = vunpack.c.h.b16 %v3658
        %v3726 = vunpack.c.l.b16 %v3674
        %v3727 = vunpack.c.l.b16 %v3659
        %v3728 = vunpack.c.h.b16 %v3659
        %v3729 = vunpack.c.l.b16 %v3675
        %v3730 = vunpack.c.l.b16 %v3660
        %v3731 = vunpack.c.h.b16 %v3660
        %v3732 = vunpack.c.l.b16 %v3676
        %v3733 = vunpack.c.l.b16 %v3661
        %v3734 = vunpack.c.h.b16 %v3661
        %v3735 = vunpack.c.l.b16 %v3677
        %v3736 = vunpack.c.l.b16 %v3662
        %v3737 = vunpack.c.h.b16 %v3662
        %v3738 = vunpack.c.l.b16 %v3678
        %v3739 = vunpack.c.l.b16 %v3663
        %v3740 = vunpack.c.h.b16 %v3663
        %v3741 = vunpack.c.l.b16 %v3679
        %v3742 = vunpack.c.l.b16 %v3664
        %v3743 = vunpack.c.h.b16 %v3664
        %v3744 = vunpack.c.l.b16 %v3680
        %v3745 = vunpack.c.l.b16 %v3665
        %v3746 = vunpack.c.h.b16 %v3665
        %v3747 = vunpack.c.l.b16 %v3681
        %v3748 = vunpack.c.l.b16 %v3666
        %v3749 = vunpack.c.h.b16 %v3666
        %v3750 = vunpack.c.l.b16 %v3682
        %v3751 = vunpack.c.l.b16 %v3667
        %v3752 = vunpack.c.h.b16 %v3667
        %v3753 = vunpack.c.l.b16 %v3683
        %v3754 = vunpack.c.l.b16 %v3668
        %v3755 = vunpack.c.h.b16 %v3668
        %v3756 = vunpack.c.l.b16 %v3684
        %v3757 = vunpack.c.l.b16 %v3669
        %v3758 = vunpack.c.h.b16 %v3669
        %v3759 = vunpack.c.l.b16 %v3685
        %v3760 = vunpack.c.l.b16 %v3670
        %v3761 = vunpack.c.h.b16 %v3670
        %v3762 = vunpack.c.l.b16 %v3686
        %v3763 = vunpack.c.l.b16 %v3671
        %v3764 = vunpack.c.h.b16 %v3671
        %v3765 = vunpack.c.l.b16 %v3687
        %v3766 = vunpack.c.l.b16 %v3672
        %v3767 = vunpack.c.h.b16 %v3672
        %v3768 = vunpack.c.l.b16 %v3688
        %v3769 = vpack.c.b16 %v3721, %v3721
        %v3770 = vpack.c.b16 %v3722, %v3722
        %v3771 = vpack.c.b16 %v3723, %v3723
        %v3772 = vpack.c.b16 %v3724, %v3724
        %v3773 = vpack.c.b16 %v3725, %v3725
        %v3774 = vpack.c.b16 %v3726, %v3726
        %v3775 = vpack.c.b16 %v3727, %v3727
        %v3776 = vpack.c.b16 %v3728, %v3728
        %v3777 = vpack.c.b16 %v3729, %v3729
        %v3778 = vpack.c.b16 %v3730, %v3730
        %v3779 = vpack.c.b16 %v3731, %v3731
        %v3780 = vpack.c.b16 %v3732, %v3732
        %v3781 = vpack.c.b16 %v3733, %v3733
        %v3782 = vpack.c.b16 %v3734, %v3734
        %v3783 = vpack.c.b16 %v3735, %v3735
        %v3784 = vpack.c.b16 %v3736, %v3736
        %v3785 = vpack.c.b16 %v3737, %v3737
        %v3786 = vpack.c.b16 %v3738, %v3738
        %v3787 = vpack.c.b16 %v3739, %v3739
        %v3788 = vpack.c.b16 %v3740, %v3740
        %v3789 = vpack.c.b16 %v3741, %v3741
        %v3790 = vpack.c.b16 %v3742, %v3742
        %v3791 = vpack.c.b16 %v3743, %v3743
        %v3792 = vpack.c.b16 %v3744, %v3744
        %v3793 = vpack.c.b16 %v3745, %v3745
        %v3794 = vpack.c.b16 %v3746, %v3746
        %v3795 = vpack.c.b16 %v3747, %v3747
        %v3796 = vpack.c.b16 %v3748, %v3748
        %v3797 = vpack.c.b16 %v3749, %v3749
        %v3798 = vpack.c.b16 %v3750, %v3750
        %v3799 = vpack.c.b16 %v3751, %v3751
        %v3800 = vpack.c.b16 %v3752, %v3752
        %v3801 = vpack.c.b16 %v3753, %v3753
        %v3802 = vpack.c.b16 %v3754, %v3754
        %v3803 = vpack.c.b16 %v3755, %v3755
        %v3804 = vpack.c.b16 %v3756, %v3756
        %v3805 = vpack.c.b16 %v3757, %v3757
        %v3806 = vpack.c.b16 %v3758, %v3758
        %v3807 = vpack.c.b16 %v3759, %v3759
        %v3808 = vpack.c.b16 %v3760, %v3760
        %v3809 = vpack.c.b16 %v3761, %v3761
        %v3810 = vpack.c.b16 %v3762, %v3762
        %v3811 = vpack.c.b16 %v3763, %v3763
        %v3812 = vpack.c.b16 %v3764, %v3764
        %v3813 = vpack.c.b16 %v3765, %v3765
        %v3814 = vpack.c.b16 %v3766, %v3766
        %v3815 = vpack.c.b16 %v3767, %v3767
        %v3816 = vpack.c.b16 %v3768, %v3768
        %s3865 = scalar_lea.vmem [#allocation2], 12
        %3866 = vst [vmem:[%s3865] sm:$0xf] %v3769
        %3867 = vst [vmem:[%s3865 + $0x4] sm:$0xf] %v3770
        %3868 = vst [vmem:[%s3865 + $0x8] sm:$0x1] %v3771
        %3869 = vst [vmem:[%s3865 + $0xc] sm:$0xf] %v3772
        %3870 = vst [vmem:[%s3865 + $0x10] sm:$0xf] %v3773
        %3871 = vst [vmem:[%s3865 + $0x14] sm:$0x1] %v3774
        %3872 = vst [vmem:[%s3865 + $0x18] sm:$0xf] %v3775
        %3873 = vst [vmem:[%s3865 + $0x1c] sm:$0xf] %v3776
        %3874 = vst [vmem:[%s3865 + $0x20] sm:$0x1] %v3777
        %3875 = vst [vmem:[%s3865 + $0x24] sm:$0xf] %v3778
        %3876 = vst [vmem:[%s3865 + $0x28] sm:$0xf] %v3779
        %3877 = vst [vmem:[%s3865 + $0x2c] sm:$0x1] %v3780
        %3878 = vst [vmem:[%s3865 + $0x30] sm:$0xf] %v3781
        %3879 = vst [vmem:[%s3865 + $0x34] sm:$0xf] %v3782
        %3880 = vst [vmem:[%s3865 + $0x38] sm:$0x1] %v3783
        %3881 = vst [vmem:[%s3865 + $0x3c] sm:$0xf] %v3784
        %3882 = vst [vmem:[%s3865 + $0x40] sm:$0xf] %v3785
        %3883 = vst [vmem:[%s3865 + $0x44] sm:$0x1] %v3786
        %3884 = vst [vmem:[%s3865 + $0x48] sm:$0xf] %v3787
        %3885 = vst [vmem:[%s3865 + $0x4c] sm:$0xf] %v3788
        %3886 = vst [vmem:[%s3865 + $0x50] sm:$0x1] %v3789
        %3887 = vst [vmem:[%s3865 + $0x54] sm:$0xf] %v3790
        %3888 = vst [vmem:[%s3865 + $0x58] sm:$0xf] %v3791
        %3889 = vst [vmem:[%s3865 + $0x5c] sm:$0x1] %v3792
        %3890 = vst [vmem:[%s3865 + $0x60] sm:$0xf] %v3793
        %3891 = vst [vmem:[%s3865 + $0x64] sm:$0xf] %v3794
        %3892 = vst [vmem:[%s3865 + $0x68] sm:$0x1] %v3795
        %3893 = vst [vmem:[%s3865 + $0x6c] sm:$0xf] %v3796
        %3894 = vst [vmem:[%s3865 + $0x70] sm:$0xf] %v3797
        %3895 = vst [vmem:[%s3865 + $0x74] sm:$0x1] %v3798
        %3896 = vst [vmem:[%s3865 + $0x78] sm:$0xf] %v3799
        %3897 = vst [vmem:[%s3865 + $0x7c] sm:$0xf] %v3800
        %3898 = vst [vmem:[%s3865 + $0x80] sm:$0x1] %v3801
        %3899 = vst [vmem:[%s3865 + $0x84] sm:$0xf] %v3802
        %3900 = vst [vmem:[%s3865 + $0x88] sm:$0xf] %v3803
        %3901 = vst [vmem:[%s3865 + $0x8c] sm:$0x1] %v3804
        %3902 = vst [vmem:[%s3865 + $0x90] sm:$0xf] %v3805
        %3903 = vst [vmem:[%s3865 + $0x94] sm:$0xf] %v3806
        %3904 = vst [vmem:[%s3865 + $0x98] sm:$0x1] %v3807
        %3905 = vst [vmem:[%s3865 + $0x9c] sm:$0xf] %v3808
        %3906 = vst [vmem:[%s3865 + $0xa0] sm:$0xf] %v3809
        %3907 = vst [vmem:[%s3865 + $0xa4] sm:$0x1] %v3810
        %3908 = vst [vmem:[%s3865 + $0xa8] sm:$0xf] %v3811
        %3909 = vst [vmem:[%s3865 + $0xac] sm:$0xf] %v3812
        %3910 = vst [vmem:[%s3865 + $0xb0] sm:$0x1] %v3813
        %3911 = vst [vmem:[%s3865 + $0xb4] sm:$0xf] %v3814
        %3912 = vst [vmem:[%s3865 + $0xb8] sm:$0xf] %v3815
        %3913 = vst [vmem:[%s3865 + $0xbc] sm:$0x1] %v3816
        %v3914 = vld [vmem:[#allocation2] sm:$0xf]
        %v3915 = vld [vmem:[#allocation2 + $0x4] sm:$0xf]
        %v3916 = vld [vmem:[#allocation2 + $0x8] sm:$0x1]
        %v3917 = vld [vmem:[#allocation2 + $0xc] sm:$0xf]
        %v3918 = vld [vmem:[#allocation2 + $0x10] sm:$0xf]
        %v3919 = vld [vmem:[#allocation2 + $0x14] sm:$0x1]
        %v3920 = vld [vmem:[#allocation2 + $0x18] sm:$0xf]
        %v3921 = vld [vmem:[#allocation2 + $0x1c] sm:$0xf]
        %v3922 = vld [vmem:[#allocation2 + $0x20] sm:$0x1]
        %v3923 = vld [vmem:[#allocation2 + $0x24] sm:$0xf]
        %v3924 = vld [vmem:[#allocation2 + $0x28] sm:$0xf]
        %v3925 = vld [vmem:[#allocation2 + $0x2c] sm:$0x1]
        %v3926 = vld [vmem:[#allocation2 + $0x30] sm:$0xf]
        %v3927 = vld [vmem:[#allocation2 + $0x34] sm:$0xf]
        %v3928 = vld [vmem:[#allocation2 + $0x38] sm:$0x1]
        %v3929 = vld [vmem:[#allocation2 + $0x3c] sm:$0xf]
        %v3930 = vld [vmem:[#allocation2 + $0x40] sm:$0xf]
        %v3931 = vld [vmem:[#allocation2 + $0x44] sm:$0x1]
        %v3932 = vld [vmem:[#allocation2 + $0x48] sm:$0xf]
        %v3933 = vld [vmem:[#allocation2 + $0x4c] sm:$0xf]
        %v3934 = vld [vmem:[#allocation2 + $0x50] sm:$0x1]
        %v3935 = vld [vmem:[#allocation2 + $0x54] sm:$0xf]
        %v3936 = vld [vmem:[#allocation2 + $0x58] sm:$0xf]
        %v3937 = vld [vmem:[#allocation2 + $0x5c] sm:$0x1]
        %v3938 = vld [vmem:[#allocation2 + $0x60] sm:$0xf]
        %v3939 = vld [vmem:[#allocation2 + $0x64] sm:$0xf]
        %v3940 = vld [vmem:[#allocation2 + $0x68] sm:$0x1]
        %v3941 = vld [vmem:[#allocation2 + $0x6c] sm:$0xf]
        %v3942 = vld [vmem:[#allocation2 + $0x70] sm:$0xf]
        %v3943 = vld [vmem:[#allocation2 + $0x74] sm:$0x1]
        %v3944 = vld [vmem:[#allocation2 + $0x78] sm:$0xf]
        %v3945 = vld [vmem:[#allocation2 + $0x7c] sm:$0xf]
        %v3946 = vld [vmem:[#allocation2 + $0x80] sm:$0x1]
        %v3947 = vld [vmem:[#allocation2 + $0x84] sm:$0xf]
        %v3948 = vld [vmem:[#allocation2 + $0x88] sm:$0xf]
        %v3949 = vld [vmem:[#allocation2 + $0x8c] sm:$0x1]
        %v3950 = vld [vmem:[#allocation2 + $0x90] sm:$0xf]
        %v3951 = vld [vmem:[#allocation2 + $0x94] sm:$0xf]
        %v3952 = vld [vmem:[#allocation2 + $0x98] sm:$0x1]
        %v3953 = vld [vmem:[#allocation2 + $0x9c] sm:$0xf]
        %v3954 = vld [vmem:[#allocation2 + $0xa0] sm:$0xf]
        %v3955 = vld [vmem:[#allocation2 + $0xa4] sm:$0x1]
        %v3956 = vld [vmem:[#allocation2 + $0xa8] sm:$0xf]
        %v3957 = vld [vmem:[#allocation2 + $0xac] sm:$0xf]
        %v3958 = vld [vmem:[#allocation2 + $0xb0] sm:$0x1]
        %v3959 = vld [vmem:[#allocation2 + $0xb4] sm:$0xf]
        %v3960 = vld [vmem:[#allocation2 + $0xb8] sm:$0xf]
        %v3961 = vld [vmem:[#allocation2 + $0xbc] sm:$0x1]
        %v3962 = vld [vmem:[#allocation2 + $0xc0] sm:$0xf]
        %v3963 = vld [vmem:[#allocation2 + $0xc4] sm:$0xf]
        %v3964 = vld [vmem:[#allocation2 + $0xc8] sm:$0x1]
        %v3965 = vld [vmem:[#allocation2 + $0xcc] sm:$0xf]
        %v3966 = vld [vmem:[#allocation2 + $0xd0] sm:$0xf]
        %v3967 = vld [vmem:[#allocation2 + $0xd4] sm:$0x1]
        %v3968 = vld [vmem:[#allocation3] sm:$0xf]
        %v3969 = vld [vmem:[#allocation3 + $0x4] sm:$0xf]
        %v3970 = vld [vmem:[#allocation3 + $0x8] sm:$0xf]
        %v3971 = vld [vmem:[#allocation3 + $0xc] sm:$0xf]
        %v3972 = vld [vmem:[#allocation3 + $0x10] sm:$0xf]
        %v3973 = vld [vmem:[#allocation3 + $0x14] sm:$0xf]
        %v3974 = vld [vmem:[#allocation3 + $0x18] sm:$0xf]
        %v3975 = vld [vmem:[#allocation3 + $0x1c] sm:$0xf]
        %v3976 = vld [vmem:[#allocation3 + $0x20] sm:$0xf]
        %v3977 = vld [vmem:[#allocation3 + $0x24] sm:$0xf]
        %v3978 = vld [vmem:[#allocation3 + $0x28] sm:$0xf]
        %v3979 = vld [vmem:[#allocation3 + $0x2c] sm:$0xf]
        %v3980 = vld [vmem:[#allocation3 + $0x30] sm:$0xf]
        %v3981 = vld [vmem:[#allocation3 + $0x34] sm:$0xf]
        %v3982 = vld [vmem:[#allocation3 + $0x38] sm:$0xf]
        %v3983 = vld [vmem:[#allocation3 + $0x3c] sm:$0xf]
        %v3985 = vshrl.u32 %v3914, 16
        %v3987 = vrot.slane %v3985, 4
        %v3988 = vshll.u32 %v3914, 16
        %v3990 = vrot.slane %v3988, 5
        %v3991 = vor.u32 %v3987, %v3990
        %v3992 = vrot.slane %v3991, 4
        %v3994 = vshll.u32 %v3915, 16
        %v3996 = vrot.slane %v3994, 5
        %v3997 = vsel %vm311, %v3992, %v3996
        %v3998 = vshrl.u32 %v3915, 16
        %v4000 = vrot.slane %v3998, 4
        %v4001 = vor.u32 %v4000, %v3996
        %v4002 = vrot.slane %v4001, 4
        %v4004 = vshll.u32 %v3916, 16
        %v4006 = vrot.slane %v4004, 5
        %v4007 = vsel %vm311, %v4002, %v4006
        %v4009 = vshrl.u32 %v3917, 16
        %v4011 = vrot.slane %v4009, 4
        %v4012 = vshll.u32 %v3917, 16
        %v4014 = vrot.slane %v4012, 5
        %v4015 = vor.u32 %v4011, %v4014
        %v4016 = vrot.slane %v4015, 4
        %v4018 = vshll.u32 %v3918, 16
        %v4020 = vrot.slane %v4018, 5
        %v4021 = vsel %vm311, %v4016, %v4020
        %v4022 = vshrl.u32 %v3918, 16
        %v4024 = vrot.slane %v4022, 4
        %v4025 = vor.u32 %v4024, %v4020
        %v4026 = vrot.slane %v4025, 4
        %v4028 = vshll.u32 %v3919, 16
        %v4030 = vrot.slane %v4028, 5
        %v4031 = vsel %vm311, %v4026, %v4030
        %v4033 = vshrl.u32 %v3920, 16
        %v4035 = vrot.slane %v4033, 4
        %v4036 = vshll.u32 %v3920, 16
        %v4038 = vrot.slane %v4036, 5
        %v4039 = vor.u32 %v4035, %v4038
        %v4040 = vrot.slane %v4039, 4
        %v4042 = vshll.u32 %v3921, 16
        %v4044 = vrot.slane %v4042, 5
        %v4045 = vsel %vm311, %v4040, %v4044
        %v4046 = vshrl.u32 %v3921, 16
        %v4048 = vrot.slane %v4046, 4
        %v4049 = vor.u32 %v4048, %v4044
        %v4050 = vrot.slane %v4049, 4
        %v4052 = vshll.u32 %v3922, 16
        %v4054 = vrot.slane %v4052, 5
        %v4055 = vsel %vm311, %v4050, %v4054
        %v4057 = vshrl.u32 %v3923, 16
        %v4059 = vrot.slane %v4057, 4
        %v4060 = vshll.u32 %v3923, 16
        %v4062 = vrot.slane %v4060, 5
        %v4063 = vor.u32 %v4059, %v4062
        %v4064 = vrot.slane %v4063, 4
        %v4066 = vshll.u32 %v3924, 16
        %v4068 = vrot.slane %v4066, 5
        %v4069 = vsel %vm311, %v4064, %v4068
        %v4070 = vshrl.u32 %v3924, 16
        %v4072 = vrot.slane %v4070, 4
        %v4073 = vor.u32 %v4072, %v4068
        %v4074 = vrot.slane %v4073, 4
        %v4076 = vshll.u32 %v3925, 16
        %v4078 = vrot.slane %v4076, 5
        %v4079 = vsel %vm311, %v4074, %v4078
        %v4081 = vshrl.u32 %v3926, 16
        %v4083 = vrot.slane %v4081, 4
        %v4084 = vshll.u32 %v3926, 16
        %v4086 = vrot.slane %v4084, 5
        %v4087 = vor.u32 %v4083, %v4086
        %v4088 = vrot.slane %v4087, 4
        %v4090 = vshll.u32 %v3927, 16
        %v4092 = vrot.slane %v4090, 5
        %v4093 = vsel %vm311, %v4088, %v4092
        %v4094 = vshrl.u32 %v3927, 16
        %v4096 = vrot.slane %v4094, 4
        %v4097 = vor.u32 %v4096, %v4092
        %v4098 = vrot.slane %v4097, 4
        %v4100 = vshll.u32 %v3928, 16
        %v4102 = vrot.slane %v4100, 5
        %v4103 = vsel %vm311, %v4098, %v4102
        %v4105 = vshrl.u32 %v3929, 16
        %v4107 = vrot.slane %v4105, 4
        %v4108 = vshll.u32 %v3929, 16
        %v4110 = vrot.slane %v4108, 5
        %v4111 = vor.u32 %v4107, %v4110
        %v4112 = vrot.slane %v4111, 4
        %v4114 = vshll.u32 %v3930, 16
        %v4116 = vrot.slane %v4114, 5
        %v4117 = vsel %vm311, %v4112, %v4116
        %v4118 = vshrl.u32 %v3930, 16
        %v4120 = vrot.slane %v4118, 4
        %v4121 = vor.u32 %v4120, %v4116
        %v4122 = vrot.slane %v4121, 4
        %v4124 = vshll.u32 %v3931, 16
        %v4126 = vrot.slane %v4124, 5
        %v4127 = vsel %vm311, %v4122, %v4126
        %v4129 = vshrl.u32 %v3932, 16
        %v4131 = vrot.slane %v4129, 4
        %v4132 = vshll.u32 %v3932, 16
        %v4134 = vrot.slane %v4132, 5
        %v4135 = vor.u32 %v4131, %v4134
        %v4136 = vrot.slane %v4135, 4
        %v4138 = vshll.u32 %v3933, 16
        %v4140 = vrot.slane %v4138, 5
        %v4141 = vsel %vm311, %v4136, %v4140
        %v4142 = vshrl.u32 %v3933, 16
        %v4144 = vrot.slane %v4142, 4
        %v4145 = vor.u32 %v4144, %v4140
        %v4146 = vrot.slane %v4145, 4
        %v4148 = vshll.u32 %v3934, 16
        %v4150 = vrot.slane %v4148, 5
        %v4151 = vsel %vm311, %v4146, %v4150
        %v4153 = vshrl.u32 %v3935, 16
        %v4155 = vrot.slane %v4153, 4
        %v4156 = vshll.u32 %v3935, 16
        %v4158 = vrot.slane %v4156, 5
        %v4159 = vor.u32 %v4155, %v4158
        %v4160 = vrot.slane %v4159, 4
        %v4162 = vshll.u32 %v3936, 16
        %v4164 = vrot.slane %v4162, 5
        %v4165 = vsel %vm311, %v4160, %v4164
        %v4166 = vshrl.u32 %v3936, 16
        %v4168 = vrot.slane %v4166, 4
        %v4169 = vor.u32 %v4168, %v4164
        %v4170 = vrot.slane %v4169, 4
        %v4172 = vshll.u32 %v3937, 16
        %v4174 = vrot.slane %v4172, 5
        %v4175 = vsel %vm311, %v4170, %v4174
        %v4177 = vshrl.u32 %v3938, 16
        %v4179 = vrot.slane %v4177, 4
        %v4180 = vshll.u32 %v3938, 16
        %v4182 = vrot.slane %v4180, 5
        %v4183 = vor.u32 %v4179, %v4182
        %v4184 = vrot.slane %v4183, 4
        %v4186 = vshll.u32 %v3939, 16
        %v4188 = vrot.slane %v4186, 5
        %v4189 = vsel %vm311, %v4184, %v4188
        %v4190 = vshrl.u32 %v3939, 16
        %v4192 = vrot.slane %v4190, 4
        %v4193 = vor.u32 %v4192, %v4188
        %v4194 = vrot.slane %v4193, 4
        %v4196 = vshll.u32 %v3940, 16
        %v4198 = vrot.slane %v4196, 5
        %v4199 = vsel %vm311, %v4194, %v4198
        %v4201 = vshrl.u32 %v3941, 16
        %v4203 = vrot.slane %v4201, 4
        %v4204 = vshll.u32 %v3941, 16
        %v4206 = vrot.slane %v4204, 5
        %v4207 = vor.u32 %v4203, %v4206
        %v4208 = vrot.slane %v4207, 4
        %v4210 = vshll.u32 %v3942, 16
        %v4212 = vrot.slane %v4210, 5
        %v4213 = vsel %vm311, %v4208, %v4212
        %v4214 = vshrl.u32 %v3942, 16
        %v4216 = vrot.slane %v4214, 4
        %v4217 = vor.u32 %v4216, %v4212
        %v4218 = vrot.slane %v4217, 4
        %v4220 = vshll.u32 %v3943, 16
        %v4222 = vrot.slane %v4220, 5
        %v4223 = vsel %vm311, %v4218, %v4222
        %v4225 = vshrl.u32 %v3944, 16
        %v4227 = vrot.slane %v4225, 4
        %v4228 = vshll.u32 %v3944, 16
        %v4230 = vrot.slane %v4228, 5
        %v4231 = vor.u32 %v4227, %v4230
        %v4232 = vrot.slane %v4231, 4
        %v4234 = vshll.u32 %v3945, 16
        %v4236 = vrot.slane %v4234, 5
        %v4237 = vsel %vm311, %v4232, %v4236
        %v4238 = vshrl.u32 %v3945, 16
        %v4240 = vrot.slane %v4238, 4
        %v4241 = vor.u32 %v4240, %v4236
        %v4242 = vrot.slane %v4241, 4
        %v4244 = vshll.u32 %v3946, 16
        %v4246 = vrot.slane %v4244, 5
        %v4247 = vsel %vm311, %v4242, %v4246
        %v4249 = vshrl.u32 %v3947, 16
        %v4251 = vrot.slane %v4249, 4
        %v4252 = vshll.u32 %v3947, 16
        %v4254 = vrot.slane %v4252, 5
        %v4255 = vor.u32 %v4251, %v4254
        %v4256 = vrot.slane %v4255, 4
        %v4258 = vshll.u32 %v3948, 16
        %v4260 = vrot.slane %v4258, 5
        %v4261 = vsel %vm311, %v4256, %v4260
        %v4262 = vshrl.u32 %v3948, 16
        %v4264 = vrot.slane %v4262, 4
        %v4265 = vor.u32 %v4264, %v4260
        %v4266 = vrot.slane %v4265, 4
        %v4268 = vshll.u32 %v3949, 16
        %v4270 = vrot.slane %v4268, 5
        %v4271 = vsel %vm311, %v4266, %v4270
        %v4273 = vshrl.u32 %v3950, 16
        %v4275 = vrot.slane %v4273, 4
        %v4276 = vshll.u32 %v3950, 16
        %v4278 = vrot.slane %v4276, 5
        %v4279 = vor.u32 %v4275, %v4278
        %v4280 = vrot.slane %v4279, 4
        %v4282 = vshll.u32 %v3951, 16
        %v4284 = vrot.slane %v4282, 5
        %v4285 = vsel %vm311, %v4280, %v4284
        %v4286 = vshrl.u32 %v3951, 16
        %v4288 = vrot.slane %v4286, 4
        %v4289 = vor.u32 %v4288, %v4284
        %v4290 = vrot.slane %v4289, 4
        %v4292 = vshll.u32 %v3952, 16
        %v4294 = vrot.slane %v4292, 5
        %v4295 = vsel %vm311, %v4290, %v4294
        %v4297 = vshrl.u32 %v3953, 16
        %v4299 = vrot.slane %v4297, 4
        %v4300 = vshll.u32 %v3953, 16
        %v4302 = vrot.slane %v4300, 5
        %v4303 = vor.u32 %v4299, %v4302
        %v4304 = vrot.slane %v4303, 4
        %v4306 = vshll.u32 %v3954, 16
        %v4308 = vrot.slane %v4306, 5
        %v4309 = vsel %vm311, %v4304, %v4308
        %v4310 = vshrl.u32 %v3954, 16
        %v4312 = vrot.slane %v4310, 4
        %v4313 = vor.u32 %v4312, %v4308
        %v4314 = vrot.slane %v4313, 4
        %v4316 = vshll.u32 %v3955, 16
        %v4318 = vrot.slane %v4316, 5
        %v4319 = vsel %vm311, %v4314, %v4318
        %v4321 = vshrl.u32 %v3956, 16
        %v4323 = vrot.slane %v4321, 4
        %v4324 = vshll.u32 %v3956, 16
        %v4326 = vrot.slane %v4324, 5
        %v4327 = vor.u32 %v4323, %v4326
        %v4328 = vrot.slane %v4327, 4
        %v4330 = vshll.u32 %v3957, 16
        %v4332 = vrot.slane %v4330, 5
        %v4333 = vsel %vm311, %v4328, %v4332
        %v4334 = vshrl.u32 %v3957, 16
        %v4336 = vrot.slane %v4334, 4
        %v4337 = vor.u32 %v4336, %v4332
        %v4338 = vrot.slane %v4337, 4
        %v4340 = vshll.u32 %v3958, 16
        %v4342 = vrot.slane %v4340, 5
        %v4343 = vsel %vm311, %v4338, %v4342
        %v4345 = vshrl.u32 %v3959, 16
        %v4347 = vrot.slane %v4345, 4
        %v4348 = vshll.u32 %v3959, 16
        %v4350 = vrot.slane %v4348, 5
        %v4351 = vor.u32 %v4347, %v4350
        %v4352 = vrot.slane %v4351, 4
        %v4354 = vshll.u32 %v3960, 16
        %v4356 = vrot.slane %v4354, 5
        %v4357 = vsel %vm311, %v4352, %v4356
        %v4358 = vshrl.u32 %v3960, 16
        %v4360 = vrot.slane %v4358, 4
        %v4361 = vor.u32 %v4360, %v4356
        %v4362 = vrot.slane %v4361, 4
        %v4364 = vshll.u32 %v3961, 16
        %v4366 = vrot.slane %v4364, 5
        %v4367 = vsel %vm311, %v4362, %v4366
        %s4368 = scalar_lea.vmem [#allocation3], 64
        %v4369 = vld [vmem:[%s4368] sm:$0xf]
        %v4370 = vld [vmem:[%s4368 + $0x4] sm:$0xf]
        %v4371 = vld [vmem:[%s4368 + $0x8] sm:$0xf]
        %v4372 = vld [vmem:[%s4368 + $0xc] sm:$0xf]
        %v4373 = vld [vmem:[%s4368 + $0x10] sm:$0xf]
        %v4374 = vld [vmem:[%s4368 + $0x14] sm:$0xf]
        %v4375 = vld [vmem:[%s4368 + $0x18] sm:$0xf]
        %v4376 = vld [vmem:[%s4368 + $0x1c] sm:$0xf]
        %v4377 = vld [vmem:[%s4368 + $0x20] sm:$0xf]
        %v4378 = vld [vmem:[%s4368 + $0x24] sm:$0xf]
        %v4379 = vld [vmem:[%s4368 + $0x28] sm:$0xf]
        %v4380 = vld [vmem:[%s4368 + $0x2c] sm:$0xf]
        %v4381 = vld [vmem:[%s4368 + $0x30] sm:$0xf]
        %v4382 = vld [vmem:[%s4368 + $0x34] sm:$0xf]
        %v4383 = vld [vmem:[%s4368 + $0x38] sm:$0xf]
        %v4384 = vld [vmem:[%s4368 + $0x3c] sm:$0xf]
        %v4385 = vunpack.c.l.b16 %v3997
        %v4386 = vunpack.c.l.b16 %v4007
        %v4387 = vunpack.c.l.b16 %v4021
        %v4388 = vunpack.c.l.b16 %v4031
        %v4389 = vunpack.c.l.b16 %v4045
        %v4390 = vunpack.c.l.b16 %v4055
        %v4391 = vunpack.c.l.b16 %v4069
        %v4392 = vunpack.c.l.b16 %v4079
        %v4393 = vunpack.c.l.b16 %v4093
        %v4394 = vunpack.c.l.b16 %v4103
        %v4395 = vunpack.c.l.b16 %v4117
        %v4396 = vunpack.c.l.b16 %v4127
        %v4397 = vunpack.c.l.b16 %v4141
        %v4398 = vunpack.c.l.b16 %v4151
        %v4399 = vunpack.c.l.b16 %v4165
        %v4400 = vunpack.c.l.b16 %v4175
        %v4401 = vunpack.c.l.b16 %v4189
        %v4402 = vunpack.c.l.b16 %v4199
        %v4403 = vunpack.c.l.b16 %v4213
        %v4404 = vunpack.c.l.b16 %v4223
        %v4405 = vunpack.c.l.b16 %v4237
        %v4406 = vunpack.c.l.b16 %v4247
        %v4407 = vunpack.c.l.b16 %v4261
        %v4408 = vunpack.c.l.b16 %v4271
        %v4409 = vunpack.c.l.b16 %v4285
        %v4410 = vunpack.c.l.b16 %v4295
        %v4411 = vunpack.c.l.b16 %v4309
        %v4412 = vunpack.c.l.b16 %v4319
        %v4413 = vunpack.c.l.b16 %v4333
        %v4414 = vunpack.c.l.b16 %v4343
        %v4415 = vunpack.c.l.b16 %v4357
        %v4416 = vunpack.c.l.b16 %v4367
        %v4417 = vpack.c.b16 %v4386, %v4385
        %v4418 = vpack.c.b16 %v4388, %v4387
        %v4419 = vpack.c.b16 %v4390, %v4389
        %v4420 = vpack.c.b16 %v4392, %v4391
        %v4421 = vpack.c.b16 %v4394, %v4393
        %v4422 = vpack.c.b16 %v4396, %v4395
        %v4423 = vpack.c.b16 %v4398, %v4397
        %v4424 = vpack.c.b16 %v4400, %v4399
        %v4425 = vpack.c.b16 %v4402, %v4401
        %v4426 = vpack.c.b16 %v4404, %v4403
        %v4427 = vpack.c.b16 %v4406, %v4405
        %v4428 = vpack.c.b16 %v4408, %v4407
        %v4429 = vpack.c.b16 %v4410, %v4409
        %v4430 = vpack.c.b16 %v4412, %v4411
        %v4431 = vpack.c.b16 %v4414, %v4413
        %v4432 = vpack.c.b16 %v4416, %v4415
        %v4465 = vunpack.c.l.b16 %v4369
        %v4466 = vunpack.c.l.b16 %v4370
        %v4467 = vunpack.c.l.b16 %v4371
        %v4468 = vunpack.c.l.b16 %v4372
        %v4469 = vunpack.c.l.b16 %v4373
        %v4470 = vunpack.c.l.b16 %v4374
        %v4471 = vunpack.c.l.b16 %v4375
        %v4472 = vunpack.c.l.b16 %v4376
        %v4473 = vunpack.c.l.b16 %v4377
        %v4474 = vunpack.c.l.b16 %v4378
        %v4475 = vunpack.c.l.b16 %v4379
        %v4476 = vunpack.c.l.b16 %v4380
        %v4477 = vunpack.c.l.b16 %v4381
        %v4478 = vunpack.c.l.b16 %v4382
        %v4479 = vunpack.c.l.b16 %v4383
        %v4480 = vunpack.c.l.b16 %v4384
        %v4481 = vpack.c.b16 %v4466, %v4465
        %v4482 = vpack.c.b16 %v4468, %v4467
        %v4483 = vpack.c.b16 %v4470, %v4469
        %v4484 = vpack.c.b16 %v4472, %v4471
        %v4485 = vpack.c.b16 %v4474, %v4473
        %v4486 = vpack.c.b16 %v4476, %v4475
        %v4487 = vpack.c.b16 %v4478, %v4477
        %v4488 = vpack.c.b16 %v4480, %v4479
        %4497 = vmatprep.subr.bf16.mxu0 0
        %4498 = vmatpush1.bf16.msra.mxu0 %v4481
        %4499 = vmatprep.subr.bf16.mxu0 0
        %4500 = vmatpush1.bf16.msra.mxu0 %v4482
        %4501 = vmatprep.subr.bf16.mxu0 0
        %4502 = vmatpush1.bf16.msra.mxu0 %v4483
        %4503 = vmatprep.subr.bf16.mxu0 0
        %4504 = vmatpush1.bf16.msra.mxu0 %v4484
        %4505 = vmatprep.subr.bf16.mxu0 0
        %4506 = vmatpush1.bf16.msra.mxu0 %v4485
        %4507 = vmatprep.subr.bf16.mxu0 0
        %4508 = vmatpush1.bf16.msra.mxu0 %v4486
        %4509 = vmatprep.subr.bf16.mxu0 0
        %4510 = vmatpush1.bf16.msra.mxu0 %v4487
        %4511 = vmatprep.subr.bf16.mxu0 0
        %4512 = vmatpush1.bf16.msra.mxu0 %v4488
        %4513 = vmatprep.subr.bf16.mxu0 0
        %4514 = vmatpush1.bf16.msra.mxu0 0
        %4515 = vmatprep.subr.bf16.mxu0 0
        %4516 = vmatpush1.bf16.msra.mxu0 0
        %4517 = vmatprep.subr.bf16.mxu0 0
        %4518 = vmatpush1.bf16.msra.mxu0 0
        %4519 = vmatprep.subr.bf16.mxu0 0
        %4520 = vmatpush1.bf16.msra.mxu0 0
        %4521 = vmatprep.subr.bf16.mxu0 0
        %4522 = vmatpush1.bf16.msra.mxu0 0
        %4523 = vmatprep.subr.bf16.mxu0 0
        %4524 = vmatpush1.bf16.msra.mxu0 0
        %4525 = vmatprep.subr.bf16.mxu0 0
        %4526 = vmatpush1.bf16.msra.mxu0 0
        %4527 = vmatprep.subr.bf16.mxu0 0
        %4528 = vmatpush1.bf16.msra.mxu0 0
        %4529 = vmatprep.mubr.bf16.mxu0 0
        %4530 = vmatmul.mubr.bf16.gmra.mrb[0].mxu0 %v4417
        %v4531 = vpop.f32.mrb[0].mxu0
        %v4532 = vadd.f32 0.0, %v4531
        %v4533 = vpop.f32.mrb[0].mxu0
        %v4534 = vpop.f32.mrb[0].mxu0
        %v4535 = vadd.f32 0.0, %v4534
        %v4536 = vpop.f32.mrb[0].mxu0
        %4537 = vmatprep.mubr.bf16.mxu0 0
        %4538 = vmatmul.mubr.bf16.gmra.mrb[0].mxu0 %v4418
        %v4539 = vpop.f32.mrb[0].mxu0
        %v4540 = vadd.f32 0.0, %v4539
        %v4541 = vpop.f32.mrb[0].mxu0
        %v4542 = vpop.f32.mrb[0].mxu0
        %v4543 = vadd.f32 0.0, %v4542
        %v4544 = vpop.f32.mrb[0].mxu0
        %4545 = vmatprep.mubr.bf16.mxu0 0
        %4546 = vmatmul.mubr.bf16.gmra.mrb[0].mxu0 %v4419
        %v4547 = vpop.f32.mrb[0].mxu0
        %v4548 = vadd.f32 0.0, %v4547
        %v4549 = vpop.f32.mrb[0].mxu0
        %v4550 = vpop.f32.mrb[0].mxu0
        %v4551 = vadd.f32 0.0, %v4550
        %v4552 = vpop.f32.mrb[0].mxu0
        %4553 = vmatprep.mubr.bf16.mxu0 0
        %4554 = vmatmul.mubr.bf16.gmra.mrb[0].mxu0 %v4420
        %v4555 = vpop.f32.mrb[0].mxu0
        %v4556 = vadd.f32 0.0, %v4555
        %v4557 = vpop.f32.mrb[0].mxu0
        %v4558 = vpop.f32.mrb[0].mxu0
        %v4559 = vadd.f32 0.0, %v4558
        %v4560 = vpop.f32.mrb[0].mxu0
        %4561 = vmatprep.mubr.bf16.mxu0 0
        %4562 = vmatmul.mubr.bf16.gmra.mrb[0].mxu0 %v4421
        %v4563 = vpop.f32.mrb[0].mxu0
        %v4564 = vadd.f32 0.0, %v4563
        %v4565 = vpop.f32.mrb[0].mxu0
        %v4566 = vpop.f32.mrb[0].mxu0
        %v4567 = vadd.f32 0.0, %v4566
        %v4568 = vpop.f32.mrb[0].mxu0
        %4569 = vmatprep.mubr.bf16.mxu0 0
        %4570 = vmatmul.mubr.bf16.gmra.mrb[0].mxu0 %v4422
        %v4571 = vpop.f32.mrb[0].mxu0
        %v4572 = vadd.f32 0.0, %v4571
        %v4573 = vpop.f32.mrb[0].mxu0
        %v4574 = vpop.f32.mrb[0].mxu0
        %v4575 = vadd.f32 0.0, %v4574
        %v4576 = vpop.f32.mrb[0].mxu0
        %4577 = vmatprep.mubr.bf16.mxu0 0
        %4578 = vmatmul.mubr.bf16.gmra.mrb[0].mxu0 %v4423
        %v4579 = vpop.f32.mrb[0].mxu0
        %v4580 = vadd.f32 0.0, %v4579
        %v4581 = vpop.f32.mrb[0].mxu0
        %v4582 = vpop.f32.mrb[0].mxu0
        %v4583 = vadd.f32 0.0, %v4582
        %v4584 = vpop.f32.mrb[0].mxu0
        %4585 = vmatprep.mubr.bf16.mxu0 0
        %4586 = vmatmul.mubr.bf16.gmra.mrb[0].mxu0 %v4424
        %v4587 = vpop.f32.mrb[0].mxu0
        %v4588 = vadd.f32 0.0, %v4587
        %v4589 = vpop.f32.mrb[0].mxu0
        %v4590 = vpop.f32.mrb[0].mxu0
        %v4591 = vadd.f32 0.0, %v4590
        %v4592 = vpop.f32.mrb[0].mxu0
        %4593 = vmatprep.mubr.bf16.mxu0 0
        %4594 = vmatmul.mubr.bf16.gmra.mrb[0].mxu0 %v4425
        %v4595 = vpop.f32.mrb[0].mxu0
        %v4596 = vadd.f32 0.0, %v4595
        %v4597 = vpop.f32.mrb[0].mxu0
        %v4598 = vpop.f32.mrb[0].mxu0
        %v4599 = vadd.f32 0.0, %v4598
        %v4600 = vpop.f32.mrb[0].mxu0
        %4601 = vmatprep.mubr.bf16.mxu0 0
        %4602 = vmatmul.mubr.bf16.gmra.mrb[0].mxu0 %v4426
        %v4603 = vpop.f32.mrb[0].mxu0
        %v4604 = vadd.f32 0.0, %v4603
        %v4605 = vpop.f32.mrb[0].mxu0
        %v4606 = vpop.f32.mrb[0].mxu0
        %v4607 = vadd.f32 0.0, %v4606
        %v4608 = vpop.f32.mrb[0].mxu0
        %4609 = vmatprep.mubr.bf16.mxu0 0
        %4610 = vmatmul.mubr.bf16.gmra.mrb[0].mxu0 %v4427
        %v4611 = vpop.f32.mrb[0].mxu0
        %v4612 = vadd.f32 0.0, %v4611
        %v4613 = vpop.f32.mrb[0].mxu0
        %v4614 = vpop.f32.mrb[0].mxu0
        %v4615 = vadd.f32 0.0, %v4614
        %v4616 = vpop.f32.mrb[0].mxu0
        %4617 = vmatprep.mubr.bf16.mxu0 0
        %4618 = vmatmul.mubr.bf16.gmra.mrb[0].mxu0 %v4428
        %v4619 = vpop.f32.mrb[0].mxu0
        %v4620 = vadd.f32 0.0, %v4619
        %v4621 = vpop.f32.mrb[0].mxu0
        %v4622 = vpop.f32.mrb[0].mxu0
        %v4623 = vadd.f32 0.0, %v4622
        %v4624 = vpop.f32.mrb[0].mxu0
        %4625 = vmatprep.mubr.bf16.mxu0 0
        %4626 = vmatmul.mubr.bf16.gmra.mrb[0].mxu0 %v4429
        %v4627 = vpop.f32.mrb[0].mxu0
        %v4628 = vadd.f32 0.0, %v4627
        %v4629 = vpop.f32.mrb[0].mxu0
        %v4630 = vpop.f32.mrb[0].mxu0
        %v4631 = vadd.f32 0.0, %v4630
        %v4632 = vpop.f32.mrb[0].mxu0
        %4633 = vmatprep.mubr.bf16.mxu0 0
        %4634 = vmatmul.mubr.bf16.gmra.mrb[0].mxu0 %v4430
        %v4635 = vpop.f32.mrb[0].mxu0
        %v4636 = vadd.f32 0.0, %v4635
        %v4637 = vpop.f32.mrb[0].mxu0
        %v4638 = vpop.f32.mrb[0].mxu0
        %v4639 = vadd.f32 0.0, %v4638
        %v4640 = vpop.f32.mrb[0].mxu0
        %4641 = vmatprep.mubr.bf16.mxu0 0
        %4642 = vmatmul.mubr.bf16.gmra.mrb[0].mxu0 %v4431
        %v4643 = vpop.f32.mrb[0].mxu0
        %v4644 = vadd.f32 0.0, %v4643
        %v4645 = vpop.f32.mrb[0].mxu0
        %v4646 = vpop.f32.mrb[0].mxu0
        %v4647 = vadd.f32 0.0, %v4646
        %v4648 = vpop.f32.mrb[0].mxu0
        %4649 = vmatprep.mubr.bf16.mxu0 0
        %4650 = vmatmul.mubr.bf16.gmra.mrb[0].mxu0 %v4432
        %v4651 = vpop.f32.mrb[0].mxu0
        %v4652 = vadd.f32 0.0, %v4651
        %v4653 = vpop.f32.mrb[0].mxu0
        %v4654 = vpop.f32.mrb[0].mxu0
        %v4655 = vadd.f32 0.0, %v4654
        %v4656 = vpop.f32.mrb[0].mxu0
        %4657 = vdwg.mxu0
        %v4690 = vunpack.c.l.b16 %v3914
        %v4691 = vunpack.c.l.b16 %v3915
        %v4692 = vunpack.c.l.b16 %v3917
        %v4693 = vunpack.c.l.b16 %v3918
        %v4694 = vunpack.c.l.b16 %v3920
        %v4695 = vunpack.c.l.b16 %v3921
        %v4696 = vunpack.c.l.b16 %v3923
        %v4697 = vunpack.c.l.b16 %v3924
        %v4698 = vunpack.c.l.b16 %v3926
        %v4699 = vunpack.c.l.b16 %v3927
        %v4700 = vunpack.c.l.b16 %v3929
        %v4701 = vunpack.c.l.b16 %v3930
        %v4702 = vunpack.c.l.b16 %v3932
        %v4703 = vunpack.c.l.b16 %v3933
        %v4704 = vunpack.c.l.b16 %v3935
        %v4705 = vunpack.c.l.b16 %v3936
        %v4706 = vunpack.c.l.b16 %v3938
        %v4707 = vunpack.c.l.b16 %v3939
        %v4708 = vunpack.c.l.b16 %v3941
        %v4709 = vunpack.c.l.b16 %v3942
        %v4710 = vunpack.c.l.b16 %v3944
        %v4711 = vunpack.c.l.b16 %v3945
        %v4712 = vunpack.c.l.b16 %v3947
        %v4713 = vunpack.c.l.b16 %v3948
        %v4714 = vunpack.c.l.b16 %v3950
        %v4715 = vunpack.c.l.b16 %v3951
        %v4716 = vunpack.c.l.b16 %v3953
        %v4717 = vunpack.c.l.b16 %v3954
        %v4718 = vunpack.c.l.b16 %v3956
        %v4719 = vunpack.c.l.b16 %v3957
        %v4720 = vunpack.c.l.b16 %v3959
        %v4721 = vunpack.c.l.b16 %v3960
        %v4722 = vpack.c.b16 %v4691, %v4690
        %v4723 = vpack.c.b16 %v4693, %v4692
        %v4724 = vpack.c.b16 %v4695, %v4694
        %v4725 = vpack.c.b16 %v4697, %v4696
        %v4726 = vpack.c.b16 %v4699, %v4698
        %v4727 = vpack.c.b16 %v4701, %v4700
        %v4728 = vpack.c.b16 %v4703, %v4702
        %v4729 = vpack.c.b16 %v4705, %v4704
        %v4730 = vpack.c.b16 %v4707, %v4706
        %v4731 = vpack.c.b16 %v4709, %v4708
        %v4732 = vpack.c.b16 %v4711, %v4710
        %v4733 = vpack.c.b16 %v4713, %v4712
        %v4734 = vpack.c.b16 %v4715, %v4714
        %v4735 = vpack.c.b16 %v4717, %v4716
        %v4736 = vpack.c.b16 %v4719, %v4718
        %v4737 = vpack.c.b16 %v4721, %v4720
        %v4770 = vunpack.c.l.b16 %v3968
        %v4771 = vunpack.c.l.b16 %v3969
        %v4772 = vunpack.c.l.b16 %v3970
        %v4773 = vunpack.c.l.b16 %v3971
        %v4774 = vunpack.c.l.b16 %v3972
        %v4775 = vunpack.c.l.b16 %v3973
        %v4776 = vunpack.c.l.b16 %v3974
        %v4777 = vunpack.c.l.b16 %v3975
        %v4778 = vunpack.c.l.b16 %v3976
        %v4779 = vunpack.c.l.b16 %v3977
        %v4780 = vunpack.c.l.b16 %v3978
        %v4781 = vunpack.c.l.b16 %v3979
        %v4782 = vunpack.c.l.b16 %v3980
        %v4783 = vunpack.c.l.b16 %v3981
        %v4784 = vunpack.c.l.b16 %v3982
        %v4785 = vunpack.c.l.b16 %v3983
        %v4786 = vpack.c.b16 %v4771, %v4770
        %v4787 = vpack.c.b16 %v4773, %v4772
        %v4788 = vpack.c.b16 %v4775, %v4774
        %v4789 = vpack.c.b16 %v4777, %v4776
        %v4790 = vpack.c.b16 %v4779, %v4778
        %v4791 = vpack.c.b16 %v4781, %v4780
        %v4792 = vpack.c.b16 %v4783, %v4782
        %v4793 = vpack.c.b16 %v4785, %v4784
        %4802 = vmatprep.subr.bf16.mxu0 0
        %4803 = vmatpush1.bf16.msra.mxu0 %v4786
        %4804 = vmatprep.subr.bf16.mxu0 0
        %4805 = vmatpush1.bf16.msra.mxu0 %v4787
        %4806 = vmatprep.subr.bf16.mxu0 0
        %4807 = vmatpush1.bf16.msra.mxu0 %v4788
        %4808 = vmatprep.subr.bf16.mxu0 0
        %4809 = vmatpush1.bf16.msra.mxu0 %v4789
        %4810 = vmatprep.subr.bf16.mxu0 0
        %4811 = vmatpush1.bf16.msra.mxu0 %v4790
        %4812 = vmatprep.subr.bf16.mxu0 0
        %4813 = vmatpush1.bf16.msra.mxu0 %v4791
        %4814 = vmatprep.subr.bf16.mxu0 0
        %4815 = vmatpush1.bf16.msra.mxu0 %v4792
        %4816 = vmatprep.subr.bf16.mxu0 0
        %4817 = vmatpush1.bf16.msra.mxu0 %v4793
        %4818 = vmatprep.subr.bf16.mxu0 0
        %4819 = vmatpush1.bf16.msra.mxu0 0
        %4820 = vmatprep.subr.bf16.mxu0 0
        %4821 = vmatpush1.bf16.msra.mxu0 0
        %4822 = vmatprep.subr.bf16.mxu0 0
        %4823 = vmatpush1.bf16.msra.mxu0 0
        %4824 = vmatprep.subr.bf16.mxu0 0
        %4825 = vmatpush1.bf16.msra.mxu0 0
        %4826 = vmatprep.subr.bf16.mxu0 0
        %4827 = vmatpush1.bf16.msra.mxu0 0
        %4828 = vmatprep.subr.bf16.mxu0 0
        %4829 = vmatpush1.bf16.msra.mxu0 0
        %4830 = vmatprep.subr.bf16.mxu0 0
        %4831 = vmatpush1.bf16.msra.mxu0 0
        %4832 = vmatprep.subr.bf16.mxu0 0
        %4833 = vmatpush1.bf16.msra.mxu0 0
        %4834 = vmatprep.mubr.bf16.mxu0 0
        %4835 = vmatmul.mubr.bf16.gmra.mrb[0].mxu0 %v4722
        %v4836 = vpop.f32.mrb[0].mxu0
        %v4837 = vadd.f32 %v4532, %v4836
        %v4838 = vpop.f32.mrb[0].mxu0
        %v4839 = vpop.f32.mrb[0].mxu0
        %v4840 = vadd.f32 %v4535, %v4839
        %v4841 = vpop.f32.mrb[0].mxu0
        %4842 = vmatprep.mubr.bf16.mxu0 0
        %4843 = vmatmul.mubr.bf16.gmra.mrb[0].mxu0 %v4723
        %v4844 = vpop.f32.mrb[0].mxu0
        %v4845 = vadd.f32 %v4540, %v4844
        %v4846 = vpop.f32.mrb[0].mxu0
        %v4847 = vpop.f32.mrb[0].mxu0
        %v4848 = vadd.f32 %v4543, %v4847
        %v4849 = vpop.f32.mrb[0].mxu0
        %4850 = vmatprep.mubr.bf16.mxu0 0
        %4851 = vmatmul.mubr.bf16.gmra.mrb[0].mxu0 %v4724
        %v4852 = vpop.f32.mrb[0].mxu0
        %v4853 = vadd.f32 %v4548, %v4852
        %v4854 = vpop.f32.mrb[0].mxu0
        %v4855 = vpop.f32.mrb[0].mxu0
        %v4856 = vadd.f32 %v4551, %v4855
        %v4857 = vpop.f32.mrb[0].mxu0
        %4858 = vmatprep.mubr.bf16.mxu0 0
        %4859 = vmatmul.mubr.bf16.gmra.mrb[0].mxu0 %v4725
        %v4860 = vpop.f32.mrb[0].mxu0
        %v4861 = vadd.f32 %v4556, %v4860
        %v4862 = vpop.f32.mrb[0].mxu0
        %v4863 = vpop.f32.mrb[0].mxu0
        %v4864 = vadd.f32 %v4559, %v4863
        %v4865 = vpop.f32.mrb[0].mxu0
        %4866 = vmatprep.mubr.bf16.mxu0 0
        %4867 = vmatmul.mubr.bf16.gmra.mrb[0].mxu0 %v4726
        %v4868 = vpop.f32.mrb[0].mxu0
        %v4869 = vadd.f32 %v4564, %v4868
        %v4870 = vpop.f32.mrb[0].mxu0
        %v4871 = vpop.f32.mrb[0].mxu0
        %v4872 = vadd.f32 %v4567, %v4871
        %v4873 = vpop.f32.mrb[0].mxu0
        %4874 = vmatprep.mubr.bf16.mxu0 0
        %4875 = vmatmul.mubr.bf16.gmra.mrb[0].mxu0 %v4727
        %v4876 = vpop.f32.mrb[0].mxu0
        %v4877 = vadd.f32 %v4572, %v4876
        %v4878 = vpop.f32.mrb[0].mxu0
        %v4879 = vpop.f32.mrb[0].mxu0
        %v4880 = vadd.f32 %v4575, %v4879
        %v4881 = vpop.f32.mrb[0].mxu0
        %4882 = vmatprep.mubr.bf16.mxu0 0
        %4883 = vmatmul.mubr.bf16.gmra.mrb[0].mxu0 %v4728
        %v4884 = vpop.f32.mrb[0].mxu0
        %v4885 = vadd.f32 %v4580, %v4884
        %v4886 = vpop.f32.mrb[0].mxu0
        %v4887 = vpop.f32.mrb[0].mxu0
        %v4888 = vadd.f32 %v4583, %v4887
        %v4889 = vpop.f32.mrb[0].mxu0
        %4890 = vmatprep.mubr.bf16.mxu0 0
        %4891 = vmatmul.mubr.bf16.gmra.mrb[0].mxu0 %v4729
        %v4892 = vpop.f32.mrb[0].mxu0
        %v4893 = vadd.f32 %v4588, %v4892
        %v4894 = vpop.f32.mrb[0].mxu0
        %v4895 = vpop.f32.mrb[0].mxu0
        %v4896 = vadd.f32 %v4591, %v4895
        %v4897 = vpop.f32.mrb[0].mxu0
        %4898 = vmatprep.mubr.bf16.mxu0 0
        %4899 = vmatmul.mubr.bf16.gmra.mrb[0].mxu0 %v4730
        %v4900 = vpop.f32.mrb[0].mxu0
        %v4901 = vadd.f32 %v4596, %v4900
        %v4902 = vpop.f32.mrb[0].mxu0
        %v4903 = vpop.f32.mrb[0].mxu0
        %v4904 = vadd.f32 %v4599, %v4903
        %v4905 = vpop.f32.mrb[0].mxu0
        %4906 = vmatprep.mubr.bf16.mxu0 0
        %4907 = vmatmul.mubr.bf16.gmra.mrb[0].mxu0 %v4731
        %v4908 = vpop.f32.mrb[0].mxu0
        %v4909 = vadd.f32 %v4604, %v4908
        %v4910 = vpop.f32.mrb[0].mxu0
        %v4911 = vpop.f32.mrb[0].mxu0
        %v4912 = vadd.f32 %v4607, %v4911
        %v4913 = vpop.f32.mrb[0].mxu0
        %4914 = vmatprep.mubr.bf16.mxu0 0
        %4915 = vmatmul.mubr.bf16.gmra.mrb[0].mxu0 %v4732
        %v4916 = vpop.f32.mrb[0].mxu0
        %v4917 = vadd.f32 %v4612, %v4916
        %v4918 = vpop.f32.mrb[0].mxu0
        %v4919 = vpop.f32.mrb[0].mxu0
        %v4920 = vadd.f32 %v4615, %v4919
        %v4921 = vpop.f32.mrb[0].mxu0
        %4922 = vmatprep.mubr.bf16.mxu0 0
        %4923 = vmatmul.mubr.bf16.gmra.mrb[0].mxu0 %v4733
        %v4924 = vpop.f32.mrb[0].mxu0
        %v4925 = vadd.f32 %v4620, %v4924
        %v4926 = vpop.f32.mrb[0].mxu0
        %v4927 = vpop.f32.mrb[0].mxu0
        %v4928 = vadd.f32 %v4623, %v4927
        %v4929 = vpop.f32.mrb[0].mxu0
        %4930 = vmatprep.mubr.bf16.mxu0 0
        %4931 = vmatmul.mubr.bf16.gmra.mrb[0].mxu0 %v4734
        %v4932 = vpop.f32.mrb[0].mxu0
        %v4933 = vadd.f32 %v4628, %v4932
        %v4934 = vpop.f32.mrb[0].mxu0
        %v4935 = vpop.f32.mrb[0].mxu0
        %v4936 = vadd.f32 %v4631, %v4935
        %v4937 = vpop.f32.mrb[0].mxu0
        %4938 = vmatprep.mubr.bf16.mxu0 0
        %4939 = vmatmul.mubr.bf16.gmra.mrb[0].mxu0 %v4735
        %v4940 = vpop.f32.mrb[0].mxu0
        %v4941 = vadd.f32 %v4636, %v4940
        %v4942 = vpop.f32.mrb[0].mxu0
        %v4943 = vpop.f32.mrb[0].mxu0
        %v4944 = vadd.f32 %v4639, %v4943
        %v4945 = vpop.f32.mrb[0].mxu0
        %4946 = vmatprep.mubr.bf16.mxu0 0
        %4947 = vmatmul.mubr.bf16.gmra.mrb[0].mxu0 %v4736
        %v4948 = vpop.f32.mrb[0].mxu0
        %v4949 = vadd.f32 %v4644, %v4948
        %v4950 = vpop.f32.mrb[0].mxu0
        %v4951 = vpop.f32.mrb[0].mxu0
        %v4952 = vadd.f32 %v4647, %v4951
        %v4953 = vpop.f32.mrb[0].mxu0
        %4954 = vmatprep.mubr.bf16.mxu0 0
        %4955 = vmatmul.mubr.bf16.gmra.mrb[0].mxu0 %v4737
        %v4956 = vpop.f32.mrb[0].mxu0
        %v4957 = vadd.f32 %v4652, %v4956
        %v4958 = vpop.f32.mrb[0].mxu0
        %v4959 = vpop.f32.mrb[0].mxu0
        %v4960 = vadd.f32 %v4655, %v4959
        %v4961 = vpop.f32.mrb[0].mxu0
        %4962 = vdwg.mxu0
        %v4979 = vrot.slane %v3914, 5
        %v4980 = vrot.slane %v4979, 4
        %v4981 = vrot.slane %v3915, 5
        %v4982 = vsel %vm1309, %v4980, %v4981
        %v4983 = vrot.slane %v4981, 4
        %v4984 = vrot.slane %v3916, 5
        %v4985 = vsel %vm1309, %v4983, %v4984
        %v4986 = vrot.slane %v3917, 5
        %v4987 = vrot.slane %v4986, 4
        %v4988 = vrot.slane %v3918, 5
        %v4989 = vsel %vm1309, %v4987, %v4988
        %v4990 = vrot.slane %v4988, 4
        %v4991 = vrot.slane %v3919, 5
        %v4992 = vsel %vm1309, %v4990, %v4991
        %v4993 = vrot.slane %v3920, 5
        %v4994 = vrot.slane %v4993, 4
        %v4995 = vrot.slane %v3921, 5
        %v4996 = vsel %vm1309, %v4994, %v4995
        %v4997 = vrot.slane %v4995, 4
        %v4998 = vrot.slane %v3922, 5
        %v4999 = vsel %vm1309, %v4997, %v4998
        %v5000 = vrot.slane %v3923, 5
        %v5001 = vrot.slane %v5000, 4
        %v5002 = vrot.slane %v3924, 5
        %v5003 = vsel %vm1309, %v5001, %v5002
        %v5004 = vrot.slane %v5002, 4
        %v5005 = vrot.slane %v3925, 5
        %v5006 = vsel %vm1309, %v5004, %v5005
        %v5007 = vrot.slane %v3926, 5
        %v5008 = vrot.slane %v5007, 4
        %v5009 = vrot.slane %v3927, 5
        %v5010 = vsel %vm1309, %v5008, %v5009
        %v5011 = vrot.slane %v5009, 4
        %v5012 = vrot.slane %v3928, 5
        %v5013 = vsel %vm1309, %v5011, %v5012
        %v5014 = vrot.slane %v3929, 5
        %v5015 = vrot.slane %v5014, 4
        %v5016 = vrot.slane %v3930, 5
        %v5017 = vsel %vm1309, %v5015, %v5016
        %v5018 = vrot.slane %v5016, 4
        %v5019 = vrot.slane %v3931, 5
        %v5020 = vsel %vm1309, %v5018, %v5019
        %v5021 = vrot.slane %v3932, 5
        %v5022 = vrot.slane %v5021, 4
        %v5023 = vrot.slane %v3933, 5
        %v5024 = vsel %vm1309, %v5022, %v5023
        %v5025 = vrot.slane %v5023, 4
        %v5026 = vrot.slane %v3934, 5
        %v5027 = vsel %vm1309, %v5025, %v5026
        %v5028 = vrot.slane %v3935, 5
        %v5029 = vrot.slane %v5028, 4
        %v5030 = vrot.slane %v3936, 5
        %v5031 = vsel %vm1309, %v5029, %v5030
        %v5032 = vrot.slane %v5030, 4
        %v5033 = vrot.slane %v3937, 5
        %v5034 = vsel %vm1309, %v5032, %v5033
        %v5035 = vrot.slane %v3938, 5
        %v5036 = vrot.slane %v5035, 4
        %v5037 = vrot.slane %v3939, 5
        %v5038 = vsel %vm1309, %v5036, %v5037
        %v5039 = vrot.slane %v5037, 4
        %v5040 = vrot.slane %v3940, 5
        %v5041 = vsel %vm1309, %v5039, %v5040
        %v5042 = vrot.slane %v3941, 5
        %v5043 = vrot.slane %v5042, 4
        %v5044 = vrot.slane %v3942, 5
        %v5045 = vsel %vm1309, %v5043, %v5044
        %v5046 = vrot.slane %v5044, 4
        %v5047 = vrot.slane %v3943, 5
        %v5048 = vsel %vm1309, %v5046, %v5047
        %v5049 = vrot.slane %v3944, 5
        %v5050 = vrot.slane %v5049, 4
        %v5051 = vrot.slane %v3945, 5
        %v5052 = vsel %vm1309, %v5050, %v5051
        %v5053 = vrot.slane %v5051, 4
        %v5054 = vrot.slane %v3946, 5
        %v5055 = vsel %vm1309, %v5053, %v5054
        %v5056 = vrot.slane %v3947, 5
        %v5057 = vrot.slane %v5056, 4
        %v5058 = vrot.slane %v3948, 5
        %v5059 = vsel %vm1309, %v5057, %v5058
        %v5060 = vrot.slane %v5058, 4
        %v5061 = vrot.slane %v3949, 5
        %v5062 = vsel %vm1309, %v5060, %v5061
        %v5063 = vrot.slane %v3950, 5
        %v5064 = vrot.slane %v5063, 4
        %v5065 = vrot.slane %v3951, 5
        %v5066 = vsel %vm1309, %v5064, %v5065
        %v5067 = vrot.slane %v5065, 4
        %v5068 = vrot.slane %v3952, 5
        %v5069 = vsel %vm1309, %v5067, %v5068
        %v5070 = vrot.slane %v3953, 5
        %v5071 = vrot.slane %v5070, 4
        %v5072 = vrot.slane %v3954, 5
        %v5073 = vsel %vm1309, %v5071, %v5072
        %v5074 = vrot.slane %v5072, 4
        %v5075 = vrot.slane %v3955, 5
        %v5076 = vsel %vm1309, %v5074, %v5075
        %v5077 = vrot.slane %v3956, 5
        %v5078 = vrot.slane %v5077, 4
        %v5079 = vrot.slane %v3957, 5
        %v5080 = vsel %vm1309, %v5078, %v5079
        %v5081 = vrot.slane %v5079, 4
        %v5082 = vrot.slane %v3958, 5
        %v5083 = vsel %vm1309, %v5081, %v5082
        %v5084 = vrot.slane %v3959, 5
        %v5085 = vrot.slane %v5084, 4
        %v5086 = vrot.slane %v3960, 5
        %v5087 = vsel %vm1309, %v5085, %v5086
        %v5088 = vrot.slane %v5086, 4
        %v5089 = vrot.slane %v3961, 5
        %v5090 = vsel %vm1309, %v5088, %v5089
        %s5091 = scalar_lea.vmem [#allocation3], 128
        %v5092 = vld [vmem:[%s5091] sm:$0xf]
        %v5093 = vld [vmem:[%s5091 + $0x4] sm:$0xf]
        %v5094 = vld [vmem:[%s5091 + $0x8] sm:$0xf]
        %v5095 = vld [vmem:[%s5091 + $0xc] sm:$0xf]
        %v5096 = vld [vmem:[%s5091 + $0x10] sm:$0xf]
        %v5097 = vld [vmem:[%s5091 + $0x14] sm:$0xf]
        %v5098 = vld [vmem:[%s5091 + $0x18] sm:$0xf]
        %v5099 = vld [vmem:[%s5091 + $0x1c] sm:$0xf]
        %v5100 = vld [vmem:[%s5091 + $0x20] sm:$0xf]
        %v5101 = vld [vmem:[%s5091 + $0x24] sm:$0xf]
        %v5102 = vld [vmem:[%s5091 + $0x28] sm:$0xf]
        %v5103 = vld [vmem:[%s5091 + $0x2c] sm:$0xf]
        %v5104 = vld [vmem:[%s5091 + $0x30] sm:$0xf]
        %v5105 = vld [vmem:[%s5091 + $0x34] sm:$0xf]
        %v5106 = vld [vmem:[%s5091 + $0x38] sm:$0xf]
        %v5107 = vld [vmem:[%s5091 + $0x3c] sm:$0xf]
        %v5108 = vunpack.c.l.b16 %v4982
        %v5109 = vunpack.c.l.b16 %v4985
        %v5110 = vunpack.c.l.b16 %v4989
        %v5111 = vunpack.c.l.b16 %v4992
        %v5112 = vunpack.c.l.b16 %v4996
        %v5113 = vunpack.c.l.b16 %v4999
        %v5114 = vunpack.c.l.b16 %v5003
        %v5115 = vunpack.c.l.b16 %v5006
        %v5116 = vunpack.c.l.b16 %v5010
        %v5117 = vunpack.c.l.b16 %v5013
        %v5118 = vunpack.c.l.b16 %v5017
        %v5119 = vunpack.c.l.b16 %v5020
        %v5120 = vunpack.c.l.b16 %v5024
        %v5121 = vunpack.c.l.b16 %v5027
        %v5122 = vunpack.c.l.b16 %v5031
        %v5123 = vunpack.c.l.b16 %v5034
        %v5124 = vunpack.c.l.b16 %v5038
        %v5125 = vunpack.c.l.b16 %v5041
        %v5126 = vunpack.c.l.b16 %v5045
        %v5127 = vunpack.c.l.b16 %v5048
        %v5128 = vunpack.c.l.b16 %v5052
        %v5129 = vunpack.c.l.b16 %v5055
        %v5130 = vunpack.c.l.b16 %v5059
        %v5131 = vunpack.c.l.b16 %v5062
        %v5132 = vunpack.c.l.b16 %v5066
        %v5133 = vunpack.c.l.b16 %v5069
        %v5134 = vunpack.c.l.b16 %v5073
        %v5135 = vunpack.c.l.b16 %v5076
        %v5136 = vunpack.c.l.b16 %v5080
        %v5137 = vunpack.c.l.b16 %v5083
        %v5138 = vunpack.c.l.b16 %v5087
        %v5139 = vunpack.c.l.b16 %v5090
        %v5140 = vpack.c.b16 %v5109, %v5108
        %v5141 = vpack.c.b16 %v5111, %v5110
        %v5142 = vpack.c.b16 %v5113, %v5112
        %v5143 = vpack.c.b16 %v5115, %v5114
        %v5144 = vpack.c.b16 %v5117, %v5116
        %v5145 = vpack.c.b16 %v5119, %v5118
        %v5146 = vpack.c.b16 %v5121, %v5120
        %v5147 = vpack.c.b16 %v5123, %v5122
        %v5148 = vpack.c.b16 %v5125, %v5124
        %v5149 = vpack.c.b16 %v5127, %v5126
        %v5150 = vpack.c.b16 %v5129, %v5128
        %v5151 = vpack.c.b16 %v5131, %v5130
        %v5152 = vpack.c.b16 %v5133, %v5132
        %v5153 = vpack.c.b16 %v5135, %v5134
        %v5154 = vpack.c.b16 %v5137, %v5136
        %v5155 = vpack.c.b16 %v5139, %v5138
        %v5188 = vunpack.c.l.b16 %v5092
        %v5189 = vunpack.c.l.b16 %v5093
        %v5190 = vunpack.c.l.b16 %v5094
        %v5191 = vunpack.c.l.b16 %v5095
        %v5192 = vunpack.c.l.b16 %v5096
        %v5193 = vunpack.c.l.b16 %v5097
        %v5194 = vunpack.c.l.b16 %v5098
        %v5195 = vunpack.c.l.b16 %v5099
        %v5196 = vunpack.c.l.b16 %v5100
        %v5197 = vunpack.c.l.b16 %v5101
        %v5198 = vunpack.c.l.b16 %v5102
        %v5199 = vunpack.c.l.b16 %v5103
        %v5200 = vunpack.c.l.b16 %v5104
        %v5201 = vunpack.c.l.b16 %v5105
        %v5202 = vunpack.c.l.b16 %v5106
        %v5203 = vunpack.c.l.b16 %v5107
        %v5204 = vpack.c.b16 %v5189, %v5188
        %v5205 = vpack.c.b16 %v5191, %v5190
        %v5206 = vpack.c.b16 %v5193, %v5192
        %v5207 = vpack.c.b16 %v5195, %v5194
        %v5208 = vpack.c.b16 %v5197, %v5196
        %v5209 = vpack.c.b16 %v5199, %v5198
        %v5210 = vpack.c.b16 %v5201, %v5200
        %v5211 = vpack.c.b16 %v5203, %v5202
        %5220 = vmatprep.subr.bf16.mxu0 0
        %5221 = vmatpush1.bf16.msra.mxu0 %v5204
        %5222 = vmatprep.subr.bf16.mxu0 0
        %5223 = vmatpush1.bf16.msra.mxu0 %v5205
        %5224 = vmatprep.subr.bf16.mxu0 0
        %5225 = vmatpush1.bf16.msra.mxu0 %v5206
        %5226 = vmatprep.subr.bf16.mxu0 0
        %5227 = vmatpush1.bf16.msra.mxu0 %v5207
        %5228 = vmatprep.subr.bf16.mxu0 0
        %5229 = vmatpush1.bf16.msra.mxu0 %v5208
        %5230 = vmatprep.subr.bf16.mxu0 0
        %5231 = vmatpush1.bf16.msra.mxu0 %v5209
        %5232 = vmatprep.subr.bf16.mxu0 0
        %5233 = vmatpush1.bf16.msra.mxu0 %v5210
        %5234 = vmatprep.subr.bf16.mxu0 0
        %5235 = vmatpush1.bf16.msra.mxu0 %v5211
        %5236 = vmatprep.subr.bf16.mxu0 0
        %5237 = vmatpush1.bf16.msra.mxu0 0
        %5238 = vmatprep.subr.bf16.mxu0 0
        %5239 = vmatpush1.bf16.msra.mxu0 0
        %5240 = vmatprep.subr.bf16.mxu0 0
        %5241 = vmatpush1.bf16.msra.mxu0 0
        %5242 = vmatprep.subr.bf16.mxu0 0
        %5243 = vmatpush1.bf16.msra.mxu0 0
        %5244 = vmatprep.subr.bf16.mxu0 0
        %5245 = vmatpush1.bf16.msra.mxu0 0
        %5246 = vmatprep.subr.bf16.mxu0 0
        %5247 = vmatpush1.bf16.msra.mxu0 0
        %5248 = vmatprep.subr.bf16.mxu0 0
        %5249 = vmatpush1.bf16.msra.mxu0 0
        %5250 = vmatprep.subr.bf16.mxu0 0
        %5251 = vmatpush1.bf16.msra.mxu0 0
        %5252 = vmatprep.mubr.bf16.mxu0 0
        %5253 = vmatmul.mubr.bf16.gmra.mrb[0].mxu0 %v5140
        %v5254 = vpop.f32.mrb[0].mxu0
        %v5255 = vadd.f32 0.0, %v5254
        %v5256 = vpop.f32.mrb[0].mxu0
        %v5257 = vpop.f32.mrb[0].mxu0
        %v5258 = vadd.f32 0.0, %v5257
        %v5259 = vpop.f32.mrb[0].mxu0
        %5260 = vmatprep.mubr.bf16.mxu0 0
        %5261 = vmatmul.mubr.bf16.gmra.mrb[0].mxu0 %v5141
        %v5262 = vpop.f32.mrb[0].mxu0
        %v5263 = vadd.f32 0.0, %v5262
        %v5264 = vpop.f32.mrb[0].mxu0
        %v5265 = vpop.f32.mrb[0].mxu0
        %v5266 = vadd.f32 0.0, %v5265
        %v5267 = vpop.f32.mrb[0].mxu0
        %5268 = vmatprep.mubr.bf16.mxu0 0
        %5269 = vmatmul.mubr.bf16.gmra.mrb[0].mxu0 %v5142
        %v5270 = vpop.f32.mrb[0].mxu0
        %v5271 = vadd.f32 0.0, %v5270
        %v5272 = vpop.f32.mrb[0].mxu0
        %v5273 = vpop.f32.mrb[0].mxu0
        %v5274 = vadd.f32 0.0, %v5273
        %v5275 = vpop.f32.mrb[0].mxu0
        %5276 = vmatprep.mubr.bf16.mxu0 0
        %5277 = vmatmul.mubr.bf16.gmra.mrb[0].mxu0 %v5143
        %v5278 = vpop.f32.mrb[0].mxu0
        %v5279 = vadd.f32 0.0, %v5278
        %v5280 = vpop.f32.mrb[0].mxu0
        %v5281 = vpop.f32.mrb[0].mxu0
        %v5282 = vadd.f32 0.0, %v5281
        %v5283 = vpop.f32.mrb[0].mxu0
        %5284 = vmatprep.mubr.bf16.mxu0 0
        %5285 = vmatmul.mubr.bf16.gmra.mrb[0].mxu0 %v5144
        %v5286 = vpop.f32.mrb[0].mxu0
        %v5287 = vadd.f32 0.0, %v5286
        %v5288 = vpop.f32.mrb[0].mxu0
        %v5289 = vpop.f32.mrb[0].mxu0
        %v5290 = vadd.f32 0.0, %v5289
        %v5291 = vpop.f32.mrb[0].mxu0
        %5292 = vmatprep.mubr.bf16.mxu0 0
        %5293 = vmatmul.mubr.bf16.gmra.mrb[0].mxu0 %v5145
        %v5294 = vpop.f32.mrb[0].mxu0
        %v5295 = vadd.f32 0.0, %v5294
        %v5296 = vpop.f32.mrb[0].mxu0
        %v5297 = vpop.f32.mrb[0].mxu0
        %v5298 = vadd.f32 0.0, %v5297
        %v5299 = vpop.f32.mrb[0].mxu0
        %5300 = vmatprep.mubr.bf16.mxu0 0
        %5301 = vmatmul.mubr.bf16.gmra.mrb[0].mxu0 %v5146
        %v5302 = vpop.f32.mrb[0].mxu0
        %v5303 = vadd.f32 0.0, %v5302
        %v5304 = vpop.f32.mrb[0].mxu0
        %v5305 = vpop.f32.mrb[0].mxu0
        %v5306 = vadd.f32 0.0, %v5305
        %v5307 = vpop.f32.mrb[0].mxu0
        %5308 = vmatprep.mubr.bf16.mxu0 0
        %5309 = vmatmul.mubr.bf16.gmra.mrb[0].mxu0 %v5147
        %v5310 = vpop.f32.mrb[0].mxu0
        %v5311 = vadd.f32 0.0, %v5310
        %v5312 = vpop.f32.mrb[0].mxu0
        %v5313 = vpop.f32.mrb[0].mxu0
        %v5314 = vadd.f32 0.0, %v5313
        %v5315 = vpop.f32.mrb[0].mxu0
        %5316 = vmatprep.mubr.bf16.mxu0 0
        %5317 = vmatmul.mubr.bf16.gmra.mrb[0].mxu0 %v5148
        %v5318 = vpop.f32.mrb[0].mxu0
        %v5319 = vadd.f32 0.0, %v5318
        %v5320 = vpop.f32.mrb[0].mxu0
        %v5321 = vpop.f32.mrb[0].mxu0
        %v5322 = vadd.f32 0.0, %v5321
        %v5323 = vpop.f32.mrb[0].mxu0
        %5324 = vmatprep.mubr.bf16.mxu0 0
        %5325 = vmatmul.mubr.bf16.gmra.mrb[0].mxu0 %v5149
        %v5326 = vpop.f32.mrb[0].mxu0
        %v5327 = vadd.f32 0.0, %v5326
        %v5328 = vpop.f32.mrb[0].mxu0
        %v5329 = vpop.f32.mrb[0].mxu0
        %v5330 = vadd.f32 0.0, %v5329
        %v5331 = vpop.f32.mrb[0].mxu0
        %5332 = vmatprep.mubr.bf16.mxu0 0
        %5333 = vmatmul.mubr.bf16.gmra.mrb[0].mxu0 %v5150
        %v5334 = vpop.f32.mrb[0].mxu0
        %v5335 = vadd.f32 0.0, %v5334
        %v5336 = vpop.f32.mrb[0].mxu0
        %v5337 = vpop.f32.mrb[0].mxu0
        %v5338 = vadd.f32 0.0, %v5337
        %v5339 = vpop.f32.mrb[0].mxu0
        %5340 = vmatprep.mubr.bf16.mxu0 0
        %5341 = vmatmul.mubr.bf16.gmra.mrb[0].mxu0 %v5151
        %v5342 = vpop.f32.mrb[0].mxu0
        %v5343 = vadd.f32 0.0, %v5342
        %v5344 = vpop.f32.mrb[0].mxu0
        %v5345 = vpop.f32.mrb[0].mxu0
        %v5346 = vadd.f32 0.0, %v5345
        %v5347 = vpop.f32.mrb[0].mxu0
        %5348 = vmatprep.mubr.bf16.mxu0 0
        %5349 = vmatmul.mubr.bf16.gmra.mrb[0].mxu0 %v5152
        %v5350 = vpop.f32.mrb[0].mxu0
        %v5351 = vadd.f32 0.0, %v5350
        %v5352 = vpop.f32.mrb[0].mxu0
        %v5353 = vpop.f32.mrb[0].mxu0
        %v5354 = vadd.f32 0.0, %v5353
        %v5355 = vpop.f32.mrb[0].mxu0
        %5356 = vmatprep.mubr.bf16.mxu0 0
        %5357 = vmatmul.mubr.bf16.gmra.mrb[0].mxu0 %v5153
        %v5358 = vpop.f32.mrb[0].mxu0
        %v5359 = vadd.f32 0.0, %v5358
        %v5360 = vpop.f32.mrb[0].mxu0
        %v5361 = vpop.f32.mrb[0].mxu0
        %v5362 = vadd.f32 0.0, %v5361
        %v5363 = vpop.f32.mrb[0].mxu0
        %5364 = vmatprep.mubr.bf16.mxu0 0
        %5365 = vmatmul.mubr.bf16.gmra.mrb[0].mxu0 %v5154
        %v5366 = vpop.f32.mrb[0].mxu0
        %v5367 = vadd.f32 0.0, %v5366
        %v5368 = vpop.f32.mrb[0].mxu0
        %v5369 = vpop.f32.mrb[0].mxu0
        %v5370 = vadd.f32 0.0, %v5369
        %v5371 = vpop.f32.mrb[0].mxu0
        %5372 = vmatprep.mubr.bf16.mxu0 0
        %5373 = vmatmul.mubr.bf16.gmra.mrb[0].mxu0 %v5155
        %v5374 = vpop.f32.mrb[0].mxu0
        %v5375 = vadd.f32 0.0, %v5374
        %v5376 = vpop.f32.mrb[0].mxu0
        %v5377 = vpop.f32.mrb[0].mxu0
        %v5378 = vadd.f32 0.0, %v5377
        %v5379 = vpop.f32.mrb[0].mxu0
        %5380 = vdwg.mxu0
        %v5381 = vadd.f32 %v4837, %v5255
        %v5382 = vadd.f32 %v4840, %v5258
        %v5383 = vadd.f32 %v4845, %v5263
        %v5384 = vadd.f32 %v4848, %v5266
        %v5385 = vadd.f32 %v4853, %v5271
        %v5386 = vadd.f32 %v4856, %v5274
        %v5387 = vadd.f32 %v4861, %v5279
        %v5388 = vadd.f32 %v4864, %v5282
        %v5389 = vadd.f32 %v4869, %v5287
        %v5390 = vadd.f32 %v4872, %v5290
        %v5391 = vadd.f32 %v4877, %v5295
        %v5392 = vadd.f32 %v4880, %v5298
        %v5393 = vadd.f32 %v4885, %v5303
        %v5394 = vadd.f32 %v4888, %v5306
        %v5395 = vadd.f32 %v4893, %v5311
        %v5396 = vadd.f32 %v4896, %v5314
        %v5397 = vadd.f32 %v4901, %v5319
        %v5398 = vadd.f32 %v4904, %v5322
        %v5399 = vadd.f32 %v4909, %v5327
        %v5400 = vadd.f32 %v4912, %v5330
        %v5401 = vadd.f32 %v4917, %v5335
        %v5402 = vadd.f32 %v4920, %v5338
        %v5403 = vadd.f32 %v4925, %v5343
        %v5404 = vadd.f32 %v4928, %v5346
        %v5405 = vadd.f32 %v4933, %v5351
        %v5406 = vadd.f32 %v4936, %v5354
        %v5407 = vadd.f32 %v4941, %v5359
        %v5408 = vadd.f32 %v4944, %v5362
        %v5409 = vadd.f32 %v4949, %v5367
        %v5410 = vadd.f32 %v4952, %v5370
        %v5411 = vadd.f32 %v4957, %v5375
        %v5412 = vadd.f32 %v4960, %v5378
        %s5413 = scalar_lea.vmem [#allocation3], 192
        %v5414 = vld [vmem:[%s5413] sm:$0xf]
        %v5415 = vld [vmem:[%s5413 + $0x4] sm:$0xf]
        %v5416 = vld [vmem:[%s5413 + $0x8] sm:$0xf]
        %v5417 = vld [vmem:[%s5413 + $0xc] sm:$0xf]
        %v5418 = vld [vmem:[%s5413 + $0x10] sm:$0xf]
        %v5419 = vld [vmem:[%s5413 + $0x14] sm:$0xf]
        %v5420 = vld [vmem:[%s5413 + $0x18] sm:$0xf]
        %v5421 = vld [vmem:[%s5413 + $0x1c] sm:$0xf]
        %v5422 = vld [vmem:[%s5413 + $0x20] sm:$0xf]
        %v5423 = vld [vmem:[%s5413 + $0x24] sm:$0xf]
        %v5424 = vld [vmem:[%s5413 + $0x28] sm:$0xf]
        %v5425 = vld [vmem:[%s5413 + $0x2c] sm:$0xf]
        %v5426 = vld [vmem:[%s5413 + $0x30] sm:$0xf]
        %v5427 = vld [vmem:[%s5413 + $0x34] sm:$0xf]
        %v5428 = vld [vmem:[%s5413 + $0x38] sm:$0xf]
        %v5429 = vld [vmem:[%s5413 + $0x3c] sm:$0xf]
        %v5432 = vunpack.c.l.b16 %v3962
        %v5433 = vunpack.c.l.b16 %v3963
        %v5434 = vpack.c.b16 %v5433, %v5432
        %v5452 = vunpack.c.l.b16 %v5414
        %v5453 = vunpack.c.l.b16 %v5415
        %v5454 = vunpack.c.l.b16 %v5416
        %v5455 = vunpack.c.l.b16 %v5417
        %v5456 = vunpack.c.l.b16 %v5418
        %v5457 = vunpack.c.l.b16 %v5419
        %v5458 = vunpack.c.l.b16 %v5420
        %v5459 = vunpack.c.l.b16 %v5421
        %v5460 = vunpack.c.l.b16 %v5422
        %v5461 = vunpack.c.l.b16 %v5423
        %v5462 = vunpack.c.l.b16 %v5424
        %v5463 = vunpack.c.l.b16 %v5425
        %v5464 = vunpack.c.l.b16 %v5426
        %v5465 = vunpack.c.l.b16 %v5427
        %v5466 = vunpack.c.l.b16 %v5428
        %v5467 = vunpack.c.l.b16 %v5429
        %v5468 = vpack.c.b16 %v5453, %v5452
        %v5469 = vpack.c.b16 %v5455, %v5454
        %v5470 = vpack.c.b16 %v5457, %v5456
        %v5471 = vpack.c.b16 %v5459, %v5458
        %v5472 = vpack.c.b16 %v5461, %v5460
        %v5473 = vpack.c.b16 %v5463, %v5462
        %v5474 = vpack.c.b16 %v5465, %v5464
        %v5475 = vpack.c.b16 %v5467, %v5466
        %5484 = vmatprep.subr.bf16.mxu0 0
        %5485 = vmatpush1.bf16.msra.mxu0 %v5468
        %5486 = vmatprep.subr.bf16.mxu0 0
        %5487 = vmatpush1.bf16.msra.mxu0 %v5469
        %5488 = vmatprep.subr.bf16.mxu0 0
        %5489 = vmatpush1.bf16.msra.mxu0 %v5470
        %5490 = vmatprep.subr.bf16.mxu0 0
        %5491 = vmatpush1.bf16.msra.mxu0 %v5471
        %5492 = vmatprep.subr.bf16.mxu0 0
        %5493 = vmatpush1.bf16.msra.mxu0 %v5472
        %5494 = vmatprep.subr.bf16.mxu0 0
        %5495 = vmatpush1.bf16.msra.mxu0 %v5473
        %5496 = vmatprep.subr.bf16.mxu0 0
        %5497 = vmatpush1.bf16.msra.mxu0 %v5474
        %5498 = vmatprep.subr.bf16.mxu0 0
        %5499 = vmatpush1.bf16.msra.mxu0 %v5475
        %5500 = vmatprep.subr.bf16.mxu0 0
        %5501 = vmatpush1.bf16.msra.mxu0 0
        %5502 = vmatprep.subr.bf16.mxu0 0
        %5503 = vmatpush1.bf16.msra.mxu0 0
        %5504 = vmatprep.subr.bf16.mxu0 0
        %5505 = vmatpush1.bf16.msra.mxu0 0
        %5506 = vmatprep.subr.bf16.mxu0 0
        %5507 = vmatpush1.bf16.msra.mxu0 0
        %5508 = vmatprep.subr.bf16.mxu0 0
        %5509 = vmatpush1.bf16.msra.mxu0 0
        %5510 = vmatprep.subr.bf16.mxu0 0
        %5511 = vmatpush1.bf16.msra.mxu0 0
        %5512 = vmatprep.subr.bf16.mxu0 0
        %5513 = vmatpush1.bf16.msra.mxu0 0
        %5514 = vmatprep.subr.bf16.mxu0 0
        %5515 = vmatpush1.bf16.msra.mxu0 0
        %5516 = vmatprep.mubr.bf16.mxu0 0
        %5517 = vmatmul.mubr.bf16.gmra.mrb[0].mxu0 %v4723
        %v5518 = vpop.f32.mrb[0].mxu0
        %v5519 = vadd.f32 0.0, %v5518
        %v5520 = vpop.f32.mrb[0].mxu0
        %v5521 = vpop.f32.mrb[0].mxu0
        %v5522 = vadd.f32 0.0, %v5521
        %v5523 = vpop.f32.mrb[0].mxu0
        %5524 = vmatprep.mubr.bf16.mxu0 0
        %5525 = vmatmul.mubr.bf16.gmra.mrb[0].mxu0 %v4724
        %v5526 = vpop.f32.mrb[0].mxu0
        %v5527 = vadd.f32 0.0, %v5526
        %v5528 = vpop.f32.mrb[0].mxu0
        %v5529 = vpop.f32.mrb[0].mxu0
        %v5530 = vadd.f32 0.0, %v5529
        %v5531 = vpop.f32.mrb[0].mxu0
        %5532 = vmatprep.mubr.bf16.mxu0 0
        %5533 = vmatmul.mubr.bf16.gmra.mrb[0].mxu0 %v4725
        %v5534 = vpop.f32.mrb[0].mxu0
        %v5535 = vadd.f32 0.0, %v5534
        %v5536 = vpop.f32.mrb[0].mxu0
        %v5537 = vpop.f32.mrb[0].mxu0
        %v5538 = vadd.f32 0.0, %v5537
        %v5539 = vpop.f32.mrb[0].mxu0
        %5540 = vmatprep.mubr.bf16.mxu0 0
        %5541 = vmatmul.mubr.bf16.gmra.mrb[0].mxu0 %v4726
        %v5542 = vpop.f32.mrb[0].mxu0
        %v5543 = vadd.f32 0.0, %v5542
        %v5544 = vpop.f32.mrb[0].mxu0
        %v5545 = vpop.f32.mrb[0].mxu0
        %v5546 = vadd.f32 0.0, %v5545
        %v5547 = vpop.f32.mrb[0].mxu0
        %5548 = vmatprep.mubr.bf16.mxu0 0
        %5549 = vmatmul.mubr.bf16.gmra.mrb[0].mxu0 %v4727
        %v5550 = vpop.f32.mrb[0].mxu0
        %v5551 = vadd.f32 0.0, %v5550
        %v5552 = vpop.f32.mrb[0].mxu0
        %v5553 = vpop.f32.mrb[0].mxu0
        %v5554 = vadd.f32 0.0, %v5553
        %v5555 = vpop.f32.mrb[0].mxu0
        %5556 = vmatprep.mubr.bf16.mxu0 0
        %5557 = vmatmul.mubr.bf16.gmra.mrb[0].mxu0 %v4728
        %v5558 = vpop.f32.mrb[0].mxu0
        %v5559 = vadd.f32 0.0, %v5558
        %v5560 = vpop.f32.mrb[0].mxu0
        %v5561 = vpop.f32.mrb[0].mxu0
        %v5562 = vadd.f32 0.0, %v5561
        %v5563 = vpop.f32.mrb[0].mxu0
        %5564 = vmatprep.mubr.bf16.mxu0 0
        %5565 = vmatmul.mubr.bf16.gmra.mrb[0].mxu0 %v4729
        %v5566 = vpop.f32.mrb[0].mxu0
        %v5567 = vadd.f32 0.0, %v5566
        %v5568 = vpop.f32.mrb[0].mxu0
        %v5569 = vpop.f32.mrb[0].mxu0
        %v5570 = vadd.f32 0.0, %v5569
        %v5571 = vpop.f32.mrb[0].mxu0
        %5572 = vmatprep.mubr.bf16.mxu0 0
        %5573 = vmatmul.mubr.bf16.gmra.mrb[0].mxu0 %v4730
        %v5574 = vpop.f32.mrb[0].mxu0
        %v5575 = vadd.f32 0.0, %v5574
        %v5576 = vpop.f32.mrb[0].mxu0
        %v5577 = vpop.f32.mrb[0].mxu0
        %v5578 = vadd.f32 0.0, %v5577
        %v5579 = vpop.f32.mrb[0].mxu0
        %5580 = vmatprep.mubr.bf16.mxu0 0
        %5581 = vmatmul.mubr.bf16.gmra.mrb[0].mxu0 %v4731
        %v5582 = vpop.f32.mrb[0].mxu0
        %v5583 = vadd.f32 0.0, %v5582
        %v5584 = vpop.f32.mrb[0].mxu0
        %v5585 = vpop.f32.mrb[0].mxu0
        %v5586 = vadd.f32 0.0, %v5585
        %v5587 = vpop.f32.mrb[0].mxu0
        %5588 = vmatprep.mubr.bf16.mxu0 0
        %5589 = vmatmul.mubr.bf16.gmra.mrb[0].mxu0 %v4732
        %v5590 = vpop.f32.mrb[0].mxu0
        %v5591 = vadd.f32 0.0, %v5590
        %v5592 = vpop.f32.mrb[0].mxu0
        %v5593 = vpop.f32.mrb[0].mxu0
        %v5594 = vadd.f32 0.0, %v5593
        %v5595 = vpop.f32.mrb[0].mxu0
        %5596 = vmatprep.mubr.bf16.mxu0 0
        %5597 = vmatmul.mubr.bf16.gmra.mrb[0].mxu0 %v4733
        %v5598 = vpop.f32.mrb[0].mxu0
        %v5599 = vadd.f32 0.0, %v5598
        %v5600 = vpop.f32.mrb[0].mxu0
        %v5601 = vpop.f32.mrb[0].mxu0
        %v5602 = vadd.f32 0.0, %v5601
        %v5603 = vpop.f32.mrb[0].mxu0
        %5604 = vmatprep.mubr.bf16.mxu0 0
        %5605 = vmatmul.mubr.bf16.gmra.mrb[0].mxu0 %v4734
        %v5606 = vpop.f32.mrb[0].mxu0
        %v5607 = vadd.f32 0.0, %v5606
        %v5608 = vpop.f32.mrb[0].mxu0
        %v5609 = vpop.f32.mrb[0].mxu0
        %v5610 = vadd.f32 0.0, %v5609
        %v5611 = vpop.f32.mrb[0].mxu0
        %5612 = vmatprep.mubr.bf16.mxu0 0
        %5613 = vmatmul.mubr.bf16.gmra.mrb[0].mxu0 %v4735
        %v5614 = vpop.f32.mrb[0].mxu0
        %v5615 = vadd.f32 0.0, %v5614
        %v5616 = vpop.f32.mrb[0].mxu0
        %v5617 = vpop.f32.mrb[0].mxu0
        %v5618 = vadd.f32 0.0, %v5617
        %v5619 = vpop.f32.mrb[0].mxu0
        %5620 = vmatprep.mubr.bf16.mxu0 0
        %5621 = vmatmul.mubr.bf16.gmra.mrb[0].mxu0 %v4736
        %v5622 = vpop.f32.mrb[0].mxu0
        %v5623 = vadd.f32 0.0, %v5622
        %v5624 = vpop.f32.mrb[0].mxu0
        %v5625 = vpop.f32.mrb[0].mxu0
        %v5626 = vadd.f32 0.0, %v5625
        %v5627 = vpop.f32.mrb[0].mxu0
        %5628 = vmatprep.mubr.bf16.mxu0 0
        %5629 = vmatmul.mubr.bf16.gmra.mrb[0].mxu0 %v4737
        %v5630 = vpop.f32.mrb[0].mxu0
        %v5631 = vadd.f32 0.0, %v5630
        %v5632 = vpop.f32.mrb[0].mxu0
        %v5633 = vpop.f32.mrb[0].mxu0
        %v5634 = vadd.f32 0.0, %v5633
        %v5635 = vpop.f32.mrb[0].mxu0
        %5636 = vmatprep.mubr.bf16.mxu0 0
        %5637 = vmatmul.mubr.bf16.gmra.mrb[0].mxu0 %v5434
        %v5638 = vpop.f32.mrb[0].mxu0
        %v5639 = vadd.f32 0.0, %v5638
        %v5640 = vpop.f32.mrb[0].mxu0
        %v5641 = vpop.f32.mrb[0].mxu0
        %v5642 = vadd.f32 0.0, %v5641
        %v5643 = vpop.f32.mrb[0].mxu0
        %5644 = vdwg.mxu0
        %v5645 = vadd.f32 %v5381, %v5519
        %v5646 = vadd.f32 %v5382, %v5522
        %v5647 = vadd.f32 %v5383, %v5527
        %v5648 = vadd.f32 %v5384, %v5530
        %v5649 = vadd.f32 %v5385, %v5535
        %v5650 = vadd.f32 %v5386, %v5538
        %v5651 = vadd.f32 %v5387, %v5543
        %v5652 = vadd.f32 %v5388, %v5546
        %v5653 = vadd.f32 %v5389, %v5551
        %v5654 = vadd.f32 %v5390, %v5554
        %v5655 = vadd.f32 %v5391, %v5559
        %v5656 = vadd.f32 %v5392, %v5562
        %v5657 = vadd.f32 %v5393, %v5567
        %v5658 = vadd.f32 %v5394, %v5570
        %v5659 = vadd.f32 %v5395, %v5575
        %v5660 = vadd.f32 %v5396, %v5578
        %v5661 = vadd.f32 %v5397, %v5583
        %v5662 = vadd.f32 %v5398, %v5586
        %v5663 = vadd.f32 %v5399, %v5591
        %v5664 = vadd.f32 %v5400, %v5594
        %v5665 = vadd.f32 %v5401, %v5599
        %v5666 = vadd.f32 %v5402, %v5602
        %v5667 = vadd.f32 %v5403, %v5607
        %v5668 = vadd.f32 %v5404, %v5610
        %v5669 = vadd.f32 %v5405, %v5615
        %v5670 = vadd.f32 %v5406, %v5618
        %v5671 = vadd.f32 %v5407, %v5623
        %v5672 = vadd.f32 %v5408, %v5626
        %v5673 = vadd.f32 %v5409, %v5631
        %v5674 = vadd.f32 %v5410, %v5634
        %v5675 = vadd.f32 %v5411, %v5639
        %v5676 = vadd.f32 %v5412, %v5642
        %v5678 = vshrl.u32 %v3962, 16
        %v5680 = vrot.slane %v5678, 4
        %v5681 = vshll.u32 %v3962, 16
        %v5683 = vrot.slane %v5681, 5
        %v5684 = vor.u32 %v5680, %v5683
        %v5685 = vrot.slane %v5684, 4
        %v5687 = vshll.u32 %v3963, 16
        %v5689 = vrot.slane %v5687, 5
        %v5690 = vsel %vm311, %v5685, %v5689
        %v5691 = vshrl.u32 %v3963, 16
        %v5693 = vrot.slane %v5691, 4
        %v5694 = vor.u32 %v5693, %v5689
        %v5695 = vrot.slane %v5694, 4
        %v5697 = vshll.u32 %v3964, 16
        %v5699 = vrot.slane %v5697, 5
        %v5700 = vsel %vm311, %v5695, %v5699
        %s5701 = scalar_lea.vmem [#allocation3], 256
        %v5702 = vld [vmem:[%s5701] sm:$0xf]
        %v5703 = vld [vmem:[%s5701 + $0x4] sm:$0xf]
        %v5704 = vld [vmem:[%s5701 + $0x8] sm:$0xf]
        %v5705 = vld [vmem:[%s5701 + $0xc] sm:$0xf]
        %v5706 = vld [vmem:[%s5701 + $0x10] sm:$0xf]
        %v5707 = vld [vmem:[%s5701 + $0x14] sm:$0xf]
        %v5708 = vld [vmem:[%s5701 + $0x18] sm:$0xf]
        %v5709 = vld [vmem:[%s5701 + $0x1c] sm:$0xf]
        %v5710 = vld [vmem:[%s5701 + $0x20] sm:$0xf]
        %v5711 = vld [vmem:[%s5701 + $0x24] sm:$0xf]
        %v5712 = vld [vmem:[%s5701 + $0x28] sm:$0xf]
        %v5713 = vld [vmem:[%s5701 + $0x2c] sm:$0xf]
        %v5714 = vld [vmem:[%s5701 + $0x30] sm:$0xf]
        %v5715 = vld [vmem:[%s5701 + $0x34] sm:$0xf]
        %v5716 = vld [vmem:[%s5701 + $0x38] sm:$0xf]
        %v5717 = vld [vmem:[%s5701 + $0x3c] sm:$0xf]
        %v5718 = vunpack.c.l.b16 %v5690
        %v5719 = vunpack.c.l.b16 %v5700
        %v5720 = vpack.c.b16 %v5719, %v5718
        %v5738 = vunpack.c.l.b16 %v5702
        %v5739 = vunpack.c.l.b16 %v5703
        %v5740 = vunpack.c.l.b16 %v5704
        %v5741 = vunpack.c.l.b16 %v5705
        %v5742 = vunpack.c.l.b16 %v5706
        %v5743 = vunpack.c.l.b16 %v5707
        %v5744 = vunpack.c.l.b16 %v5708
        %v5745 = vunpack.c.l.b16 %v5709
        %v5746 = vunpack.c.l.b16 %v5710
        %v5747 = vunpack.c.l.b16 %v5711
        %v5748 = vunpack.c.l.b16 %v5712
        %v5749 = vunpack.c.l.b16 %v5713
        %v5750 = vunpack.c.l.b16 %v5714
        %v5751 = vunpack.c.l.b16 %v5715
        %v5752 = vunpack.c.l.b16 %v5716
        %v5753 = vunpack.c.l.b16 %v5717
        %v5754 = vpack.c.b16 %v5739, %v5738
        %v5755 = vpack.c.b16 %v5741, %v5740
        %v5756 = vpack.c.b16 %v5743, %v5742
        %v5757 = vpack.c.b16 %v5745, %v5744
        %v5758 = vpack.c.b16 %v5747, %v5746
        %v5759 = vpack.c.b16 %v5749, %v5748
        %v5760 = vpack.c.b16 %v5751, %v5750
        %v5761 = vpack.c.b16 %v5753, %v5752
        %5770 = vmatprep.subr.bf16.mxu0 0
        %5771 = vmatpush1.bf16.msra.mxu0 %v5754
        %5772 = vmatprep.subr.bf16.mxu0 0
        %5773 = vmatpush1.bf16.msra.mxu0 %v5755
        %5774 = vmatprep.subr.bf16.mxu0 0
        %5775 = vmatpush1.bf16.msra.mxu0 %v5756
        %5776 = vmatprep.subr.bf16.mxu0 0
        %5777 = vmatpush1.bf16.msra.mxu0 %v5757
        %5778 = vmatprep.subr.bf16.mxu0 0
        %5779 = vmatpush1.bf16.msra.mxu0 %v5758
        %5780 = vmatprep.subr.bf16.mxu0 0
        %5781 = vmatpush1.bf16.msra.mxu0 %v5759
        %5782 = vmatprep.subr.bf16.mxu0 0
        %5783 = vmatpush1.bf16.msra.mxu0 %v5760
        %5784 = vmatprep.subr.bf16.mxu0 0
        %5785 = vmatpush1.bf16.msra.mxu0 %v5761
        %5786 = vmatprep.subr.bf16.mxu0 0
        %5787 = vmatpush1.bf16.msra.mxu0 0
        %5788 = vmatprep.subr.bf16.mxu0 0
        %5789 = vmatpush1.bf16.msra.mxu0 0
        %5790 = vmatprep.subr.bf16.mxu0 0
        %5791 = vmatpush1.bf16.msra.mxu0 0
        %5792 = vmatprep.subr.bf16.mxu0 0
        %5793 = vmatpush1.bf16.msra.mxu0 0
        %5794 = vmatprep.subr.bf16.mxu0 0
        %5795 = vmatpush1.bf16.msra.mxu0 0
        %5796 = vmatprep.subr.bf16.mxu0 0
        %5797 = vmatpush1.bf16.msra.mxu0 0
        %5798 = vmatprep.subr.bf16.mxu0 0
        %5799 = vmatpush1.bf16.msra.mxu0 0
        %5800 = vmatprep.subr.bf16.mxu0 0
        %5801 = vmatpush1.bf16.msra.mxu0 0
        %5802 = vmatprep.mubr.bf16.mxu0 0
        %5803 = vmatmul.mubr.bf16.gmra.mrb[0].mxu0 %v4418
        %v5804 = vpop.f32.mrb[0].mxu0
        %v5805 = vadd.f32 0.0, %v5804
        %v5806 = vpop.f32.mrb[0].mxu0
        %v5807 = vpop.f32.mrb[0].mxu0
        %v5808 = vadd.f32 0.0, %v5807
        %v5809 = vpop.f32.mrb[0].mxu0
        %5810 = vmatprep.mubr.bf16.mxu0 0
        %5811 = vmatmul.mubr.bf16.gmra.mrb[0].mxu0 %v4419
        %v5812 = vpop.f32.mrb[0].mxu0
        %v5813 = vadd.f32 0.0, %v5812
        %v5814 = vpop.f32.mrb[0].mxu0
        %v5815 = vpop.f32.mrb[0].mxu0
        %v5816 = vadd.f32 0.0, %v5815
        %v5817 = vpop.f32.mrb[0].mxu0
        %5818 = vmatprep.mubr.bf16.mxu0 0
        %5819 = vmatmul.mubr.bf16.gmra.mrb[0].mxu0 %v4420
        %v5820 = vpop.f32.mrb[0].mxu0
        %v5821 = vadd.f32 0.0, %v5820
        %v5822 = vpop.f32.mrb[0].mxu0
        %v5823 = vpop.f32.mrb[0].mxu0
        %v5824 = vadd.f32 0.0, %v5823
        %v5825 = vpop.f32.mrb[0].mxu0
        %5826 = vmatprep.mubr.bf16.mxu0 0
        %5827 = vmatmul.mubr.bf16.gmra.mrb[0].mxu0 %v4421
        %v5828 = vpop.f32.mrb[0].mxu0
        %v5829 = vadd.f32 0.0, %v5828
        %v5830 = vpop.f32.mrb[0].mxu0
        %v5831 = vpop.f32.mrb[0].mxu0
        %v5832 = vadd.f32 0.0, %v5831
        %v5833 = vpop.f32.mrb[0].mxu0
        %5834 = vmatprep.mubr.bf16.mxu0 0
        %5835 = vmatmul.mubr.bf16.gmra.mrb[0].mxu0 %v4422
        %v5836 = vpop.f32.mrb[0].mxu0
        %v5837 = vadd.f32 0.0, %v5836
        %v5838 = vpop.f32.mrb[0].mxu0
        %v5839 = vpop.f32.mrb[0].mxu0
        %v5840 = vadd.f32 0.0, %v5839
        %v5841 = vpop.f32.mrb[0].mxu0
        %5842 = vmatprep.mubr.bf16.mxu0 0
        %5843 = vmatmul.mubr.bf16.gmra.mrb[0].mxu0 %v4423
        %v5844 = vpop.f32.mrb[0].mxu0
        %v5845 = vadd.f32 0.0, %v5844
        %v5846 = vpop.f32.mrb[0].mxu0
        %v5847 = vpop.f32.mrb[0].mxu0
        %v5848 = vadd.f32 0.0, %v5847
        %v5849 = vpop.f32.mrb[0].mxu0
        %5850 = vmatprep.mubr.bf16.mxu0 0
        %5851 = vmatmul.mubr.bf16.gmra.mrb[0].mxu0 %v4424
        %v5852 = vpop.f32.mrb[0].mxu0
        %v5853 = vadd.f32 0.0, %v5852
        %v5854 = vpop.f32.mrb[0].mxu0
        %v5855 = vpop.f32.mrb[0].mxu0
        %v5856 = vadd.f32 0.0, %v5855
        %v5857 = vpop.f32.mrb[0].mxu0
        %5858 = vmatprep.mubr.bf16.mxu0 0
        %5859 = vmatmul.mubr.bf16.gmra.mrb[0].mxu0 %v4425
        %v5860 = vpop.f32.mrb[0].mxu0
        %v5861 = vadd.f32 0.0, %v5860
        %v5862 = vpop.f32.mrb[0].mxu0
        %v5863 = vpop.f32.mrb[0].mxu0
        %v5864 = vadd.f32 0.0, %v5863
        %v5865 = vpop.f32.mrb[0].mxu0
        %5866 = vmatprep.mubr.bf16.mxu0 0
        %5867 = vmatmul.mubr.bf16.gmra.mrb[0].mxu0 %v4426
        %v5868 = vpop.f32.mrb[0].mxu0
        %v5869 = vadd.f32 0.0, %v5868
        %v5870 = vpop.f32.mrb[0].mxu0
        %v5871 = vpop.f32.mrb[0].mxu0
        %v5872 = vadd.f32 0.0, %v5871
        %v5873 = vpop.f32.mrb[0].mxu0
        %5874 = vmatprep.mubr.bf16.mxu0 0
        %5875 = vmatmul.mubr.bf16.gmra.mrb[0].mxu0 %v4427
        %v5876 = vpop.f32.mrb[0].mxu0
        %v5877 = vadd.f32 0.0, %v5876
        %v5878 = vpop.f32.mrb[0].mxu0
        %v5879 = vpop.f32.mrb[0].mxu0
        %v5880 = vadd.f32 0.0, %v5879
        %v5881 = vpop.f32.mrb[0].mxu0
        %5882 = vmatprep.mubr.bf16.mxu0 0
        %5883 = vmatmul.mubr.bf16.gmra.mrb[0].mxu0 %v4428
        %v5884 = vpop.f32.mrb[0].mxu0
        %v5885 = vadd.f32 0.0, %v5884
        %v5886 = vpop.f32.mrb[0].mxu0
        %v5887 = vpop.f32.mrb[0].mxu0
        %v5888 = vadd.f32 0.0, %v5887
        %v5889 = vpop.f32.mrb[0].mxu0
        %5890 = vmatprep.mubr.bf16.mxu0 0
        %5891 = vmatmul.mubr.bf16.gmra.mrb[0].mxu0 %v4429
        %v5892 = vpop.f32.mrb[0].mxu0
        %v5893 = vadd.f32 0.0, %v5892
        %v5894 = vpop.f32.mrb[0].mxu0
        %v5895 = vpop.f32.mrb[0].mxu0
        %v5896 = vadd.f32 0.0, %v5895
        %v5897 = vpop.f32.mrb[0].mxu0
        %5898 = vmatprep.mubr.bf16.mxu0 0
        %5899 = vmatmul.mubr.bf16.gmra.mrb[0].mxu0 %v4430
        %v5900 = vpop.f32.mrb[0].mxu0
        %v5901 = vadd.f32 0.0, %v5900
        %v5902 = vpop.f32.mrb[0].mxu0
        %v5903 = vpop.f32.mrb[0].mxu0
        %v5904 = vadd.f32 0.0, %v5903
        %v5905 = vpop.f32.mrb[0].mxu0
        %5906 = vmatprep.mubr.bf16.mxu0 0
        %5907 = vmatmul.mubr.bf16.gmra.mrb[0].mxu0 %v4431
        %v5908 = vpop.f32.mrb[0].mxu0
        %v5909 = vadd.f32 0.0, %v5908
        %v5910 = vpop.f32.mrb[0].mxu0
        %v5911 = vpop.f32.mrb[0].mxu0
        %v5912 = vadd.f32 0.0, %v5911
        %v5913 = vpop.f32.mrb[0].mxu0
        %5914 = vmatprep.mubr.bf16.mxu0 0
        %5915 = vmatmul.mubr.bf16.gmra.mrb[0].mxu0 %v4432
        %v5916 = vpop.f32.mrb[0].mxu0
        %v5917 = vadd.f32 0.0, %v5916
        %v5918 = vpop.f32.mrb[0].mxu0
        %v5919 = vpop.f32.mrb[0].mxu0
        %v5920 = vadd.f32 0.0, %v5919
        %v5921 = vpop.f32.mrb[0].mxu0
        %5922 = vmatprep.mubr.bf16.mxu0 0
        %5923 = vmatmul.mubr.bf16.gmra.mrb[0].mxu0 %v5720
        %v5924 = vpop.f32.mrb[0].mxu0
        %v5925 = vadd.f32 0.0, %v5924
        %v5926 = vpop.f32.mrb[0].mxu0
        %v5927 = vpop.f32.mrb[0].mxu0
        %v5928 = vadd.f32 0.0, %v5927
        %v5929 = vpop.f32.mrb[0].mxu0
        %5930 = vdwg.mxu0
        %v5931 = vadd.f32 %v5645, %v5805
        %v5932 = vadd.f32 %v5646, %v5808
        %v5933 = vadd.f32 %v5647, %v5813
        %v5934 = vadd.f32 %v5648, %v5816
        %v5935 = vadd.f32 %v5649, %v5821
        %v5936 = vadd.f32 %v5650, %v5824
        %v5937 = vadd.f32 %v5651, %v5829
        %v5938 = vadd.f32 %v5652, %v5832
        %v5939 = vadd.f32 %v5653, %v5837
        %v5940 = vadd.f32 %v5654, %v5840
        %v5941 = vadd.f32 %v5655, %v5845
        %v5942 = vadd.f32 %v5656, %v5848
        %v5943 = vadd.f32 %v5657, %v5853
        %v5944 = vadd.f32 %v5658, %v5856
        %v5945 = vadd.f32 %v5659, %v5861
        %v5946 = vadd.f32 %v5660, %v5864
        %v5947 = vadd.f32 %v5661, %v5869
        %v5948 = vadd.f32 %v5662, %v5872
        %v5949 = vadd.f32 %v5663, %v5877
        %v5950 = vadd.f32 %v5664, %v5880
        %v5951 = vadd.f32 %v5665, %v5885
        %v5952 = vadd.f32 %v5666, %v5888
        %v5953 = vadd.f32 %v5667, %v5893
        %v5954 = vadd.f32 %v5668, %v5896
        %v5955 = vadd.f32 %v5669, %v5901
        %v5956 = vadd.f32 %v5670, %v5904
        %v5957 = vadd.f32 %v5671, %v5909
        %v5958 = vadd.f32 %v5672, %v5912
        %v5959 = vadd.f32 %v5673, %v5917
        %v5960 = vadd.f32 %v5674, %v5920
        %v5961 = vadd.f32 %v5675, %v5925
        %v5962 = vadd.f32 %v5676, %v5928
        %v5964 = vrot.slane %v3962, 5
        %v5965 = vrot.slane %v5964, 4
        %v5966 = vrot.slane %v3963, 5
        %v5967 = vsel %vm1309, %v5965, %v5966
        %v5968 = vrot.slane %v5966, 4
        %v5969 = vrot.slane %v3964, 5
        %v5970 = vsel %vm1309, %v5968, %v5969
        %s5971 = scalar_lea.vmem [#allocation3], 320
        %v5972 = vld [vmem:[%s5971] sm:$0xf]
        %v5973 = vld [vmem:[%s5971 + $0x4] sm:$0xf]
        %v5974 = vld [vmem:[%s5971 + $0x8] sm:$0xf]
        %v5975 = vld [vmem:[%s5971 + $0xc] sm:$0xf]
        %v5976 = vld [vmem:[%s5971 + $0x10] sm:$0xf]
        %v5977 = vld [vmem:[%s5971 + $0x14] sm:$0xf]
        %v5978 = vld [vmem:[%s5971 + $0x18] sm:$0xf]
        %v5979 = vld [vmem:[%s5971 + $0x1c] sm:$0xf]
        %v5980 = vld [vmem:[%s5971 + $0x20] sm:$0xf]
        %v5981 = vld [vmem:[%s5971 + $0x24] sm:$0xf]
        %v5982 = vld [vmem:[%s5971 + $0x28] sm:$0xf]
        %v5983 = vld [vmem:[%s5971 + $0x2c] sm:$0xf]
        %v5984 = vld [vmem:[%s5971 + $0x30] sm:$0xf]
        %v5985 = vld [vmem:[%s5971 + $0x34] sm:$0xf]
        %v5986 = vld [vmem:[%s5971 + $0x38] sm:$0xf]
        %v5987 = vld [vmem:[%s5971 + $0x3c] sm:$0xf]
        %v5988 = vunpack.c.l.b16 %v5967
        %v5989 = vunpack.c.l.b16 %v5970
        %v5990 = vpack.c.b16 %v5989, %v5988
        %v6008 = vunpack.c.l.b16 %v5972
        %v6009 = vunpack.c.l.b16 %v5973
        %v6010 = vunpack.c.l.b16 %v5974
        %v6011 = vunpack.c.l.b16 %v5975
        %v6012 = vunpack.c.l.b16 %v5976
        %v6013 = vunpack.c.l.b16 %v5977
        %v6014 = vunpack.c.l.b16 %v5978
        %v6015 = vunpack.c.l.b16 %v5979
        %v6016 = vunpack.c.l.b16 %v5980
        %v6017 = vunpack.c.l.b16 %v5981
        %v6018 = vunpack.c.l.b16 %v5982
        %v6019 = vunpack.c.l.b16 %v5983
        %v6020 = vunpack.c.l.b16 %v5984
        %v6021 = vunpack.c.l.b16 %v5985
        %v6022 = vunpack.c.l.b16 %v5986
        %v6023 = vunpack.c.l.b16 %v5987
        %v6024 = vpack.c.b16 %v6009, %v6008
        %v6025 = vpack.c.b16 %v6011, %v6010
        %v6026 = vpack.c.b16 %v6013, %v6012
        %v6027 = vpack.c.b16 %v6015, %v6014
        %v6028 = vpack.c.b16 %v6017, %v6016
        %v6029 = vpack.c.b16 %v6019, %v6018
        %v6030 = vpack.c.b16 %v6021, %v6020
        %v6031 = vpack.c.b16 %v6023, %v6022
        %6040 = vmatprep.subr.bf16.mxu0 0
        %6041 = vmatpush1.bf16.msra.mxu0 %v6024
        %6042 = vmatprep.subr.bf16.mxu0 0
        %6043 = vmatpush1.bf16.msra.mxu0 %v6025
        %6044 = vmatprep.subr.bf16.mxu0 0
        %6045 = vmatpush1.bf16.msra.mxu0 %v6026
        %6046 = vmatprep.subr.bf16.mxu0 0
        %6047 = vmatpush1.bf16.msra.mxu0 %v6027
        %6048 = vmatprep.subr.bf16.mxu0 0
        %6049 = vmatpush1.bf16.msra.mxu0 %v6028
        %6050 = vmatprep.subr.bf16.mxu0 0
        %6051 = vmatpush1.bf16.msra.mxu0 %v6029
        %6052 = vmatprep.subr.bf16.mxu0 0
        %6053 = vmatpush1.bf16.msra.mxu0 %v6030
        %6054 = vmatprep.subr.bf16.mxu0 0
        %6055 = vmatpush1.bf16.msra.mxu0 %v6031
        %6056 = vmatprep.subr.bf16.mxu0 0
        %6057 = vmatpush1.bf16.msra.mxu0 0
        %6058 = vmatprep.subr.bf16.mxu0 0
        %6059 = vmatpush1.bf16.msra.mxu0 0
        %6060 = vmatprep.subr.bf16.mxu0 0
        %6061 = vmatpush1.bf16.msra.mxu0 0
        %6062 = vmatprep.subr.bf16.mxu0 0
        %6063 = vmatpush1.bf16.msra.mxu0 0
        %6064 = vmatprep.subr.bf16.mxu0 0
        %6065 = vmatpush1.bf16.msra.mxu0 0
        %6066 = vmatprep.subr.bf16.mxu0 0
        %6067 = vmatpush1.bf16.msra.mxu0 0
        %6068 = vmatprep.subr.bf16.mxu0 0
        %6069 = vmatpush1.bf16.msra.mxu0 0
        %6070 = vmatprep.subr.bf16.mxu0 0
        %6071 = vmatpush1.bf16.msra.mxu0 0
        %6072 = vmatprep.mubr.bf16.mxu0 0
        %6073 = vmatmul.mubr.bf16.gmra.mrb[0].mxu0 %v5141
        %v6074 = vpop.f32.mrb[0].mxu0
        %v6075 = vadd.f32 0.0, %v6074
        %v6076 = vpop.f32.mrb[0].mxu0
        %v6077 = vpop.f32.mrb[0].mxu0
        %v6078 = vadd.f32 0.0, %v6077
        %v6079 = vpop.f32.mrb[0].mxu0
        %6080 = vmatprep.mubr.bf16.mxu0 0
        %6081 = vmatmul.mubr.bf16.gmra.mrb[0].mxu0 %v5142
        %v6082 = vpop.f32.mrb[0].mxu0
        %v6083 = vadd.f32 0.0, %v6082
        %v6084 = vpop.f32.mrb[0].mxu0
        %v6085 = vpop.f32.mrb[0].mxu0
        %v6086 = vadd.f32 0.0, %v6085
        %v6087 = vpop.f32.mrb[0].mxu0
        %6088 = vmatprep.mubr.bf16.mxu0 0
        %6089 = vmatmul.mubr.bf16.gmra.mrb[0].mxu0 %v5143
        %v6090 = vpop.f32.mrb[0].mxu0
        %v6091 = vadd.f32 0.0, %v6090
        %v6092 = vpop.f32.mrb[0].mxu0
        %v6093 = vpop.f32.mrb[0].mxu0
        %v6094 = vadd.f32 0.0, %v6093
        %v6095 = vpop.f32.mrb[0].mxu0
        %6096 = vmatprep.mubr.bf16.mxu0 0
        %6097 = vmatmul.mubr.bf16.gmra.mrb[0].mxu0 %v5144
        %v6098 = vpop.f32.mrb[0].mxu0
        %v6099 = vadd.f32 0.0, %v6098
        %v6100 = vpop.f32.mrb[0].mxu0
        %v6101 = vpop.f32.mrb[0].mxu0
        %v6102 = vadd.f32 0.0, %v6101
        %v6103 = vpop.f32.mrb[0].mxu0
        %6104 = vmatprep.mubr.bf16.mxu0 0
        %6105 = vmatmul.mubr.bf16.gmra.mrb[0].mxu0 %v5145
        %v6106 = vpop.f32.mrb[0].mxu0
        %v6107 = vadd.f32 0.0, %v6106
        %v6108 = vpop.f32.mrb[0].mxu0
        %v6109 = vpop.f32.mrb[0].mxu0
        %v6110 = vadd.f32 0.0, %v6109
        %v6111 = vpop.f32.mrb[0].mxu0
        %6112 = vmatprep.mubr.bf16.mxu0 0
        %6113 = vmatmul.mubr.bf16.gmra.mrb[0].mxu0 %v5146
        %v6114 = vpop.f32.mrb[0].mxu0
        %v6115 = vadd.f32 0.0, %v6114
        %v6116 = vpop.f32.mrb[0].mxu0
        %v6117 = vpop.f32.mrb[0].mxu0
        %v6118 = vadd.f32 0.0, %v6117
        %v6119 = vpop.f32.mrb[0].mxu0
        %6120 = vmatprep.mubr.bf16.mxu0 0
        %6121 = vmatmul.mubr.bf16.gmra.mrb[0].mxu0 %v5147
        %v6122 = vpop.f32.mrb[0].mxu0
        %v6123 = vadd.f32 0.0, %v6122
        %v6124 = vpop.f32.mrb[0].mxu0
        %v6125 = vpop.f32.mrb[0].mxu0
        %v6126 = vadd.f32 0.0, %v6125
        %v6127 = vpop.f32.mrb[0].mxu0
        %6128 = vmatprep.mubr.bf16.mxu0 0
        %6129 = vmatmul.mubr.bf16.gmra.mrb[0].mxu0 %v5148
        %v6130 = vpop.f32.mrb[0].mxu0
        %v6131 = vadd.f32 0.0, %v6130
        %v6132 = vpop.f32.mrb[0].mxu0
        %v6133 = vpop.f32.mrb[0].mxu0
        %v6134 = vadd.f32 0.0, %v6133
        %v6135 = vpop.f32.mrb[0].mxu0
        %6136 = vmatprep.mubr.bf16.mxu0 0
        %6137 = vmatmul.mubr.bf16.gmra.mrb[0].mxu0 %v5149
        %v6138 = vpop.f32.mrb[0].mxu0
        %v6139 = vadd.f32 0.0, %v6138
        %v6140 = vpop.f32.mrb[0].mxu0
        %v6141 = vpop.f32.mrb[0].mxu0
        %v6142 = vadd.f32 0.0, %v6141
        %v6143 = vpop.f32.mrb[0].mxu0
        %6144 = vmatprep.mubr.bf16.mxu0 0
        %6145 = vmatmul.mubr.bf16.gmra.mrb[0].mxu0 %v5150
        %v6146 = vpop.f32.mrb[0].mxu0
        %v6147 = vadd.f32 0.0, %v6146
        %v6148 = vpop.f32.mrb[0].mxu0
        %v6149 = vpop.f32.mrb[0].mxu0
        %v6150 = vadd.f32 0.0, %v6149
        %v6151 = vpop.f32.mrb[0].mxu0
        %6152 = vmatprep.mubr.bf16.mxu0 0
        %6153 = vmatmul.mubr.bf16.gmra.mrb[0].mxu0 %v5151
        %v6154 = vpop.f32.mrb[0].mxu0
        %v6155 = vadd.f32 0.0, %v6154
        %v6156 = vpop.f32.mrb[0].mxu0
        %v6157 = vpop.f32.mrb[0].mxu0
        %v6158 = vadd.f32 0.0, %v6157
        %v6159 = vpop.f32.mrb[0].mxu0
        %6160 = vmatprep.mubr.bf16.mxu0 0
        %6161 = vmatmul.mubr.bf16.gmra.mrb[0].mxu0 %v5152
        %v6162 = vpop.f32.mrb[0].mxu0
        %v6163 = vadd.f32 0.0, %v6162
        %v6164 = vpop.f32.mrb[0].mxu0
        %v6165 = vpop.f32.mrb[0].mxu0
        %v6166 = vadd.f32 0.0, %v6165
        %v6167 = vpop.f32.mrb[0].mxu0
        %6168 = vmatprep.mubr.bf16.mxu0 0
        %6169 = vmatmul.mubr.bf16.gmra.mrb[0].mxu0 %v5153
        %v6170 = vpop.f32.mrb[0].mxu0
        %v6171 = vadd.f32 0.0, %v6170
        %v6172 = vpop.f32.mrb[0].mxu0
        %v6173 = vpop.f32.mrb[0].mxu0
        %v6174 = vadd.f32 0.0, %v6173
        %v6175 = vpop.f32.mrb[0].mxu0
        %6176 = vmatprep.mubr.bf16.mxu0 0
        %6177 = vmatmul.mubr.bf16.gmra.mrb[0].mxu0 %v5154
        %v6178 = vpop.f32.mrb[0].mxu0
        %v6179 = vadd.f32 0.0, %v6178
        %v6180 = vpop.f32.mrb[0].mxu0
        %v6181 = vpop.f32.mrb[0].mxu0
        %v6182 = vadd.f32 0.0, %v6181
        %v6183 = vpop.f32.mrb[0].mxu0
        %6184 = vmatprep.mubr.bf16.mxu0 0
        %6185 = vmatmul.mubr.bf16.gmra.mrb[0].mxu0 %v5155
        %v6186 = vpop.f32.mrb[0].mxu0
        %v6187 = vadd.f32 0.0, %v6186
        %v6188 = vpop.f32.mrb[0].mxu0
        %v6189 = vpop.f32.mrb[0].mxu0
        %v6190 = vadd.f32 0.0, %v6189
        %v6191 = vpop.f32.mrb[0].mxu0
        %6192 = vmatprep.mubr.bf16.mxu0 0
        %6193 = vmatmul.mubr.bf16.gmra.mrb[0].mxu0 %v5990
        %v6194 = vpop.f32.mrb[0].mxu0
        %v6195 = vadd.f32 0.0, %v6194
        %v6196 = vpop.f32.mrb[0].mxu0
        %v6197 = vpop.f32.mrb[0].mxu0
        %v6198 = vadd.f32 0.0, %v6197
        %v6199 = vpop.f32.mrb[0].mxu0
        %6200 = vdwg.mxu0
        %v6201 = vadd.f32 %v5931, %v6075
        %v6202 = vadd.f32 %v5932, %v6078
        %v6203 = vadd.f32 %v5933, %v6083
        %v6204 = vadd.f32 %v5934, %v6086
        %v6205 = vadd.f32 %v5935, %v6091
        %v6206 = vadd.f32 %v5936, %v6094
        %v6207 = vadd.f32 %v5937, %v6099
        %v6208 = vadd.f32 %v5938, %v6102
        %v6209 = vadd.f32 %v5939, %v6107
        %v6210 = vadd.f32 %v5940, %v6110
        %v6211 = vadd.f32 %v5941, %v6115
        %v6212 = vadd.f32 %v5942, %v6118
        %v6213 = vadd.f32 %v5943, %v6123
        %v6214 = vadd.f32 %v5944, %v6126
        %v6215 = vadd.f32 %v5945, %v6131
        %v6216 = vadd.f32 %v5946, %v6134
        %v6217 = vadd.f32 %v5947, %v6139
        %v6218 = vadd.f32 %v5948, %v6142
        %v6219 = vadd.f32 %v5949, %v6147
        %v6220 = vadd.f32 %v5950, %v6150
        %v6221 = vadd.f32 %v5951, %v6155
        %v6222 = vadd.f32 %v5952, %v6158
        %v6223 = vadd.f32 %v5953, %v6163
        %v6224 = vadd.f32 %v5954, %v6166
        %v6225 = vadd.f32 %v5955, %v6171
        %v6226 = vadd.f32 %v5956, %v6174
        %v6227 = vadd.f32 %v5957, %v6179
        %v6228 = vadd.f32 %v5958, %v6182
        %v6229 = vadd.f32 %v5959, %v6187
        %v6230 = vadd.f32 %v5960, %v6190
        %v6231 = vadd.f32 %v5961, %v6195
        %v6232 = vadd.f32 %v5962, %v6198
        %s6233 = scalar_lea.vmem [#allocation3], 384
        %v6234 = vld [vmem:[%s6233] sm:$0xf]
        %v6235 = vld [vmem:[%s6233 + $0x4] sm:$0xf]
        %v6236 = vld [vmem:[%s6233 + $0x8] sm:$0xf]
        %v6237 = vld [vmem:[%s6233 + $0xc] sm:$0xf]
        %v6238 = vld [vmem:[%s6233 + $0x10] sm:$0xf]
        %v6239 = vld [vmem:[%s6233 + $0x14] sm:$0xf]
        %v6240 = vld [vmem:[%s6233 + $0x18] sm:$0xf]
        %v6241 = vld [vmem:[%s6233 + $0x1c] sm:$0xf]
        %v6242 = vld [vmem:[%s6233 + $0x20] sm:$0xf]
        %v6243 = vld [vmem:[%s6233 + $0x24] sm:$0xf]
        %v6244 = vld [vmem:[%s6233 + $0x28] sm:$0xf]
        %v6245 = vld [vmem:[%s6233 + $0x2c] sm:$0xf]
        %v6246 = vld [vmem:[%s6233 + $0x30] sm:$0xf]
        %v6247 = vld [vmem:[%s6233 + $0x34] sm:$0xf]
        %v6248 = vld [vmem:[%s6233 + $0x38] sm:$0xf]
        %v6249 = vld [vmem:[%s6233 + $0x3c] sm:$0xf]
        %v6252 = vunpack.c.l.b16 %v3965
        %v6253 = vunpack.c.l.b16 %v3966
        %v6254 = vpack.c.b16 %v6253, %v6252
        %v6272 = vunpack.c.l.b16 %v6234
        %v6273 = vunpack.c.l.b16 %v6235
        %v6274 = vunpack.c.l.b16 %v6236
        %v6275 = vunpack.c.l.b16 %v6237
        %v6276 = vunpack.c.l.b16 %v6238
        %v6277 = vunpack.c.l.b16 %v6239
        %v6278 = vunpack.c.l.b16 %v6240
        %v6279 = vunpack.c.l.b16 %v6241
        %v6280 = vunpack.c.l.b16 %v6242
        %v6281 = vunpack.c.l.b16 %v6243
        %v6282 = vunpack.c.l.b16 %v6244
        %v6283 = vunpack.c.l.b16 %v6245
        %v6284 = vunpack.c.l.b16 %v6246
        %v6285 = vunpack.c.l.b16 %v6247
        %v6286 = vunpack.c.l.b16 %v6248
        %v6287 = vunpack.c.l.b16 %v6249
        %v6288 = vpack.c.b16 %v6273, %v6272
        %v6289 = vpack.c.b16 %v6275, %v6274
        %v6290 = vpack.c.b16 %v6277, %v6276
        %v6291 = vpack.c.b16 %v6279, %v6278
        %v6292 = vpack.c.b16 %v6281, %v6280
        %v6293 = vpack.c.b16 %v6283, %v6282
        %v6294 = vpack.c.b16 %v6285, %v6284
        %v6295 = vpack.c.b16 %v6287, %v6286
        %6304 = vmatprep.subr.bf16.mxu0 0
        %6305 = vmatpush1.bf16.msra.mxu0 %v6288
        %6306 = vmatprep.subr.bf16.mxu0 0
        %6307 = vmatpush1.bf16.msra.mxu0 %v6289
        %6308 = vmatprep.subr.bf16.mxu0 0
        %6309 = vmatpush1.bf16.msra.mxu0 %v6290
        %6310 = vmatprep.subr.bf16.mxu0 0
        %6311 = vmatpush1.bf16.msra.mxu0 %v6291
        %6312 = vmatprep.subr.bf16.mxu0 0
        %6313 = vmatpush1.bf16.msra.mxu0 %v6292
        %6314 = vmatprep.subr.bf16.mxu0 0
        %6315 = vmatpush1.bf16.msra.mxu0 %v6293
        %6316 = vmatprep.subr.bf16.mxu0 0
        %6317 = vmatpush1.bf16.msra.mxu0 %v6294
        %6318 = vmatprep.subr.bf16.mxu0 0
        %6319 = vmatpush1.bf16.msra.mxu0 %v6295
        %6320 = vmatprep.subr.bf16.mxu0 0
        %6321 = vmatpush1.bf16.msra.mxu0 0
        %6322 = vmatprep.subr.bf16.mxu0 0
        %6323 = vmatpush1.bf16.msra.mxu0 0
        %6324 = vmatprep.subr.bf16.mxu0 0
        %6325 = vmatpush1.bf16.msra.mxu0 0
        %6326 = vmatprep.subr.bf16.mxu0 0
        %6327 = vmatpush1.bf16.msra.mxu0 0
        %6328 = vmatprep.subr.bf16.mxu0 0
        %6329 = vmatpush1.bf16.msra.mxu0 0
        %6330 = vmatprep.subr.bf16.mxu0 0
        %6331 = vmatpush1.bf16.msra.mxu0 0
        %6332 = vmatprep.subr.bf16.mxu0 0
        %6333 = vmatpush1.bf16.msra.mxu0 0
        %6334 = vmatprep.subr.bf16.mxu0 0
        %6335 = vmatpush1.bf16.msra.mxu0 0
        %6336 = vmatprep.mubr.bf16.mxu0 0
        %6337 = vmatmul.mubr.bf16.gmra.mrb[0].mxu0 %v4724
        %v6338 = vpop.f32.mrb[0].mxu0
        %v6339 = vadd.f32 0.0, %v6338
        %v6340 = vpop.f32.mrb[0].mxu0
        %v6341 = vpop.f32.mrb[0].mxu0
        %v6342 = vadd.f32 0.0, %v6341
        %v6343 = vpop.f32.mrb[0].mxu0
        %6344 = vmatprep.mubr.bf16.mxu0 0
        %6345 = vmatmul.mubr.bf16.gmra.mrb[0].mxu0 %v4725
        %v6346 = vpop.f32.mrb[0].mxu0
        %v6347 = vadd.f32 0.0, %v6346
        %v6348 = vpop.f32.mrb[0].mxu0
        %v6349 = vpop.f32.mrb[0].mxu0
        %v6350 = vadd.f32 0.0, %v6349
        %v6351 = vpop.f32.mrb[0].mxu0
        %6352 = vmatprep.mubr.bf16.mxu0 0
        %6353 = vmatmul.mubr.bf16.gmra.mrb[0].mxu0 %v4726
        %v6354 = vpop.f32.mrb[0].mxu0
        %v6355 = vadd.f32 0.0, %v6354
        %v6356 = vpop.f32.mrb[0].mxu0
        %v6357 = vpop.f32.mrb[0].mxu0
        %v6358 = vadd.f32 0.0, %v6357
        %v6359 = vpop.f32.mrb[0].mxu0
        %6360 = vmatprep.mubr.bf16.mxu0 0
        %6361 = vmatmul.mubr.bf16.gmra.mrb[0].mxu0 %v4727
        %v6362 = vpop.f32.mrb[0].mxu0
        %v6363 = vadd.f32 0.0, %v6362
        %v6364 = vpop.f32.mrb[0].mxu0
        %v6365 = vpop.f32.mrb[0].mxu0
        %v6366 = vadd.f32 0.0, %v6365
        %v6367 = vpop.f32.mrb[0].mxu0
        %6368 = vmatprep.mubr.bf16.mxu0 0
        %6369 = vmatmul.mubr.bf16.gmra.mrb[0].mxu0 %v4728
        %v6370 = vpop.f32.mrb[0].mxu0
        %v6371 = vadd.f32 0.0, %v6370
        %v6372 = vpop.f32.mrb[0].mxu0
        %v6373 = vpop.f32.mrb[0].mxu0
        %v6374 = vadd.f32 0.0, %v6373
        %v6375 = vpop.f32.mrb[0].mxu0
        %6376 = vmatprep.mubr.bf16.mxu0 0
        %6377 = vmatmul.mubr.bf16.gmra.mrb[0].mxu0 %v4729
        %v6378 = vpop.f32.mrb[0].mxu0
        %v6379 = vadd.f32 0.0, %v6378
        %v6380 = vpop.f32.mrb[0].mxu0
        %v6381 = vpop.f32.mrb[0].mxu0
        %v6382 = vadd.f32 0.0, %v6381
        %v6383 = vpop.f32.mrb[0].mxu0
        %6384 = vmatprep.mubr.bf16.mxu0 0
        %6385 = vmatmul.mubr.bf16.gmra.mrb[0].mxu0 %v4730
        %v6386 = vpop.f32.mrb[0].mxu0
        %v6387 = vadd.f32 0.0, %v6386
        %v6388 = vpop.f32.mrb[0].mxu0
        %v6389 = vpop.f32.mrb[0].mxu0
        %v6390 = vadd.f32 0.0, %v6389
        %v6391 = vpop.f32.mrb[0].mxu0
        %6392 = vmatprep.mubr.bf16.mxu0 0
        %6393 = vmatmul.mubr.bf16.gmra.mrb[0].mxu0 %v4731
        %v6394 = vpop.f32.mrb[0].mxu0
        %v6395 = vadd.f32 0.0, %v6394
        %v6396 = vpop.f32.mrb[0].mxu0
        %v6397 = vpop.f32.mrb[0].mxu0
        %v6398 = vadd.f32 0.0, %v6397
        %v6399 = vpop.f32.mrb[0].mxu0
        %6400 = vmatprep.mubr.bf16.mxu0 0
        %6401 = vmatmul.mubr.bf16.gmra.mrb[0].mxu0 %v4732
        %v6402 = vpop.f32.mrb[0].mxu0
        %v6403 = vadd.f32 0.0, %v6402
        %v6404 = vpop.f32.mrb[0].mxu0
        %v6405 = vpop.f32.mrb[0].mxu0
        %v6406 = vadd.f32 0.0, %v6405
        %v6407 = vpop.f32.mrb[0].mxu0
        %6408 = vmatprep.mubr.bf16.mxu0 0
        %6409 = vmatmul.mubr.bf16.gmra.mrb[0].mxu0 %v4733
        %v6410 = vpop.f32.mrb[0].mxu0
        %v6411 = vadd.f32 0.0, %v6410
        %v6412 = vpop.f32.mrb[0].mxu0
        %v6413 = vpop.f32.mrb[0].mxu0
        %v6414 = vadd.f32 0.0, %v6413
        %v6415 = vpop.f32.mrb[0].mxu0
        %6416 = vmatprep.mubr.bf16.mxu0 0
        %6417 = vmatmul.mubr.bf16.gmra.mrb[0].mxu0 %v4734
        %v6418 = vpop.f32.mrb[0].mxu0
        %v6419 = vadd.f32 0.0, %v6418
        %v6420 = vpop.f32.mrb[0].mxu0
        %v6421 = vpop.f32.mrb[0].mxu0
        %v6422 = vadd.f32 0.0, %v6421
        %v6423 = vpop.f32.mrb[0].mxu0
        %6424 = vmatprep.mubr.bf16.mxu0 0
        %6425 = vmatmul.mubr.bf16.gmra.mrb[0].mxu0 %v4735
        %v6426 = vpop.f32.mrb[0].mxu0
        %v6427 = vadd.f32 0.0, %v6426
        %v6428 = vpop.f32.mrb[0].mxu0
        %v6429 = vpop.f32.mrb[0].mxu0
        %v6430 = vadd.f32 0.0, %v6429
        %v6431 = vpop.f32.mrb[0].mxu0
        %6432 = vmatprep.mubr.bf16.mxu0 0
        %6433 = vmatmul.mubr.bf16.gmra.mrb[0].mxu0 %v4736
        %v6434 = vpop.f32.mrb[0].mxu0
        %v6435 = vadd.f32 0.0, %v6434
        %v6436 = vpop.f32.mrb[0].mxu0
        %v6437 = vpop.f32.mrb[0].mxu0
        %v6438 = vadd.f32 0.0, %v6437
        %v6439 = vpop.f32.mrb[0].mxu0
        %6440 = vmatprep.mubr.bf16.mxu0 0
        %6441 = vmatmul.mubr.bf16.gmra.mrb[0].mxu0 %v4737
        %v6442 = vpop.f32.mrb[0].mxu0
        %v6443 = vadd.f32 0.0, %v6442
        %v6444 = vpop.f32.mrb[0].mxu0
        %v6445 = vpop.f32.mrb[0].mxu0
        %v6446 = vadd.f32 0.0, %v6445
        %v6447 = vpop.f32.mrb[0].mxu0
        %6448 = vmatprep.mubr.bf16.mxu0 0
        %6449 = vmatmul.mubr.bf16.gmra.mrb[0].mxu0 %v5434
        %v6450 = vpop.f32.mrb[0].mxu0
        %v6451 = vadd.f32 0.0, %v6450
        %v6452 = vpop.f32.mrb[0].mxu0
        %v6453 = vpop.f32.mrb[0].mxu0
        %v6454 = vadd.f32 0.0, %v6453
        %v6455 = vpop.f32.mrb[0].mxu0
        %6456 = vmatprep.mubr.bf16.mxu0 0
        %6457 = vmatmul.mubr.bf16.gmra.mrb[0].mxu0 %v6254
        %v6458 = vpop.f32.mrb[0].mxu0
        %v6459 = vadd.f32 0.0, %v6458
        %v6460 = vpop.f32.mrb[0].mxu0
        %v6461 = vpop.f32.mrb[0].mxu0
        %v6462 = vadd.f32 0.0, %v6461
        %v6463 = vpop.f32.mrb[0].mxu0
        %6464 = vdwg.mxu0
        %v6465 = vadd.f32 %v6201, %v6339
        %v6466 = vadd.f32 %v6202, %v6342
        %v6467 = vadd.f32 %v6203, %v6347
        %v6468 = vadd.f32 %v6204, %v6350
        %v6469 = vadd.f32 %v6205, %v6355
        %v6470 = vadd.f32 %v6206, %v6358
        %v6471 = vadd.f32 %v6207, %v6363
        %v6472 = vadd.f32 %v6208, %v6366
        %v6473 = vadd.f32 %v6209, %v6371
        %v6474 = vadd.f32 %v6210, %v6374
        %v6475 = vadd.f32 %v6211, %v6379
        %v6476 = vadd.f32 %v6212, %v6382
        %v6477 = vadd.f32 %v6213, %v6387
        %v6478 = vadd.f32 %v6214, %v6390
        %v6479 = vadd.f32 %v6215, %v6395
        %v6480 = vadd.f32 %v6216, %v6398
        %v6481 = vadd.f32 %v6217, %v6403
        %v6482 = vadd.f32 %v6218, %v6406
        %v6483 = vadd.f32 %v6219, %v6411
        %v6484 = vadd.f32 %v6220, %v6414
        %v6485 = vadd.f32 %v6221, %v6419
        %v6486 = vadd.f32 %v6222, %v6422
        %v6487 = vadd.f32 %v6223, %v6427
        %v6488 = vadd.f32 %v6224, %v6430
        %v6489 = vadd.f32 %v6225, %v6435
        %v6490 = vadd.f32 %v6226, %v6438
        %v6491 = vadd.f32 %v6227, %v6443
        %v6492 = vadd.f32 %v6228, %v6446
        %v6493 = vadd.f32 %v6229, %v6451
        %v6494 = vadd.f32 %v6230, %v6454
        %v6495 = vadd.f32 %v6231, %v6459
        %v6496 = vadd.f32 %v6232, %v6462
        %v6498 = vshrl.u32 %v3965, 16
        %v6500 = vrot.slane %v6498, 4
        %v6501 = vshll.u32 %v3965, 16
        %v6503 = vrot.slane %v6501, 5
        %v6504 = vor.u32 %v6500, %v6503
        %v6505 = vrot.slane %v6504, 4
        %v6507 = vshll.u32 %v3966, 16
        %v6509 = vrot.slane %v6507, 5
        %v6510 = vsel %vm311, %v6505, %v6509
        %v6511 = vshrl.u32 %v3966, 16
        %v6513 = vrot.slane %v6511, 4
        %v6514 = vor.u32 %v6513, %v6509
        %v6515 = vrot.slane %v6514, 4
        %v6517 = vshll.u32 %v3967, 16
        %v6519 = vrot.slane %v6517, 5
        %v6520 = vsel %vm311, %v6515, %v6519
        %s6521 = scalar_lea.vmem [#allocation3], 448
        %v6522 = vld [vmem:[%s6521] sm:$0xf]
        %v6523 = vld [vmem:[%s6521 + $0x4] sm:$0xf]
        %v6524 = vld [vmem:[%s6521 + $0x8] sm:$0xf]
        %v6525 = vld [vmem:[%s6521 + $0xc] sm:$0xf]
        %v6526 = vld [vmem:[%s6521 + $0x10] sm:$0xf]
        %v6527 = vld [vmem:[%s6521 + $0x14] sm:$0xf]
        %v6528 = vld [vmem:[%s6521 + $0x18] sm:$0xf]
        %v6529 = vld [vmem:[%s6521 + $0x1c] sm:$0xf]
        %v6530 = vld [vmem:[%s6521 + $0x20] sm:$0xf]
        %v6531 = vld [vmem:[%s6521 + $0x24] sm:$0xf]
        %v6532 = vld [vmem:[%s6521 + $0x28] sm:$0xf]
        %v6533 = vld [vmem:[%s6521 + $0x2c] sm:$0xf]
        %v6534 = vld [vmem:[%s6521 + $0x30] sm:$0xf]
        %v6535 = vld [vmem:[%s6521 + $0x34] sm:$0xf]
        %v6536 = vld [vmem:[%s6521 + $0x38] sm:$0xf]
        %v6537 = vld [vmem:[%s6521 + $0x3c] sm:$0xf]
        %v6538 = vunpack.c.l.b16 %v6510
        %v6539 = vunpack.c.l.b16 %v6520
        %v6540 = vpack.c.b16 %v6539, %v6538
        %v6558 = vunpack.c.l.b16 %v6522
        %v6559 = vunpack.c.l.b16 %v6523
        %v6560 = vunpack.c.l.b16 %v6524
        %v6561 = vunpack.c.l.b16 %v6525
        %v6562 = vunpack.c.l.b16 %v6526
        %v6563 = vunpack.c.l.b16 %v6527
        %v6564 = vunpack.c.l.b16 %v6528
        %v6565 = vunpack.c.l.b16 %v6529
        %v6566 = vunpack.c.l.b16 %v6530
        %v6567 = vunpack.c.l.b16 %v6531
        %v6568 = vunpack.c.l.b16 %v6532
        %v6569 = vunpack.c.l.b16 %v6533
        %v6570 = vunpack.c.l.b16 %v6534
        %v6571 = vunpack.c.l.b16 %v6535
        %v6572 = vunpack.c.l.b16 %v6536
        %v6573 = vunpack.c.l.b16 %v6537
        %v6574 = vpack.c.b16 %v6559, %v6558
        %v6575 = vpack.c.b16 %v6561, %v6560
        %v6576 = vpack.c.b16 %v6563, %v6562
        %v6577 = vpack.c.b16 %v6565, %v6564
        %v6578 = vpack.c.b16 %v6567, %v6566
        %v6579 = vpack.c.b16 %v6569, %v6568
        %v6580 = vpack.c.b16 %v6571, %v6570
        %v6581 = vpack.c.b16 %v6573, %v6572
        %6590 = vmatprep.subr.bf16.mxu0 0
        %6591 = vmatpush1.bf16.msra.mxu0 %v6574
        %6592 = vmatprep.subr.bf16.mxu0 0
        %6593 = vmatpush1.bf16.msra.mxu0 %v6575
        %6594 = vmatprep.subr.bf16.mxu0 0
        %6595 = vmatpush1.bf16.msra.mxu0 %v6576
        %6596 = vmatprep.subr.bf16.mxu0 0
        %6597 = vmatpush1.bf16.msra.mxu0 %v6577
        %6598 = vmatprep.subr.bf16.mxu0 0
        %6599 = vmatpush1.bf16.msra.mxu0 %v6578
        %6600 = vmatprep.subr.bf16.mxu0 0
        %6601 = vmatpush1.bf16.msra.mxu0 %v6579
        %6602 = vmatprep.subr.bf16.mxu0 0
        %6603 = vmatpush1.bf16.msra.mxu0 %v6580
        %6604 = vmatprep.subr.bf16.mxu0 0
        %6605 = vmatpush1.bf16.msra.mxu0 %v6581
        %6606 = vmatprep.subr.bf16.mxu0 0
        %6607 = vmatpush1.bf16.msra.mxu0 0
        %6608 = vmatprep.subr.bf16.mxu0 0
        %6609 = vmatpush1.bf16.msra.mxu0 0
        %6610 = vmatprep.subr.bf16.mxu0 0
        %6611 = vmatpush1.bf16.msra.mxu0 0
        %6612 = vmatprep.subr.bf16.mxu0 0
        %6613 = vmatpush1.bf16.msra.mxu0 0
        %6614 = vmatprep.subr.bf16.mxu0 0
        %6615 = vmatpush1.bf16.msra.mxu0 0
        %6616 = vmatprep.subr.bf16.mxu0 0
        %6617 = vmatpush1.bf16.msra.mxu0 0
        %6618 = vmatprep.subr.bf16.mxu0 0
        %6619 = vmatpush1.bf16.msra.mxu0 0
        %6620 = vmatprep.subr.bf16.mxu0 0
        %6621 = vmatpush1.bf16.msra.mxu0 0
        %6622 = vmatprep.mubr.bf16.mxu0 0
        %6623 = vmatmul.mubr.bf16.gmra.mrb[0].mxu0 %v4419
        %v6624 = vpop.f32.mrb[0].mxu0
        %v6625 = vadd.f32 0.0, %v6624
        %v6626 = vpop.f32.mrb[0].mxu0
        %v6627 = vpop.f32.mrb[0].mxu0
        %v6628 = vadd.f32 0.0, %v6627
        %v6629 = vpop.f32.mrb[0].mxu0
        %6630 = vmatprep.mubr.bf16.mxu0 0
        %6631 = vmatmul.mubr.bf16.gmra.mrb[0].mxu0 %v4420
        %v6632 = vpop.f32.mrb[0].mxu0
        %v6633 = vadd.f32 0.0, %v6632
        %v6634 = vpop.f32.mrb[0].mxu0
        %v6635 = vpop.f32.mrb[0].mxu0
        %v6636 = vadd.f32 0.0, %v6635
        %v6637 = vpop.f32.mrb[0].mxu0
        %6638 = vmatprep.mubr.bf16.mxu0 0
        %6639 = vmatmul.mubr.bf16.gmra.mrb[0].mxu0 %v4421
        %v6640 = vpop.f32.mrb[0].mxu0
        %v6641 = vadd.f32 0.0, %v6640
        %v6642 = vpop.f32.mrb[0].mxu0
        %v6643 = vpop.f32.mrb[0].mxu0
        %v6644 = vadd.f32 0.0, %v6643
        %v6645 = vpop.f32.mrb[0].mxu0
        %6646 = vmatprep.mubr.bf16.mxu0 0
        %6647 = vmatmul.mubr.bf16.gmra.mrb[0].mxu0 %v4422
        %v6648 = vpop.f32.mrb[0].mxu0
        %v6649 = vadd.f32 0.0, %v6648
        %v6650 = vpop.f32.mrb[0].mxu0
        %v6651 = vpop.f32.mrb[0].mxu0
        %v6652 = vadd.f32 0.0, %v6651
        %v6653 = vpop.f32.mrb[0].mxu0
        %6654 = vmatprep.mubr.bf16.mxu0 0
        %6655 = vmatmul.mubr.bf16.gmra.mrb[0].mxu0 %v4423
        %v6656 = vpop.f32.mrb[0].mxu0
        %v6657 = vadd.f32 0.0, %v6656
        %v6658 = vpop.f32.mrb[0].mxu0
        %v6659 = vpop.f32.mrb[0].mxu0
        %v6660 = vadd.f32 0.0, %v6659
        %v6661 = vpop.f32.mrb[0].mxu0
        %6662 = vmatprep.mubr.bf16.mxu0 0
        %6663 = vmatmul.mubr.bf16.gmra.mrb[0].mxu0 %v4424
        %v6664 = vpop.f32.mrb[0].mxu0
        %v6665 = vadd.f32 0.0, %v6664
        %v6666 = vpop.f32.mrb[0].mxu0
        %v6667 = vpop.f32.mrb[0].mxu0
        %v6668 = vadd.f32 0.0, %v6667
        %v6669 = vpop.f32.mrb[0].mxu0
        %6670 = vmatprep.mubr.bf16.mxu0 0
        %6671 = vmatmul.mubr.bf16.gmra.mrb[0].mxu0 %v4425
        %v6672 = vpop.f32.mrb[0].mxu0
        %v6673 = vadd.f32 0.0, %v6672
        %v6674 = vpop.f32.mrb[0].mxu0
        %v6675 = vpop.f32.mrb[0].mxu0
        %v6676 = vadd.f32 0.0, %v6675
        %v6677 = vpop.f32.mrb[0].mxu0
        %6678 = vmatprep.mubr.bf16.mxu0 0
        %6679 = vmatmul.mubr.bf16.gmra.mrb[0].mxu0 %v4426
        %v6680 = vpop.f32.mrb[0].mxu0
        %v6681 = vadd.f32 0.0, %v6680
        %v6682 = vpop.f32.mrb[0].mxu0
        %v6683 = vpop.f32.mrb[0].mxu0
        %v6684 = vadd.f32 0.0, %v6683
        %v6685 = vpop.f32.mrb[0].mxu0
        %6686 = vmatprep.mubr.bf16.mxu0 0
        %6687 = vmatmul.mubr.bf16.gmra.mrb[0].mxu0 %v4427
        %v6688 = vpop.f32.mrb[0].mxu0
        %v6689 = vadd.f32 0.0, %v6688
        %v6690 = vpop.f32.mrb[0].mxu0
        %v6691 = vpop.f32.mrb[0].mxu0
        %v6692 = vadd.f32 0.0, %v6691
        %v6693 = vpop.f32.mrb[0].mxu0
        %6694 = vmatprep.mubr.bf16.mxu0 0
        %6695 = vmatmul.mubr.bf16.gmra.mrb[0].mxu0 %v4428
        %v6696 = vpop.f32.mrb[0].mxu0
        %v6697 = vadd.f32 0.0, %v6696
        %v6698 = vpop.f32.mrb[0].mxu0
        %v6699 = vpop.f32.mrb[0].mxu0
        %v6700 = vadd.f32 0.0, %v6699
        %v6701 = vpop.f32.mrb[0].mxu0
        %6702 = vmatprep.mubr.bf16.mxu0 0
        %6703 = vmatmul.mubr.bf16.gmra.mrb[0].mxu0 %v4429
        %v6704 = vpop.f32.mrb[0].mxu0
        %v6705 = vadd.f32 0.0, %v6704
        %v6706 = vpop.f32.mrb[0].mxu0
        %v6707 = vpop.f32.mrb[0].mxu0
        %v6708 = vadd.f32 0.0, %v6707
        %v6709 = vpop.f32.mrb[0].mxu0
        %6710 = vmatprep.mubr.bf16.mxu0 0
        %6711 = vmatmul.mubr.bf16.gmra.mrb[0].mxu0 %v4430
        %v6712 = vpop.f32.mrb[0].mxu0
        %v6713 = vadd.f32 0.0, %v6712
        %v6714 = vpop.f32.mrb[0].mxu0
        %v6715 = vpop.f32.mrb[0].mxu0
        %v6716 = vadd.f32 0.0, %v6715
        %v6717 = vpop.f32.mrb[0].mxu0
        %6718 = vmatprep.mubr.bf16.mxu0 0
        %6719 = vmatmul.mubr.bf16.gmra.mrb[0].mxu0 %v4431
        %v6720 = vpop.f32.mrb[0].mxu0
        %v6721 = vadd.f32 0.0, %v6720
        %v6722 = vpop.f32.mrb[0].mxu0
        %v6723 = vpop.f32.mrb[0].mxu0
        %v6724 = vadd.f32 0.0, %v6723
        %v6725 = vpop.f32.mrb[0].mxu0
        %6726 = vmatprep.mubr.bf16.mxu0 0
        %6727 = vmatmul.mubr.bf16.gmra.mrb[0].mxu0 %v4432
        %v6728 = vpop.f32.mrb[0].mxu0
        %v6729 = vadd.f32 0.0, %v6728
        %v6730 = vpop.f32.mrb[0].mxu0
        %v6731 = vpop.f32.mrb[0].mxu0
        %v6732 = vadd.f32 0.0, %v6731
        %v6733 = vpop.f32.mrb[0].mxu0
        %6734 = vmatprep.mubr.bf16.mxu0 0
        %6735 = vmatmul.mubr.bf16.gmra.mrb[0].mxu0 %v5720
        %v6736 = vpop.f32.mrb[0].mxu0
        %v6737 = vadd.f32 0.0, %v6736
        %v6738 = vpop.f32.mrb[0].mxu0
        %v6739 = vpop.f32.mrb[0].mxu0
        %v6740 = vadd.f32 0.0, %v6739
        %v6741 = vpop.f32.mrb[0].mxu0
        %6742 = vmatprep.mubr.bf16.mxu0 0
        %6743 = vmatmul.mubr.bf16.gmra.mrb[0].mxu0 %v6540
        %v6744 = vpop.f32.mrb[0].mxu0
        %v6745 = vadd.f32 0.0, %v6744
        %v6746 = vpop.f32.mrb[0].mxu0
        %v6747 = vpop.f32.mrb[0].mxu0
        %v6748 = vadd.f32 0.0, %v6747
        %v6749 = vpop.f32.mrb[0].mxu0
        %6750 = vdwg.mxu0
        %v6751 = vadd.f32 %v6465, %v6625
        %v6752 = vadd.f32 %v6466, %v6628
        %v6753 = vadd.f32 %v6467, %v6633
        %v6754 = vadd.f32 %v6468, %v6636
        %v6755 = vadd.f32 %v6469, %v6641
        %v6756 = vadd.f32 %v6470, %v6644
        %v6757 = vadd.f32 %v6471, %v6649
        %v6758 = vadd.f32 %v6472, %v6652
        %v6759 = vadd.f32 %v6473, %v6657
        %v6760 = vadd.f32 %v6474, %v6660
        %v6761 = vadd.f32 %v6475, %v6665
        %v6762 = vadd.f32 %v6476, %v6668
        %v6763 = vadd.f32 %v6477, %v6673
        %v6764 = vadd.f32 %v6478, %v6676
        %v6765 = vadd.f32 %v6479, %v6681
        %v6766 = vadd.f32 %v6480, %v6684
        %v6767 = vadd.f32 %v6481, %v6689
        %v6768 = vadd.f32 %v6482, %v6692
        %v6769 = vadd.f32 %v6483, %v6697
        %v6770 = vadd.f32 %v6484, %v6700
        %v6771 = vadd.f32 %v6485, %v6705
        %v6772 = vadd.f32 %v6486, %v6708
        %v6773 = vadd.f32 %v6487, %v6713
        %v6774 = vadd.f32 %v6488, %v6716
        %v6775 = vadd.f32 %v6489, %v6721
        %v6776 = vadd.f32 %v6490, %v6724
        %v6777 = vadd.f32 %v6491, %v6729
        %v6778 = vadd.f32 %v6492, %v6732
        %v6779 = vadd.f32 %v6493, %v6737
        %v6780 = vadd.f32 %v6494, %v6740
        %v6781 = vadd.f32 %v6495, %v6745
        %v6782 = vadd.f32 %v6496, %v6748
        %v6784 = vrot.slane %v3965, 5
        %v6785 = vrot.slane %v6784, 4
        %v6786 = vrot.slane %v3966, 5
        %v6787 = vsel %vm1309, %v6785, %v6786
        %v6788 = vrot.slane %v6786, 4
        %v6789 = vrot.slane %v3967, 5
        %v6790 = vsel %vm1309, %v6788, %v6789
        %s6791 = scalar_lea.vmem [#allocation3], 512
        %v6792 = vld [vmem:[%s6791] sm:$0xf]
        %v6793 = vld [vmem:[%s6791 + $0x4] sm:$0xf]
        %v6794 = vld [vmem:[%s6791 + $0x8] sm:$0xf]
        %v6795 = vld [vmem:[%s6791 + $0xc] sm:$0xf]
        %v6796 = vld [vmem:[%s6791 + $0x10] sm:$0xf]
        %v6797 = vld [vmem:[%s6791 + $0x14] sm:$0xf]
        %v6798 = vld [vmem:[%s6791 + $0x18] sm:$0xf]
        %v6799 = vld [vmem:[%s6791 + $0x1c] sm:$0xf]
        %v6800 = vld [vmem:[%s6791 + $0x20] sm:$0xf]
        %v6801 = vld [vmem:[%s6791 + $0x24] sm:$0xf]
        %v6802 = vld [vmem:[%s6791 + $0x28] sm:$0xf]
        %v6803 = vld [vmem:[%s6791 + $0x2c] sm:$0xf]
        %v6804 = vld [vmem:[%s6791 + $0x30] sm:$0xf]
        %v6805 = vld [vmem:[%s6791 + $0x34] sm:$0xf]
        %v6806 = vld [vmem:[%s6791 + $0x38] sm:$0xf]
        %v6807 = vld [vmem:[%s6791 + $0x3c] sm:$0xf]
        %v6808 = vunpack.c.l.b16 %v6787
        %v6809 = vunpack.c.l.b16 %v6790
        %v6810 = vpack.c.b16 %v6809, %v6808
        %v6828 = vunpack.c.l.b16 %v6792
        %v6829 = vunpack.c.l.b16 %v6793
        %v6830 = vunpack.c.l.b16 %v6794
        %v6831 = vunpack.c.l.b16 %v6795
        %v6832 = vunpack.c.l.b16 %v6796
        %v6833 = vunpack.c.l.b16 %v6797
        %v6834 = vunpack.c.l.b16 %v6798
        %v6835 = vunpack.c.l.b16 %v6799
        %v6836 = vunpack.c.l.b16 %v6800
        %v6837 = vunpack.c.l.b16 %v6801
        %v6838 = vunpack.c.l.b16 %v6802
        %v6839 = vunpack.c.l.b16 %v6803
        %v6840 = vunpack.c.l.b16 %v6804
        %v6841 = vunpack.c.l.b16 %v6805
        %v6842 = vunpack.c.l.b16 %v6806
        %v6843 = vunpack.c.l.b16 %v6807
        %v6844 = vpack.c.b16 %v6829, %v6828
        %v6845 = vpack.c.b16 %v6831, %v6830
        %v6846 = vpack.c.b16 %v6833, %v6832
        %v6847 = vpack.c.b16 %v6835, %v6834
        %v6848 = vpack.c.b16 %v6837, %v6836
        %v6849 = vpack.c.b16 %v6839, %v6838
        %v6850 = vpack.c.b16 %v6841, %v6840
        %v6851 = vpack.c.b16 %v6843, %v6842
        %6860 = vmatprep.subr.bf16.mxu0 0
        %6861 = vmatpush1.bf16.msra.mxu0 %v6844
        %6862 = vmatprep.subr.bf16.mxu0 0
        %6863 = vmatpush1.bf16.msra.mxu0 %v6845
        %6864 = vmatprep.subr.bf16.mxu0 0
        %6865 = vmatpush1.bf16.msra.mxu0 %v6846
        %6866 = vmatprep.subr.bf16.mxu0 0
        %6867 = vmatpush1.bf16.msra.mxu0 %v6847
        %6868 = vmatprep.subr.bf16.mxu0 0
        %6869 = vmatpush1.bf16.msra.mxu0 %v6848
        %6870 = vmatprep.subr.bf16.mxu0 0
        %6871 = vmatpush1.bf16.msra.mxu0 %v6849
        %6872 = vmatprep.subr.bf16.mxu0 0
        %6873 = vmatpush1.bf16.msra.mxu0 %v6850
        %6874 = vmatprep.subr.bf16.mxu0 0
        %6875 = vmatpush1.bf16.msra.mxu0 %v6851
        %6876 = vmatprep.subr.bf16.mxu0 0
        %6877 = vmatpush1.bf16.msra.mxu0 0
        %6878 = vmatprep.subr.bf16.mxu0 0
        %6879 = vmatpush1.bf16.msra.mxu0 0
        %6880 = vmatprep.subr.bf16.mxu0 0
        %6881 = vmatpush1.bf16.msra.mxu0 0
        %6882 = vmatprep.subr.bf16.mxu0 0
        %6883 = vmatpush1.bf16.msra.mxu0 0
        %6884 = vmatprep.subr.bf16.mxu0 0
        %6885 = vmatpush1.bf16.msra.mxu0 0
        %6886 = vmatprep.subr.bf16.mxu0 0
        %6887 = vmatpush1.bf16.msra.mxu0 0
        %6888 = vmatprep.subr.bf16.mxu0 0
        %6889 = vmatpush1.bf16.msra.mxu0 0
        %6890 = vmatprep.subr.bf16.mxu0 0
        %6891 = vmatpush1.bf16.msra.mxu0 0
        %6892 = vmatprep.mubr.bf16.mxu0 0
        %6893 = vmatmul.mubr.bf16.gmra.mrb[0].mxu0 %v5142
        %v6894 = vpop.f32.mrb[0].mxu0
        %v6895 = vadd.f32 0.0, %v6894
        %v6896 = vpop.f32.mrb[0].mxu0
        %v6897 = vpop.f32.mrb[0].mxu0
        %v6898 = vadd.f32 0.0, %v6897
        %v6899 = vpop.f32.mrb[0].mxu0
        %6900 = vmatprep.mubr.bf16.mxu0 0
        %6901 = vmatmul.mubr.bf16.gmra.mrb[0].mxu0 %v5143
        %v6902 = vpop.f32.mrb[0].mxu0
        %v6903 = vadd.f32 0.0, %v6902
        %v6904 = vpop.f32.mrb[0].mxu0
        %v6905 = vpop.f32.mrb[0].mxu0
        %v6906 = vadd.f32 0.0, %v6905
        %v6907 = vpop.f32.mrb[0].mxu0
        %6908 = vmatprep.mubr.bf16.mxu0 0
        %6909 = vmatmul.mubr.bf16.gmra.mrb[0].mxu0 %v5144
        %v6910 = vpop.f32.mrb[0].mxu0
        %v6911 = vadd.f32 0.0, %v6910
        %v6912 = vpop.f32.mrb[0].mxu0
        %v6913 = vpop.f32.mrb[0].mxu0
        %v6914 = vadd.f32 0.0, %v6913
        %v6915 = vpop.f32.mrb[0].mxu0
        %6916 = vmatprep.mubr.bf16.mxu0 0
        %6917 = vmatmul.mubr.bf16.gmra.mrb[0].mxu0 %v5145
        %v6918 = vpop.f32.mrb[0].mxu0
        %v6919 = vadd.f32 0.0, %v6918
        %v6920 = vpop.f32.mrb[0].mxu0
        %v6921 = vpop.f32.mrb[0].mxu0
        %v6922 = vadd.f32 0.0, %v6921
        %v6923 = vpop.f32.mrb[0].mxu0
        %6924 = vmatprep.mubr.bf16.mxu0 0
        %6925 = vmatmul.mubr.bf16.gmra.mrb[0].mxu0 %v5146
        %v6926 = vpop.f32.mrb[0].mxu0
        %v6927 = vadd.f32 0.0, %v6926
        %v6928 = vpop.f32.mrb[0].mxu0
        %v6929 = vpop.f32.mrb[0].mxu0
        %v6930 = vadd.f32 0.0, %v6929
        %v6931 = vpop.f32.mrb[0].mxu0
        %6932 = vmatprep.mubr.bf16.mxu0 0
        %6933 = vmatmul.mubr.bf16.gmra.mrb[0].mxu0 %v5147
        %v6934 = vpop.f32.mrb[0].mxu0
        %v6935 = vadd.f32 0.0, %v6934
        %v6936 = vpop.f32.mrb[0].mxu0
        %v6937 = vpop.f32.mrb[0].mxu0
        %v6938 = vadd.f32 0.0, %v6937
        %v6939 = vpop.f32.mrb[0].mxu0
        %6940 = vmatprep.mubr.bf16.mxu0 0
        %6941 = vmatmul.mubr.bf16.gmra.mrb[0].mxu0 %v5148
        %v6942 = vpop.f32.mrb[0].mxu0
        %v6943 = vadd.f32 0.0, %v6942
        %v6944 = vpop.f32.mrb[0].mxu0
        %v6945 = vpop.f32.mrb[0].mxu0
        %v6946 = vadd.f32 0.0, %v6945
        %v6947 = vpop.f32.mrb[0].mxu0
        %6948 = vmatprep.mubr.bf16.mxu0 0
        %6949 = vmatmul.mubr.bf16.gmra.mrb[0].mxu0 %v5149
        %v6950 = vpop.f32.mrb[0].mxu0
        %v6951 = vadd.f32 0.0, %v6950
        %v6952 = vpop.f32.mrb[0].mxu0
        %v6953 = vpop.f32.mrb[0].mxu0
        %v6954 = vadd.f32 0.0, %v6953
        %v6955 = vpop.f32.mrb[0].mxu0
        %6956 = vmatprep.mubr.bf16.mxu0 0
        %6957 = vmatmul.mubr.bf16.gmra.mrb[0].mxu0 %v5150
        %v6958 = vpop.f32.mrb[0].mxu0
        %v6959 = vadd.f32 0.0, %v6958
        %v6960 = vpop.f32.mrb[0].mxu0
        %v6961 = vpop.f32.mrb[0].mxu0
        %v6962 = vadd.f32 0.0, %v6961
        %v6963 = vpop.f32.mrb[0].mxu0
        %6964 = vmatprep.mubr.bf16.mxu0 0
        %6965 = vmatmul.mubr.bf16.gmra.mrb[0].mxu0 %v5151
        %v6966 = vpop.f32.mrb[0].mxu0
        %v6967 = vadd.f32 0.0, %v6966
        %v6968 = vpop.f32.mrb[0].mxu0
        %v6969 = vpop.f32.mrb[0].mxu0
        %v6970 = vadd.f32 0.0, %v6969
        %v6971 = vpop.f32.mrb[0].mxu0
        %6972 = vmatprep.mubr.bf16.mxu0 0
        %6973 = vmatmul.mubr.bf16.gmra.mrb[0].mxu0 %v5152
        %v6974 = vpop.f32.mrb[0].mxu0
        %v6975 = vadd.f32 0.0, %v6974
        %v6976 = vpop.f32.mrb[0].mxu0
        %v6977 = vpop.f32.mrb[0].mxu0
        %v6978 = vadd.f32 0.0, %v6977
        %v6979 = vpop.f32.mrb[0].mxu0
        %6980 = vmatprep.mubr.bf16.mxu0 0
        %6981 = vmatmul.mubr.bf16.gmra.mrb[0].mxu0 %v5153
        %v6982 = vpop.f32.mrb[0].mxu0
        %v6983 = vadd.f32 0.0, %v6982
        %v6984 = vpop.f32.mrb[0].mxu0
        %v6985 = vpop.f32.mrb[0].mxu0
        %v6986 = vadd.f32 0.0, %v6985
        %v6987 = vpop.f32.mrb[0].mxu0
        %6988 = vmatprep.mubr.bf16.mxu0 0
        %6989 = vmatmul.mubr.bf16.gmra.mrb[0].mxu0 %v5154
        %v6990 = vpop.f32.mrb[0].mxu0
        %v6991 = vadd.f32 0.0, %v6990
        %v6992 = vpop.f32.mrb[0].mxu0
        %v6993 = vpop.f32.mrb[0].mxu0
        %v6994 = vadd.f32 0.0, %v6993
        %v6995 = vpop.f32.mrb[0].mxu0
        %6996 = vmatprep.mubr.bf16.mxu0 0
        %6997 = vmatmul.mubr.bf16.gmra.mrb[0].mxu0 %v5155
        %v6998 = vpop.f32.mrb[0].mxu0
        %v6999 = vadd.f32 0.0, %v6998
        %v7000 = vpop.f32.mrb[0].mxu0
        %v7001 = vpop.f32.mrb[0].mxu0
        %v7002 = vadd.f32 0.0, %v7001
        %v7003 = vpop.f32.mrb[0].mxu0
        %7004 = vmatprep.mubr.bf16.mxu0 0
        %7005 = vmatmul.mubr.bf16.gmra.mrb[0].mxu0 %v5990
        %v7006 = vpop.f32.mrb[0].mxu0
        %v7007 = vadd.f32 0.0, %v7006
        %v7008 = vpop.f32.mrb[0].mxu0
        %v7009 = vpop.f32.mrb[0].mxu0
        %v7010 = vadd.f32 0.0, %v7009
        %v7011 = vpop.f32.mrb[0].mxu0
        %7012 = vmatprep.mubr.bf16.mxu0 0
        %7013 = vmatmul.mubr.bf16.gmra.mrb[0].mxu0 %v6810
        %v7014 = vpop.f32.mrb[0].mxu0
        %v7015 = vadd.f32 0.0, %v7014
        %v7016 = vpop.f32.mrb[0].mxu0
        %v7017 = vpop.f32.mrb[0].mxu0
        %v7018 = vadd.f32 0.0, %v7017
        %v7019 = vpop.f32.mrb[0].mxu0
        %7020 = vdwg.mxu0
        %v7021 = vadd.f32 %v6751, %v6895
        %v7022 = vadd.f32 %v6752, %v6898
        %v7023 = vadd.f32 %v6753, %v6903
        %v7024 = vadd.f32 %v6754, %v6906
        %v7025 = vadd.f32 %v6755, %v6911
        %v7026 = vadd.f32 %v6756, %v6914
        %v7027 = vadd.f32 %v6757, %v6919
        %v7028 = vadd.f32 %v6758, %v6922
        %v7029 = vadd.f32 %v6759, %v6927
        %v7030 = vadd.f32 %v6760, %v6930
        %v7031 = vadd.f32 %v6761, %v6935
        %v7032 = vadd.f32 %v6762, %v6938
        %v7033 = vadd.f32 %v6763, %v6943
        %v7034 = vadd.f32 %v6764, %v6946
        %v7035 = vadd.f32 %v6765, %v6951
        %v7036 = vadd.f32 %v6766, %v6954
        %v7037 = vadd.f32 %v6767, %v6959
        %v7038 = vadd.f32 %v6768, %v6962
        %v7039 = vadd.f32 %v6769, %v6967
        %v7040 = vadd.f32 %v6770, %v6970
        %v7041 = vadd.f32 %v6771, %v6975
        %v7042 = vadd.f32 %v6772, %v6978
        %v7043 = vadd.f32 %v6773, %v6983
        %v7044 = vadd.f32 %v6774, %v6986
        %v7045 = vadd.f32 %v6775, %v6991
        %v7046 = vadd.f32 %v6776, %v6994
        %v7047 = vadd.f32 %v6777, %v6999
        %v7048 = vadd.f32 %v6778, %v7002
        %v7049 = vadd.f32 %v6779, %v7007
        %v7050 = vadd.f32 %v6780, %v7010
        %v7051 = vadd.f32 %v6781, %v7015
        %v7052 = vadd.f32 %v6782, %v7018
        %v7053 = vunpack.c.l.bf16 %v349
        %v7054 = vunpack.c.l.bf16 %v359
        %v7055 = vunpack.c.l.bf16 %v373
        %v7056 = vunpack.c.l.bf16 %v383
        %v7057 = vunpack.c.l.bf16 %v397
        %v7058 = vunpack.c.l.bf16 %v407
        %v7059 = vunpack.c.l.bf16 %v421
        %v7060 = vunpack.c.l.bf16 %v431
        %v7061 = vunpack.c.l.bf16 %v445
        %v7062 = vunpack.c.l.bf16 %v455
        %v7063 = vunpack.c.l.bf16 %v469
        %v7064 = vunpack.c.l.bf16 %v479
        %v7065 = vunpack.c.l.bf16 %v493
        %v7066 = vunpack.c.l.bf16 %v503
        %v7067 = vunpack.c.l.bf16 %v517
        %v7068 = vunpack.c.l.bf16 %v527
        %v7069 = vunpack.c.l.bf16 %v541
        %v7070 = vunpack.c.l.bf16 %v551
        %v7071 = vunpack.c.l.bf16 %v565
        %v7072 = vunpack.c.l.bf16 %v575
        %v7073 = vunpack.c.l.bf16 %v589
        %v7074 = vunpack.c.l.bf16 %v599
        %v7075 = vunpack.c.l.bf16 %v613
        %v7076 = vunpack.c.l.bf16 %v623
        %v7077 = vunpack.c.l.bf16 %v637
        %v7078 = vunpack.c.l.bf16 %v647
        %v7079 = vunpack.c.l.bf16 %v661
        %v7080 = vunpack.c.l.bf16 %v671
        %v7081 = vunpack.c.l.bf16 %v685
        %v7082 = vunpack.c.l.bf16 %v695
        %v7083 = vunpack.c.l.bf16 %v2021
        %v7084 = vunpack.c.l.bf16 %v2031
        %v7085 = vld [vmem:[%s4] sm:$0x1]
        %v7087 = vlaneseq
        %v7088 = vshrl.u32 %v7087, 7
        %v7089 = vsub.s32 0, %v7088
        %v7090 = vrot.slane %v7085, %v7089
        %v7092 = vadd.f32 %v7021, %v7090
        %v7093 = vadd.f32 %v7022, %v7090
        %v7094 = vadd.f32 %v7023, %v7090
        %v7095 = vadd.f32 %v7024, %v7090
        %v7096 = vadd.f32 %v7025, %v7090
        %v7097 = vadd.f32 %v7026, %v7090
        %v7098 = vadd.f32 %v7027, %v7090
        %v7099 = vadd.f32 %v7028, %v7090
        %v7100 = vadd.f32 %v7029, %v7090
        %v7101 = vadd.f32 %v7030, %v7090
        %v7102 = vadd.f32 %v7031, %v7090
        %v7103 = vadd.f32 %v7032, %v7090
        %v7104 = vadd.f32 %v7033, %v7090
        %v7105 = vadd.f32 %v7034, %v7090
        %v7106 = vadd.f32 %v7035, %v7090
        %v7107 = vadd.f32 %v7036, %v7090
        %v7108 = vadd.f32 %v7037, %v7090
        %v7109 = vadd.f32 %v7038, %v7090
        %v7110 = vadd.f32 %v7039, %v7090
        %v7111 = vadd.f32 %v7040, %v7090
        %v7112 = vadd.f32 %v7041, %v7090
        %v7113 = vadd.f32 %v7042, %v7090
        %v7114 = vadd.f32 %v7043, %v7090
        %v7115 = vadd.f32 %v7044, %v7090
        %v7116 = vadd.f32 %v7045, %v7090
        %v7117 = vadd.f32 %v7046, %v7090
        %v7118 = vadd.f32 %v7047, %v7090
        %v7119 = vadd.f32 %v7048, %v7090
        %v7120 = vadd.f32 %v7049, %v7090
        %v7121 = vadd.f32 %v7050, %v7090
        %v7122 = vadd.f32 %v7051, %v7090
        %v7123 = vadd.f32 %v7052, %v7090
        %v7124 = vadd.f32 %v7092, %v7053
        %v7125 = vadd.f32 %v7093, %v7054
        %v7126 = vadd.f32 %v7094, %v7055
        %v7127 = vadd.f32 %v7095, %v7056
        %v7128 = vadd.f32 %v7096, %v7057
        %v7129 = vadd.f32 %v7097, %v7058
        %v7130 = vadd.f32 %v7098, %v7059
        %v7131 = vadd.f32 %v7099, %v7060
        %v7132 = vadd.f32 %v7100, %v7061
        %v7133 = vadd.f32 %v7101, %v7062
        %v7134 = vadd.f32 %v7102, %v7063
        %v7135 = vadd.f32 %v7103, %v7064
        %v7136 = vadd.f32 %v7104, %v7065
        %v7137 = vadd.f32 %v7105, %v7066
        %v7138 = vadd.f32 %v7106, %v7067
        %v7139 = vadd.f32 %v7107, %v7068
        %v7140 = vadd.f32 %v7108, %v7069
        %v7141 = vadd.f32 %v7109, %v7070
        %v7142 = vadd.f32 %v7110, %v7071
        %v7143 = vadd.f32 %v7111, %v7072
        %v7144 = vadd.f32 %v7112, %v7073
        %v7145 = vadd.f32 %v7113, %v7074
        %v7146 = vadd.f32 %v7114, %v7075
        %v7147 = vadd.f32 %v7115, %v7076
        %v7148 = vadd.f32 %v7116, %v7077
        %v7149 = vadd.f32 %v7117, %v7078
        %v7150 = vadd.f32 %v7118, %v7079
        %v7151 = vadd.f32 %v7119, %v7080
        %v7152 = vadd.f32 %v7120, %v7081
        %v7153 = vadd.f32 %v7121, %v7082
        %v7154 = vadd.f32 %v7122, %v7083
        %v7155 = vadd.f32 %v7123, %v7084
        %v7156 = vmax.f32 %v7124, 0.0
        %v7157 = vmax.f32 %v7125, 0.0
        %v7158 = vmax.f32 %v7126, 0.0
        %v7159 = vmax.f32 %v7127, 0.0
        %v7160 = vmax.f32 %v7128, 0.0
        %v7161 = vmax.f32 %v7129, 0.0
        %v7162 = vmax.f32 %v7130, 0.0
        %v7163 = vmax.f32 %v7131, 0.0
        %v7164 = vmax.f32 %v7132, 0.0
        %v7165 = vmax.f32 %v7133, 0.0
        %v7166 = vmax.f32 %v7134, 0.0
        %v7167 = vmax.f32 %v7135, 0.0
        %v7168 = vmax.f32 %v7136, 0.0
        %v7169 = vmax.f32 %v7137, 0.0
        %v7170 = vmax.f32 %v7138, 0.0
        %v7171 = vmax.f32 %v7139, 0.0
        %v7172 = vmax.f32 %v7140, 0.0
        %v7173 = vmax.f32 %v7141, 0.0
        %v7174 = vmax.f32 %v7142, 0.0
        %v7175 = vmax.f32 %v7143, 0.0
        %v7176 = vmax.f32 %v7144, 0.0
        %v7177 = vmax.f32 %v7145, 0.0
        %v7178 = vmax.f32 %v7146, 0.0
        %v7179 = vmax.f32 %v7147, 0.0
        %v7180 = vmax.f32 %v7148, 0.0
        %v7181 = vmax.f32 %v7149, 0.0
        %v7182 = vmax.f32 %v7150, 0.0
        %v7183 = vmax.f32 %v7151, 0.0
        %v7184 = vmax.f32 %v7152, 0.0
        %v7185 = vmax.f32 %v7153, 0.0
        %v7186 = vmax.f32 %v7154, 0.0
        %v7187 = vmax.f32 %v7155, 0.0
        %7188 = vst [vmem:[%s232] sm:$0xff] %v7156
        %7189 = vst [vmem:[%s232 + $0x8] sm:$0xff] %v7157
        %7190 = vst [vmem:[%s232 + $0x10] sm:$0xff] %v7158
        %7191 = vst [vmem:[%s232 + $0x18] sm:$0xff] %v7159
        %7192 = vst [vmem:[%s232 + $0x20] sm:$0xff] %v7160
        %7193 = vst [vmem:[%s232 + $0x28] sm:$0xff] %v7161
        %7194 = vst [vmem:[%s232 + $0x30] sm:$0xff] %v7162
        %7195 = vst [vmem:[%s232 + $0x38] sm:$0xff] %v7163
        %7196 = vst [vmem:[%s232 + $0x40] sm:$0xff] %v7164
        %7197 = vst [vmem:[%s232 + $0x48] sm:$0xff] %v7165
        %7198 = vst [vmem:[%s232 + $0x50] sm:$0xff] %v7166
        %7199 = vst [vmem:[%s232 + $0x58] sm:$0xff] %v7167
        %7200 = vst [vmem:[%s232 + $0x60] sm:$0xff] %v7168
        %7201 = vst [vmem:[%s232 + $0x68] sm:$0xff] %v7169
        %7202 = vst [vmem:[%s232 + $0x70] sm:$0xff] %v7170
        %7203 = vst [vmem:[%s232 + $0x78] sm:$0xff] %v7171
        %7204 = vst [vmem:[%s232 + $0x80] sm:$0xff] %v7172
        %7205 = vst [vmem:[%s232 + $0x88] sm:$0xff] %v7173
        %7206 = vst [vmem:[%s232 + $0x90] sm:$0xff] %v7174
        %7207 = vst [vmem:[%s232 + $0x98] sm:$0xff] %v7175
        %7208 = vst [vmem:[%s232 + $0xa0] sm:$0xff] %v7176
        %7209 = vst [vmem:[%s232 + $0xa8] sm:$0xff] %v7177
        %7210 = vst [vmem:[%s232 + $0xb0] sm:$0xff] %v7178
        %7211 = vst [vmem:[%s232 + $0xb8] sm:$0xff] %v7179
        %7212 = vst [vmem:[%s232 + $0xc0] sm:$0xff] %v7180
        %7213 = vst [vmem:[%s232 + $0xc8] sm:$0xff] %v7181
        %7214 = vst [vmem:[%s232 + $0xd0] sm:$0xff] %v7182
        %7215 = vst [vmem:[%s232 + $0xd8] sm:$0xff] %v7183
        %7216 = vst [vmem:[%s232 + $0xe0] sm:$0xff] %v7184
        %7217 = vst [vmem:[%s232 + $0xe8] sm:$0xff] %v7185
        %7218 = vst [vmem:[%s232 + $0xf0] sm:$0xff] %v7186
        %7219 = vst [vmem:[%s232 + $0xf8] sm:$0xff] %v7187
        %s7220 = sand.u32 %s138, 1
        %s7221 = scalar_lea.sflag [#allocation5], %s7220
        %s7222 = sand.u32 %s138, 1
        %s7223 = smul.addr %s7222, 256
        %s7224 = scalar_lea.vmem [#allocation6], %s7223
        // Predicated region
        $region45: #{tpu_custom_call.1} parent=39 // pred_check
          %p7225 = pneg %p148
        $region46: #{tpu_custom_call.1} parent=39 // pred_check_branch
          %7227 = sbr.rel (%p7225) target = $region48
        $region47: #{tpu_custom_call.1} parent=39 // pred_region
          %s7229 = ssub.s32 4096, 4096
          %7230 = vsyncadd %s7221, %s7229
          %s7231 = smul.addr %s20, 32
          %s7232 = smul.addr %s7231, 128
          %s7233 = scalar_lea.hbm %s5, %s7232
          %s7234 = sshll.u32 %s7224, 4
          %s7235 = int_to_ptr.vmem [resolvable:$true] %s7234
          %7240 = dma.vmem_to_hbm [thread:$0]  %s7235, 4096, %s7233, %s7221, 128, 128, 8
        $region48: #{tpu_custom_call.1} parent=39 // pred_fallthru
          _
      $region40: #{tpu_custom_call.1} parent=5 // pred_fallthru
        _
      %p7241 = scmp.le.s32.totalorder 2, %s15
      // Predicated region
      $region49: #{tpu_custom_call.1} parent=5 // pred_check
        %p7242 = pneg %p7241
      $region50: #{tpu_custom_call.1} parent=5 // pred_check_branch
        %7244 = sbr.rel (%p7242) target = $region52
      $region51: #{tpu_custom_call.1} parent=5 // pred_region
        %s7245 = ssub.s32 %s15, 2
        // Predicated region
        $region53: #{tpu_custom_call.1} parent=51 // pred_check
          %p7246 = pneg %p154
        $region54: #{tpu_custom_call.1} parent=51 // pred_check_branch
          %7248 = sbr.rel (%p7246) target = $region56
        $region55: #{tpu_custom_call.1} parent=51 // pred_region
          %s7249 = sand.u32 %s139, 1
          %s7250 = scalar_lea.sflag [#allocation5], %s7249
          %s7251 = sand.u32 %s139, 1
          %s7252 = smul.addr %s7251, 256
          %s7253 = scalar_lea.vmem [#allocation6], %s7252
          %7254 = dma.done %s7250, 4096
        $region56: #{tpu_custom_call.1} parent=51 // pred_fallthru
          _
      $region52: #{tpu_custom_call.1} parent=5 // pred_fallthru
        _
    $region6: #{tpu_custom_call.1} parent=1 // loop_footer
      %s19 = sadd.s32 1, %s15
    $region7: #{tpu_custom_call.1} parent=1 // loop_footer_branch
      %14 = sbr.rel target = $region3
    $region8: #{tpu_custom_call.1} parent=1 // loop_exit
      _
    %7255 = vsyncpa [#allocation4], 1
    %s7256 = scalar_lea.sflag [#allocation4], 1
    %7257 = vsyncpa %s7256, 1
    %7258 = vsyncpa [#allocation5], 1
    %s7259 = scalar_lea.sflag [#allocation5], 1
    %7260 = vsyncpa %s7259, 1

</llo_original>
